<compile_context>
chip_gen: v7x
topology: tpu7x:2x2x1
jax: 0.10.0
libtpu: 0.0.40
codegen_flags: <defaults>
</compile_context>

<pallas_src>
import jax
import jax.numpy as jnp
from jax import lax
from jax.experimental import pallas as pl
from jax.experimental.pallas import tpu as pltpu

# Deterministic module hyper-parameters (lane/sublane friendly).
DIM = 256
NUM_HEADS = 2
HEAD_DIM = DIM // NUM_HEADS          # 128 -> per-head slices are lane-aligned
MLP_HIDDEN = DIM * 4                 # mlp_ratio = 4.0
EPS = 1e-5                           # nn.LayerNorm default
SCALE = HEAD_DIM ** (-0.5)           # qk_scale = None -> head_dim**-0.5


def _layernorm(v, g, b):
    # Fused-statistics LN: one pass over the lane axis computes E[x] and E[x^2];
    # var = E[x^2] - E[x]^2 (clamped).  Halves the XLU reduction passes.
    mu = jnp.mean(v, axis=-1, keepdims=True)
    ms = jnp.mean(v * v, axis=-1, keepdims=True)
    var = jnp.maximum(ms - mu * mu, 0.0)
    return (v - mu) * lax.rsqrt(var + EPS) * g + b


def _gelu_tanh(v):
    # TODO(synk): nn.GELU default is exact erf-GELU; the tanh approximation is used
    # since erf is not guaranteed to lower in Mosaic (max abs diff ~1e-3 here).
    c = jnp.float32(0.7978845608028654)  # sqrt(2/pi)
    return 0.5 * v * (1.0 + jnp.tanh(c * (v + 0.044715 * v * v * v)))


def _make_block_kernel(tb, n):
    """Kernel over a (TB*N, C) row-block; TB batch items per grid step."""

    def block_kernel(x_ref, g1_ref, b1_ref, wqkv_ref, wproj_ref, bproj_ref,
                     g2_ref, b2_ref, wfc1_ref, bfc1_ref, wfc2_ref, bfc2_ref, o_ref):
        bf16 = jnp.bfloat16
        x = x_ref[...]                                         # (TB*N, C) f32

        # ---- attention branch: y = proj(MHSA(LN1(x))) ----
        xn = _layernorm(x, g1_ref[...], b1_ref[...])
        qkv = jnp.dot(xn.astype(bf16), wqkv_ref[...],
                      preferred_element_type=jnp.float32)      # (TB*N, 3C) f32

        y_parts = []
        for b in range(tb):                                    # static, small loops
            r0 = b * n
            acc_b = None
            for h in range(NUM_HEADS):
                c0 = h * HEAD_DIM
                qh = qkv[r0:r0 + n, c0:c0 + HEAD_DIM].astype(bf16)
                kh = qkv[r0:r0 + n, DIM + c0:DIM + c0 + HEAD_DIM].astype(bf16)
                vh = qkv[r0:r0 + n, 2 * DIM + c0:2 * DIM + c0 + HEAD_DIM].astype(bf16)
                # scores = qh @ kh^T (contract last dims; no explicit transpose op)
                s = lax.dot_general(qh, kh, (((1,), (1,)), ((), ())),
                                    preferred_element_type=jnp.float32) * SCALE
                s = s - jnp.max(s, axis=-1, keepdims=True)
                p = jnp.exp(s)
                p = p * pl.reciprocal(jnp.sum(p, axis=-1, keepdims=True), approx=True)
                ho = jnp.dot(p.astype(bf16), vh,
                             preferred_element_type=jnp.float32)          # (N, hd)
                # Accumulate this head's contribution straight through its wproj slice
                # (avoids materializing a concatenated (N, C) attention output).
                contrib = jnp.dot(ho.astype(bf16), wproj_ref[c0:c0 + HEAD_DIM, :],
                                  preferred_element_type=jnp.float32)     # (N, C)
                acc_b = contrib if acc_b is None else acc_b + contrib
            y_parts.append(acc_b)
        y = y_parts[0] if tb == 1 else jnp.concatenate(y_parts, axis=0)   # (TB*N, C)
        x1 = x + y + bproj_ref[...]                                       # residual 1

        # ---- MLP branch: out = fc2(GELU(fc1(LN2(x1)))) ----
        xn2 = _layernorm(x1, g2_ref[...], b2_ref[...])
        hid = jnp.dot(xn2.astype(bf16), wfc1_ref[...],
                      preferred_element_type=jnp.float32) + bfc1_ref[...]  # (TB*N, 4C)
        hid = _gelu_tanh(hid)
        out = jnp.dot(hid.astype(bf16), wfc2_ref[...],
                      preferred_element_type=jnp.float32) + bfc2_ref[...]  # (TB*N, C)

        o_ref[...] = (x1 + out).astype(o_ref.dtype)

    return block_kernel


def _pick_tb(B):
    # Batch items per grid step: M = TB*N rows per linear.  TB=4 (M=256) matches the
    # v6e/v7x MXU; TB=2 (M=128) matches v5e and the B=2 example (grid=(1,) -> the
    # resident weights are DMA'd once instead of once per TensorCore).
    for tb in (4, 2, 1):
        if B % tb == 0:
            return tb


def block_forward(x, params):
    B, N, C = x.shape
    assert C == DIM and N % 8 == 0
    (g1, b1, wqkv, wproj, bproj, g2, b2, wfc1, bfc1, wfc2, bfc2) = params
    # bf16 matmul operands (MXU-native on all generations); biases / LN params and the
    # residual path stay f32, accumulation is f32 via preferred_element_type.
    wqkv, wproj, wfc1, wfc2 = (w.astype(jnp.bfloat16) for w in (wqkv, wproj, wfc1, wfc2))
    kparams = (g1, b1, wqkv, wproj, bproj, g2, b2, wfc1, bfc1, wfc2, bfc2)

    TB = _pick_tb(B)
    x2 = x.reshape(B * N, C)                 # lane-dense 2-D view; contiguous (free)

    def weight_spec(a):                      # constant index_map -> VMEM-resident
        return pl.BlockSpec(a.shape, lambda i: (0,) * a.ndim)

    flops = (2 * B * N * DIM * (3 * DIM + DIM + MLP_HIDDEN + MLP_HIDDEN)
             + 4 * B * NUM_HEADS * N * N * HEAD_DIM)
    transcendentals = B * NUM_HEADS * N * N + B * N * MLP_HIDDEN
    bytes_accessed = (2 * x.size * x.dtype.itemsize
                      + sum(int(a.size) * a.dtype.itemsize for a in kparams))

    out2 = pl.pallas_call(
        _make_block_kernel(TB, N),
        out_shape=jax.ShapeDtypeStruct((B * N, C), x.dtype),
        grid=(B // TB,),
        in_specs=[pl.BlockSpec((TB * N, C), lambda i: (i, 0))]
                 + [weight_spec(a) for a in kparams],
        out_specs=pl.BlockSpec((TB * N, C), lambda i: (i, 0)),
        compiler_params=pltpu.CompilerParams(dimension_semantics=("parallel",)),
        cost_estimate=pl.CostEstimate(flops=flops,
                                      transcendentals=transcendentals,
                                      bytes_accessed=bytes_accessed),
    )(x2, *kparams)
    return out2.reshape(B, N, C)


def block_ref(x, params):
    # Pure-JAX f32 reference mirroring the PyTorch Block forward (eval mode).
    (g1, b1, wqkv, wproj, bproj, g2, b2, wfc1, bfc1, wfc2, bfc2) = params
    B, N, C = x.shape
    xn = _layernorm(x, g1, b1)
    qkv = (xn @ wqkv).reshape(B, N, 3, NUM_HEADS, HEAD_DIM).transpose(2, 0, 3, 1, 4)
    q, k, v = qkv[0], qkv[1], qkv[2]                           # (B, H, N, hd)
    attn = (q @ jnp.swapaxes(k, -2, -1)) * SCALE
    attn = jax.nn.softmax(attn, axis=-1)
    y = (attn @ v).transpose(0, 2, 1, 3).reshape(B, N, C)
    y = y @ wproj + bproj
    x = x + y
    xn2 = _layernorm(x, g2, b2)
    h = _gelu_tanh(xn2 @ wfc1 + bfc1)
    return x + (h @ wfc2 + bfc2)


if __name__ == "__main__":
    B, N = 2, 64                                               # small, TPU-layout friendly
    key = jax.random.PRNGKey(0)
    ks = jax.random.split(key, 12)

    x = jax.random.normal(ks[0], (B, N, DIM), jnp.float32)
    g1 = 1.0 + 0.1 * jax.random.normal(ks[1], (1, DIM), jnp.float32)
    b1 = 0.1 * jax.random.normal(ks[2], (1, DIM), jnp.float32)
    wqkv = 0.02 * jax.random.normal(ks[3], (DIM, 3 * DIM), jnp.float32)    # qkv_bias=False
    wproj = 0.02 * jax.random.normal(ks[4], (DIM, DIM), jnp.float32)
    bproj = 0.02 * jax.random.normal(ks[5], (1, DIM), jnp.float32)
    g2 = 1.0 + 0.1 * jax.random.normal(ks[6], (1, DIM), jnp.float32)
    b2 = 0.1 * jax.random.normal(ks[7], (1, DIM), jnp.float32)
    wfc1 = 0.02 * jax.random.normal(ks[8], (DIM, MLP_HIDDEN), jnp.float32)
    bfc1 = 0.02 * jax.random.normal(ks[9], (1, MLP_HIDDEN), jnp.float32)
    wfc2 = 0.02 * jax.random.normal(ks[10], (MLP_HIDDEN, DIM), jnp.float32)
    bfc2 = 0.02 * jax.random.normal(ks[11], (1, DIM), jnp.float32)
    params = (g1, b1, wqkv, wproj, bproj, g2, b2, wfc1, bfc1, wfc2, bfc2)

    y = jax.block_until_ready(block_forward(x, params))
    y_ref = block_ref(x, params)

    assert y.shape == (B, N, DIM) and y.dtype == jnp.float32
    # bf16 matmul inputs add ~1e-3 abs error vs. the f32 reference; tolerance loosened
    # accordingly (feedback correctness note).
    max_err = float(jnp.max(jnp.abs(y - y_ref)))
    assert jnp.allclose(y, y_ref, atol=2e-2, rtol=2e-2), max_err
    print("KERNEL_OK")
</pallas_src>

<mosaic_0001>
module attributes {stable_mosaic.version = 11 : i64} {
  func.func @block_kernel(%arg0: i32, %arg1: memref<128x256xf32, #tpu.memory_space<vmem>>, %arg2: memref<1x256xf32, #tpu.memory_space<vmem>>, %arg3: memref<1x256xf32, #tpu.memory_space<vmem>>, %arg4: memref<256x768xbf16, #tpu.memory_space<vmem>>, %arg5: memref<256x256xbf16, #tpu.memory_space<vmem>>, %arg6: memref<1x256xf32, #tpu.memory_space<vmem>>, %arg7: memref<1x256xf32, #tpu.memory_space<vmem>>, %arg8: memref<1x256xf32, #tpu.memory_space<vmem>>, %arg9: memref<256x1024xbf16, #tpu.memory_space<vmem>>, %arg10: memref<1x1024xf32, #tpu.memory_space<vmem>>, %arg11: memref<1024x256xbf16, #tpu.memory_space<vmem>>, %arg12: memref<1x256xf32, #tpu.memory_space<vmem>>, %arg13: memref<128x256xf32, #tpu.memory_space<vmem>>) attributes {dimension_semantics = [#tpu.dimension_semantics<parallel>], iteration_bounds = array<i64: 1>, scalar_prefetch = 0 : i64, scratch_operands = 0 : i64, tpu.core_type = #tpu.core_type<tc>, window_params = [{transform_indices = @transform_0, window_bounds = array<i64: 128, 256>}, {pipeline_mode = #tpu.pipeline_mode<synchronous>, transform_indices = @transform_1, window_bounds = array<i64: 1, 256>}, {pipeline_mode = #tpu.pipeline_mode<synchronous>, transform_indices = @transform_2, window_bounds = array<i64: 1, 256>}, {pipeline_mode = #tpu.pipeline_mode<synchronous>, transform_indices = @transform_3, window_bounds = array<i64: 256, 768>}, {pipeline_mode = #tpu.pipeline_mode<synchronous>, transform_indices = @transform_4, window_bounds = array<i64: 256, 256>}, {pipeline_mode = #tpu.pipeline_mode<synchronous>, transform_indices = @transform_5, window_bounds = array<i64: 1, 256>}, {pipeline_mode = #tpu.pipeline_mode<synchronous>, transform_indices = @transform_6, window_bounds = array<i64: 1, 256>}, {pipeline_mode = #tpu.pipeline_mode<synchronous>, transform_indices = @transform_7, window_bounds = array<i64: 1, 256>}, {pipeline_mode = #tpu.pipeline_mode<synchronous>, transform_indices = @transform_8, window_bounds = array<i64: 256, 1024>}, {pipeline_mode = #tpu.pipeline_mode<synchronous>, transform_indices = @transform_9, window_bounds = array<i64: 1, 1024>}, {pipeline_mode = #tpu.pipeline_mode<synchronous>, transform_indices = @transform_10, window_bounds = array<i64: 1024, 256>}, {pipeline_mode = #tpu.pipeline_mode<synchronous>, transform_indices = @transform_11, window_bounds = array<i64: 1, 256>}, {transform_indices = @transform_12, window_bounds = array<i64: 128, 256>}]} {
    %c0 = arith.constant 0 : index
    %c0_0 = arith.constant 0 : index
    %0 = vector.load %arg1[%c0, %c0_0] : memref<128x256xf32, #tpu.memory_space<vmem>>, vector<128x256xf32>
    %c0_1 = arith.constant 0 : index
    %c0_2 = arith.constant 0 : index
    %1 = vector.load %arg2[%c0_1, %c0_2] : memref<1x256xf32, #tpu.memory_space<vmem>>, vector<1x256xf32>
    %c0_3 = arith.constant 0 : index
    %c0_4 = arith.constant 0 : index
    %2 = vector.load %arg3[%c0_3, %c0_4] : memref<1x256xf32, #tpu.memory_space<vmem>>, vector<1x256xf32>
    %cst = arith.constant dense<0.000000e+00> : vector<128xf32>
    %3 = vector.multi_reduction <add>, %0, %cst [1] : vector<128x256xf32> to vector<128xf32>
    %4 = vector.shape_cast %3 : vector<128xf32> to vector<128x1xf32>
    %cst_5 = arith.constant 2.560000e+02 : f32
    %5 = vector.broadcast %cst_5 : f32 to vector<128x1xf32>
    %6 = arith.divf %4, %5 : vector<128x1xf32>
    %7 = arith.mulf %0, %0 : vector<128x256xf32>
    %cst_6 = arith.constant dense<0.000000e+00> : vector<128xf32>
    %8 = vector.multi_reduction <add>, %7, %cst_6 [1] : vector<128x256xf32> to vector<128xf32>
    %9 = vector.shape_cast %8 : vector<128xf32> to vector<128x1xf32>
    %cst_7 = arith.constant 2.560000e+02 : f32
    %10 = vector.broadcast %cst_7 : f32 to vector<128x1xf32>
    %11 = arith.divf %9, %10 : vector<128x1xf32>
    %12 = arith.mulf %6, %6 : vector<128x1xf32>
    %13 = arith.subf %11, %12 : vector<128x1xf32>
    %cst_8 = arith.constant 0.000000e+00 : f32
    %14 = vector.broadcast %cst_8 : f32 to vector<128x1xf32>
    %15 = arith.maximumf %13, %14 : vector<128x1xf32>
    %16 = vector.broadcast %6 : vector<128x1xf32> to vector<128x256xf32>
    %17 = arith.subf %0, %16 : vector<128x256xf32>
    %cst_9 = arith.constant 9.99999974E-6 : f32
    %18 = vector.broadcast %cst_9 : f32 to vector<128x1xf32>
    %19 = arith.addf %15, %18 : vector<128x1xf32>
    %20 = math.rsqrt %19 : vector<128x1xf32>
    %21 = vector.broadcast %20 : vector<128x1xf32> to vector<128x256xf32>
    %22 = arith.mulf %17, %21 : vector<128x256xf32>
    %23 = vector.broadcast %1 : vector<1x256xf32> to vector<128x256xf32>
    %24 = arith.mulf %22, %23 : vector<128x256xf32>
    %25 = vector.broadcast %2 : vector<1x256xf32> to vector<128x256xf32>
    %26 = arith.addf %24, %25 : vector<128x256xf32>
    %27 = arith.truncf %26 : vector<128x256xf32> to vector<128x256xbf16>
    %c0_10 = arith.constant 0 : index
    %c0_11 = arith.constant 0 : index
    %28 = vector.load %arg4[%c0_10, %c0_11] : memref<256x768xbf16, #tpu.memory_space<vmem>>, vector<256x768xbf16>
    %cst_12 = arith.constant dense<0.000000e+00> : vector<128x768xf32>
    %29 = tpu.matmul %27, %28, %cst_12 {dimension_numbers = #tpu.dot_dimension_numbers<[1], [0], [0], [1], [0, 0, 1, 1], [], []>} : vector<128x256xbf16>, vector<256x768xbf16>, vector<128x768xf32> -> vector<128x768xf32>
    %30 = vector.extract_strided_slice %29 {offsets = [0, 0], sizes = [64, 128], strides = [1, 1]} : vector<128x768xf32> to vector<64x128xf32>
    %31 = arith.truncf %30 : vector<64x128xf32> to vector<64x128xbf16>
    %32 = vector.extract_strided_slice %29 {offsets = [0, 256], sizes = [64, 128], strides = [1, 1]} : vector<128x768xf32> to vector<64x128xf32>
    %33 = arith.truncf %32 : vector<64x128xf32> to vector<64x128xbf16>
    %34 = vector.extract_strided_slice %29 {offsets = [0, 512], sizes = [64, 128], strides = [1, 1]} : vector<128x768xf32> to vector<64x128xf32>
    %35 = arith.truncf %34 : vector<64x128xf32> to vector<64x128xbf16>
    %cst_13 = arith.constant dense<0.000000e+00> : vector<64x64xf32>
    %36 = tpu.matmul %31, %33, %cst_13 {dimension_numbers = #tpu.dot_dimension_numbers<[1], [1], [0], [0], [0, 0, 1, 0], [], []>} : vector<64x128xbf16>, vector<64x128xbf16>, vector<64x64xf32> -> vector<64x64xf32>
    %cst_14 = arith.constant 0.0883883461 : f32
    %37 = vector.broadcast %cst_14 : f32 to vector<64x64xf32>
    %38 = arith.mulf %36, %37 : vector<64x64xf32>
    %cst_15 = arith.constant dense<0xFF800000> : vector<64xf32>
    %39 = vector.multi_reduction <maximumf>, %38, %cst_15 [1] : vector<64x64xf32> to vector<64xf32>
    %40 = vector.shape_cast %39 : vector<64xf32> to vector<64x1xf32>
    %41 = vector.broadcast %40 : vector<64x1xf32> to vector<64x64xf32>
    %42 = arith.subf %38, %41 : vector<64x64xf32>
    %43 = math.exp %42 : vector<64x64xf32>
    %cst_16 = arith.constant dense<0.000000e+00> : vector<64xf32>
    %44 = vector.multi_reduction <add>, %43, %cst_16 [1] : vector<64x64xf32> to vector<64xf32>
    %45 = vector.shape_cast %44 : vector<64xf32> to vector<64x1xf32>
    %46 = tpu.reciprocal %45 {approx = true} : vector<64x1xf32> -> vector<64x1xf32>
    %47 = vector.broadcast %46 : vector<64x1xf32> to vector<64x64xf32>
    %48 = arith.mulf %43, %47 : vector<64x64xf32>
    %49 = arith.truncf %48 : vector<64x64xf32> to vector<64x64xbf16>
    %cst_17 = arith.constant dense<0.000000e+00> : vector<64x128xf32>
    %50 = tpu.matmul %49, %35, %cst_17 {dimension_numbers = #tpu.dot_dimension_numbers<[1], [0], [0], [1], [0, 0, 1, 1], [], []>} : vector<64x64xbf16>, vector<64x128xbf16>, vector<64x128xf32> -> vector<64x128xf32>
    %51 = arith.truncf %50 : vector<64x128xf32> to vector<64x128xbf16>
    %c0_18 = arith.constant 0 : index
    %c0_19 = arith.constant 0 : index
    %52 = vector.load %arg5[%c0_18, %c0_19] : memref<256x256xbf16, #tpu.memory_space<vmem>>, vector<128x256xbf16>
    %cst_20 = arith.constant dense<0.000000e+00> : vector<64x256xf32>
    %53 = tpu.matmul %51, %52, %cst_20 {dimension_numbers = #tpu.dot_dimension_numbers<[1], [0], [0], [1], [0, 0, 1, 1], [], []>} : vector<64x128xbf16>, vector<128x256xbf16>, vector<64x256xf32> -> vector<64x256xf32>
    %54 = vector.extract_strided_slice %29 {offsets = [0, 128], sizes = [64, 128], strides = [1, 1]} : vector<128x768xf32> to vector<64x128xf32>
    %55 = arith.truncf %54 : vector<64x128xf32> to vector<64x128xbf16>
    %56 = vector.extract_strided_slice %29 {offsets = [0, 384], sizes = [64, 128], strides = [1, 1]} : vector<128x768xf32> to vector<64x128xf32>
    %57 = arith.truncf %56 : vector<64x128xf32> to vector<64x128xbf16>
    %58 = vector.extract_strided_slice %29 {offsets = [0, 640], sizes = [64, 128], strides = [1, 1]} : vector<128x768xf32> to vector<64x128xf32>
    %59 = arith.truncf %58 : vector<64x128xf32> to vector<64x128xbf16>
    %cst_21 = arith.constant dense<0.000000e+00> : vector<64x64xf32>
    %60 = tpu.matmul %55, %57, %cst_21 {dimension_numbers = #tpu.dot_dimension_numbers<[1], [1], [0], [0], [0, 0, 1, 0], [], []>} : vector<64x128xbf16>, vector<64x128xbf16>, vector<64x64xf32> -> vector<64x64xf32>
    %cst_22 = arith.constant 0.0883883461 : f32
    %61 = vector.broadcast %cst_22 : f32 to vector<64x64xf32>
    %62 = arith.mulf %60, %61 : vector<64x64xf32>
    %cst_23 = arith.constant dense<0xFF800000> : vector<64xf32>
    %63 = vector.multi_reduction <maximumf>, %62, %cst_23 [1] : vector<64x64xf32> to vector<64xf32>
    %64 = vector.shape_cast %63 : vector<64xf32> to vector<64x1xf32>
    %65 = vector.broadcast %64 : vector<64x1xf32> to vector<64x64xf32>
    %66 = arith.subf %62, %65 : vector<64x64xf32>
    %67 = math.exp %66 : vector<64x64xf32>
    %cst_24 = arith.constant dense<0.000000e+00> : vector<64xf32>
    %68 = vector.multi_reduction <add>, %67, %cst_24 [1] : vector<64x64xf32> to vector<64xf32>
    %69 = vector.shape_cast %68 : vector<64xf32> to vector<64x1xf32>
    %70 = tpu.reciprocal %69 {approx = true} : vector<64x1xf32> -> vector<64x1xf32>
    %71 = vector.broadcast %70 : vector<64x1xf32> to vector<64x64xf32>
    %72 = arith.mulf %67, %71 : vector<64x64xf32>
    %73 = arith.truncf %72 : vector<64x64xf32> to vector<64x64xbf16>
    %cst_25 = arith.constant dense<0.000000e+00> : vector<64x128xf32>
    %74 = tpu.matmul %73, %59, %cst_25 {dimension_numbers = #tpu.dot_dimension_numbers<[1], [0], [0], [1], [0, 0, 1, 1], [], []>} : vector<64x64xbf16>, vector<64x128xbf16>, vector<64x128xf32> -> vector<64x128xf32>
    %75 = arith.truncf %74 : vector<64x128xf32> to vector<64x128xbf16>
    %c128 = arith.constant 128 : index
    %c0_26 = arith.constant 0 : index
    %76 = vector.load %arg5[%c128, %c0_26] : memref<256x256xbf16, #tpu.memory_space<vmem>>, vector<128x256xbf16>
    %cst_27 = arith.constant dense<0.000000e+00> : vector<64x256xf32>
    %77 = tpu.matmul %75, %76, %cst_27 {dimension_numbers = #tpu.dot_dimension_numbers<[1], [0], [0], [1], [0, 0, 1, 1], [], []>} : vector<64x128xbf16>, vector<128x256xbf16>, vector<64x256xf32> -> vector<64x256xf32>
    %78 = arith.addf %53, %77 : vector<64x256xf32>
    %79 = vector.extract_strided_slice %29 {offsets = [64, 0], sizes = [64, 128], strides = [1, 1]} : vector<128x768xf32> to vector<64x128xf32>
    %80 = arith.truncf %79 : vector<64x128xf32> to vector<64x128xbf16>
    %81 = vector.extract_strided_slice %29 {offsets = [64, 256], sizes = [64, 128], strides = [1, 1]} : vector<128x768xf32> to vector<64x128xf32>
    %82 = arith.truncf %81 : vector<64x128xf32> to vector<64x128xbf16>
    %83 = vector.extract_strided_slice %29 {offsets = [64, 512], sizes = [64, 128], strides = [1, 1]} : vector<128x768xf32> to vector<64x128xf32>
    %84 = arith.truncf %83 : vector<64x128xf32> to vector<64x128xbf16>
    %cst_28 = arith.constant dense<0.000000e+00> : vector<64x64xf32>
    %85 = tpu.matmul %80, %82, %cst_28 {dimension_numbers = #tpu.dot_dimension_numbers<[1], [1], [0], [0], [0, 0, 1, 0], [], []>} : vector<64x128xbf16>, vector<64x128xbf16>, vector<64x64xf32> -> vector<64x64xf32>
    %cst_29 = arith.constant 0.0883883461 : f32
    %86 = vector.broadcast %cst_29 : f32 to vector<64x64xf32>
    %87 = arith.mulf %85, %86 : vector<64x64xf32>
    %cst_30 = arith.constant dense<0xFF800000> : vector<64xf32>
    %88 = vector.multi_reduction <maximumf>, %87, %cst_30 [1] : vector<64x64xf32> to vector<64xf32>
    %89 = vector.shape_cast %88 : vector<64xf32> to vector<64x1xf32>
    %90 = vector.broadcast %89 : vector<64x1xf32> to vector<64x64xf32>
    %91 = arith.subf %87, %90 : vector<64x64xf32>
    %92 = math.exp %91 : vector<64x64xf32>
    %cst_31 = arith.constant dense<0.000000e+00> : vector<64xf32>
    %93 = vector.multi_reduction <add>, %92, %cst_31 [1] : vector<64x64xf32> to vector<64xf32>
    %94 = vector.shape_cast %93 : vector<64xf32> to vector<64x1xf32>
    %95 = tpu.reciprocal %94 {approx = true} : vector<64x1xf32> -> vector<64x1xf32>
    %96 = vector.broadcast %95 : vector<64x1xf32> to vector<64x64xf32>
    %97 = arith.mulf %92, %96 : vector<64x64xf32>
    %98 = arith.truncf %97 : vector<64x64xf32> to vector<64x64xbf16>
    %cst_32 = arith.constant dense<0.000000e+00> : vector<64x128xf32>
    %99 = tpu.matmul %98, %84, %cst_32 {dimension_numbers = #tpu.dot_dimension_numbers<[1], [0], [0], [1], [0, 0, 1, 1], [], []>} : vector<64x64xbf16>, vector<64x128xbf16>, vector<64x128xf32> -> vector<64x128xf32>
    %100 = arith.truncf %99 : vector<64x128xf32> to vector<64x128xbf16>
    %c0_33 = arith.constant 0 : index
    %c0_34 = arith.constant 0 : index
    %101 = vector.load %arg5[%c0_33, %c0_34] : memref<256x256xbf16, #tpu.memory_space<vmem>>, vector<128x256xbf16>
    %cst_35 = arith.constant dense<0.000000e+00> : vector<64x256xf32>
    %102 = tpu.matmul %100, %101, %cst_35 {dimension_numbers = #tpu.dot_dimension_numbers<[1], [0], [0], [1], [0, 0, 1, 1], [], []>} : vector<64x128xbf16>, vector<128x256xbf16>, vector<64x256xf32> -> vector<64x256xf32>
    %103 = vector.extract_strided_slice %29 {offsets = [64, 128], sizes = [64, 128], strides = [1, 1]} : vector<128x768xf32> to vector<64x128xf32>
    %104 = arith.truncf %103 : vector<64x128xf32> to vector<64x128xbf16>
    %105 = vector.extract_strided_slice %29 {offsets = [64, 384], sizes = [64, 128], strides = [1, 1]} : vector<128x768xf32> to vector<64x128xf32>
    %106 = arith.truncf %105 : vector<64x128xf32> to vector<64x128xbf16>
    %107 = vector.extract_strided_slice %29 {offsets = [64, 640], sizes = [64, 128], strides = [1, 1]} : vector<128x768xf32> to vector<64x128xf32>
    %108 = arith.truncf %107 : vector<64x128xf32> to vector<64x128xbf16>
    %cst_36 = arith.constant dense<0.000000e+00> : vector<64x64xf32>
    %109 = tpu.matmul %104, %106, %cst_36 {dimension_numbers = #tpu.dot_dimension_numbers<[1], [1], [0], [0], [0, 0, 1, 0], [], []>} : vector<64x128xbf16>, vector<64x128xbf16>, vector<64x64xf32> -> vector<64x64xf32>
    %cst_37 = arith.constant 0.0883883461 : f32
    %110 = vector.broadcast %cst_37 : f32 to vector<64x64xf32>
    %111 = arith.mulf %109, %110 : vector<64x64xf32>
    %cst_38 = arith.constant dense<0xFF800000> : vector<64xf32>
    %112 = vector.multi_reduction <maximumf>, %111, %cst_38 [1] : vector<64x64xf32> to vector<64xf32>
    %113 = vector.shape_cast %112 : vector<64xf32> to vector<64x1xf32>
    %114 = vector.broadcast %113 : vector<64x1xf32> to vector<64x64xf32>
    %115 = arith.subf %111, %114 : vector<64x64xf32>
    %116 = math.exp %115 : vector<64x64xf32>
    %cst_39 = arith.constant dense<0.000000e+00> : vector<64xf32>
    %117 = vector.multi_reduction <add>, %116, %cst_39 [1] : vector<64x64xf32> to vector<64xf32>
    %118 = vector.shape_cast %117 : vector<64xf32> to vector<64x1xf32>
    %119 = tpu.reciprocal %118 {approx = true} : vector<64x1xf32> -> vector<64x1xf32>
    %120 = vector.broadcast %119 : vector<64x1xf32> to vector<64x64xf32>
    %121 = arith.mulf %116, %120 : vector<64x64xf32>
    %122 = arith.truncf %121 : vector<64x64xf32> to vector<64x64xbf16>
    %cst_40 = arith.constant dense<0.000000e+00> : vector<64x128xf32>
    %123 = tpu.matmul %122, %108, %cst_40 {dimension_numbers = #tpu.dot_dimension_numbers<[1], [0], [0], [1], [0, 0, 1, 1], [], []>} : vector<64x64xbf16>, vector<64x128xbf16>, vector<64x128xf32> -> vector<64x128xf32>
    %124 = arith.truncf %123 : vector<64x128xf32> to vector<64x128xbf16>
    %c128_41 = arith.constant 128 : index
    %c0_42 = arith.constant 0 : index
    %125 = vector.load %arg5[%c128_41, %c0_42] : memref<256x256xbf16, #tpu.memory_space<vmem>>, vector<128x256xbf16>
    %cst_43 = arith.constant dense<0.000000e+00> : vector<64x256xf32>
    %126 = tpu.matmul %124, %125, %cst_43 {dimension_numbers = #tpu.dot_dimension_numbers<[1], [0], [0], [1], [0, 0, 1, 1], [], []>} : vector<64x128xbf16>, vector<128x256xbf16>, vector<64x256xf32> -> vector<64x256xf32>
    %127 = arith.addf %102, %126 : vector<64x256xf32>
    %128 = tpu.concatenate %78, %127 in 0 : vector<64x256xf32>, vector<64x256xf32> -> vector<128x256xf32>
    %129 = arith.addf %0, %128 : vector<128x256xf32>
    %c0_44 = arith.constant 0 : index
    %c0_45 = arith.constant 0 : index
    %130 = vector.load %arg6[%c0_44, %c0_45] : memref<1x256xf32, #tpu.memory_space<vmem>>, vector<1x256xf32>
    %131 = vector.broadcast %130 : vector<1x256xf32> to vector<128x256xf32>
    %132 = arith.addf %129, %131 : vector<128x256xf32>
    %c0_46 = arith.constant 0 : index
    %c0_47 = arith.constant 0 : index
    %133 = vector.load %arg7[%c0_46, %c0_47] : memref<1x256xf32, #tpu.memory_space<vmem>>, vector<1x256xf32>
    %c0_48 = arith.constant 0 : index
    %c0_49 = arith.constant 0 : index
    %134 = vector.load %arg8[%c0_48, %c0_49] : memref<1x256xf32, #tpu.memory_space<vmem>>, vector<1x256xf32>
    %cst_50 = arith.constant dense<0.000000e+00> : vector<128xf32>
    %135 = vector.multi_reduction <add>, %132, %cst_50 [1] : vector<128x256xf32> to vector<128xf32>
    %136 = vector.shape_cast %135 : vector<128xf32> to vector<128x1xf32>
    %cst_51 = arith.constant 2.560000e+02 : f32
    %137 = vector.broadcast %cst_51 : f32 to vector<128x1xf32>
    %138 = arith.divf %136, %137 : vector<128x1xf32>
    %139 = arith.mulf %132, %132 : vector<128x256xf32>
    %cst_52 = arith.constant dense<0.000000e+00> : vector<128xf32>
    %140 = vector.multi_reduction <add>, %139, %cst_52 [1] : vector<128x256xf32> to vector<128xf32>
    %141 = vector.shape_cast %140 : vector<128xf32> to vector<128x1xf32>
    %cst_53 = arith.constant 2.560000e+02 : f32
    %142 = vector.broadcast %cst_53 : f32 to vector<128x1xf32>
    %143 = arith.divf %141, %142 : vector<128x1xf32>
    %144 = arith.mulf %138, %138 : vector<128x1xf32>
    %145 = arith.subf %143, %144 : vector<128x1xf32>
    %cst_54 = arith.constant 0.000000e+00 : f32
    %146 = vector.broadcast %cst_54 : f32 to vector<128x1xf32>
    %147 = arith.maximumf %145, %146 : vector<128x1xf32>
    %148 = vector.broadcast %138 : vector<128x1xf32> to vector<128x256xf32>
    %149 = arith.subf %132, %148 : vector<128x256xf32>
    %cst_55 = arith.constant 9.99999974E-6 : f32
    %150 = vector.broadcast %cst_55 : f32 to vector<128x1xf32>
    %151 = arith.addf %147, %150 : vector<128x1xf32>
    %152 = math.rsqrt %151 : vector<128x1xf32>
    %153 = vector.broadcast %152 : vector<128x1xf32> to vector<128x256xf32>
    %154 = arith.mulf %149, %153 : vector<128x256xf32>
    %155 = vector.broadcast %133 : vector<1x256xf32> to vector<128x256xf32>
    %156 = arith.mulf %154, %155 : vector<128x256xf32>
    %157 = vector.broadcast %134 : vector<1x256xf32> to vector<128x256xf32>
    %158 = arith.addf %156, %157 : vector<128x256xf32>
    %159 = arith.truncf %158 : vector<128x256xf32> to vector<128x256xbf16>
    %c0_56 = arith.constant 0 : index
    %c0_57 = arith.constant 0 : index
    %160 = vector.load %arg9[%c0_56, %c0_57] : memref<256x1024xbf16, #tpu.memory_space<vmem>>, vector<256x1024xbf16>
    %cst_58 = arith.constant dense<0.000000e+00> : vector<128x1024xf32>
    %161 = tpu.matmul %159, %160, %cst_58 {dimension_numbers = #tpu.dot_dimension_numbers<[1], [0], [0], [1], [0, 0, 1, 1], [], []>} : vector<128x256xbf16>, vector<256x1024xbf16>, vector<128x1024xf32> -> vector<128x1024xf32>
    %c0_59 = arith.constant 0 : index
    %c0_60 = arith.constant 0 : index
    %162 = vector.load %arg10[%c0_59, %c0_60] : memref<1x1024xf32, #tpu.memory_space<vmem>>, vector<1x1024xf32>
    %163 = vector.broadcast %162 : vector<1x1024xf32> to vector<128x1024xf32>
    %164 = arith.addf %161, %163 : vector<128x1024xf32>
    %cst_61 = arith.constant 5.000000e-01 : f32
    %165 = vector.broadcast %cst_61 : f32 to vector<128x1024xf32>
    %166 = arith.mulf %165, %164 : vector<128x1024xf32>
    %cst_62 = arith.constant 4.471500e-02 : f32
    %167 = vector.broadcast %cst_62 : f32 to vector<128x1024xf32>
    %168 = arith.mulf %167, %164 : vector<128x1024xf32>
    %169 = arith.mulf %168, %164 : vector<128x1024xf32>
    %170 = arith.mulf %169, %164 : vector<128x1024xf32>
    %171 = arith.addf %164, %170 : vector<128x1024xf32>
    %cst_63 = arith.constant 0.797884583 : f32
    %172 = vector.broadcast %cst_63 : f32 to vector<128x1024xf32>
    %173 = arith.mulf %172, %171 : vector<128x1024xf32>
    %174 = math.tanh %173 : vector<128x1024xf32>
    %cst_64 = arith.constant 1.000000e+00 : f32
    %175 = vector.broadcast %cst_64 : f32 to vector<128x1024xf32>
    %176 = arith.addf %175, %174 : vector<128x1024xf32>
    %177 = arith.mulf %166, %176 : vector<128x1024xf32>
    %178 = arith.truncf %177 : vector<128x1024xf32> to vector<128x1024xbf16>
    %c0_65 = arith.constant 0 : index
    %c0_66 = arith.constant 0 : index
    %179 = vector.load %arg11[%c0_65, %c0_66] : memref<1024x256xbf16, #tpu.memory_space<vmem>>, vector<1024x256xbf16>
    %cst_67 = arith.constant dense<0.000000e+00> : vector<128x256xf32>
    %180 = tpu.matmul %178, %179, %cst_67 {dimension_numbers = #tpu.dot_dimension_numbers<[1], [0], [0], [1], [0, 0, 1, 1], [], []>} : vector<128x1024xbf16>, vector<1024x256xbf16>, vector<128x256xf32> -> vector<128x256xf32>
    %c0_68 = arith.constant 0 : index
    %c0_69 = arith.constant 0 : index
    %181 = vector.load %arg12[%c0_68, %c0_69] : memref<1x256xf32, #tpu.memory_space<vmem>>, vector<1x256xf32>
    %182 = vector.broadcast %181 : vector<1x256xf32> to vector<128x256xf32>
    %183 = arith.addf %180, %182 : vector<128x256xf32>
    %184 = arith.addf %132, %183 : vector<128x256xf32>
    %c0_70 = arith.constant 0 : index
    %c0_71 = arith.constant 0 : index
    %185 = vector.load %arg13[%c0_70, %c0_71] : memref<128x256xf32, #tpu.memory_space<vmem>>, vector<128x256xf32>
    tpu.vector_store %arg13[%c0_70, %c0_71], %184 {strides = array<i32>} : memref<128x256xf32, #tpu.memory_space<vmem>>, vector<128x256xf32>,
    return
  }
  func.func @transform_0(%arg0: i32) -> (i32, i32) {
    %c0_i32 = arith.constant 0 : i32
    %c0_i32_0 = arith.constant 0 : i32
    return %arg0, %c0_i32 : i32, i32
  }
  func.func @transform_1(%arg0: i32) -> (i32, i32) {
    %c0_i32 = arith.constant 0 : i32
    %c0_i32_0 = arith.constant 0 : i32
    %c0_i32_1 = arith.constant 0 : i32
    return %c0_i32, %c0_i32_0 : i32, i32
  }
  func.func @transform_2(%arg0: i32) -> (i32, i32) {
    %c0_i32 = arith.constant 0 : i32
    %c0_i32_0 = arith.constant 0 : i32
    %c0_i32_1 = arith.constant 0 : i32
    return %c0_i32, %c0_i32_0 : i32, i32
  }
  func.func @transform_3(%arg0: i32) -> (i32, i32) {
    %c0_i32 = arith.constant 0 : i32
    %c0_i32_0 = arith.constant 0 : i32
    %c0_i32_1 = arith.constant 0 : i32
    return %c0_i32, %c0_i32_0 : i32, i32
  }
  func.func @transform_4(%arg0: i32) -> (i32, i32) {
    %c0_i32 = arith.constant 0 : i32
    %c0_i32_0 = arith.constant 0 : i32
    %c0_i32_1 = arith.constant 0 : i32
    return %c0_i32, %c0_i32_0 : i32, i32
  }
  func.func @transform_5(%arg0: i32) -> (i32, i32) {
    %c0_i32 = arith.constant 0 : i32
    %c0_i32_0 = arith.constant 0 : i32
    %c0_i32_1 = arith.constant 0 : i32
    return %c0_i32, %c0_i32_0 : i32, i32
  }
  func.func @transform_6(%arg0: i32) -> (i32, i32) {
    %c0_i32 = arith.constant 0 : i32
    %c0_i32_0 = arith.constant 0 : i32
    %c0_i32_1 = arith.constant 0 : i32
    return %c0_i32, %c0_i32_0 : i32, i32
  }
  func.func @transform_7(%arg0: i32) -> (i32, i32) {
    %c0_i32 = arith.constant 0 : i32
    %c0_i32_0 = arith.constant 0 : i32
    %c0_i32_1 = arith.constant 0 : i32
    return %c0_i32, %c0_i32_0 : i32, i32
  }
  func.func @transform_8(%arg0: i32) -> (i32, i32) {
    %c0_i32 = arith.constant 0 : i32
    %c0_i32_0 = arith.constant 0 : i32
    %c0_i32_1 = arith.constant 0 : i32
    return %c0_i32, %c0_i32_0 : i32, i32
  }
  func.func @transform_9(%arg0: i32) -> (i32, i32) {
    %c0_i32 = arith.constant 0 : i32
    %c0_i32_0 = arith.constant 0 : i32
    %c0_i32_1 = arith.constant 0 : i32
    return %c0_i32, %c0_i32_0 : i32, i32
  }
  func.func @transform_10(%arg0: i32) -> (i32, i32) {
    %c0_i32 = arith.constant 0 : i32
    %c0_i32_0 = arith.constant 0 : i32
    %c0_i32_1 = arith.constant 0 : i32
    return %c0_i32, %c0_i32_0 : i32, i32
  }
  func.func @transform_11(%arg0: i32) -> (i32, i32) {
    %c0_i32 = arith.constant 0 : i32
    %c0_i32_0 = arith.constant 0 : i32
    %c0_i32_1 = arith.constant 0 : i32
    return %c0_i32, %c0_i32_0 : i32, i32
  }
  func.func @transform_12(%arg0: i32) -> (i32, i32) {
    %c0_i32 = arith.constant 0 : i32
    %c0_i32_0 = arith.constant 0 : i32
    return %arg0, %c0_i32 : i32, i32
  }
}

</mosaic_0001>

<llo_original>
// kernel: tpu_custom_call.1
$region0: #{tpu_custom_call.1}
  #allocation0 [shape = 'u32[]', space=smem, size = 0x4, offset = 0x4, fixed_abs, tag = 'smem constant byte address 0x4 - core index']
  #allocation1 [shape = 'u32[144,128]{1,0:T(1,128)}', space=vmem, size = 0x12000, scoped, tag = 'internal scratch']
  %s0 = inlined_call_operand.hbm [shape: f32[128,256], index: 0, kind: input, shape index: {}]
  %s1 = inlined_call_operand.vmem [shape: f32[1,256], index: 1, kind: input, shape index: {}]
  %s2 = inlined_call_operand.vmem [shape: f32[1,256], index: 2, kind: input, shape index: {}]
  %s3 = inlined_call_operand.hbm [shape: bf16[256,768], index: 3, kind: input, shape index: {}]
  %s4 = inlined_call_operand.hbm [shape: bf16[256,256], index: 4, kind: input, shape index: {}]
  %s5 = inlined_call_operand.vmem [shape: f32[1,256], index: 5, kind: input, shape index: {}]
  %s6 = inlined_call_operand.vmem [shape: f32[1,256], index: 6, kind: input, shape index: {}]
  %s7 = inlined_call_operand.vmem [shape: f32[1,256], index: 7, kind: input, shape index: {}]
  %s8 = inlined_call_operand.hbm [shape: bf16[256,1024], index: 8, kind: input, shape index: {}]
  %s9 = inlined_call_operand.vmem [shape: f32[1,1024], index: 9, kind: input, shape index: {}]
  %s10 = inlined_call_operand.hbm [shape: bf16[1024,256], index: 10, kind: input, shape index: {}]
  %s11 = inlined_call_operand.vmem [shape: f32[1,256], index: 11, kind: input, shape index: {}]
  %s12 = inlined_call_operand.hbm [shape: f32[128,256], index: 12, kind: output, shape index: {}]
  %s13 = sld [smem:[#allocation0]]
  $region78: #{tpu_custom_call.1} parent=0
    _
  %s15 = ssub.s32 1, %s13
  %s16 = scalar_select 0, %s15, %s13
  $region1: #{tpu_custom_call.1} parent=0
    #allocation2 [shape = 'u8[131072]{0}', space=vmem, size = 0x20000, scoped, tag = 'input window, operand 0, single buffered']
    #allocation3 [shape = 's32[1]{0}', space=sflag, size = 0x4, scoped, tag = 'scoped memory for tpu_custom_call.1']
    #allocation4 [shape = 's32[1]{0}', space=sflag, size = 0x4, scoped, tag = 'scoped memory for tpu_custom_call.1']
    #allocation5 [shape = 'u8[393216]{0}', space=vmem, size = 0x60000, scoped, tag = 'input window, operand 3, single buffered']
    #allocation6 [shape = 's32[1]{0}', space=sflag, size = 0x4, scoped, tag = 'scoped memory for tpu_custom_call.1']
    #allocation7 [shape = 'u8[131072]{0}', space=vmem, size = 0x20000, scoped, tag = 'input window, operand 4, single buffered']
    #allocation8 [shape = 'u8[524288]{0}', space=vmem, size = 0x80000, scoped, tag = 'input window, operand 8, single buffered']
    #allocation9 [shape = 's32[1]{0}', space=sflag, size = 0x4, scoped, tag = 'scoped memory for tpu_custom_call.1']
    #allocation10 [shape = 'u8[524288]{0}', space=vmem, size = 0x80000, scoped, tag = 'input window, operand 10, single buffered']
    #allocation11 [shape = 'u8[131072]{0}', space=vmem, size = 0x20000, scoped, tag = 'output window, operand 0, single buffered']
    %17 = vsyncpa [#allocation3], 0
    %18 = vsyncpa [#allocation6], 0
    %19 = vsyncpa [#allocation9], 0
    %20 = vsyncpa [#allocation4], 0
    // Predicated region
    $region2: #{tpu_custom_call.1} parent=1 // pred_check
      _
    $region3: #{tpu_custom_call.1} parent=1 // pred_check_branch
      %22 = sbr.rel (0) target = $region5
    $region4: #{tpu_custom_call.1} parent=1 // pred_region
      %s24 = ssub.s32 4096, 4096
      %25 = vsyncadd [#allocation3], %s24
      %s26 = sshll.u32 [#allocation2], 4
      %s27 = int_to_ptr.vmem [resolvable:$true] %s26
      %32 = dma.hbm_to_vmem [thread:$0]  %s0, 4096, %s27, [#allocation3], 256, 256, 16
    $region5: #{tpu_custom_call.1} parent=1 // pred_fallthru
      _
    // Predicated region
    $region6: #{tpu_custom_call.1} parent=1 // pred_check
      _
    $region7: #{tpu_custom_call.1} parent=1 // pred_check_branch
      %34 = sbr.rel (0) target = $region9
    $region8: #{tpu_custom_call.1} parent=1 // pred_region
      _
    $region9: #{tpu_custom_call.1} parent=1 // pred_fallthru
      _
    // Predicated region
    $region10: #{tpu_custom_call.1} parent=1 // pred_check
      _
    $region11: #{tpu_custom_call.1} parent=1 // pred_check_branch
      %36 = sbr.rel (0) target = $region13
    $region12: #{tpu_custom_call.1} parent=1 // pred_region
      _
    $region13: #{tpu_custom_call.1} parent=1 // pred_fallthru
      _
    // Predicated region
    $region14: #{tpu_custom_call.1} parent=1 // pred_check
      _
    $region15: #{tpu_custom_call.1} parent=1 // pred_check_branch
      %38 = sbr.rel (0) target = $region17
    $region16: #{tpu_custom_call.1} parent=1 // pred_region
      %s40 = ssub.s32 12288, 12288
      %41 = vsyncadd [#allocation6], %s40
      %s42 = sshll.u32 [#allocation5], 4
      %s43 = int_to_ptr.vmem [resolvable:$true] %s42
      %48 = dma.hbm_to_vmem [thread:$0]  %s3, 12288, %s43, [#allocation6], 384, 384, 24
    $region17: #{tpu_custom_call.1} parent=1 // pred_fallthru
      _
    // Predicated region
    $region18: #{tpu_custom_call.1} parent=1 // pred_check
      _
    $region19: #{tpu_custom_call.1} parent=1 // pred_check_branch
      %50 = sbr.rel (0) target = $region21
    $region20: #{tpu_custom_call.1} parent=1 // pred_region
      %s52 = ssub.s32 4096, 4096
      %53 = vsyncadd [#allocation6], %s52
      %s54 = sshll.u32 [#allocation7], 4
      %s55 = int_to_ptr.vmem [resolvable:$true] %s54
      %60 = dma.hbm_to_vmem [thread:$0]  %s4, 4096, %s55, [#allocation6], 128, 128, 8
    $region21: #{tpu_custom_call.1} parent=1 // pred_fallthru
      _
    // Predicated region
    $region22: #{tpu_custom_call.1} parent=1 // pred_check
      _
    $region23: #{tpu_custom_call.1} parent=1 // pred_check_branch
      %62 = sbr.rel (0) target = $region25
    $region24: #{tpu_custom_call.1} parent=1 // pred_region
      _
    $region25: #{tpu_custom_call.1} parent=1 // pred_fallthru
      _
    // Predicated region
    $region26: #{tpu_custom_call.1} parent=1 // pred_check
      _
    $region27: #{tpu_custom_call.1} parent=1 // pred_check_branch
      %64 = sbr.rel (0) target = $region29
    $region28: #{tpu_custom_call.1} parent=1 // pred_region
      _
    $region29: #{tpu_custom_call.1} parent=1 // pred_fallthru
      _
    // Predicated region
    $region30: #{tpu_custom_call.1} parent=1 // pred_check
      _
    $region31: #{tpu_custom_call.1} parent=1 // pred_check_branch
      %66 = sbr.rel (0) target = $region33
    $region32: #{tpu_custom_call.1} parent=1 // pred_region
      _
    $region33: #{tpu_custom_call.1} parent=1 // pred_fallthru
      _
    // Predicated region
    $region34: #{tpu_custom_call.1} parent=1 // pred_check
      _
    $region35: #{tpu_custom_call.1} parent=1 // pred_check_branch
      %68 = sbr.rel (0) target = $region37
    $region36: #{tpu_custom_call.1} parent=1 // pred_region
      %s70 = ssub.s32 16384, 16384
      %71 = vsyncadd [#allocation9], %s70
      %s72 = sshll.u32 [#allocation8], 4
      %s73 = int_to_ptr.vmem [resolvable:$true] %s72
      %78 = dma.hbm_to_vmem [thread:$0]  %s8, 16384, %s73, [#allocation9], 512, 512, 32
    $region37: #{tpu_custom_call.1} parent=1 // pred_fallthru
      _
    // Predicated region
    $region38: #{tpu_custom_call.1} parent=1 // pred_check
      _
    $region39: #{tpu_custom_call.1} parent=1 // pred_check_branch
      %80 = sbr.rel (0) target = $region41
    $region40: #{tpu_custom_call.1} parent=1 // pred_region
      _
    $region41: #{tpu_custom_call.1} parent=1 // pred_fallthru
      _
    // Predicated region
    $region42: #{tpu_custom_call.1} parent=1 // pred_check
      _
    $region43: #{tpu_custom_call.1} parent=1 // pred_check_branch
      %82 = sbr.rel (0) target = $region45
    $region44: #{tpu_custom_call.1} parent=1 // pred_region
      %s84 = ssub.s32 16384, 16384
      %85 = vsyncadd [#allocation9], %s84
      %s86 = sshll.u32 [#allocation10], 4
      %s87 = int_to_ptr.vmem [resolvable:$true] %s86
      %92 = dma.hbm_to_vmem [thread:$0]  %s10, 16384, %s87, [#allocation9], 128, 128, 8
    $region45: #{tpu_custom_call.1} parent=1 // pred_fallthru
      _
    // Predicated region
    $region46: #{tpu_custom_call.1} parent=1 // pred_check
      _
    $region47: #{tpu_custom_call.1} parent=1 // pred_check_branch
      %94 = sbr.rel (0) target = $region49
    $region48: #{tpu_custom_call.1} parent=1 // pred_region
      _
    $region49: #{tpu_custom_call.1} parent=1 // pred_fallthru
      _
    // Predicated region
    $region50: #{tpu_custom_call.1} parent=1 // pred_check
      _
    $region51: #{tpu_custom_call.1} parent=1 // pred_check_branch
      %96 = sbr.rel (0) target = $region53
    $region52: #{tpu_custom_call.1} parent=1 // pred_region
      %97 = dma.done [#allocation3], 4096
    $region53: #{tpu_custom_call.1} parent=1 // pred_fallthru
      _
    // Predicated region
    $region54: #{tpu_custom_call.1} parent=1 // pred_check
      _
    $region55: #{tpu_custom_call.1} parent=1 // pred_check_branch
      %99 = sbr.rel (0) target = $region57
    $region56: #{tpu_custom_call.1} parent=1 // pred_region
      %100 = dma.done [#allocation6], 12288
    $region57: #{tpu_custom_call.1} parent=1 // pred_fallthru
      _
    // Predicated region
    $region58: #{tpu_custom_call.1} parent=1 // pred_check
      _
    $region59: #{tpu_custom_call.1} parent=1 // pred_check_branch
      %102 = sbr.rel (0) target = $region61
    $region60: #{tpu_custom_call.1} parent=1 // pred_region
      %103 = dma.done [#allocation6], 4096
    $region61: #{tpu_custom_call.1} parent=1 // pred_fallthru
      _
    // Predicated region
    $region62: #{tpu_custom_call.1} parent=1 // pred_check
      _
    $region63: #{tpu_custom_call.1} parent=1 // pred_check_branch
      %105 = sbr.rel (0) target = $region65
    $region64: #{tpu_custom_call.1} parent=1 // pred_region
      %106 = dma.done [#allocation9], 16384
    $region65: #{tpu_custom_call.1} parent=1 // pred_fallthru
      _
    // Predicated region
    $region66: #{tpu_custom_call.1} parent=1 // pred_check
      _
    $region67: #{tpu_custom_call.1} parent=1 // pred_check_branch
      %108 = sbr.rel (0) target = $region69
    $region68: #{tpu_custom_call.1} parent=1 // pred_region
      %109 = dma.done [#allocation9], 16384
    $region69: #{tpu_custom_call.1} parent=1 // pred_fallthru
      _
    %v111 = vld [vmem:[#allocation2] sm:$0xff]
    %v112 = vld [vmem:[#allocation2 + $0x8] sm:$0xff]
    %v113 = vld [vmem:[#allocation2 + $0x10] sm:$0xff]
    %v114 = vld [vmem:[#allocation2 + $0x18] sm:$0xff]
    %v115 = vld [vmem:[#allocation2 + $0x20] sm:$0xff]
    %v116 = vld [vmem:[#allocation2 + $0x28] sm:$0xff]
    %v117 = vld [vmem:[#allocation2 + $0x30] sm:$0xff]
    %v118 = vld [vmem:[#allocation2 + $0x38] sm:$0xff]
    %v119 = vld [vmem:[#allocation2 + $0x40] sm:$0xff]
    %v120 = vld [vmem:[#allocation2 + $0x48] sm:$0xff]
    %v121 = vld [vmem:[#allocation2 + $0x50] sm:$0xff]
    %v122 = vld [vmem:[#allocation2 + $0x58] sm:$0xff]
    %v123 = vld [vmem:[#allocation2 + $0x60] sm:$0xff]
    %v124 = vld [vmem:[#allocation2 + $0x68] sm:$0xff]
    %v125 = vld [vmem:[#allocation2 + $0x70] sm:$0xff]
    %v126 = vld [vmem:[#allocation2 + $0x78] sm:$0xff]
    %v127 = vld [vmem:[#allocation2 + $0x80] sm:$0xff]
    %v128 = vld [vmem:[#allocation2 + $0x88] sm:$0xff]
    %v129 = vld [vmem:[#allocation2 + $0x90] sm:$0xff]
    %v130 = vld [vmem:[#allocation2 + $0x98] sm:$0xff]
    %v131 = vld [vmem:[#allocation2 + $0xa0] sm:$0xff]
    %v132 = vld [vmem:[#allocation2 + $0xa8] sm:$0xff]
    %v133 = vld [vmem:[#allocation2 + $0xb0] sm:$0xff]
    %v134 = vld [vmem:[#allocation2 + $0xb8] sm:$0xff]
    %v135 = vld [vmem:[#allocation2 + $0xc0] sm:$0xff]
    %v136 = vld [vmem:[#allocation2 + $0xc8] sm:$0xff]
    %v137 = vld [vmem:[#allocation2 + $0xd0] sm:$0xff]
    %v138 = vld [vmem:[#allocation2 + $0xd8] sm:$0xff]
    %v139 = vld [vmem:[#allocation2 + $0xe0] sm:$0xff]
    %v140 = vld [vmem:[#allocation2 + $0xe8] sm:$0xff]
    %v141 = vld [vmem:[#allocation2 + $0xf0] sm:$0xff]
    %v142 = vld [vmem:[#allocation2 + $0xf8] sm:$0xff]
    %v143 = vld [vmem:[%s1] sm:$0x3]
    %v144 = vld [vmem:[%s2] sm:$0x3]
    %v145 = vadd.f32 %v111, %v112
    %146 = vadd.xlane.f32.xlu0 %v145
    %v147 = vpop.xlane.xlu0 %146
    %v148 = vadd.f32 %v113, %v114
    %149 = vadd.xlane.f32.xlu0 %v148
    %v150 = vpop.xlane.xlu0 %149
    %v151 = vadd.f32 %v115, %v116
    %152 = vadd.xlane.f32.xlu0 %v151
    %v153 = vpop.xlane.xlu0 %152
    %v154 = vadd.f32 %v117, %v118
    %155 = vadd.xlane.f32.xlu0 %v154
    %v156 = vpop.xlane.xlu0 %155
    %v157 = vadd.f32 %v119, %v120
    %158 = vadd.xlane.f32.xlu0 %v157
    %v159 = vpop.xlane.xlu0 %158
    %v160 = vadd.f32 %v121, %v122
    %161 = vadd.xlane.f32.xlu0 %v160
    %v162 = vpop.xlane.xlu0 %161
    %v163 = vadd.f32 %v123, %v124
    %164 = vadd.xlane.f32.xlu0 %v163
    %v165 = vpop.xlane.xlu0 %164
    %v166 = vadd.f32 %v125, %v126
    %167 = vadd.xlane.f32.xlu0 %v166
    %v168 = vpop.xlane.xlu0 %167
    %v169 = vadd.f32 %v127, %v128
    %170 = vadd.xlane.f32.xlu0 %v169
    %v171 = vpop.xlane.xlu0 %170
    %v172 = vadd.f32 %v129, %v130
    %173 = vadd.xlane.f32.xlu0 %v172
    %v174 = vpop.xlane.xlu0 %173
    %v175 = vadd.f32 %v131, %v132
    %176 = vadd.xlane.f32.xlu0 %v175
    %v177 = vpop.xlane.xlu0 %176
    %v178 = vadd.f32 %v133, %v134
    %179 = vadd.xlane.f32.xlu0 %v178
    %v180 = vpop.xlane.xlu0 %179
    %v181 = vadd.f32 %v135, %v136
    %182 = vadd.xlane.f32.xlu0 %v181
    %v183 = vpop.xlane.xlu0 %182
    %v184 = vadd.f32 %v137, %v138
    %185 = vadd.xlane.f32.xlu0 %v184
    %v186 = vpop.xlane.xlu0 %185
    %v187 = vadd.f32 %v139, %v140
    %188 = vadd.xlane.f32.xlu0 %v187
    %v189 = vpop.xlane.xlu0 %188
    %v190 = vadd.f32 %v141, %v142
    %191 = vadd.xlane.f32.xlu0 %v190
    %v192 = vpop.xlane.xlu0 %191
    %v193 = vrcp.pop 256.0
    %v194 = vmul.f32 %v147, %v193
    %v195 = vmul.f32 %v150, %v193
    %v196 = vmul.f32 %v153, %v193
    %v197 = vmul.f32 %v156, %v193
    %v198 = vmul.f32 %v159, %v193
    %v199 = vmul.f32 %v162, %v193
    %v200 = vmul.f32 %v165, %v193
    %v201 = vmul.f32 %v168, %v193
    %v202 = vmul.f32 %v171, %v193
    %v203 = vmul.f32 %v174, %v193
    %v204 = vmul.f32 %v177, %v193
    %v205 = vmul.f32 %v180, %v193
    %v206 = vmul.f32 %v183, %v193
    %v207 = vmul.f32 %v186, %v193
    %v208 = vmul.f32 %v189, %v193
    %v209 = vmul.f32 %v192, %v193
    %v210 = vmul.f32 %v111, %v111
    %v211 = vmul.f32 %v112, %v112
    %v212 = vmul.f32 %v113, %v113
    %v213 = vmul.f32 %v114, %v114
    %v214 = vmul.f32 %v115, %v115
    %v215 = vmul.f32 %v116, %v116
    %v216 = vmul.f32 %v117, %v117
    %v217 = vmul.f32 %v118, %v118
    %v218 = vmul.f32 %v119, %v119
    %v219 = vmul.f32 %v120, %v120
    %v220 = vmul.f32 %v121, %v121
    %v221 = vmul.f32 %v122, %v122
    %v222 = vmul.f32 %v123, %v123
    %v223 = vmul.f32 %v124, %v124
    %v224 = vmul.f32 %v125, %v125
    %v225 = vmul.f32 %v126, %v126
    %v226 = vmul.f32 %v127, %v127
    %v227 = vmul.f32 %v128, %v128
    %v228 = vmul.f32 %v129, %v129
    %v229 = vmul.f32 %v130, %v130
    %v230 = vmul.f32 %v131, %v131
    %v231 = vmul.f32 %v132, %v132
    %v232 = vmul.f32 %v133, %v133
    %v233 = vmul.f32 %v134, %v134
    %v234 = vmul.f32 %v135, %v135
    %v235 = vmul.f32 %v136, %v136
    %v236 = vmul.f32 %v137, %v137
    %v237 = vmul.f32 %v138, %v138
    %v238 = vmul.f32 %v139, %v139
    %v239 = vmul.f32 %v140, %v140
    %v240 = vmul.f32 %v141, %v141
    %v241 = vmul.f32 %v142, %v142
    %v242 = vadd.f32 %v210, %v211
    %243 = vadd.xlane.f32.xlu0 %v242
    %v244 = vpop.xlane.xlu0 %243
    %v245 = vadd.f32 %v212, %v213
    %246 = vadd.xlane.f32.xlu0 %v245
    %v247 = vpop.xlane.xlu0 %246
    %v248 = vadd.f32 %v214, %v215
    %249 = vadd.xlane.f32.xlu0 %v248
    %v250 = vpop.xlane.xlu0 %249
    %v251 = vadd.f32 %v216, %v217
    %252 = vadd.xlane.f32.xlu0 %v251
    %v253 = vpop.xlane.xlu0 %252
    %v254 = vadd.f32 %v218, %v219
    %255 = vadd.xlane.f32.xlu0 %v254
    %v256 = vpop.xlane.xlu0 %255
    %v257 = vadd.f32 %v220, %v221
    %258 = vadd.xlane.f32.xlu0 %v257
    %v259 = vpop.xlane.xlu0 %258
    %v260 = vadd.f32 %v222, %v223
    %261 = vadd.xlane.f32.xlu0 %v260
    %v262 = vpop.xlane.xlu0 %261
    %v263 = vadd.f32 %v224, %v225
    %264 = vadd.xlane.f32.xlu0 %v263
    %v265 = vpop.xlane.xlu0 %264
    %v266 = vadd.f32 %v226, %v227
    %267 = vadd.xlane.f32.xlu0 %v266
    %v268 = vpop.xlane.xlu0 %267
    %v269 = vadd.f32 %v228, %v229
    %270 = vadd.xlane.f32.xlu0 %v269
    %v271 = vpop.xlane.xlu0 %270
    %v272 = vadd.f32 %v230, %v231
    %273 = vadd.xlane.f32.xlu0 %v272
    %v274 = vpop.xlane.xlu0 %273
    %v275 = vadd.f32 %v232, %v233
    %276 = vadd.xlane.f32.xlu0 %v275
    %v277 = vpop.xlane.xlu0 %276
    %v278 = vadd.f32 %v234, %v235
    %279 = vadd.xlane.f32.xlu0 %v278
    %v280 = vpop.xlane.xlu0 %279
    %v281 = vadd.f32 %v236, %v237
    %282 = vadd.xlane.f32.xlu0 %v281
    %v283 = vpop.xlane.xlu0 %282
    %v284 = vadd.f32 %v238, %v239
    %285 = vadd.xlane.f32.xlu0 %v284
    %v286 = vpop.xlane.xlu0 %285
    %v287 = vadd.f32 %v240, %v241
    %288 = vadd.xlane.f32.xlu0 %v287
    %v289 = vpop.xlane.xlu0 %288
    %v290 = vmul.f32 %v244, %v193
    %v291 = vmul.f32 %v247, %v193
    %v292 = vmul.f32 %v250, %v193
    %v293 = vmul.f32 %v253, %v193
    %v294 = vmul.f32 %v256, %v193
    %v295 = vmul.f32 %v259, %v193
    %v296 = vmul.f32 %v262, %v193
    %v297 = vmul.f32 %v265, %v193
    %v298 = vmul.f32 %v268, %v193
    %v299 = vmul.f32 %v271, %v193
    %v300 = vmul.f32 %v274, %v193
    %v301 = vmul.f32 %v277, %v193
    %v302 = vmul.f32 %v280, %v193
    %v303 = vmul.f32 %v283, %v193
    %v304 = vmul.f32 %v286, %v193
    %v305 = vmul.f32 %v289, %v193
    %v306 = vmul.f32 %v194, %v194
    %v307 = vmul.f32 %v195, %v195
    %v308 = vmul.f32 %v196, %v196
    %v309 = vmul.f32 %v197, %v197
    %v310 = vmul.f32 %v198, %v198
    %v311 = vmul.f32 %v199, %v199
    %v312 = vmul.f32 %v200, %v200
    %v313 = vmul.f32 %v201, %v201
    %v314 = vmul.f32 %v202, %v202
    %v315 = vmul.f32 %v203, %v203
    %v316 = vmul.f32 %v204, %v204
    %v317 = vmul.f32 %v205, %v205
    %v318 = vmul.f32 %v206, %v206
    %v319 = vmul.f32 %v207, %v207
    %v320 = vmul.f32 %v208, %v208
    %v321 = vmul.f32 %v209, %v209
    %v322 = vsub.f32 %v290, %v306
    %v323 = vsub.f32 %v291, %v307
    %v324 = vsub.f32 %v292, %v308
    %v325 = vsub.f32 %v293, %v309
    %v326 = vsub.f32 %v294, %v310
    %v327 = vsub.f32 %v295, %v311
    %v328 = vsub.f32 %v296, %v312
    %v329 = vsub.f32 %v297, %v313
    %v330 = vsub.f32 %v298, %v314
    %v331 = vsub.f32 %v299, %v315
    %v332 = vsub.f32 %v300, %v316
    %v333 = vsub.f32 %v301, %v317
    %v334 = vsub.f32 %v302, %v318
    %v335 = vsub.f32 %v303, %v319
    %v336 = vsub.f32 %v304, %v320
    %v337 = vsub.f32 %v305, %v321
    %v338 = vmax.f32 %v322, 0.0
    %v339 = vmax.f32 %v323, 0.0
    %v340 = vmax.f32 %v324, 0.0
    %v341 = vmax.f32 %v325, 0.0
    %v342 = vmax.f32 %v326, 0.0
    %v343 = vmax.f32 %v327, 0.0
    %v344 = vmax.f32 %v328, 0.0
    %v345 = vmax.f32 %v329, 0.0
    %v346 = vmax.f32 %v330, 0.0
    %v347 = vmax.f32 %v331, 0.0
    %v348 = vmax.f32 %v332, 0.0
    %v349 = vmax.f32 %v333, 0.0
    %v350 = vmax.f32 %v334, 0.0
    %v351 = vmax.f32 %v335, 0.0
    %v352 = vmax.f32 %v336, 0.0
    %v353 = vmax.f32 %v337, 0.0
    %v354 = vsub.f32 %v111, %v194
    %v355 = vsub.f32 %v112, %v194
    %v356 = vsub.f32 %v113, %v195
    %v357 = vsub.f32 %v114, %v195
    %v358 = vsub.f32 %v115, %v196
    %v359 = vsub.f32 %v116, %v196
    %v360 = vsub.f32 %v117, %v197
    %v361 = vsub.f32 %v118, %v197
    %v362 = vsub.f32 %v119, %v198
    %v363 = vsub.f32 %v120, %v198
    %v364 = vsub.f32 %v121, %v199
    %v365 = vsub.f32 %v122, %v199
    %v366 = vsub.f32 %v123, %v200
    %v367 = vsub.f32 %v124, %v200
    %v368 = vsub.f32 %v125, %v201
    %v369 = vsub.f32 %v126, %v201
    %v370 = vsub.f32 %v127, %v202
    %v371 = vsub.f32 %v128, %v202
    %v372 = vsub.f32 %v129, %v203
    %v373 = vsub.f32 %v130, %v203
    %v374 = vsub.f32 %v131, %v204
    %v375 = vsub.f32 %v132, %v204
    %v376 = vsub.f32 %v133, %v205
    %v377 = vsub.f32 %v134, %v205
    %v378 = vsub.f32 %v135, %v206
    %v379 = vsub.f32 %v136, %v206
    %v380 = vsub.f32 %v137, %v207
    %v381 = vsub.f32 %v138, %v207
    %v382 = vsub.f32 %v139, %v208
    %v383 = vsub.f32 %v140, %v208
    %v384 = vsub.f32 %v141, %v209
    %v385 = vsub.f32 %v142, %v209
    %v386 = vadd.f32 %v338, 1e-05
    %v387 = vadd.f32 %v339, 1e-05
    %v388 = vadd.f32 %v340, 1e-05
    %v389 = vadd.f32 %v341, 1e-05
    %v390 = vadd.f32 %v342, 1e-05
    %v391 = vadd.f32 %v343, 1e-05
    %v392 = vadd.f32 %v344, 1e-05
    %v393 = vadd.f32 %v345, 1e-05
    %v394 = vadd.f32 %v346, 1e-05
    %v395 = vadd.f32 %v347, 1e-05
    %v396 = vadd.f32 %v348, 1e-05
    %v397 = vadd.f32 %v349, 1e-05
    %v398 = vadd.f32 %v350, 1e-05
    %v399 = vadd.f32 %v351, 1e-05
    %v400 = vadd.f32 %v352, 1e-05
    %v401 = vadd.f32 %v353, 1e-05
    %v402 = vrsqrt.pop %v386
    %v403 = vrsqrt.pop %v387
    %v404 = vrsqrt.pop %v388
    %v405 = vrsqrt.pop %v389
    %v406 = vrsqrt.pop %v390
    %v407 = vrsqrt.pop %v391
    %v408 = vrsqrt.pop %v392
    %v409 = vrsqrt.pop %v393
    %v410 = vrsqrt.pop %v394
    %v411 = vrsqrt.pop %v395
    %v412 = vrsqrt.pop %v396
    %v413 = vrsqrt.pop %v397
    %v414 = vrsqrt.pop %v398
    %v415 = vrsqrt.pop %v399
    %v416 = vrsqrt.pop %v400
    %v417 = vrsqrt.pop %v401
    %v418 = vmul.f32 %v354, %v402
    %v419 = vmul.f32 %v355, %v402
    %v420 = vmul.f32 %v356, %v403
    %v421 = vmul.f32 %v357, %v403
    %v422 = vmul.f32 %v358, %v404
    %v423 = vmul.f32 %v359, %v404
    %v424 = vmul.f32 %v360, %v405
    %v425 = vmul.f32 %v361, %v405
    %v426 = vmul.f32 %v362, %v406
    %v427 = vmul.f32 %v363, %v406
    %v428 = vmul.f32 %v364, %v407
    %v429 = vmul.f32 %v365, %v407
    %v430 = vmul.f32 %v366, %v408
    %v431 = vmul.f32 %v367, %v408
    %v432 = vmul.f32 %v368, %v409
    %v433 = vmul.f32 %v369, %v409
    %v434 = vmul.f32 %v370, %v410
    %v435 = vmul.f32 %v371, %v410
    %v436 = vmul.f32 %v372, %v411
    %v437 = vmul.f32 %v373, %v411
    %v438 = vmul.f32 %v374, %v412
    %v439 = vmul.f32 %v375, %v412
    %v440 = vmul.f32 %v376, %v413
    %v441 = vmul.f32 %v377, %v413
    %v442 = vmul.f32 %v378, %v414
    %v443 = vmul.f32 %v379, %v414
    %v444 = vmul.f32 %v380, %v415
    %v445 = vmul.f32 %v381, %v415
    %v446 = vmul.f32 %v382, %v416
    %v447 = vmul.f32 %v383, %v416
    %v448 = vmul.f32 %v384, %v417
    %v449 = vmul.f32 %v385, %v417
    %v451 = vlaneseq
    %v452 = vshrl.u32 %v451, 7
    %v453 = vsub.s32 0, %v452
    %v454 = vrot.slane %v143, %v453
    %v455 = vlaneseq
    %v456 = vshrl.u32 %v455, 7
    %v457 = vsub.s32 1, %v456
    %v458 = vrot.slane %v143, %v457
    %v461 = vmul.f32 %v418, %v454
    %v462 = vmul.f32 %v419, %v458
    %v463 = vmul.f32 %v420, %v454
    %v464 = vmul.f32 %v421, %v458
    %v465 = vmul.f32 %v422, %v454
    %v466 = vmul.f32 %v423, %v458
    %v467 = vmul.f32 %v424, %v454
    %v468 = vmul.f32 %v425, %v458
    %v469 = vmul.f32 %v426, %v454
    %v470 = vmul.f32 %v427, %v458
    %v471 = vmul.f32 %v428, %v454
    %v472 = vmul.f32 %v429, %v458
    %v473 = vmul.f32 %v430, %v454
    %v474 = vmul.f32 %v431, %v458
    %v475 = vmul.f32 %v432, %v454
    %v476 = vmul.f32 %v433, %v458
    %v477 = vmul.f32 %v434, %v454
    %v478 = vmul.f32 %v435, %v458
    %v479 = vmul.f32 %v436, %v454
    %v480 = vmul.f32 %v437, %v458
    %v481 = vmul.f32 %v438, %v454
    %v482 = vmul.f32 %v439, %v458
    %v483 = vmul.f32 %v440, %v454
    %v484 = vmul.f32 %v441, %v458
    %v485 = vmul.f32 %v442, %v454
    %v486 = vmul.f32 %v443, %v458
    %v487 = vmul.f32 %v444, %v454
    %v488 = vmul.f32 %v445, %v458
    %v489 = vmul.f32 %v446, %v454
    %v490 = vmul.f32 %v447, %v458
    %v491 = vmul.f32 %v448, %v454
    %v492 = vmul.f32 %v449, %v458
    %v494 = vlaneseq
    %v495 = vshrl.u32 %v494, 7
    %v496 = vsub.s32 0, %v495
    %v497 = vrot.slane %v144, %v496
    %v498 = vlaneseq
    %v499 = vshrl.u32 %v498, 7
    %v500 = vsub.s32 1, %v499
    %v501 = vrot.slane %v144, %v500
    %v504 = vadd.f32 %v461, %v497
    %v505 = vadd.f32 %v462, %v501
    %v506 = vadd.f32 %v463, %v497
    %v507 = vadd.f32 %v464, %v501
    %v508 = vadd.f32 %v465, %v497
    %v509 = vadd.f32 %v466, %v501
    %v510 = vadd.f32 %v467, %v497
    %v511 = vadd.f32 %v468, %v501
    %v512 = vadd.f32 %v469, %v497
    %v513 = vadd.f32 %v470, %v501
    %v514 = vadd.f32 %v471, %v497
    %v515 = vadd.f32 %v472, %v501
    %v516 = vadd.f32 %v473, %v497
    %v517 = vadd.f32 %v474, %v501
    %v518 = vadd.f32 %v475, %v497
    %v519 = vadd.f32 %v476, %v501
    %v520 = vadd.f32 %v477, %v497
    %v521 = vadd.f32 %v478, %v501
    %v522 = vadd.f32 %v479, %v497
    %v523 = vadd.f32 %v480, %v501
    %v524 = vadd.f32 %v481, %v497
    %v525 = vadd.f32 %v482, %v501
    %v526 = vadd.f32 %v483, %v497
    %v527 = vadd.f32 %v484, %v501
    %v528 = vadd.f32 %v485, %v497
    %v529 = vadd.f32 %v486, %v501
    %v530 = vadd.f32 %v487, %v497
    %v531 = vadd.f32 %v488, %v501
    %v532 = vadd.f32 %v489, %v497
    %v533 = vadd.f32 %v490, %v501
    %v534 = vadd.f32 %v491, %v497
    %v535 = vadd.f32 %v492, %v501
    %v536 = vpack.c.bf16 %v506, %v504
    %v537 = vpack.c.bf16 %v507, %v505
    %v538 = vpack.c.bf16 %v510, %v508
    %v539 = vpack.c.bf16 %v511, %v509
    %v540 = vpack.c.bf16 %v514, %v512
    %v541 = vpack.c.bf16 %v515, %v513
    %v542 = vpack.c.bf16 %v518, %v516
    %v543 = vpack.c.bf16 %v519, %v517
    %v544 = vpack.c.bf16 %v522, %v520
    %v545 = vpack.c.bf16 %v523, %v521
    %v546 = vpack.c.bf16 %v526, %v524
    %v547 = vpack.c.bf16 %v527, %v525
    %v548 = vpack.c.bf16 %v530, %v528
    %v549 = vpack.c.bf16 %v531, %v529
    %v550 = vpack.c.bf16 %v534, %v532
    %v551 = vpack.c.bf16 %v535, %v533
    %v552 = vld [vmem:[#allocation5] sm:$0xff]
    %v553 = vld [vmem:[#allocation5 + $0x8] sm:$0xff]
    %v554 = vld [vmem:[#allocation5 + $0x10] sm:$0xff]
    %v555 = vld [vmem:[#allocation5 + $0x18] sm:$0xff]
    %v556 = vld [vmem:[#allocation5 + $0x20] sm:$0xff]
    %v557 = vld [vmem:[#allocation5 + $0x28] sm:$0xff]
    %v558 = vld [vmem:[#allocation5 + $0x30] sm:$0xff]
    %v559 = vld [vmem:[#allocation5 + $0x38] sm:$0xff]
    %v560 = vld [vmem:[#allocation5 + $0x40] sm:$0xff]
    %v561 = vld [vmem:[#allocation5 + $0x48] sm:$0xff]
    %v562 = vld [vmem:[#allocation5 + $0x50] sm:$0xff]
    %v563 = vld [vmem:[#allocation5 + $0x58] sm:$0xff]
    %v564 = vld [vmem:[#allocation5 + $0x60] sm:$0xff]
    %v565 = vld [vmem:[#allocation5 + $0x68] sm:$0xff]
    %v566 = vld [vmem:[#allocation5 + $0x70] sm:$0xff]
    %v567 = vld [vmem:[#allocation5 + $0x78] sm:$0xff]
    %v568 = vld [vmem:[#allocation5 + $0x80] sm:$0xff]
    %v569 = vld [vmem:[#allocation5 + $0x88] sm:$0xff]
    %v570 = vld [vmem:[#allocation5 + $0x90] sm:$0xff]
    %v571 = vld [vmem:[#allocation5 + $0x98] sm:$0xff]
    %v572 = vld [vmem:[#allocation5 + $0xa0] sm:$0xff]
    %v573 = vld [vmem:[#allocation5 + $0xa8] sm:$0xff]
    %v574 = vld [vmem:[#allocation5 + $0xb0] sm:$0xff]
    %v575 = vld [vmem:[#allocation5 + $0xb8] sm:$0xff]
    %v576 = vld [vmem:[#allocation5 + $0xc0] sm:$0xff]
    %v577 = vld [vmem:[#allocation5 + $0xc8] sm:$0xff]
    %v578 = vld [vmem:[#allocation5 + $0xd0] sm:$0xff]
    %v579 = vld [vmem:[#allocation5 + $0xd8] sm:$0xff]
    %v580 = vld [vmem:[#allocation5 + $0xe0] sm:$0xff]
    %v581 = vld [vmem:[#allocation5 + $0xe8] sm:$0xff]
    %v582 = vld [vmem:[#allocation5 + $0xf0] sm:$0xff]
    %v583 = vld [vmem:[#allocation5 + $0xf8] sm:$0xff]
    %v584 = vld [vmem:[#allocation5 + $0x100] sm:$0xff]
    %v585 = vld [vmem:[#allocation5 + $0x108] sm:$0xff]
    %v586 = vld [vmem:[#allocation5 + $0x110] sm:$0xff]
    %v587 = vld [vmem:[#allocation5 + $0x118] sm:$0xff]
    %v588 = vld [vmem:[#allocation5 + $0x120] sm:$0xff]
    %v589 = vld [vmem:[#allocation5 + $0x128] sm:$0xff]
    %v590 = vld [vmem:[#allocation5 + $0x130] sm:$0xff]
    %v591 = vld [vmem:[#allocation5 + $0x138] sm:$0xff]
    %v592 = vld [vmem:[#allocation5 + $0x140] sm:$0xff]
    %v593 = vld [vmem:[#allocation5 + $0x148] sm:$0xff]
    %v594 = vld [vmem:[#allocation5 + $0x150] sm:$0xff]
    %v595 = vld [vmem:[#allocation5 + $0x158] sm:$0xff]
    %v596 = vld [vmem:[#allocation5 + $0x160] sm:$0xff]
    %v597 = vld [vmem:[#allocation5 + $0x168] sm:$0xff]
    %v598 = vld [vmem:[#allocation5 + $0x170] sm:$0xff]
    %v599 = vld [vmem:[#allocation5 + $0x178] sm:$0xff]
    %v600 = vld [vmem:[#allocation5 + $0x180] sm:$0xff]
    %v601 = vld [vmem:[#allocation5 + $0x188] sm:$0xff]
    %v602 = vld [vmem:[#allocation5 + $0x190] sm:$0xff]
    %v603 = vld [vmem:[#allocation5 + $0x198] sm:$0xff]
    %v604 = vld [vmem:[#allocation5 + $0x1a0] sm:$0xff]
    %v605 = vld [vmem:[#allocation5 + $0x1a8] sm:$0xff]
    %v606 = vld [vmem:[#allocation5 + $0x1b0] sm:$0xff]
    %v607 = vld [vmem:[#allocation5 + $0x1b8] sm:$0xff]
    %v608 = vld [vmem:[#allocation5 + $0x1c0] sm:$0xff]
    %v609 = vld [vmem:[#allocation5 + $0x1c8] sm:$0xff]
    %v610 = vld [vmem:[#allocation5 + $0x1d0] sm:$0xff]
    %v611 = vld [vmem:[#allocation5 + $0x1d8] sm:$0xff]
    %v612 = vld [vmem:[#allocation5 + $0x1e0] sm:$0xff]
    %v613 = vld [vmem:[#allocation5 + $0x1e8] sm:$0xff]
    %v614 = vld [vmem:[#allocation5 + $0x1f0] sm:$0xff]
    %v615 = vld [vmem:[#allocation5 + $0x1f8] sm:$0xff]
    %v616 = vld [vmem:[#allocation5 + $0x200] sm:$0xff]
    %v617 = vld [vmem:[#allocation5 + $0x208] sm:$0xff]
    %v618 = vld [vmem:[#allocation5 + $0x210] sm:$0xff]
    %v619 = vld [vmem:[#allocation5 + $0x218] sm:$0xff]
    %v620 = vld [vmem:[#allocation5 + $0x220] sm:$0xff]
    %v621 = vld [vmem:[#allocation5 + $0x228] sm:$0xff]
    %v622 = vld [vmem:[#allocation5 + $0x230] sm:$0xff]
    %v623 = vld [vmem:[#allocation5 + $0x238] sm:$0xff]
    %v624 = vld [vmem:[#allocation5 + $0x240] sm:$0xff]
    %v625 = vld [vmem:[#allocation5 + $0x248] sm:$0xff]
    %v626 = vld [vmem:[#allocation5 + $0x250] sm:$0xff]
    %v627 = vld [vmem:[#allocation5 + $0x258] sm:$0xff]
    %v628 = vld [vmem:[#allocation5 + $0x260] sm:$0xff]
    %v629 = vld [vmem:[#allocation5 + $0x268] sm:$0xff]
    %v630 = vld [vmem:[#allocation5 + $0x270] sm:$0xff]
    %v631 = vld [vmem:[#allocation5 + $0x278] sm:$0xff]
    %v632 = vld [vmem:[#allocation5 + $0x280] sm:$0xff]
    %v633 = vld [vmem:[#allocation5 + $0x288] sm:$0xff]
    %v634 = vld [vmem:[#allocation5 + $0x290] sm:$0xff]
    %v635 = vld [vmem:[#allocation5 + $0x298] sm:$0xff]
    %v636 = vld [vmem:[#allocation5 + $0x2a0] sm:$0xff]
    %v637 = vld [vmem:[#allocation5 + $0x2a8] sm:$0xff]
    %v638 = vld [vmem:[#allocation5 + $0x2b0] sm:$0xff]
    %v639 = vld [vmem:[#allocation5 + $0x2b8] sm:$0xff]
    %v640 = vld [vmem:[#allocation5 + $0x2c0] sm:$0xff]
    %v641 = vld [vmem:[#allocation5 + $0x2c8] sm:$0xff]
    %v642 = vld [vmem:[#allocation5 + $0x2d0] sm:$0xff]
    %v643 = vld [vmem:[#allocation5 + $0x2d8] sm:$0xff]
    %v644 = vld [vmem:[#allocation5 + $0x2e0] sm:$0xff]
    %v645 = vld [vmem:[#allocation5 + $0x2e8] sm:$0xff]
    %v646 = vld [vmem:[#allocation5 + $0x2f0] sm:$0xff]
    %v647 = vld [vmem:[#allocation5 + $0x2f8] sm:$0xff]
    %v744 = vunpack.c.l.b16 %v552
    %v745 = vunpack.c.h.b16 %v552
    %v746 = vunpack.c.l.b16 %v553
    %v747 = vunpack.c.h.b16 %v553
    %v748 = vunpack.c.l.b16 %v554
    %v749 = vunpack.c.h.b16 %v554
    %v750 = vunpack.c.l.b16 %v555
    %v751 = vunpack.c.h.b16 %v555
    %v752 = vunpack.c.l.b16 %v556
    %v753 = vunpack.c.h.b16 %v556
    %v754 = vunpack.c.l.b16 %v557
    %v755 = vunpack.c.h.b16 %v557
    %v756 = vunpack.c.l.b16 %v558
    %v757 = vunpack.c.h.b16 %v558
    %v758 = vunpack.c.l.b16 %v559
    %v759 = vunpack.c.h.b16 %v559
    %v760 = vunpack.c.l.b16 %v560
    %v761 = vunpack.c.h.b16 %v560
    %v762 = vunpack.c.l.b16 %v561
    %v763 = vunpack.c.h.b16 %v561
    %v764 = vunpack.c.l.b16 %v562
    %v765 = vunpack.c.h.b16 %v562
    %v766 = vunpack.c.l.b16 %v563
    %v767 = vunpack.c.h.b16 %v563
    %v768 = vunpack.c.l.b16 %v564
    %v769 = vunpack.c.h.b16 %v564
    %v770 = vunpack.c.l.b16 %v565
    %v771 = vunpack.c.h.b16 %v565
    %v772 = vunpack.c.l.b16 %v566
    %v773 = vunpack.c.h.b16 %v566
    %v774 = vunpack.c.l.b16 %v567
    %v775 = vunpack.c.h.b16 %v567
    %v776 = vunpack.c.l.b16 %v568
    %v777 = vunpack.c.h.b16 %v568
    %v778 = vunpack.c.l.b16 %v569
    %v779 = vunpack.c.h.b16 %v569
    %v780 = vunpack.c.l.b16 %v570
    %v781 = vunpack.c.h.b16 %v570
    %v782 = vunpack.c.l.b16 %v571
    %v783 = vunpack.c.h.b16 %v571
    %v784 = vunpack.c.l.b16 %v572
    %v785 = vunpack.c.h.b16 %v572
    %v786 = vunpack.c.l.b16 %v573
    %v787 = vunpack.c.h.b16 %v573
    %v788 = vunpack.c.l.b16 %v574
    %v789 = vunpack.c.h.b16 %v574
    %v790 = vunpack.c.l.b16 %v575
    %v791 = vunpack.c.h.b16 %v575
    %v792 = vunpack.c.l.b16 %v576
    %v793 = vunpack.c.h.b16 %v576
    %v794 = vunpack.c.l.b16 %v577
    %v795 = vunpack.c.h.b16 %v577
    %v796 = vunpack.c.l.b16 %v578
    %v797 = vunpack.c.h.b16 %v578
    %v798 = vunpack.c.l.b16 %v579
    %v799 = vunpack.c.h.b16 %v579
    %v800 = vunpack.c.l.b16 %v580
    %v801 = vunpack.c.h.b16 %v580
    %v802 = vunpack.c.l.b16 %v581
    %v803 = vunpack.c.h.b16 %v581
    %v804 = vunpack.c.l.b16 %v582
    %v805 = vunpack.c.h.b16 %v582
    %v806 = vunpack.c.l.b16 %v583
    %v807 = vunpack.c.h.b16 %v583
    %v808 = vunpack.c.l.b16 %v584
    %v809 = vunpack.c.h.b16 %v584
    %v810 = vunpack.c.l.b16 %v585
    %v811 = vunpack.c.h.b16 %v585
    %v812 = vunpack.c.l.b16 %v586
    %v813 = vunpack.c.h.b16 %v586
    %v814 = vunpack.c.l.b16 %v587
    %v815 = vunpack.c.h.b16 %v587
    %v816 = vunpack.c.l.b16 %v588
    %v817 = vunpack.c.h.b16 %v588
    %v818 = vunpack.c.l.b16 %v589
    %v819 = vunpack.c.h.b16 %v589
    %v820 = vunpack.c.l.b16 %v590
    %v821 = vunpack.c.h.b16 %v590
    %v822 = vunpack.c.l.b16 %v591
    %v823 = vunpack.c.h.b16 %v591
    %v824 = vunpack.c.l.b16 %v592
    %v825 = vunpack.c.h.b16 %v592
    %v826 = vunpack.c.l.b16 %v593
    %v827 = vunpack.c.h.b16 %v593
    %v828 = vunpack.c.l.b16 %v594
    %v829 = vunpack.c.h.b16 %v594
    %v830 = vunpack.c.l.b16 %v595
    %v831 = vunpack.c.h.b16 %v595
    %v832 = vunpack.c.l.b16 %v596
    %v833 = vunpack.c.h.b16 %v596
    %v834 = vunpack.c.l.b16 %v597
    %v835 = vunpack.c.h.b16 %v597
    %v836 = vunpack.c.l.b16 %v598
    %v837 = vunpack.c.h.b16 %v598
    %v838 = vunpack.c.l.b16 %v599
    %v839 = vunpack.c.h.b16 %v599
    %v840 = vunpack.c.l.b16 %v600
    %v841 = vunpack.c.h.b16 %v600
    %v842 = vunpack.c.l.b16 %v601
    %v843 = vunpack.c.h.b16 %v601
    %v844 = vunpack.c.l.b16 %v602
    %v845 = vunpack.c.h.b16 %v602
    %v846 = vunpack.c.l.b16 %v603
    %v847 = vunpack.c.h.b16 %v603
    %v848 = vunpack.c.l.b16 %v604
    %v849 = vunpack.c.h.b16 %v604
    %v850 = vunpack.c.l.b16 %v605
    %v851 = vunpack.c.h.b16 %v605
    %v852 = vunpack.c.l.b16 %v606
    %v853 = vunpack.c.h.b16 %v606
    %v854 = vunpack.c.l.b16 %v607
    %v855 = vunpack.c.h.b16 %v607
    %v856 = vunpack.c.l.b16 %v608
    %v857 = vunpack.c.h.b16 %v608
    %v858 = vunpack.c.l.b16 %v609
    %v859 = vunpack.c.h.b16 %v609
    %v860 = vunpack.c.l.b16 %v610
    %v861 = vunpack.c.h.b16 %v610
    %v862 = vunpack.c.l.b16 %v611
    %v863 = vunpack.c.h.b16 %v611
    %v864 = vunpack.c.l.b16 %v612
    %v865 = vunpack.c.h.b16 %v612
    %v866 = vunpack.c.l.b16 %v613
    %v867 = vunpack.c.h.b16 %v613
    %v868 = vunpack.c.l.b16 %v614
    %v869 = vunpack.c.h.b16 %v614
    %v870 = vunpack.c.l.b16 %v615
    %v871 = vunpack.c.h.b16 %v615
    %v872 = vunpack.c.l.b16 %v616
    %v873 = vunpack.c.h.b16 %v616
    %v874 = vunpack.c.l.b16 %v617
    %v875 = vunpack.c.h.b16 %v617
    %v876 = vunpack.c.l.b16 %v618
    %v877 = vunpack.c.h.b16 %v618
    %v878 = vunpack.c.l.b16 %v619
    %v879 = vunpack.c.h.b16 %v619
    %v880 = vunpack.c.l.b16 %v620
    %v881 = vunpack.c.h.b16 %v620
    %v882 = vunpack.c.l.b16 %v621
    %v883 = vunpack.c.h.b16 %v621
    %v884 = vunpack.c.l.b16 %v622
    %v885 = vunpack.c.h.b16 %v622
    %v886 = vunpack.c.l.b16 %v623
    %v887 = vunpack.c.h.b16 %v623
    %v888 = vunpack.c.l.b16 %v624
    %v889 = vunpack.c.h.b16 %v624
    %v890 = vunpack.c.l.b16 %v625
    %v891 = vunpack.c.h.b16 %v625
    %v892 = vunpack.c.l.b16 %v626
    %v893 = vunpack.c.h.b16 %v626
    %v894 = vunpack.c.l.b16 %v627
    %v895 = vunpack.c.h.b16 %v627
    %v896 = vunpack.c.l.b16 %v628
    %v897 = vunpack.c.h.b16 %v628
    %v898 = vunpack.c.l.b16 %v629
    %v899 = vunpack.c.h.b16 %v629
    %v900 = vunpack.c.l.b16 %v630
    %v901 = vunpack.c.h.b16 %v630
    %v902 = vunpack.c.l.b16 %v631
    %v903 = vunpack.c.h.b16 %v631
    %v904 = vunpack.c.l.b16 %v632
    %v905 = vunpack.c.h.b16 %v632
    %v906 = vunpack.c.l.b16 %v633
    %v907 = vunpack.c.h.b16 %v633
    %v908 = vunpack.c.l.b16 %v634
    %v909 = vunpack.c.h.b16 %v634
    %v910 = vunpack.c.l.b16 %v635
    %v911 = vunpack.c.h.b16 %v635
    %v912 = vunpack.c.l.b16 %v636
    %v913 = vunpack.c.h.b16 %v636
    %v914 = vunpack.c.l.b16 %v637
    %v915 = vunpack.c.h.b16 %v637
    %v916 = vunpack.c.l.b16 %v638
    %v917 = vunpack.c.h.b16 %v638
    %v918 = vunpack.c.l.b16 %v639
    %v919 = vunpack.c.h.b16 %v639
    %v920 = vunpack.c.l.b16 %v640
    %v921 = vunpack.c.h.b16 %v640
    %v922 = vunpack.c.l.b16 %v641
    %v923 = vunpack.c.h.b16 %v641
    %v924 = vunpack.c.l.b16 %v642
    %v925 = vunpack.c.h.b16 %v642
    %v926 = vunpack.c.l.b16 %v643
    %v927 = vunpack.c.h.b16 %v643
    %v928 = vunpack.c.l.b16 %v644
    %v929 = vunpack.c.h.b16 %v644
    %v930 = vunpack.c.l.b16 %v645
    %v931 = vunpack.c.h.b16 %v645
    %v932 = vunpack.c.l.b16 %v646
    %v933 = vunpack.c.h.b16 %v646
    %v934 = vunpack.c.l.b16 %v647
    %v935 = vunpack.c.h.b16 %v647
    %v936 = vpack.c.b16 %v750, %v744
    %v937 = vpack.c.b16 %v751, %v745
    %v938 = vpack.c.b16 %v752, %v746
    %v939 = vpack.c.b16 %v753, %v747
    %v940 = vpack.c.b16 %v754, %v748
    %v941 = vpack.c.b16 %v755, %v749
    %v942 = vpack.c.b16 %v762, %v756
    %v943 = vpack.c.b16 %v763, %v757
    %v944 = vpack.c.b16 %v764, %v758
    %v945 = vpack.c.b16 %v765, %v759
    %v946 = vpack.c.b16 %v766, %v760
    %v947 = vpack.c.b16 %v767, %v761
    %v948 = vpack.c.b16 %v774, %v768
    %v949 = vpack.c.b16 %v775, %v769
    %v950 = vpack.c.b16 %v776, %v770
    %v951 = vpack.c.b16 %v777, %v771
    %v952 = vpack.c.b16 %v778, %v772
    %v953 = vpack.c.b16 %v779, %v773
    %v954 = vpack.c.b16 %v786, %v780
    %v955 = vpack.c.b16 %v787, %v781
    %v956 = vpack.c.b16 %v788, %v782
    %v957 = vpack.c.b16 %v789, %v783
    %v958 = vpack.c.b16 %v790, %v784
    %v959 = vpack.c.b16 %v791, %v785
    %v960 = vpack.c.b16 %v798, %v792
    %v961 = vpack.c.b16 %v799, %v793
    %v962 = vpack.c.b16 %v800, %v794
    %v963 = vpack.c.b16 %v801, %v795
    %v964 = vpack.c.b16 %v802, %v796
    %v965 = vpack.c.b16 %v803, %v797
    %v966 = vpack.c.b16 %v810, %v804
    %v967 = vpack.c.b16 %v811, %v805
    %v968 = vpack.c.b16 %v812, %v806
    %v969 = vpack.c.b16 %v813, %v807
    %v970 = vpack.c.b16 %v814, %v808
    %v971 = vpack.c.b16 %v815, %v809
    %v972 = vpack.c.b16 %v822, %v816
    %v973 = vpack.c.b16 %v823, %v817
    %v974 = vpack.c.b16 %v824, %v818
    %v975 = vpack.c.b16 %v825, %v819
    %v976 = vpack.c.b16 %v826, %v820
    %v977 = vpack.c.b16 %v827, %v821
    %v978 = vpack.c.b16 %v834, %v828
    %v979 = vpack.c.b16 %v835, %v829
    %v980 = vpack.c.b16 %v836, %v830
    %v981 = vpack.c.b16 %v837, %v831
    %v982 = vpack.c.b16 %v838, %v832
    %v983 = vpack.c.b16 %v839, %v833
    %v984 = vpack.c.b16 %v846, %v840
    %v985 = vpack.c.b16 %v847, %v841
    %v986 = vpack.c.b16 %v848, %v842
    %v987 = vpack.c.b16 %v849, %v843
    %v988 = vpack.c.b16 %v850, %v844
    %v989 = vpack.c.b16 %v851, %v845
    %v990 = vpack.c.b16 %v858, %v852
    %v991 = vpack.c.b16 %v859, %v853
    %v992 = vpack.c.b16 %v860, %v854
    %v993 = vpack.c.b16 %v861, %v855
    %v994 = vpack.c.b16 %v862, %v856
    %v995 = vpack.c.b16 %v863, %v857
    %v996 = vpack.c.b16 %v870, %v864
    %v997 = vpack.c.b16 %v871, %v865
    %v998 = vpack.c.b16 %v872, %v866
    %v999 = vpack.c.b16 %v873, %v867
    %v1000 = vpack.c.b16 %v874, %v868
    %v1001 = vpack.c.b16 %v875, %v869
    %v1002 = vpack.c.b16 %v882, %v876
    %v1003 = vpack.c.b16 %v883, %v877
    %v1004 = vpack.c.b16 %v884, %v878
    %v1005 = vpack.c.b16 %v885, %v879
    %v1006 = vpack.c.b16 %v886, %v880
    %v1007 = vpack.c.b16 %v887, %v881
    %v1008 = vpack.c.b16 %v894, %v888
    %v1009 = vpack.c.b16 %v895, %v889
    %v1010 = vpack.c.b16 %v896, %v890
    %v1011 = vpack.c.b16 %v897, %v891
    %v1012 = vpack.c.b16 %v898, %v892
    %v1013 = vpack.c.b16 %v899, %v893
    %v1014 = vpack.c.b16 %v906, %v900
    %v1015 = vpack.c.b16 %v907, %v901
    %v1016 = vpack.c.b16 %v908, %v902
    %v1017 = vpack.c.b16 %v909, %v903
    %v1018 = vpack.c.b16 %v910, %v904
    %v1019 = vpack.c.b16 %v911, %v905
    %v1020 = vpack.c.b16 %v918, %v912
    %v1021 = vpack.c.b16 %v919, %v913
    %v1022 = vpack.c.b16 %v920, %v914
    %v1023 = vpack.c.b16 %v921, %v915
    %v1024 = vpack.c.b16 %v922, %v916
    %v1025 = vpack.c.b16 %v923, %v917
    %v1026 = vpack.c.b16 %v930, %v924
    %v1027 = vpack.c.b16 %v931, %v925
    %v1028 = vpack.c.b16 %v932, %v926
    %v1029 = vpack.c.b16 %v933, %v927
    %v1030 = vpack.c.b16 %v934, %v928
    %v1031 = vpack.c.b16 %v935, %v929
    %1128 = vmatprep.subr.bf16.mxu0 %v937
    %1129 = vmatpush1.bf16.msra.mxu0 %v936
    %1130 = vmatprep.subr.bf16.mxu0 %v943
    %1131 = vmatpush1.bf16.msra.mxu0 %v942
    %1132 = vmatprep.subr.bf16.mxu0 %v949
    %1133 = vmatpush1.bf16.msra.mxu0 %v948
    %1134 = vmatprep.subr.bf16.mxu0 %v955
    %1135 = vmatpush1.bf16.msra.mxu0 %v954
    %1136 = vmatprep.subr.bf16.mxu0 %v961
    %1137 = vmatpush1.bf16.msra.mxu0 %v960
    %1138 = vmatprep.subr.bf16.mxu0 %v967
    %1139 = vmatpush1.bf16.msra.mxu0 %v966
    %1140 = vmatprep.subr.bf16.mxu0 %v973
    %1141 = vmatpush1.bf16.msra.mxu0 %v972
    %1142 = vmatprep.subr.bf16.mxu0 %v979
    %1143 = vmatpush1.bf16.msra.mxu0 %v978
    %1144 = vmatprep.subr.bf16.mxu0 %v985
    %1145 = vmatpush1.bf16.msra.mxu0 %v984
    %1146 = vmatprep.subr.bf16.mxu0 %v991
    %1147 = vmatpush1.bf16.msra.mxu0 %v990
    %1148 = vmatprep.subr.bf16.mxu0 %v997
    %1149 = vmatpush1.bf16.msra.mxu0 %v996
    %1150 = vmatprep.subr.bf16.mxu0 %v1003
    %1151 = vmatpush1.bf16.msra.mxu0 %v1002
    %1152 = vmatprep.subr.bf16.mxu0 %v1009
    %1153 = vmatpush1.bf16.msra.mxu0 %v1008
    %1154 = vmatprep.subr.bf16.mxu0 %v1015
    %1155 = vmatpush1.bf16.msra.mxu0 %v1014
    %1156 = vmatprep.subr.bf16.mxu0 %v1021
    %1157 = vmatpush1.bf16.msra.mxu0 %v1020
    %1158 = vmatprep.subr.bf16.mxu0 %v1027
    %1159 = vmatpush1.bf16.msra.mxu0 %v1026
    %1160 = vmatprep.mubr.bf16.mxu0 %v537
    %1161 = vmatmul.mubr.bf16.gmra.mrb[0].mxu0 %v536
    %v1162 = vpop.f32.mrb[0].mxu0
    %v1163 = vadd.f32 0.0, %v1162
    %v1164 = vpop.f32.mrb[0].mxu0
    %v1165 = vadd.f32 0.0, %v1164
    %v1166 = vpop.f32.mrb[0].mxu0
    %v1167 = vadd.f32 0.0, %v1166
    %v1168 = vpop.f32.mrb[0].mxu0
    %v1169 = vadd.f32 0.0, %v1168
    %1170 = vmatprep.mubr.bf16.mxu0 %v539
    %1171 = vmatmul.mubr.bf16.gmra.mrb[0].mxu0 %v538
    %v1172 = vpop.f32.mrb[0].mxu0
    %v1173 = vadd.f32 0.0, %v1172
    %v1174 = vpop.f32.mrb[0].mxu0
    %v1175 = vadd.f32 0.0, %v1174
    %v1176 = vpop.f32.mrb[0].mxu0
    %v1177 = vadd.f32 0.0, %v1176
    %v1178 = vpop.f32.mrb[0].mxu0
    %v1179 = vadd.f32 0.0, %v1178
    %1180 = vmatprep.mubr.bf16.mxu0 %v541
    %1181 = vmatmul.mubr.bf16.gmra.mrb[0].mxu0 %v540
    %v1182 = vpop.f32.mrb[0].mxu0
    %v1183 = vadd.f32 0.0, %v1182
    %v1184 = vpop.f32.mrb[0].mxu0
    %v1185 = vadd.f32 0.0, %v1184
    %v1186 = vpop.f32.mrb[0].mxu0
    %v1187 = vadd.f32 0.0, %v1186
    %v1188 = vpop.f32.mrb[0].mxu0
    %v1189 = vadd.f32 0.0, %v1188
    %1190 = vmatprep.mubr.bf16.mxu0 %v543
    %1191 = vmatmul.mubr.bf16.gmra.mrb[0].mxu0 %v542
    %v1192 = vpop.f32.mrb[0].mxu0
    %v1193 = vadd.f32 0.0, %v1192
    %v1194 = vpop.f32.mrb[0].mxu0
    %v1195 = vadd.f32 0.0, %v1194
    %v1196 = vpop.f32.mrb[0].mxu0
    %v1197 = vadd.f32 0.0, %v1196
    %v1198 = vpop.f32.mrb[0].mxu0
    %v1199 = vadd.f32 0.0, %v1198
    %1200 = vmatprep.mubr.bf16.mxu0 %v545
    %1201 = vmatmul.mubr.bf16.gmra.mrb[0].mxu0 %v544
    %v1202 = vpop.f32.mrb[0].mxu0
    %v1203 = vadd.f32 0.0, %v1202
    %v1204 = vpop.f32.mrb[0].mxu0
    %v1205 = vadd.f32 0.0, %v1204
    %v1206 = vpop.f32.mrb[0].mxu0
    %v1207 = vadd.f32 0.0, %v1206
    %v1208 = vpop.f32.mrb[0].mxu0
    %v1209 = vadd.f32 0.0, %v1208
    %1210 = vmatprep.mubr.bf16.mxu0 %v547
    %1211 = vmatmul.mubr.bf16.gmra.mrb[0].mxu0 %v546
    %v1212 = vpop.f32.mrb[0].mxu0
    %v1213 = vadd.f32 0.0, %v1212
    %v1214 = vpop.f32.mrb[0].mxu0
    %v1215 = vadd.f32 0.0, %v1214
    %v1216 = vpop.f32.mrb[0].mxu0
    %v1217 = vadd.f32 0.0, %v1216
    %v1218 = vpop.f32.mrb[0].mxu0
    %v1219 = vadd.f32 0.0, %v1218
    %1220 = vmatprep.mubr.bf16.mxu0 %v549
    %1221 = vmatmul.mubr.bf16.gmra.mrb[0].mxu0 %v548
    %v1222 = vpop.f32.mrb[0].mxu0
    %v1223 = vadd.f32 0.0, %v1222
    %v1224 = vpop.f32.mrb[0].mxu0
    %v1225 = vadd.f32 0.0, %v1224
    %v1226 = vpop.f32.mrb[0].mxu0
    %v1227 = vadd.f32 0.0, %v1226
    %v1228 = vpop.f32.mrb[0].mxu0
    %v1229 = vadd.f32 0.0, %v1228
    %1230 = vmatprep.mubr.bf16.mxu0 %v551
    %1231 = vmatmul.mubr.bf16.gmra.mrb[0].mxu0 %v550
    %v1232 = vpop.f32.mrb[0].mxu0
    %v1233 = vadd.f32 0.0, %v1232
    %v1234 = vpop.f32.mrb[0].mxu0
    %v1235 = vadd.f32 0.0, %v1234
    %v1236 = vpop.f32.mrb[0].mxu0
    %v1237 = vadd.f32 0.0, %v1236
    %v1238 = vpop.f32.mrb[0].mxu0
    %v1239 = vadd.f32 0.0, %v1238
    %1240 = vdwg.mxu0
    %1241 = vmatprep.subr.bf16.mxu0 %v939
    %1242 = vmatpush1.bf16.msra.mxu0 %v938
    %1243 = vmatprep.subr.bf16.mxu0 %v945
    %1244 = vmatpush1.bf16.msra.mxu0 %v944
    %1245 = vmatprep.subr.bf16.mxu0 %v951
    %1246 = vmatpush1.bf16.msra.mxu0 %v950
    %1247 = vmatprep.subr.bf16.mxu0 %v957
    %1248 = vmatpush1.bf16.msra.mxu0 %v956
    %1249 = vmatprep.subr.bf16.mxu0 %v963
    %1250 = vmatpush1.bf16.msra.mxu0 %v962
    %1251 = vmatprep.subr.bf16.mxu0 %v969
    %1252 = vmatpush1.bf16.msra.mxu0 %v968
    %1253 = vmatprep.subr.bf16.mxu0 %v975
    %1254 = vmatpush1.bf16.msra.mxu0 %v974
    %1255 = vmatprep.subr.bf16.mxu0 %v981
    %1256 = vmatpush1.bf16.msra.mxu0 %v980
    %1257 = vmatprep.subr.bf16.mxu0 %v987
    %1258 = vmatpush1.bf16.msra.mxu0 %v986
    %1259 = vmatprep.subr.bf16.mxu0 %v993
    %1260 = vmatpush1.bf16.msra.mxu0 %v992
    %1261 = vmatprep.subr.bf16.mxu0 %v999
    %1262 = vmatpush1.bf16.msra.mxu0 %v998
    %1263 = vmatprep.subr.bf16.mxu0 %v1005
    %1264 = vmatpush1.bf16.msra.mxu0 %v1004
    %1265 = vmatprep.subr.bf16.mxu0 %v1011
    %1266 = vmatpush1.bf16.msra.mxu0 %v1010
    %1267 = vmatprep.subr.bf16.mxu0 %v1017
    %1268 = vmatpush1.bf16.msra.mxu0 %v1016
    %1269 = vmatprep.subr.bf16.mxu0 %v1023
    %1270 = vmatpush1.bf16.msra.mxu0 %v1022
    %1271 = vmatprep.subr.bf16.mxu0 %v1029
    %1272 = vmatpush1.bf16.msra.mxu0 %v1028
    %1273 = vmatprep.mubr.bf16.mxu0 %v537
    %1274 = vmatmul.mubr.bf16.gmra.mrb[0].mxu0 %v536
    %v1275 = vpop.f32.mrb[0].mxu0
    %v1276 = vadd.f32 0.0, %v1275
    %v1277 = vpop.f32.mrb[0].mxu0
    %v1278 = vadd.f32 0.0, %v1277
    %v1279 = vpop.f32.mrb[0].mxu0
    %v1280 = vadd.f32 0.0, %v1279
    %v1281 = vpop.f32.mrb[0].mxu0
    %v1282 = vadd.f32 0.0, %v1281
    %1283 = vmatprep.mubr.bf16.mxu0 %v539
    %1284 = vmatmul.mubr.bf16.gmra.mrb[0].mxu0 %v538
    %v1285 = vpop.f32.mrb[0].mxu0
    %v1286 = vadd.f32 0.0, %v1285
    %v1287 = vpop.f32.mrb[0].mxu0
    %v1288 = vadd.f32 0.0, %v1287
    %v1289 = vpop.f32.mrb[0].mxu0
    %v1290 = vadd.f32 0.0, %v1289
    %v1291 = vpop.f32.mrb[0].mxu0
    %v1292 = vadd.f32 0.0, %v1291
    %1293 = vmatprep.mubr.bf16.mxu0 %v541
    %1294 = vmatmul.mubr.bf16.gmra.mrb[0].mxu0 %v540
    %v1295 = vpop.f32.mrb[0].mxu0
    %v1296 = vadd.f32 0.0, %v1295
    %v1297 = vpop.f32.mrb[0].mxu0
    %v1298 = vadd.f32 0.0, %v1297
    %v1299 = vpop.f32.mrb[0].mxu0
    %v1300 = vadd.f32 0.0, %v1299
    %v1301 = vpop.f32.mrb[0].mxu0
    %v1302 = vadd.f32 0.0, %v1301
    %1303 = vmatprep.mubr.bf16.mxu0 %v543
    %1304 = vmatmul.mubr.bf16.gmra.mrb[0].mxu0 %v542
    %v1305 = vpop.f32.mrb[0].mxu0
    %v1306 = vadd.f32 0.0, %v1305
    %v1307 = vpop.f32.mrb[0].mxu0
    %v1308 = vadd.f32 0.0, %v1307
    %v1309 = vpop.f32.mrb[0].mxu0
    %v1310 = vadd.f32 0.0, %v1309
    %v1311 = vpop.f32.mrb[0].mxu0
    %v1312 = vadd.f32 0.0, %v1311
    %1313 = vmatprep.mubr.bf16.mxu0 %v545
    %1314 = vmatmul.mubr.bf16.gmra.mrb[0].mxu0 %v544
    %v1315 = vpop.f32.mrb[0].mxu0
    %v1316 = vadd.f32 0.0, %v1315
    %v1317 = vpop.f32.mrb[0].mxu0
    %v1318 = vadd.f32 0.0, %v1317
    %v1319 = vpop.f32.mrb[0].mxu0
    %v1320 = vadd.f32 0.0, %v1319
    %v1321 = vpop.f32.mrb[0].mxu0
    %v1322 = vadd.f32 0.0, %v1321
    %1323 = vmatprep.mubr.bf16.mxu0 %v547
    %1324 = vmatmul.mubr.bf16.gmra.mrb[0].mxu0 %v546
    %v1325 = vpop.f32.mrb[0].mxu0
    %v1326 = vadd.f32 0.0, %v1325
    %v1327 = vpop.f32.mrb[0].mxu0
    %v1328 = vadd.f32 0.0, %v1327
    %v1329 = vpop.f32.mrb[0].mxu0
    %v1330 = vadd.f32 0.0, %v1329
    %v1331 = vpop.f32.mrb[0].mxu0
    %v1332 = vadd.f32 0.0, %v1331
    %1333 = vmatprep.mubr.bf16.mxu0 %v549
    %1334 = vmatmul.mubr.bf16.gmra.mrb[0].mxu0 %v548
    %v1335 = vpop.f32.mrb[0].mxu0
    %v1336 = vadd.f32 0.0, %v1335
    %v1337 = vpop.f32.mrb[0].mxu0
    %v1338 = vadd.f32 0.0, %v1337
    %v1339 = vpop.f32.mrb[0].mxu0
    %v1340 = vadd.f32 0.0, %v1339
    %v1341 = vpop.f32.mrb[0].mxu0
    %v1342 = vadd.f32 0.0, %v1341
    %1343 = vmatprep.mubr.bf16.mxu0 %v551
    %1344 = vmatmul.mubr.bf16.gmra.mrb[0].mxu0 %v550
    %v1345 = vpop.f32.mrb[0].mxu0
    %v1346 = vadd.f32 0.0, %v1345
    %v1347 = vpop.f32.mrb[0].mxu0
    %v1348 = vadd.f32 0.0, %v1347
    %v1349 = vpop.f32.mrb[0].mxu0
    %v1350 = vadd.f32 0.0, %v1349
    %v1351 = vpop.f32.mrb[0].mxu0
    %v1352 = vadd.f32 0.0, %v1351
    %1353 = vdwg.mxu0
    %1354 = vmatprep.subr.bf16.mxu0 %v941
    %1355 = vmatpush1.bf16.msra.mxu0 %v940
    %1356 = vmatprep.subr.bf16.mxu0 %v947
    %1357 = vmatpush1.bf16.msra.mxu0 %v946
    %1358 = vmatprep.subr.bf16.mxu0 %v953
    %1359 = vmatpush1.bf16.msra.mxu0 %v952
    %1360 = vmatprep.subr.bf16.mxu0 %v959
    %1361 = vmatpush1.bf16.msra.mxu0 %v958
    %1362 = vmatprep.subr.bf16.mxu0 %v965
    %1363 = vmatpush1.bf16.msra.mxu0 %v964
    %1364 = vmatprep.subr.bf16.mxu0 %v971
    %1365 = vmatpush1.bf16.msra.mxu0 %v970
    %1366 = vmatprep.subr.bf16.mxu0 %v977
    %1367 = vmatpush1.bf16.msra.mxu0 %v976
    %1368 = vmatprep.subr.bf16.mxu0 %v983
    %1369 = vmatpush1.bf16.msra.mxu0 %v982
    %1370 = vmatprep.subr.bf16.mxu0 %v989
    %1371 = vmatpush1.bf16.msra.mxu0 %v988
    %1372 = vmatprep.subr.bf16.mxu0 %v995
    %1373 = vmatpush1.bf16.msra.mxu0 %v994
    %1374 = vmatprep.subr.bf16.mxu0 %v1001
    %1375 = vmatpush1.bf16.msra.mxu0 %v1000
    %1376 = vmatprep.subr.bf16.mxu0 %v1007
    %1377 = vmatpush1.bf16.msra.mxu0 %v1006
    %1378 = vmatprep.subr.bf16.mxu0 %v1013
    %1379 = vmatpush1.bf16.msra.mxu0 %v1012
    %1380 = vmatprep.subr.bf16.mxu0 %v1019
    %1381 = vmatpush1.bf16.msra.mxu0 %v1018
    %1382 = vmatprep.subr.bf16.mxu0 %v1025
    %1383 = vmatpush1.bf16.msra.mxu0 %v1024
    %1384 = vmatprep.subr.bf16.mxu0 %v1031
    %1385 = vmatpush1.bf16.msra.mxu0 %v1030
    %1386 = vmatprep.mubr.bf16.mxu0 %v537
    %1387 = vmatmul.mubr.bf16.gmra.mrb[0].mxu0 %v536
    %v1388 = vpop.f32.mrb[0].mxu0
    %v1389 = vadd.f32 0.0, %v1388
    %v1390 = vpop.f32.mrb[0].mxu0
    %v1391 = vadd.f32 0.0, %v1390
    %v1392 = vpop.f32.mrb[0].mxu0
    %v1393 = vadd.f32 0.0, %v1392
    %v1394 = vpop.f32.mrb[0].mxu0
    %v1395 = vadd.f32 0.0, %v1394
    %1396 = vmatprep.mubr.bf16.mxu0 %v539
    %1397 = vmatmul.mubr.bf16.gmra.mrb[0].mxu0 %v538
    %v1398 = vpop.f32.mrb[0].mxu0
    %v1399 = vadd.f32 0.0, %v1398
    %v1400 = vpop.f32.mrb[0].mxu0
    %v1401 = vadd.f32 0.0, %v1400
    %v1402 = vpop.f32.mrb[0].mxu0
    %v1403 = vadd.f32 0.0, %v1402
    %v1404 = vpop.f32.mrb[0].mxu0
    %v1405 = vadd.f32 0.0, %v1404
    %1406 = vmatprep.mubr.bf16.mxu0 %v541
    %1407 = vmatmul.mubr.bf16.gmra.mrb[0].mxu0 %v540
    %v1408 = vpop.f32.mrb[0].mxu0
    %v1409 = vadd.f32 0.0, %v1408
    %v1410 = vpop.f32.mrb[0].mxu0
    %v1411 = vadd.f32 0.0, %v1410
    %v1412 = vpop.f32.mrb[0].mxu0
    %v1413 = vadd.f32 0.0, %v1412
    %v1414 = vpop.f32.mrb[0].mxu0
    %v1415 = vadd.f32 0.0, %v1414
    %1416 = vmatprep.mubr.bf16.mxu0 %v543
    %1417 = vmatmul.mubr.bf16.gmra.mrb[0].mxu0 %v542
    %v1418 = vpop.f32.mrb[0].mxu0
    %v1419 = vadd.f32 0.0, %v1418
    %v1420 = vpop.f32.mrb[0].mxu0
    %v1421 = vadd.f32 0.0, %v1420
    %v1422 = vpop.f32.mrb[0].mxu0
    %v1423 = vadd.f32 0.0, %v1422
    %v1424 = vpop.f32.mrb[0].mxu0
    %v1425 = vadd.f32 0.0, %v1424
    %1426 = vmatprep.mubr.bf16.mxu0 %v545
    %1427 = vmatmul.mubr.bf16.gmra.mrb[0].mxu0 %v544
    %v1428 = vpop.f32.mrb[0].mxu0
    %v1429 = vadd.f32 0.0, %v1428
    %v1430 = vpop.f32.mrb[0].mxu0
    %v1431 = vadd.f32 0.0, %v1430
    %v1432 = vpop.f32.mrb[0].mxu0
    %v1433 = vadd.f32 0.0, %v1432
    %v1434 = vpop.f32.mrb[0].mxu0
    %v1435 = vadd.f32 0.0, %v1434
    %1436 = vmatprep.mubr.bf16.mxu0 %v547
    %1437 = vmatmul.mubr.bf16.gmra.mrb[0].mxu0 %v546
    %v1438 = vpop.f32.mrb[0].mxu0
    %v1439 = vadd.f32 0.0, %v1438
    %v1440 = vpop.f32.mrb[0].mxu0
    %v1441 = vadd.f32 0.0, %v1440
    %v1442 = vpop.f32.mrb[0].mxu0
    %v1443 = vadd.f32 0.0, %v1442
    %v1444 = vpop.f32.mrb[0].mxu0
    %v1445 = vadd.f32 0.0, %v1444
    %1446 = vmatprep.mubr.bf16.mxu0 %v549
    %1447 = vmatmul.mubr.bf16.gmra.mrb[0].mxu0 %v548
    %v1448 = vpop.f32.mrb[0].mxu0
    %v1449 = vadd.f32 0.0, %v1448
    %v1450 = vpop.f32.mrb[0].mxu0
    %v1451 = vadd.f32 0.0, %v1450
    %v1452 = vpop.f32.mrb[0].mxu0
    %v1453 = vadd.f32 0.0, %v1452
    %v1454 = vpop.f32.mrb[0].mxu0
    %v1455 = vadd.f32 0.0, %v1454
    %1456 = vmatprep.mubr.bf16.mxu0 %v551
    %1457 = vmatmul.mubr.bf16.gmra.mrb[0].mxu0 %v550
    %v1458 = vpop.f32.mrb[0].mxu0
    %v1459 = vadd.f32 0.0, %v1458
    %v1460 = vpop.f32.mrb[0].mxu0
    %v1461 = vadd.f32 0.0, %v1460
    %v1462 = vpop.f32.mrb[0].mxu0
    %v1463 = vadd.f32 0.0, %v1462
    %v1464 = vpop.f32.mrb[0].mxu0
    %v1465 = vadd.f32 0.0, %v1464
    %1466 = vdwg.mxu0
    %v1467 = vpack.c.bf16 %v1167, %v1163
    %v1468 = vpack.c.bf16 %v1177, %v1173
    %v1469 = vpack.c.bf16 %v1187, %v1183
    %v1470 = vpack.c.bf16 %v1197, %v1193
    %v1471 = vpack.c.bf16 %v1280, %v1276
    %v1472 = vpack.c.bf16 %v1290, %v1286
    %v1473 = vpack.c.bf16 %v1300, %v1296
    %v1474 = vpack.c.bf16 %v1310, %v1306
    %v1475 = vpack.c.bf16 %v1393, %v1389
    %v1476 = vpack.c.bf16 %v1403, %v1399
    %v1477 = vpack.c.bf16 %v1413, %v1409
    %v1478 = vpack.c.bf16 %v1423, %v1419
    %1479 = vmatprep.subr.bf16.mxu0 0
    %1480 = vmatpush1.bf16.xpose.msra.mxu0 %v1471
    %1481 = vmatprep.subr.bf16.mxu0 0
    %1482 = vmatpush1.bf16.xpose.msra.mxu0 %v1472
    %1483 = vmatprep.subr.bf16.mxu0 0
    %1484 = vmatpush1.bf16.xpose.msra.mxu0 %v1473
    %1485 = vmatprep.subr.bf16.mxu0 0
    %1486 = vmatpush1.bf16.xpose.msra.mxu0 %v1474
    %1487 = vmatprep.subr.bf16.mxu0 0
    %1488 = vmatpush1.bf16.xpose.msra.mxu0 0
    %1489 = vmatprep.subr.bf16.mxu0 0
    %1490 = vmatpush1.bf16.xpose.msra.mxu0 0
    %1491 = vmatprep.subr.bf16.mxu0 0
    %1492 = vmatpush1.bf16.xpose.msra.mxu0 0
    %1493 = vmatprep.subr.bf16.mxu0 0
    %1494 = vmatpush1.bf16.xpose.msra.mxu0 0
    %1495 = vmatprep.subr.bf16.mxu0 0
    %1496 = vmatpush1.bf16.xpose.msra.mxu0 0
    %1497 = vmatprep.subr.bf16.mxu0 0
    %1498 = vmatpush1.bf16.xpose.msra.mxu0 0
    %1499 = vmatprep.subr.bf16.mxu0 0
    %1500 = vmatpush1.bf16.xpose.msra.mxu0 0
    %1501 = vmatprep.subr.bf16.mxu0 0
    %1502 = vmatpush1.bf16.xpose.msra.mxu0 0
    %1503 = vmatprep.subr.bf16.mxu0 0
    %1504 = vmatpush1.bf16.xpose.msra.mxu0 0
    %1505 = vmatprep.subr.bf16.mxu0 0
    %1506 = vmatpush1.bf16.xpose.msra.mxu0 0
    %1507 = vmatprep.subr.bf16.mxu0 0
    %1508 = vmatpush1.bf16.xpose.msra.mxu0 0
    %1509 = vmatprep.subr.bf16.mxu0 0
    %1510 = vmatpush1.bf16.xpose.msra.mxu0 0
    %1511 = vmatprep.mubr.bf16.mxu0 0
    %1512 = vmatmul.mubr.bf16.gmra.mrb[0].mxu0 %v1467
    %v1513 = vpop.f32.mrb[0].mxu0
    %v1514 = vadd.f32 0.0, %v1513
    %v1515 = vpop.f32.mrb[0].mxu0
    %v1516 = vpop.f32.mrb[0].mxu0
    %v1517 = vadd.f32 0.0, %v1516
    %v1518 = vpop.f32.mrb[0].mxu0
    %1519 = vmatprep.mubr.bf16.mxu0 0
    %1520 = vmatmul.mubr.bf16.gmra.mrb[0].mxu0 %v1468
    %v1521 = vpop.f32.mrb[0].mxu0
    %v1522 = vadd.f32 0.0, %v1521
    %v1523 = vpop.f32.mrb[0].mxu0
    %v1524 = vpop.f32.mrb[0].mxu0
    %v1525 = vadd.f32 0.0, %v1524
    %v1526 = vpop.f32.mrb[0].mxu0
    %1527 = vmatprep.mubr.bf16.mxu0 0
    %1528 = vmatmul.mubr.bf16.gmra.mrb[0].mxu0 %v1469
    %v1529 = vpop.f32.mrb[0].mxu0
    %v1530 = vadd.f32 0.0, %v1529
    %v1531 = vpop.f32.mrb[0].mxu0
    %v1532 = vpop.f32.mrb[0].mxu0
    %v1533 = vadd.f32 0.0, %v1532
    %v1534 = vpop.f32.mrb[0].mxu0
    %1535 = vmatprep.mubr.bf16.mxu0 0
    %1536 = vmatmul.mubr.bf16.gmra.mrb[0].mxu0 %v1470
    %v1537 = vpop.f32.mrb[0].mxu0
    %v1538 = vadd.f32 0.0, %v1537
    %v1539 = vpop.f32.mrb[0].mxu0
    %v1540 = vpop.f32.mrb[0].mxu0
    %v1541 = vadd.f32 0.0, %v1540
    %v1542 = vpop.f32.mrb[0].mxu0
    %1543 = vdwg.mxu0
    %v1544 = vmul.f32 %v1514, 0.088388346
    %v1545 = vmul.f32 %v1517, 0.088388346
    %v1546 = vmul.f32 %v1522, 0.088388346
    %v1547 = vmul.f32 %v1525, 0.088388346
    %v1548 = vmul.f32 %v1530, 0.088388346
    %v1549 = vmul.f32 %v1533, 0.088388346
    %v1550 = vmul.f32 %v1538, 0.088388346
    %v1551 = vmul.f32 %v1541, 0.088388346
    %vm1552 = vcmask 523264
    %v1553 = vsel %vm1552, %v1544, -inf
    %1554 = vmax.xlane.f32.xlu0 %v1553
    %v1555 = vpop.xlane.xlu0 %1554
    %v1556 = vsel %vm1552, %v1545, -inf
    %1557 = vmax.xlane.f32.xlu0 %v1556
    %v1558 = vpop.xlane.xlu0 %1557
    %v1559 = vsel %vm1552, %v1546, -inf
    %1560 = vmax.xlane.f32.xlu0 %v1559
    %v1561 = vpop.xlane.xlu0 %1560
    %v1562 = vsel %vm1552, %v1547, -inf
    %1563 = vmax.xlane.f32.xlu0 %v1562
    %v1564 = vpop.xlane.xlu0 %1563
    %v1565 = vsel %vm1552, %v1548, -inf
    %1566 = vmax.xlane.f32.xlu0 %v1565
    %v1567 = vpop.xlane.xlu0 %1566
    %v1568 = vsel %vm1552, %v1549, -inf
    %1569 = vmax.xlane.f32.xlu0 %v1568
    %v1570 = vpop.xlane.xlu0 %1569
    %v1571 = vsel %vm1552, %v1550, -inf
    %1572 = vmax.xlane.f32.xlu0 %v1571
    %v1573 = vpop.xlane.xlu0 %1572
    %v1574 = vsel %vm1552, %v1551, -inf
    %1575 = vmax.xlane.f32.xlu0 %v1574
    %v1576 = vpop.xlane.xlu0 %1575
    %v1577 = vsub.f32 %v1544, %v1555
    %v1578 = vsub.f32 %v1545, %v1558
    %v1579 = vsub.f32 %v1546, %v1561
    %v1580 = vsub.f32 %v1547, %v1564
    %v1581 = vsub.f32 %v1548, %v1567
    %v1582 = vsub.f32 %v1549, %v1570
    %v1583 = vsub.f32 %v1550, %v1573
    %v1584 = vsub.f32 %v1551, %v1576
    %v1585 = vmul.f32 %v1577, 1.442695
    %v1586 = vpow.pop %v1585
    %v1587 = vmul.f32 %v1578, 1.442695
    %v1588 = vpow.pop %v1587
    %v1589 = vmul.f32 %v1579, 1.442695
    %v1590 = vpow.pop %v1589
    %v1591 = vmul.f32 %v1580, 1.442695
    %v1592 = vpow.pop %v1591
    %v1593 = vmul.f32 %v1581, 1.442695
    %v1594 = vpow.pop %v1593
    %v1595 = vmul.f32 %v1582, 1.442695
    %v1596 = vpow.pop %v1595
    %v1597 = vmul.f32 %v1583, 1.442695
    %v1598 = vpow.pop %v1597
    %v1599 = vmul.f32 %v1584, 1.442695
    %v1600 = vpow.pop %v1599
    %v1601 = vsel %vm1552, %v1586, 0.0
    %1602 = vadd.xlane.f32.xlu0 %v1601
    %v1603 = vpop.xlane.xlu0 %1602
    %v1604 = vsel %vm1552, %v1588, 0.0
    %1605 = vadd.xlane.f32.xlu0 %v1604
    %v1606 = vpop.xlane.xlu0 %1605
    %v1607 = vsel %vm1552, %v1590, 0.0
    %1608 = vadd.xlane.f32.xlu0 %v1607
    %v1609 = vpop.xlane.xlu0 %1608
    %v1610 = vsel %vm1552, %v1592, 0.0
    %1611 = vadd.xlane.f32.xlu0 %v1610
    %v1612 = vpop.xlane.xlu0 %1611
    %v1613 = vsel %vm1552, %v1594, 0.0
    %1614 = vadd.xlane.f32.xlu0 %v1613
    %v1615 = vpop.xlane.xlu0 %1614
    %v1616 = vsel %vm1552, %v1596, 0.0
    %1617 = vadd.xlane.f32.xlu0 %v1616
    %v1618 = vpop.xlane.xlu0 %1617
    %v1619 = vsel %vm1552, %v1598, 0.0
    %1620 = vadd.xlane.f32.xlu0 %v1619
    %v1621 = vpop.xlane.xlu0 %1620
    %v1622 = vsel %vm1552, %v1600, 0.0
    %1623 = vadd.xlane.f32.xlu0 %v1622
    %v1624 = vpop.xlane.xlu0 %1623
    %v1625 = vrcp.pop %v1603
    %v1626 = vrcp.pop %v1606
    %v1627 = vrcp.pop %v1609
    %v1628 = vrcp.pop %v1612
    %v1629 = vrcp.pop %v1615
    %v1630 = vrcp.pop %v1618
    %v1631 = vrcp.pop %v1621
    %v1632 = vrcp.pop %v1624
    %v1633 = vmul.f32 %v1586, %v1625
    %v1634 = vmul.f32 %v1588, %v1626
    %v1635 = vmul.f32 %v1590, %v1627
    %v1636 = vmul.f32 %v1592, %v1628
    %v1637 = vmul.f32 %v1594, %v1629
    %v1638 = vmul.f32 %v1596, %v1630
    %v1639 = vmul.f32 %v1598, %v1631
    %v1640 = vmul.f32 %v1600, %v1632
    %v1641 = vpack.c.bf16 %v1634, %v1633
    %v1642 = vpack.c.bf16 %v1636, %v1635
    %v1643 = vpack.c.bf16 %v1638, %v1637
    %v1644 = vpack.c.bf16 %v1640, %v1639
    %v1646 = vsel %vm1552, %v1641, 0
    %v1649 = vsel %vm1552, %v1642, 0
    %v1652 = vsel %vm1552, %v1643, 0
    %v1655 = vsel %vm1552, %v1644, 0
    %1657 = vmatprep.subr.bf16.mxu0 0
    %1658 = vmatpush1.bf16.msra.mxu0 %v1475
    %1659 = vmatprep.subr.bf16.mxu0 0
    %1660 = vmatpush1.bf16.msra.mxu0 %v1476
    %1661 = vmatprep.subr.bf16.mxu0 0
    %1662 = vmatpush1.bf16.msra.mxu0 %v1477
    %1663 = vmatprep.subr.bf16.mxu0 0
    %1664 = vmatpush1.bf16.msra.mxu0 %v1478
    %1665 = vmatprep.subr.bf16.mxu0 0
    %1666 = vmatpush1.bf16.msra.mxu0 0
    %1667 = vmatprep.subr.bf16.mxu0 0
    %1668 = vmatpush1.bf16.msra.mxu0 0
    %1669 = vmatprep.subr.bf16.mxu0 0
    %1670 = vmatpush1.bf16.msra.mxu0 0
    %1671 = vmatprep.subr.bf16.mxu0 0
    %1672 = vmatpush1.bf16.msra.mxu0 0
    %1673 = vmatprep.subr.bf16.mxu0 0
    %1674 = vmatpush1.bf16.msra.mxu0 0
    %1675 = vmatprep.subr.bf16.mxu0 0
    %1676 = vmatpush1.bf16.msra.mxu0 0
    %1677 = vmatprep.subr.bf16.mxu0 0
    %1678 = vmatpush1.bf16.msra.mxu0 0
    %1679 = vmatprep.subr.bf16.mxu0 0
    %1680 = vmatpush1.bf16.msra.mxu0 0
    %1681 = vmatprep.subr.bf16.mxu0 0
    %1682 = vmatpush1.bf16.msra.mxu0 0
    %1683 = vmatprep.subr.bf16.mxu0 0
    %1684 = vmatpush1.bf16.msra.mxu0 0
    %1685 = vmatprep.subr.bf16.mxu0 0
    %1686 = vmatpush1.bf16.msra.mxu0 0
    %1687 = vmatprep.subr.bf16.mxu0 0
    %1688 = vmatpush1.bf16.msra.mxu0 0
    %1689 = vmatprep.mubr.bf16.mxu0 0
    %1690 = vmatmul.mubr.bf16.gmra.mrb[0].mxu0 %v1646
    %v1691 = vpop.f32.mrb[0].mxu0
    %v1692 = vadd.f32 0.0, %v1691
    %v1693 = vpop.f32.mrb[0].mxu0
    %v1694 = vpop.f32.mrb[0].mxu0
    %v1695 = vadd.f32 0.0, %v1694
    %v1696 = vpop.f32.mrb[0].mxu0
    %1697 = vmatprep.mubr.bf16.mxu0 0
    %1698 = vmatmul.mubr.bf16.gmra.mrb[0].mxu0 %v1649
    %v1699 = vpop.f32.mrb[0].mxu0
    %v1700 = vadd.f32 0.0, %v1699
    %v1701 = vpop.f32.mrb[0].mxu0
    %v1702 = vpop.f32.mrb[0].mxu0
    %v1703 = vadd.f32 0.0, %v1702
    %v1704 = vpop.f32.mrb[0].mxu0
    %1705 = vmatprep.mubr.bf16.mxu0 0
    %1706 = vmatmul.mubr.bf16.gmra.mrb[0].mxu0 %v1652
    %v1707 = vpop.f32.mrb[0].mxu0
    %v1708 = vadd.f32 0.0, %v1707
    %v1709 = vpop.f32.mrb[0].mxu0
    %v1710 = vpop.f32.mrb[0].mxu0
    %v1711 = vadd.f32 0.0, %v1710
    %v1712 = vpop.f32.mrb[0].mxu0
    %1713 = vmatprep.mubr.bf16.mxu0 0
    %1714 = vmatmul.mubr.bf16.gmra.mrb[0].mxu0 %v1655
    %v1715 = vpop.f32.mrb[0].mxu0
    %v1716 = vadd.f32 0.0, %v1715
    %v1717 = vpop.f32.mrb[0].mxu0
    %v1718 = vpop.f32.mrb[0].mxu0
    %v1719 = vadd.f32 0.0, %v1718
    %v1720 = vpop.f32.mrb[0].mxu0
    %1721 = vdwg.mxu0
    %v1722 = vpack.c.bf16 %v1695, %v1692
    %v1723 = vpack.c.bf16 %v1703, %v1700
    %v1724 = vpack.c.bf16 %v1711, %v1708
    %v1725 = vpack.c.bf16 %v1719, %v1716
    %v1726 = vld [vmem:[#allocation7] sm:$0xff]
    %v1727 = vld [vmem:[#allocation7 + $0x8] sm:$0xff]
    %v1728 = vld [vmem:[#allocation7 + $0x10] sm:$0xff]
    %v1729 = vld [vmem:[#allocation7 + $0x18] sm:$0xff]
    %v1730 = vld [vmem:[#allocation7 + $0x20] sm:$0xff]
    %v1731 = vld [vmem:[#allocation7 + $0x28] sm:$0xff]
    %v1732 = vld [vmem:[#allocation7 + $0x30] sm:$0xff]
    %v1733 = vld [vmem:[#allocation7 + $0x38] sm:$0xff]
    %v1734 = vld [vmem:[#allocation7 + $0x40] sm:$0xff]
    %v1735 = vld [vmem:[#allocation7 + $0x48] sm:$0xff]
    %v1736 = vld [vmem:[#allocation7 + $0x50] sm:$0xff]
    %v1737 = vld [vmem:[#allocation7 + $0x58] sm:$0xff]
    %v1738 = vld [vmem:[#allocation7 + $0x60] sm:$0xff]
    %v1739 = vld [vmem:[#allocation7 + $0x68] sm:$0xff]
    %v1740 = vld [vmem:[#allocation7 + $0x70] sm:$0xff]
    %v1741 = vld [vmem:[#allocation7 + $0x78] sm:$0xff]
    %v1742 = vpack.c.bf16 %v1169, %v1165
    %v1743 = vpack.c.bf16 %v1179, %v1175
    %v1744 = vpack.c.bf16 %v1189, %v1185
    %v1745 = vpack.c.bf16 %v1199, %v1195
    %v1746 = vpack.c.bf16 %v1282, %v1278
    %v1747 = vpack.c.bf16 %v1292, %v1288
    %v1748 = vpack.c.bf16 %v1302, %v1298
    %v1749 = vpack.c.bf16 %v1312, %v1308
    %v1750 = vpack.c.bf16 %v1395, %v1391
    %v1751 = vpack.c.bf16 %v1405, %v1401
    %v1752 = vpack.c.bf16 %v1415, %v1411
    %v1753 = vpack.c.bf16 %v1425, %v1421
    %1754 = vmatprep.subr.bf16.mxu0 0
    %1755 = vmatpush1.bf16.xpose.msra.mxu0 %v1746
    %1756 = vmatprep.subr.bf16.mxu0 0
    %1757 = vmatpush1.bf16.xpose.msra.mxu0 %v1747
    %1758 = vmatprep.subr.bf16.mxu0 0
    %1759 = vmatpush1.bf16.xpose.msra.mxu0 %v1748
    %1760 = vmatprep.subr.bf16.mxu0 0
    %1761 = vmatpush1.bf16.xpose.msra.mxu0 %v1749
    %1762 = vmatprep.subr.bf16.mxu0 0
    %1763 = vmatpush1.bf16.xpose.msra.mxu0 0
    %1764 = vmatprep.subr.bf16.mxu0 0
    %1765 = vmatpush1.bf16.xpose.msra.mxu0 0
    %1766 = vmatprep.subr.bf16.mxu0 0
    %1767 = vmatpush1.bf16.xpose.msra.mxu0 0
    %1768 = vmatprep.subr.bf16.mxu0 0
    %1769 = vmatpush1.bf16.xpose.msra.mxu0 0
    %1770 = vmatprep.subr.bf16.mxu0 0
    %1771 = vmatpush1.bf16.xpose.msra.mxu0 0
    %1772 = vmatprep.subr.bf16.mxu0 0
    %1773 = vmatpush1.bf16.xpose.msra.mxu0 0
    %1774 = vmatprep.subr.bf16.mxu0 0
    %1775 = vmatpush1.bf16.xpose.msra.mxu0 0
    %1776 = vmatprep.subr.bf16.mxu0 0
    %1777 = vmatpush1.bf16.xpose.msra.mxu0 0
    %1778 = vmatprep.subr.bf16.mxu0 0
    %1779 = vmatpush1.bf16.xpose.msra.mxu0 0
    %1780 = vmatprep.subr.bf16.mxu0 0
    %1781 = vmatpush1.bf16.xpose.msra.mxu0 0
    %1782 = vmatprep.subr.bf16.mxu0 0
    %1783 = vmatpush1.bf16.xpose.msra.mxu0 0
    %1784 = vmatprep.subr.bf16.mxu0 0
    %1785 = vmatpush1.bf16.xpose.msra.mxu0 0
    %1786 = vmatprep.mubr.bf16.mxu0 0
    %1787 = vmatmul.mubr.bf16.gmra.mrb[0].mxu0 %v1742
    %v1788 = vpop.f32.mrb[0].mxu0
    %v1789 = vadd.f32 0.0, %v1788
    %v1790 = vpop.f32.mrb[0].mxu0
    %v1791 = vpop.f32.mrb[0].mxu0
    %v1792 = vadd.f32 0.0, %v1791
    %v1793 = vpop.f32.mrb[0].mxu0
    %1794 = vmatprep.mubr.bf16.mxu0 0
    %1795 = vmatmul.mubr.bf16.gmra.mrb[0].mxu0 %v1743
    %v1796 = vpop.f32.mrb[0].mxu0
    %v1797 = vadd.f32 0.0, %v1796
    %v1798 = vpop.f32.mrb[0].mxu0
    %v1799 = vpop.f32.mrb[0].mxu0
    %v1800 = vadd.f32 0.0, %v1799
    %v1801 = vpop.f32.mrb[0].mxu0
    %1802 = vmatprep.mubr.bf16.mxu0 0
    %1803 = vmatmul.mubr.bf16.gmra.mrb[0].mxu0 %v1744
    %v1804 = vpop.f32.mrb[0].mxu0
    %v1805 = vadd.f32 0.0, %v1804
    %v1806 = vpop.f32.mrb[0].mxu0
    %v1807 = vpop.f32.mrb[0].mxu0
    %v1808 = vadd.f32 0.0, %v1807
    %v1809 = vpop.f32.mrb[0].mxu0
    %1810 = vmatprep.mubr.bf16.mxu0 0
    %1811 = vmatmul.mubr.bf16.gmra.mrb[0].mxu0 %v1745
    %v1812 = vpop.f32.mrb[0].mxu0
    %v1813 = vadd.f32 0.0, %v1812
    %v1814 = vpop.f32.mrb[0].mxu0
    %v1815 = vpop.f32.mrb[0].mxu0
    %v1816 = vadd.f32 0.0, %v1815
    %v1817 = vpop.f32.mrb[0].mxu0
    %1818 = vdwg.mxu0
    %v1819 = vmul.f32 %v1789, 0.088388346
    %v1820 = vmul.f32 %v1792, 0.088388346
    %v1821 = vmul.f32 %v1797, 0.088388346
    %v1822 = vmul.f32 %v1800, 0.088388346
    %v1823 = vmul.f32 %v1805, 0.088388346
    %v1824 = vmul.f32 %v1808, 0.088388346
    %v1825 = vmul.f32 %v1813, 0.088388346
    %v1826 = vmul.f32 %v1816, 0.088388346
    %v1827 = vsel %vm1552, %v1819, -inf
    %1828 = vmax.xlane.f32.xlu0 %v1827
    %v1829 = vpop.xlane.xlu0 %1828
    %v1830 = vsel %vm1552, %v1820, -inf
    %1831 = vmax.xlane.f32.xlu0 %v1830
    %v1832 = vpop.xlane.xlu0 %1831
    %v1833 = vsel %vm1552, %v1821, -inf
    %1834 = vmax.xlane.f32.xlu0 %v1833
    %v1835 = vpop.xlane.xlu0 %1834
    %v1836 = vsel %vm1552, %v1822, -inf
    %1837 = vmax.xlane.f32.xlu0 %v1836
    %v1838 = vpop.xlane.xlu0 %1837
    %v1839 = vsel %vm1552, %v1823, -inf
    %1840 = vmax.xlane.f32.xlu0 %v1839
    %v1841 = vpop.xlane.xlu0 %1840
    %v1842 = vsel %vm1552, %v1824, -inf
    %1843 = vmax.xlane.f32.xlu0 %v1842
    %v1844 = vpop.xlane.xlu0 %1843
    %v1845 = vsel %vm1552, %v1825, -inf
    %1846 = vmax.xlane.f32.xlu0 %v1845
    %v1847 = vpop.xlane.xlu0 %1846
    %v1848 = vsel %vm1552, %v1826, -inf
    %1849 = vmax.xlane.f32.xlu0 %v1848
    %v1850 = vpop.xlane.xlu0 %1849
    %v1851 = vsub.f32 %v1819, %v1829
    %v1852 = vsub.f32 %v1820, %v1832
    %v1853 = vsub.f32 %v1821, %v1835
    %v1854 = vsub.f32 %v1822, %v1838
    %v1855 = vsub.f32 %v1823, %v1841
    %v1856 = vsub.f32 %v1824, %v1844
    %v1857 = vsub.f32 %v1825, %v1847
    %v1858 = vsub.f32 %v1826, %v1850
    %v1859 = vmul.f32 %v1851, 1.442695
    %v1860 = vpow.pop %v1859
    %v1861 = vmul.f32 %v1852, 1.442695
    %v1862 = vpow.pop %v1861
    %v1863 = vmul.f32 %v1853, 1.442695
    %v1864 = vpow.pop %v1863
    %v1865 = vmul.f32 %v1854, 1.442695
    %v1866 = vpow.pop %v1865
    %v1867 = vmul.f32 %v1855, 1.442695
    %v1868 = vpow.pop %v1867
    %v1869 = vmul.f32 %v1856, 1.442695
    %v1870 = vpow.pop %v1869
    %v1871 = vmul.f32 %v1857, 1.442695
    %v1872 = vpow.pop %v1871
    %v1873 = vmul.f32 %v1858, 1.442695
    %v1874 = vpow.pop %v1873
    %v1875 = vsel %vm1552, %v1860, 0.0
    %1876 = vadd.xlane.f32.xlu0 %v1875
    %v1877 = vpop.xlane.xlu0 %1876
    %v1878 = vsel %vm1552, %v1862, 0.0
    %1879 = vadd.xlane.f32.xlu0 %v1878
    %v1880 = vpop.xlane.xlu0 %1879
    %v1881 = vsel %vm1552, %v1864, 0.0
    %1882 = vadd.xlane.f32.xlu0 %v1881
    %v1883 = vpop.xlane.xlu0 %1882
    %v1884 = vsel %vm1552, %v1866, 0.0
    %1885 = vadd.xlane.f32.xlu0 %v1884
    %v1886 = vpop.xlane.xlu0 %1885
    %v1887 = vsel %vm1552, %v1868, 0.0
    %1888 = vadd.xlane.f32.xlu0 %v1887
    %v1889 = vpop.xlane.xlu0 %1888
    %v1890 = vsel %vm1552, %v1870, 0.0
    %1891 = vadd.xlane.f32.xlu0 %v1890
    %v1892 = vpop.xlane.xlu0 %1891
    %v1893 = vsel %vm1552, %v1872, 0.0
    %1894 = vadd.xlane.f32.xlu0 %v1893
    %v1895 = vpop.xlane.xlu0 %1894
    %v1896 = vsel %vm1552, %v1874, 0.0
    %1897 = vadd.xlane.f32.xlu0 %v1896
    %v1898 = vpop.xlane.xlu0 %1897
    %v1899 = vrcp.pop %v1877
    %v1900 = vrcp.pop %v1880
    %v1901 = vrcp.pop %v1883
    %v1902 = vrcp.pop %v1886
    %v1903 = vrcp.pop %v1889
    %v1904 = vrcp.pop %v1892
    %v1905 = vrcp.pop %v1895
    %v1906 = vrcp.pop %v1898
    %v1907 = vmul.f32 %v1860, %v1899
    %v1908 = vmul.f32 %v1862, %v1900
    %v1909 = vmul.f32 %v1864, %v1901
    %v1910 = vmul.f32 %v1866, %v1902
    %v1911 = vmul.f32 %v1868, %v1903
    %v1912 = vmul.f32 %v1870, %v1904
    %v1913 = vmul.f32 %v1872, %v1905
    %v1914 = vmul.f32 %v1874, %v1906
    %v1915 = vpack.c.bf16 %v1908, %v1907
    %v1916 = vpack.c.bf16 %v1910, %v1909
    %v1917 = vpack.c.bf16 %v1912, %v1911
    %v1918 = vpack.c.bf16 %v1914, %v1913
    %v1920 = vsel %vm1552, %v1915, 0
    %v1923 = vsel %vm1552, %v1916, 0
    %v1926 = vsel %vm1552, %v1917, 0
    %v1929 = vsel %vm1552, %v1918, 0
    %1931 = vmatprep.subr.bf16.mxu0 0
    %1932 = vmatpush1.bf16.msra.mxu0 %v1750
    %1933 = vmatprep.subr.bf16.mxu0 0
    %1934 = vmatpush1.bf16.msra.mxu0 %v1751
    %1935 = vmatprep.subr.bf16.mxu0 0
    %1936 = vmatpush1.bf16.msra.mxu0 %v1752
    %1937 = vmatprep.subr.bf16.mxu0 0
    %1938 = vmatpush1.bf16.msra.mxu0 %v1753
    %1939 = vmatprep.subr.bf16.mxu0 0
    %1940 = vmatpush1.bf16.msra.mxu0 0
    %1941 = vmatprep.subr.bf16.mxu0 0
    %1942 = vmatpush1.bf16.msra.mxu0 0
    %1943 = vmatprep.subr.bf16.mxu0 0
    %1944 = vmatpush1.bf16.msra.mxu0 0
    %1945 = vmatprep.subr.bf16.mxu0 0
    %1946 = vmatpush1.bf16.msra.mxu0 0
    %1947 = vmatprep.subr.bf16.mxu0 0
    %1948 = vmatpush1.bf16.msra.mxu0 0
    %1949 = vmatprep.subr.bf16.mxu0 0
    %1950 = vmatpush1.bf16.msra.mxu0 0
    %1951 = vmatprep.subr.bf16.mxu0 0
    %1952 = vmatpush1.bf16.msra.mxu0 0
    %1953 = vmatprep.subr.bf16.mxu0 0
    %1954 = vmatpush1.bf16.msra.mxu0 0
    %1955 = vmatprep.subr.bf16.mxu0 0
    %1956 = vmatpush1.bf16.msra.mxu0 0
    %1957 = vmatprep.subr.bf16.mxu0 0
    %1958 = vmatpush1.bf16.msra.mxu0 0
    %1959 = vmatprep.subr.bf16.mxu0 0
    %1960 = vmatpush1.bf16.msra.mxu0 0
    %1961 = vmatprep.subr.bf16.mxu0 0
    %1962 = vmatpush1.bf16.msra.mxu0 0
    %1963 = vmatprep.mubr.bf16.mxu0 0
    %1964 = vmatmul.mubr.bf16.gmra.mrb[0].mxu0 %v1920
    %v1965 = vpop.f32.mrb[0].mxu0
    %v1966 = vadd.f32 0.0, %v1965
    %v1967 = vpop.f32.mrb[0].mxu0
    %v1968 = vpop.f32.mrb[0].mxu0
    %v1969 = vadd.f32 0.0, %v1968
    %v1970 = vpop.f32.mrb[0].mxu0
    %1971 = vmatprep.mubr.bf16.mxu0 0
    %1972 = vmatmul.mubr.bf16.gmra.mrb[0].mxu0 %v1923
    %v1973 = vpop.f32.mrb[0].mxu0
    %v1974 = vadd.f32 0.0, %v1973
    %v1975 = vpop.f32.mrb[0].mxu0
    %v1976 = vpop.f32.mrb[0].mxu0
    %v1977 = vadd.f32 0.0, %v1976
    %v1978 = vpop.f32.mrb[0].mxu0
    %1979 = vmatprep.mubr.bf16.mxu0 0
    %1980 = vmatmul.mubr.bf16.gmra.mrb[0].mxu0 %v1926
    %v1981 = vpop.f32.mrb[0].mxu0
    %v1982 = vadd.f32 0.0, %v1981
    %v1983 = vpop.f32.mrb[0].mxu0
    %v1984 = vpop.f32.mrb[0].mxu0
    %v1985 = vadd.f32 0.0, %v1984
    %v1986 = vpop.f32.mrb[0].mxu0
    %1987 = vmatprep.mubr.bf16.mxu0 0
    %1988 = vmatmul.mubr.bf16.gmra.mrb[0].mxu0 %v1929
    %v1989 = vpop.f32.mrb[0].mxu0
    %v1990 = vadd.f32 0.0, %v1989
    %v1991 = vpop.f32.mrb[0].mxu0
    %v1992 = vpop.f32.mrb[0].mxu0
    %v1993 = vadd.f32 0.0, %v1992
    %v1994 = vpop.f32.mrb[0].mxu0
    %1995 = vdwg.mxu0
    %v1996 = vpack.c.bf16 %v1969, %v1966
    %v1997 = vpack.c.bf16 %v1977, %v1974
    %v1998 = vpack.c.bf16 %v1985, %v1982
    %v1999 = vpack.c.bf16 %v1993, %v1990
    %v2000 = vld [vmem:[#allocation7 + $0x80] sm:$0xff]
    %v2001 = vld [vmem:[#allocation7 + $0x88] sm:$0xff]
    %v2002 = vld [vmem:[#allocation7 + $0x90] sm:$0xff]
    %v2003 = vld [vmem:[#allocation7 + $0x98] sm:$0xff]
    %v2004 = vld [vmem:[#allocation7 + $0xa0] sm:$0xff]
    %v2005 = vld [vmem:[#allocation7 + $0xa8] sm:$0xff]
    %v2006 = vld [vmem:[#allocation7 + $0xb0] sm:$0xff]
    %v2007 = vld [vmem:[#allocation7 + $0xb8] sm:$0xff]
    %v2008 = vld [vmem:[#allocation7 + $0xc0] sm:$0xff]
    %v2009 = vld [vmem:[#allocation7 + $0xc8] sm:$0xff]
    %v2010 = vld [vmem:[#allocation7 + $0xd0] sm:$0xff]
    %v2011 = vld [vmem:[#allocation7 + $0xd8] sm:$0xff]
    %v2012 = vld [vmem:[#allocation7 + $0xe0] sm:$0xff]
    %v2013 = vld [vmem:[#allocation7 + $0xe8] sm:$0xff]
    %v2014 = vld [vmem:[#allocation7 + $0xf0] sm:$0xff]
    %v2015 = vld [vmem:[#allocation7 + $0xf8] sm:$0xff]
    %v2032 = vunpack.c.l.b16 %v2000
    %v2033 = vunpack.c.h.b16 %v2000
    %v2034 = vunpack.c.l.b16 %v2001
    %v2035 = vunpack.c.h.b16 %v2001
    %v2036 = vunpack.c.l.b16 %v2002
    %v2037 = vunpack.c.h.b16 %v2002
    %v2038 = vunpack.c.l.b16 %v2003
    %v2039 = vunpack.c.h.b16 %v2003
    %v2040 = vunpack.c.l.b16 %v2004
    %v2041 = vunpack.c.h.b16 %v2004
    %v2042 = vunpack.c.l.b16 %v2005
    %v2043 = vunpack.c.h.b16 %v2005
    %v2044 = vunpack.c.l.b16 %v2006
    %v2045 = vunpack.c.h.b16 %v2006
    %v2046 = vunpack.c.l.b16 %v2007
    %v2047 = vunpack.c.h.b16 %v2007
    %v2048 = vunpack.c.l.b16 %v2008
    %v2049 = vunpack.c.h.b16 %v2008
    %v2050 = vunpack.c.l.b16 %v2009
    %v2051 = vunpack.c.h.b16 %v2009
    %v2052 = vunpack.c.l.b16 %v2010
    %v2053 = vunpack.c.h.b16 %v2010
    %v2054 = vunpack.c.l.b16 %v2011
    %v2055 = vunpack.c.h.b16 %v2011
    %v2056 = vunpack.c.l.b16 %v2012
    %v2057 = vunpack.c.h.b16 %v2012
    %v2058 = vunpack.c.l.b16 %v2013
    %v2059 = vunpack.c.h.b16 %v2013
    %v2060 = vunpack.c.l.b16 %v2014
    %v2061 = vunpack.c.h.b16 %v2014
    %v2062 = vunpack.c.l.b16 %v2015
    %v2063 = vunpack.c.h.b16 %v2015
    %v2064 = vpack.c.b16 %v2034, %v2032
    %v2065 = vpack.c.b16 %v2035, %v2033
    %v2066 = vpack.c.b16 %v2038, %v2036
    %v2067 = vpack.c.b16 %v2039, %v2037
    %v2068 = vpack.c.b16 %v2042, %v2040
    %v2069 = vpack.c.b16 %v2043, %v2041
    %v2070 = vpack.c.b16 %v2046, %v2044
    %v2071 = vpack.c.b16 %v2047, %v2045
    %v2072 = vpack.c.b16 %v2050, %v2048
    %v2073 = vpack.c.b16 %v2051, %v2049
    %v2074 = vpack.c.b16 %v2054, %v2052
    %v2075 = vpack.c.b16 %v2055, %v2053
    %v2076 = vpack.c.b16 %v2058, %v2056
    %v2077 = vpack.c.b16 %v2059, %v2057
    %v2078 = vpack.c.b16 %v2062, %v2060
    %v2079 = vpack.c.b16 %v2063, %v2061
    %2096 = vmatprep.subr.bf16.mxu0 %v2065
    %2097 = vmatpush1.bf16.msra.mxu0 %v2064
    %2098 = vmatprep.subr.bf16.mxu0 %v2067
    %2099 = vmatpush1.bf16.msra.mxu0 %v2066
    %2100 = vmatprep.subr.bf16.mxu0 %v2069
    %2101 = vmatpush1.bf16.msra.mxu0 %v2068
    %2102 = vmatprep.subr.bf16.mxu0 %v2071
    %2103 = vmatpush1.bf16.msra.mxu0 %v2070
    %2104 = vmatprep.subr.bf16.mxu0 %v2073
    %2105 = vmatpush1.bf16.msra.mxu0 %v2072
    %2106 = vmatprep.subr.bf16.mxu0 %v2075
    %2107 = vmatpush1.bf16.msra.mxu0 %v2074
    %2108 = vmatprep.subr.bf16.mxu0 %v2077
    %2109 = vmatpush1.bf16.msra.mxu0 %v2076
    %2110 = vmatprep.subr.bf16.mxu0 %v2079
    %2111 = vmatpush1.bf16.msra.mxu0 %v2078
    %2112 = vmatprep.subr.bf16.mxu0 0
    %2113 = vmatpush1.bf16.msra.mxu0 0
    %2114 = vmatprep.subr.bf16.mxu0 0
    %2115 = vmatpush1.bf16.msra.mxu0 0
    %2116 = vmatprep.subr.bf16.mxu0 0
    %2117 = vmatpush1.bf16.msra.mxu0 0
    %2118 = vmatprep.subr.bf16.mxu0 0
    %2119 = vmatpush1.bf16.msra.mxu0 0
    %2120 = vmatprep.subr.bf16.mxu0 0
    %2121 = vmatpush1.bf16.msra.mxu0 0
    %2122 = vmatprep.subr.bf16.mxu0 0
    %2123 = vmatpush1.bf16.msra.mxu0 0
    %2124 = vmatprep.subr.bf16.mxu0 0
    %2125 = vmatpush1.bf16.msra.mxu0 0
    %2126 = vmatprep.subr.bf16.mxu0 0
    %2127 = vmatpush1.bf16.msra.mxu0 0
    %2128 = vmatprep.mubr.bf16.mxu0 0
    %2129 = vmatmul.mubr.bf16.gmra.mrb[0].mxu0 %v1996
    %v2130 = vpop.f32.mrb[0].mxu0
    %v2131 = vadd.f32 0.0, %v2130
    %v2132 = vpop.f32.mrb[0].mxu0
    %v2133 = vadd.f32 0.0, %v2132
    %v2134 = vpop.f32.mrb[0].mxu0
    %v2135 = vadd.f32 0.0, %v2134
    %v2136 = vpop.f32.mrb[0].mxu0
    %v2137 = vadd.f32 0.0, %v2136
    %2138 = vmatprep.mubr.bf16.mxu0 0
    %2139 = vmatmul.mubr.bf16.gmra.mrb[0].mxu0 %v1997
    %v2140 = vpop.f32.mrb[0].mxu0
    %v2141 = vadd.f32 0.0, %v2140
    %v2142 = vpop.f32.mrb[0].mxu0
    %v2143 = vadd.f32 0.0, %v2142
    %v2144 = vpop.f32.mrb[0].mxu0
    %v2145 = vadd.f32 0.0, %v2144
    %v2146 = vpop.f32.mrb[0].mxu0
    %v2147 = vadd.f32 0.0, %v2146
    %2148 = vmatprep.mubr.bf16.mxu0 0
    %2149 = vmatmul.mubr.bf16.gmra.mrb[0].mxu0 %v1998
    %v2150 = vpop.f32.mrb[0].mxu0
    %v2151 = vadd.f32 0.0, %v2150
    %v2152 = vpop.f32.mrb[0].mxu0
    %v2153 = vadd.f32 0.0, %v2152
    %v2154 = vpop.f32.mrb[0].mxu0
    %v2155 = vadd.f32 0.0, %v2154
    %v2156 = vpop.f32.mrb[0].mxu0
    %v2157 = vadd.f32 0.0, %v2156
    %2158 = vmatprep.mubr.bf16.mxu0 0
    %2159 = vmatmul.mubr.bf16.gmra.mrb[0].mxu0 %v1999
    %v2160 = vpop.f32.mrb[0].mxu0
    %v2161 = vadd.f32 0.0, %v2160
    %v2162 = vpop.f32.mrb[0].mxu0
    %v2163 = vadd.f32 0.0, %v2162
    %v2164 = vpop.f32.mrb[0].mxu0
    %v2165 = vadd.f32 0.0, %v2164
    %v2166 = vpop.f32.mrb[0].mxu0
    %v2167 = vadd.f32 0.0, %v2166
    %2168 = vdwg.mxu0
    %v2185 = vunpack.c.l.b16 %v1726
    %v2186 = vunpack.c.h.b16 %v1726
    %v2187 = vunpack.c.l.b16 %v1727
    %v2188 = vunpack.c.h.b16 %v1727
    %v2189 = vunpack.c.l.b16 %v1728
    %v2190 = vunpack.c.h.b16 %v1728
    %v2191 = vunpack.c.l.b16 %v1729
    %v2192 = vunpack.c.h.b16 %v1729
    %v2193 = vunpack.c.l.b16 %v1730
    %v2194 = vunpack.c.h.b16 %v1730
    %v2195 = vunpack.c.l.b16 %v1731
    %v2196 = vunpack.c.h.b16 %v1731
    %v2197 = vunpack.c.l.b16 %v1732
    %v2198 = vunpack.c.h.b16 %v1732
    %v2199 = vunpack.c.l.b16 %v1733
    %v2200 = vunpack.c.h.b16 %v1733
    %v2201 = vunpack.c.l.b16 %v1734
    %v2202 = vunpack.c.h.b16 %v1734
    %v2203 = vunpack.c.l.b16 %v1735
    %v2204 = vunpack.c.h.b16 %v1735
    %v2205 = vunpack.c.l.b16 %v1736
    %v2206 = vunpack.c.h.b16 %v1736
    %v2207 = vunpack.c.l.b16 %v1737
    %v2208 = vunpack.c.h.b16 %v1737
    %v2209 = vunpack.c.l.b16 %v1738
    %v2210 = vunpack.c.h.b16 %v1738
    %v2211 = vunpack.c.l.b16 %v1739
    %v2212 = vunpack.c.h.b16 %v1739
    %v2213 = vunpack.c.l.b16 %v1740
    %v2214 = vunpack.c.h.b16 %v1740
    %v2215 = vunpack.c.l.b16 %v1741
    %v2216 = vunpack.c.h.b16 %v1741
    %v2217 = vpack.c.b16 %v2187, %v2185
    %v2218 = vpack.c.b16 %v2188, %v2186
    %v2219 = vpack.c.b16 %v2191, %v2189
    %v2220 = vpack.c.b16 %v2192, %v2190
    %v2221 = vpack.c.b16 %v2195, %v2193
    %v2222 = vpack.c.b16 %v2196, %v2194
    %v2223 = vpack.c.b16 %v2199, %v2197
    %v2224 = vpack.c.b16 %v2200, %v2198
    %v2225 = vpack.c.b16 %v2203, %v2201
    %v2226 = vpack.c.b16 %v2204, %v2202
    %v2227 = vpack.c.b16 %v2207, %v2205
    %v2228 = vpack.c.b16 %v2208, %v2206
    %v2229 = vpack.c.b16 %v2211, %v2209
    %v2230 = vpack.c.b16 %v2212, %v2210
    %v2231 = vpack.c.b16 %v2215, %v2213
    %v2232 = vpack.c.b16 %v2216, %v2214
    %2249 = vmatprep.subr.bf16.mxu0 %v2218
    %2250 = vmatpush1.bf16.msra.mxu0 %v2217
    %2251 = vmatprep.subr.bf16.mxu0 %v2220
    %2252 = vmatpush1.bf16.msra.mxu0 %v2219
    %2253 = vmatprep.subr.bf16.mxu0 %v2222
    %2254 = vmatpush1.bf16.msra.mxu0 %v2221
    %2255 = vmatprep.subr.bf16.mxu0 %v2224
    %2256 = vmatpush1.bf16.msra.mxu0 %v2223
    %2257 = vmatprep.subr.bf16.mxu0 %v2226
    %2258 = vmatpush1.bf16.msra.mxu0 %v2225
    %2259 = vmatprep.subr.bf16.mxu0 %v2228
    %2260 = vmatpush1.bf16.msra.mxu0 %v2227
    %2261 = vmatprep.subr.bf16.mxu0 %v2230
    %2262 = vmatpush1.bf16.msra.mxu0 %v2229
    %2263 = vmatprep.subr.bf16.mxu0 %v2232
    %2264 = vmatpush1.bf16.msra.mxu0 %v2231
    %2265 = vmatprep.subr.bf16.mxu0 0
    %2266 = vmatpush1.bf16.msra.mxu0 0
    %2267 = vmatprep.subr.bf16.mxu0 0
    %2268 = vmatpush1.bf16.msra.mxu0 0
    %2269 = vmatprep.subr.bf16.mxu0 0
    %2270 = vmatpush1.bf16.msra.mxu0 0
    %2271 = vmatprep.subr.bf16.mxu0 0
    %2272 = vmatpush1.bf16.msra.mxu0 0
    %2273 = vmatprep.subr.bf16.mxu0 0
    %2274 = vmatpush1.bf16.msra.mxu0 0
    %2275 = vmatprep.subr.bf16.mxu0 0
    %2276 = vmatpush1.bf16.msra.mxu0 0
    %2277 = vmatprep.subr.bf16.mxu0 0
    %2278 = vmatpush1.bf16.msra.mxu0 0
    %2279 = vmatprep.subr.bf16.mxu0 0
    %2280 = vmatpush1.bf16.msra.mxu0 0
    %2281 = vmatprep.mubr.bf16.mxu0 0
    %2282 = vmatmul.mubr.bf16.gmra.mrb[0].mxu0 %v1722
    %v2283 = vpop.f32.mrb[0].mxu0
    %v2284 = vadd.f32 %v2131, %v2283
    %v2285 = vpop.f32.mrb[0].mxu0
    %v2286 = vadd.f32 %v2133, %v2285
    %v2287 = vpop.f32.mrb[0].mxu0
    %v2288 = vadd.f32 %v2135, %v2287
    %v2289 = vpop.f32.mrb[0].mxu0
    %v2290 = vadd.f32 %v2137, %v2289
    %2291 = vmatprep.mubr.bf16.mxu0 0
    %2292 = vmatmul.mubr.bf16.gmra.mrb[0].mxu0 %v1723
    %v2293 = vpop.f32.mrb[0].mxu0
    %v2294 = vadd.f32 %v2141, %v2293
    %v2295 = vpop.f32.mrb[0].mxu0
    %v2296 = vadd.f32 %v2143, %v2295
    %v2297 = vpop.f32.mrb[0].mxu0
    %v2298 = vadd.f32 %v2145, %v2297
    %v2299 = vpop.f32.mrb[0].mxu0
    %v2300 = vadd.f32 %v2147, %v2299
    %2301 = vmatprep.mubr.bf16.mxu0 0
    %2302 = vmatmul.mubr.bf16.gmra.mrb[0].mxu0 %v1724
    %v2303 = vpop.f32.mrb[0].mxu0
    %v2304 = vadd.f32 %v2151, %v2303
    %v2305 = vpop.f32.mrb[0].mxu0
    %v2306 = vadd.f32 %v2153, %v2305
    %v2307 = vpop.f32.mrb[0].mxu0
    %v2308 = vadd.f32 %v2155, %v2307
    %v2309 = vpop.f32.mrb[0].mxu0
    %v2310 = vadd.f32 %v2157, %v2309
    %2311 = vmatprep.mubr.bf16.mxu0 0
    %2312 = vmatmul.mubr.bf16.gmra.mrb[0].mxu0 %v1725
    %v2313 = vpop.f32.mrb[0].mxu0
    %v2314 = vadd.f32 %v2161, %v2313
    %v2315 = vpop.f32.mrb[0].mxu0
    %v2316 = vadd.f32 %v2163, %v2315
    %v2317 = vpop.f32.mrb[0].mxu0
    %v2318 = vadd.f32 %v2165, %v2317
    %v2319 = vpop.f32.mrb[0].mxu0
    %v2320 = vadd.f32 %v2167, %v2319
    %2321 = vdwg.mxu0
    %v2322 = vpack.c.bf16 %v1207, %v1203
    %v2323 = vpack.c.bf16 %v1217, %v1213
    %v2324 = vpack.c.bf16 %v1227, %v1223
    %v2325 = vpack.c.bf16 %v1237, %v1233
    %v2326 = vpack.c.bf16 %v1320, %v1316
    %v2327 = vpack.c.bf16 %v1330, %v1326
    %v2328 = vpack.c.bf16 %v1340, %v1336
    %v2329 = vpack.c.bf16 %v1350, %v1346
    %v2330 = vpack.c.bf16 %v1433, %v1429
    %v2331 = vpack.c.bf16 %v1443, %v1439
    %v2332 = vpack.c.bf16 %v1453, %v1449
    %v2333 = vpack.c.bf16 %v1463, %v1459
    %2334 = vmatprep.subr.bf16.mxu0 0
    %2335 = vmatpush1.bf16.xpose.msra.mxu0 %v2326
    %2336 = vmatprep.subr.bf16.mxu0 0
    %2337 = vmatpush1.bf16.xpose.msra.mxu0 %v2327
    %2338 = vmatprep.subr.bf16.mxu0 0
    %2339 = vmatpush1.bf16.xpose.msra.mxu0 %v2328
    %2340 = vmatprep.subr.bf16.mxu0 0
    %2341 = vmatpush1.bf16.xpose.msra.mxu0 %v2329
    %2342 = vmatprep.subr.bf16.mxu0 0
    %2343 = vmatpush1.bf16.xpose.msra.mxu0 0
    %2344 = vmatprep.subr.bf16.mxu0 0
    %2345 = vmatpush1.bf16.xpose.msra.mxu0 0
    %2346 = vmatprep.subr.bf16.mxu0 0
    %2347 = vmatpush1.bf16.xpose.msra.mxu0 0
    %2348 = vmatprep.subr.bf16.mxu0 0
    %2349 = vmatpush1.bf16.xpose.msra.mxu0 0
    %2350 = vmatprep.subr.bf16.mxu0 0
    %2351 = vmatpush1.bf16.xpose.msra.mxu0 0
    %2352 = vmatprep.subr.bf16.mxu0 0
    %2353 = vmatpush1.bf16.xpose.msra.mxu0 0
    %2354 = vmatprep.subr.bf16.mxu0 0
    %2355 = vmatpush1.bf16.xpose.msra.mxu0 0
    %2356 = vmatprep.subr.bf16.mxu0 0
    %2357 = vmatpush1.bf16.xpose.msra.mxu0 0
    %2358 = vmatprep.subr.bf16.mxu0 0
    %2359 = vmatpush1.bf16.xpose.msra.mxu0 0
    %2360 = vmatprep.subr.bf16.mxu0 0
    %2361 = vmatpush1.bf16.xpose.msra.mxu0 0
    %2362 = vmatprep.subr.bf16.mxu0 0
    %2363 = vmatpush1.bf16.xpose.msra.mxu0 0
    %2364 = vmatprep.subr.bf16.mxu0 0
    %2365 = vmatpush1.bf16.xpose.msra.mxu0 0
    %2366 = vmatprep.mubr.bf16.mxu0 0
    %2367 = vmatmul.mubr.bf16.gmra.mrb[0].mxu0 %v2322
    %v2368 = vpop.f32.mrb[0].mxu0
    %v2369 = vadd.f32 0.0, %v2368
    %v2370 = vpop.f32.mrb[0].mxu0
    %v2371 = vpop.f32.mrb[0].mxu0
    %v2372 = vadd.f32 0.0, %v2371
    %v2373 = vpop.f32.mrb[0].mxu0
    %2374 = vmatprep.mubr.bf16.mxu0 0
    %2375 = vmatmul.mubr.bf16.gmra.mrb[0].mxu0 %v2323
    %v2376 = vpop.f32.mrb[0].mxu0
    %v2377 = vadd.f32 0.0, %v2376
    %v2378 = vpop.f32.mrb[0].mxu0
    %v2379 = vpop.f32.mrb[0].mxu0
    %v2380 = vadd.f32 0.0, %v2379
    %v2381 = vpop.f32.mrb[0].mxu0
    %2382 = vmatprep.mubr.bf16.mxu0 0
    %2383 = vmatmul.mubr.bf16.gmra.mrb[0].mxu0 %v2324
    %v2384 = vpop.f32.mrb[0].mxu0
    %v2385 = vadd.f32 0.0, %v2384
    %v2386 = vpop.f32.mrb[0].mxu0
    %v2387 = vpop.f32.mrb[0].mxu0
    %v2388 = vadd.f32 0.0, %v2387
    %v2389 = vpop.f32.mrb[0].mxu0
    %2390 = vmatprep.mubr.bf16.mxu0 0
    %2391 = vmatmul.mubr.bf16.gmra.mrb[0].mxu0 %v2325
    %v2392 = vpop.f32.mrb[0].mxu0
    %v2393 = vadd.f32 0.0, %v2392
    %v2394 = vpop.f32.mrb[0].mxu0
    %v2395 = vpop.f32.mrb[0].mxu0
    %v2396 = vadd.f32 0.0, %v2395
    %v2397 = vpop.f32.mrb[0].mxu0
    %2398 = vdwg.mxu0
    %v2399 = vmul.f32 %v2369, 0.088388346
    %v2400 = vmul.f32 %v2372, 0.088388346
    %v2401 = vmul.f32 %v2377, 0.088388346
    %v2402 = vmul.f32 %v2380, 0.088388346
    %v2403 = vmul.f32 %v2385, 0.088388346
    %v2404 = vmul.f32 %v2388, 0.088388346
    %v2405 = vmul.f32 %v2393, 0.088388346
    %v2406 = vmul.f32 %v2396, 0.088388346
    %v2407 = vsel %vm1552, %v2399, -inf
    %2408 = vmax.xlane.f32.xlu0 %v2407
    %v2409 = vpop.xlane.xlu0 %2408
    %v2410 = vsel %vm1552, %v2400, -inf
    %2411 = vmax.xlane.f32.xlu0 %v2410
    %v2412 = vpop.xlane.xlu0 %2411
    %v2413 = vsel %vm1552, %v2401, -inf
    %2414 = vmax.xlane.f32.xlu0 %v2413
    %v2415 = vpop.xlane.xlu0 %2414
    %v2416 = vsel %vm1552, %v2402, -inf
    %2417 = vmax.xlane.f32.xlu0 %v2416
    %v2418 = vpop.xlane.xlu0 %2417
    %v2419 = vsel %vm1552, %v2403, -inf
    %2420 = vmax.xlane.f32.xlu0 %v2419
    %v2421 = vpop.xlane.xlu0 %2420
    %v2422 = vsel %vm1552, %v2404, -inf
    %2423 = vmax.xlane.f32.xlu0 %v2422
    %v2424 = vpop.xlane.xlu0 %2423
    %v2425 = vsel %vm1552, %v2405, -inf
    %2426 = vmax.xlane.f32.xlu0 %v2425
    %v2427 = vpop.xlane.xlu0 %2426
    %v2428 = vsel %vm1552, %v2406, -inf
    %2429 = vmax.xlane.f32.xlu0 %v2428
    %v2430 = vpop.xlane.xlu0 %2429
    %v2431 = vsub.f32 %v2399, %v2409
    %v2432 = vsub.f32 %v2400, %v2412
    %v2433 = vsub.f32 %v2401, %v2415
    %v2434 = vsub.f32 %v2402, %v2418
    %v2435 = vsub.f32 %v2403, %v2421
    %v2436 = vsub.f32 %v2404, %v2424
    %v2437 = vsub.f32 %v2405, %v2427
    %v2438 = vsub.f32 %v2406, %v2430
    %v2439 = vmul.f32 %v2431, 1.442695
    %v2440 = vpow.pop %v2439
    %v2441 = vmul.f32 %v2432, 1.442695
    %v2442 = vpow.pop %v2441
    %v2443 = vmul.f32 %v2433, 1.442695
    %v2444 = vpow.pop %v2443
    %v2445 = vmul.f32 %v2434, 1.442695
    %v2446 = vpow.pop %v2445
    %v2447 = vmul.f32 %v2435, 1.442695
    %v2448 = vpow.pop %v2447
    %v2449 = vmul.f32 %v2436, 1.442695
    %v2450 = vpow.pop %v2449
    %v2451 = vmul.f32 %v2437, 1.442695
    %v2452 = vpow.pop %v2451
    %v2453 = vmul.f32 %v2438, 1.442695
    %v2454 = vpow.pop %v2453
    %v2455 = vsel %vm1552, %v2440, 0.0
    %2456 = vadd.xlane.f32.xlu0 %v2455
    %v2457 = vpop.xlane.xlu0 %2456
    %v2458 = vsel %vm1552, %v2442, 0.0
    %2459 = vadd.xlane.f32.xlu0 %v2458
    %v2460 = vpop.xlane.xlu0 %2459
    %v2461 = vsel %vm1552, %v2444, 0.0
    %2462 = vadd.xlane.f32.xlu0 %v2461
    %v2463 = vpop.xlane.xlu0 %2462
    %v2464 = vsel %vm1552, %v2446, 0.0
    %2465 = vadd.xlane.f32.xlu0 %v2464
    %v2466 = vpop.xlane.xlu0 %2465
    %v2467 = vsel %vm1552, %v2448, 0.0
    %2468 = vadd.xlane.f32.xlu0 %v2467
    %v2469 = vpop.xlane.xlu0 %2468
    %v2470 = vsel %vm1552, %v2450, 0.0
    %2471 = vadd.xlane.f32.xlu0 %v2470
    %v2472 = vpop.xlane.xlu0 %2471
    %v2473 = vsel %vm1552, %v2452, 0.0
    %2474 = vadd.xlane.f32.xlu0 %v2473
    %v2475 = vpop.xlane.xlu0 %2474
    %v2476 = vsel %vm1552, %v2454, 0.0
    %2477 = vadd.xlane.f32.xlu0 %v2476
    %v2478 = vpop.xlane.xlu0 %2477
    %v2479 = vrcp.pop %v2457
    %v2480 = vrcp.pop %v2460
    %v2481 = vrcp.pop %v2463
    %v2482 = vrcp.pop %v2466
    %v2483 = vrcp.pop %v2469
    %v2484 = vrcp.pop %v2472
    %v2485 = vrcp.pop %v2475
    %v2486 = vrcp.pop %v2478
    %v2487 = vmul.f32 %v2440, %v2479
    %v2488 = vmul.f32 %v2442, %v2480
    %v2489 = vmul.f32 %v2444, %v2481
    %v2490 = vmul.f32 %v2446, %v2482
    %v2491 = vmul.f32 %v2448, %v2483
    %v2492 = vmul.f32 %v2450, %v2484
    %v2493 = vmul.f32 %v2452, %v2485
    %v2494 = vmul.f32 %v2454, %v2486
    %v2495 = vpack.c.bf16 %v2488, %v2487
    %v2496 = vpack.c.bf16 %v2490, %v2489
    %v2497 = vpack.c.bf16 %v2492, %v2491
    %v2498 = vpack.c.bf16 %v2494, %v2493
    %v2500 = vsel %vm1552, %v2495, 0
    %v2503 = vsel %vm1552, %v2496, 0
    %v2506 = vsel %vm1552, %v2497, 0
    %v2509 = vsel %vm1552, %v2498, 0
    %2511 = vmatprep.subr.bf16.mxu0 0
    %2512 = vmatpush1.bf16.msra.mxu0 %v2330
    %2513 = vmatprep.subr.bf16.mxu0 0
    %2514 = vmatpush1.bf16.msra.mxu0 %v2331
    %2515 = vmatprep.subr.bf16.mxu0 0
    %2516 = vmatpush1.bf16.msra.mxu0 %v2332
    %2517 = vmatprep.subr.bf16.mxu0 0
    %2518 = vmatpush1.bf16.msra.mxu0 %v2333
    %2519 = vmatprep.subr.bf16.mxu0 0
    %2520 = vmatpush1.bf16.msra.mxu0 0
    %2521 = vmatprep.subr.bf16.mxu0 0
    %2522 = vmatpush1.bf16.msra.mxu0 0
    %2523 = vmatprep.subr.bf16.mxu0 0
    %2524 = vmatpush1.bf16.msra.mxu0 0
    %2525 = vmatprep.subr.bf16.mxu0 0
    %2526 = vmatpush1.bf16.msra.mxu0 0
    %2527 = vmatprep.subr.bf16.mxu0 0
    %2528 = vmatpush1.bf16.msra.mxu0 0
    %2529 = vmatprep.subr.bf16.mxu0 0
    %2530 = vmatpush1.bf16.msra.mxu0 0
    %2531 = vmatprep.subr.bf16.mxu0 0
    %2532 = vmatpush1.bf16.msra.mxu0 0
    %2533 = vmatprep.subr.bf16.mxu0 0
    %2534 = vmatpush1.bf16.msra.mxu0 0
    %2535 = vmatprep.subr.bf16.mxu0 0
    %2536 = vmatpush1.bf16.msra.mxu0 0
    %2537 = vmatprep.subr.bf16.mxu0 0
    %2538 = vmatpush1.bf16.msra.mxu0 0
    %2539 = vmatprep.subr.bf16.mxu0 0
    %2540 = vmatpush1.bf16.msra.mxu0 0
    %2541 = vmatprep.subr.bf16.mxu0 0
    %2542 = vmatpush1.bf16.msra.mxu0 0
    %2543 = vmatprep.mubr.bf16.mxu0 0
    %2544 = vmatmul.mubr.bf16.gmra.mrb[0].mxu0 %v2500
    %v2545 = vpop.f32.mrb[0].mxu0
    %v2546 = vadd.f32 0.0, %v2545
    %v2547 = vpop.f32.mrb[0].mxu0
    %v2548 = vpop.f32.mrb[0].mxu0
    %v2549 = vadd.f32 0.0, %v2548
    %v2550 = vpop.f32.mrb[0].mxu0
    %2551 = vmatprep.mubr.bf16.mxu0 0
    %2552 = vmatmul.mubr.bf16.gmra.mrb[0].mxu0 %v2503
    %v2553 = vpop.f32.mrb[0].mxu0
    %v2554 = vadd.f32 0.0, %v2553
    %v2555 = vpop.f32.mrb[0].mxu0
    %v2556 = vpop.f32.mrb[0].mxu0
    %v2557 = vadd.f32 0.0, %v2556
    %v2558 = vpop.f32.mrb[0].mxu0
    %2559 = vmatprep.mubr.bf16.mxu0 0
    %2560 = vmatmul.mubr.bf16.gmra.mrb[0].mxu0 %v2506
    %v2561 = vpop.f32.mrb[0].mxu0
    %v2562 = vadd.f32 0.0, %v2561
    %v2563 = vpop.f32.mrb[0].mxu0
    %v2564 = vpop.f32.mrb[0].mxu0
    %v2565 = vadd.f32 0.0, %v2564
    %v2566 = vpop.f32.mrb[0].mxu0
    %2567 = vmatprep.mubr.bf16.mxu0 0
    %2568 = vmatmul.mubr.bf16.gmra.mrb[0].mxu0 %v2509
    %v2569 = vpop.f32.mrb[0].mxu0
    %v2570 = vadd.f32 0.0, %v2569
    %v2571 = vpop.f32.mrb[0].mxu0
    %v2572 = vpop.f32.mrb[0].mxu0
    %v2573 = vadd.f32 0.0, %v2572
    %v2574 = vpop.f32.mrb[0].mxu0
    %2575 = vdwg.mxu0
    %v2576 = vpack.c.bf16 %v2549, %v2546
    %v2577 = vpack.c.bf16 %v2557, %v2554
    %v2578 = vpack.c.bf16 %v2565, %v2562
    %v2579 = vpack.c.bf16 %v2573, %v2570
    %v2580 = vpack.c.bf16 %v1209, %v1205
    %v2581 = vpack.c.bf16 %v1219, %v1215
    %v2582 = vpack.c.bf16 %v1229, %v1225
    %v2583 = vpack.c.bf16 %v1239, %v1235
    %v2584 = vpack.c.bf16 %v1322, %v1318
    %v2585 = vpack.c.bf16 %v1332, %v1328
    %v2586 = vpack.c.bf16 %v1342, %v1338
    %v2587 = vpack.c.bf16 %v1352, %v1348
    %v2588 = vpack.c.bf16 %v1435, %v1431
    %v2589 = vpack.c.bf16 %v1445, %v1441
    %v2590 = vpack.c.bf16 %v1455, %v1451
    %v2591 = vpack.c.bf16 %v1465, %v1461
    %2592 = vmatprep.subr.bf16.mxu0 0
    %2593 = vmatpush1.bf16.xpose.msra.mxu0 %v2584
    %2594 = vmatprep.subr.bf16.mxu0 0
    %2595 = vmatpush1.bf16.xpose.msra.mxu0 %v2585
    %2596 = vmatprep.subr.bf16.mxu0 0
    %2597 = vmatpush1.bf16.xpose.msra.mxu0 %v2586
    %2598 = vmatprep.subr.bf16.mxu0 0
    %2599 = vmatpush1.bf16.xpose.msra.mxu0 %v2587
    %2600 = vmatprep.subr.bf16.mxu0 0
    %2601 = vmatpush1.bf16.xpose.msra.mxu0 0
    %2602 = vmatprep.subr.bf16.mxu0 0
    %2603 = vmatpush1.bf16.xpose.msra.mxu0 0
    %2604 = vmatprep.subr.bf16.mxu0 0
    %2605 = vmatpush1.bf16.xpose.msra.mxu0 0
    %2606 = vmatprep.subr.bf16.mxu0 0
    %2607 = vmatpush1.bf16.xpose.msra.mxu0 0
    %2608 = vmatprep.subr.bf16.mxu0 0
    %2609 = vmatpush1.bf16.xpose.msra.mxu0 0
    %2610 = vmatprep.subr.bf16.mxu0 0
    %2611 = vmatpush1.bf16.xpose.msra.mxu0 0
    %2612 = vmatprep.subr.bf16.mxu0 0
    %2613 = vmatpush1.bf16.xpose.msra.mxu0 0
    %2614 = vmatprep.subr.bf16.mxu0 0
    %2615 = vmatpush1.bf16.xpose.msra.mxu0 0
    %2616 = vmatprep.subr.bf16.mxu0 0
    %2617 = vmatpush1.bf16.xpose.msra.mxu0 0
    %2618 = vmatprep.subr.bf16.mxu0 0
    %2619 = vmatpush1.bf16.xpose.msra.mxu0 0
    %2620 = vmatprep.subr.bf16.mxu0 0
    %2621 = vmatpush1.bf16.xpose.msra.mxu0 0
    %2622 = vmatprep.subr.bf16.mxu0 0
    %2623 = vmatpush1.bf16.xpose.msra.mxu0 0
    %2624 = vmatprep.mubr.bf16.mxu0 0
    %2625 = vmatmul.mubr.bf16.gmra.mrb[0].mxu0 %v2580
    %v2626 = vpop.f32.mrb[0].mxu0
    %v2627 = vadd.f32 0.0, %v2626
    %v2628 = vpop.f32.mrb[0].mxu0
    %v2629 = vpop.f32.mrb[0].mxu0
    %v2630 = vadd.f32 0.0, %v2629
    %v2631 = vpop.f32.mrb[0].mxu0
    %2632 = vmatprep.mubr.bf16.mxu0 0
    %2633 = vmatmul.mubr.bf16.gmra.mrb[0].mxu0 %v2581
    %v2634 = vpop.f32.mrb[0].mxu0
    %v2635 = vadd.f32 0.0, %v2634
    %v2636 = vpop.f32.mrb[0].mxu0
    %v2637 = vpop.f32.mrb[0].mxu0
    %v2638 = vadd.f32 0.0, %v2637
    %v2639 = vpop.f32.mrb[0].mxu0
    %2640 = vmatprep.mubr.bf16.mxu0 0
    %2641 = vmatmul.mubr.bf16.gmra.mrb[0].mxu0 %v2582
    %v2642 = vpop.f32.mrb[0].mxu0
    %v2643 = vadd.f32 0.0, %v2642
    %v2644 = vpop.f32.mrb[0].mxu0
    %v2645 = vpop.f32.mrb[0].mxu0
    %v2646 = vadd.f32 0.0, %v2645
    %v2647 = vpop.f32.mrb[0].mxu0
    %2648 = vmatprep.mubr.bf16.mxu0 0
    %2649 = vmatmul.mubr.bf16.gmra.mrb[0].mxu0 %v2583
    %v2650 = vpop.f32.mrb[0].mxu0
    %v2651 = vadd.f32 0.0, %v2650
    %v2652 = vpop.f32.mrb[0].mxu0
    %v2653 = vpop.f32.mrb[0].mxu0
    %v2654 = vadd.f32 0.0, %v2653
    %v2655 = vpop.f32.mrb[0].mxu0
    %2656 = vdwg.mxu0
    %v2657 = vmul.f32 %v2627, 0.088388346
    %v2658 = vmul.f32 %v2630, 0.088388346
    %v2659 = vmul.f32 %v2635, 0.088388346
    %v2660 = vmul.f32 %v2638, 0.088388346
    %v2661 = vmul.f32 %v2643, 0.088388346
    %v2662 = vmul.f32 %v2646, 0.088388346
    %v2663 = vmul.f32 %v2651, 0.088388346
    %v2664 = vmul.f32 %v2654, 0.088388346
    %v2665 = vsel %vm1552, %v2657, -inf
    %2666 = vmax.xlane.f32.xlu0 %v2665
    %v2667 = vpop.xlane.xlu0 %2666
    %v2668 = vsel %vm1552, %v2658, -inf
    %2669 = vmax.xlane.f32.xlu0 %v2668
    %v2670 = vpop.xlane.xlu0 %2669
    %v2671 = vsel %vm1552, %v2659, -inf
    %2672 = vmax.xlane.f32.xlu0 %v2671
    %v2673 = vpop.xlane.xlu0 %2672
    %v2674 = vsel %vm1552, %v2660, -inf
    %2675 = vmax.xlane.f32.xlu0 %v2674
    %v2676 = vpop.xlane.xlu0 %2675
    %v2677 = vsel %vm1552, %v2661, -inf
    %2678 = vmax.xlane.f32.xlu0 %v2677
    %v2679 = vpop.xlane.xlu0 %2678
    %v2680 = vsel %vm1552, %v2662, -inf
    %2681 = vmax.xlane.f32.xlu0 %v2680
    %v2682 = vpop.xlane.xlu0 %2681
    %v2683 = vsel %vm1552, %v2663, -inf
    %2684 = vmax.xlane.f32.xlu0 %v2683
    %v2685 = vpop.xlane.xlu0 %2684
    %v2686 = vsel %vm1552, %v2664, -inf
    %2687 = vmax.xlane.f32.xlu0 %v2686
    %v2688 = vpop.xlane.xlu0 %2687
    %v2689 = vsub.f32 %v2657, %v2667
    %v2690 = vsub.f32 %v2658, %v2670
    %v2691 = vsub.f32 %v2659, %v2673
    %v2692 = vsub.f32 %v2660, %v2676
    %v2693 = vsub.f32 %v2661, %v2679
    %v2694 = vsub.f32 %v2662, %v2682
    %v2695 = vsub.f32 %v2663, %v2685
    %v2696 = vsub.f32 %v2664, %v2688
    %v2697 = vmul.f32 %v2689, 1.442695
    %v2698 = vpow.pop %v2697
    %v2699 = vmul.f32 %v2690, 1.442695
    %v2700 = vpow.pop %v2699
    %v2701 = vmul.f32 %v2691, 1.442695
    %v2702 = vpow.pop %v2701
    %v2703 = vmul.f32 %v2692, 1.442695
    %v2704 = vpow.pop %v2703
    %v2705 = vmul.f32 %v2693, 1.442695
    %v2706 = vpow.pop %v2705
    %v2707 = vmul.f32 %v2694, 1.442695
    %v2708 = vpow.pop %v2707
    %v2709 = vmul.f32 %v2695, 1.442695
    %v2710 = vpow.pop %v2709
    %v2711 = vmul.f32 %v2696, 1.442695
    %v2712 = vpow.pop %v2711
    %v2713 = vsel %vm1552, %v2698, 0.0
    %2714 = vadd.xlane.f32.xlu0 %v2713
    %v2715 = vpop.xlane.xlu0 %2714
    %v2716 = vsel %vm1552, %v2700, 0.0
    %2717 = vadd.xlane.f32.xlu0 %v2716
    %v2718 = vpop.xlane.xlu0 %2717
    %v2719 = vsel %vm1552, %v2702, 0.0
    %2720 = vadd.xlane.f32.xlu0 %v2719
    %v2721 = vpop.xlane.xlu0 %2720
    %v2722 = vsel %vm1552, %v2704, 0.0
    %2723 = vadd.xlane.f32.xlu0 %v2722
    %v2724 = vpop.xlane.xlu0 %2723
    %v2725 = vsel %vm1552, %v2706, 0.0
    %2726 = vadd.xlane.f32.xlu0 %v2725
    %v2727 = vpop.xlane.xlu0 %2726
    %v2728 = vsel %vm1552, %v2708, 0.0
    %2729 = vadd.xlane.f32.xlu0 %v2728
    %v2730 = vpop.xlane.xlu0 %2729
    %v2731 = vsel %vm1552, %v2710, 0.0
    %2732 = vadd.xlane.f32.xlu0 %v2731
    %v2733 = vpop.xlane.xlu0 %2732
    %v2734 = vsel %vm1552, %v2712, 0.0
    %2735 = vadd.xlane.f32.xlu0 %v2734
    %v2736 = vpop.xlane.xlu0 %2735
    %v2737 = vrcp.pop %v2715
    %v2738 = vrcp.pop %v2718
    %v2739 = vrcp.pop %v2721
    %v2740 = vrcp.pop %v2724
    %v2741 = vrcp.pop %v2727
    %v2742 = vrcp.pop %v2730
    %v2743 = vrcp.pop %v2733
    %v2744 = vrcp.pop %v2736
    %v2745 = vmul.f32 %v2698, %v2737
    %v2746 = vmul.f32 %v2700, %v2738
    %v2747 = vmul.f32 %v2702, %v2739
    %v2748 = vmul.f32 %v2704, %v2740
    %v2749 = vmul.f32 %v2706, %v2741
    %v2750 = vmul.f32 %v2708, %v2742
    %v2751 = vmul.f32 %v2710, %v2743
    %v2752 = vmul.f32 %v2712, %v2744
    %v2753 = vpack.c.bf16 %v2746, %v2745
    %v2754 = vpack.c.bf16 %v2748, %v2747
    %v2755 = vpack.c.bf16 %v2750, %v2749
    %v2756 = vpack.c.bf16 %v2752, %v2751
    %v2758 = vsel %vm1552, %v2753, 0
    %v2761 = vsel %vm1552, %v2754, 0
    %v2764 = vsel %vm1552, %v2755, 0
    %v2767 = vsel %vm1552, %v2756, 0
    %2769 = vmatprep.subr.bf16.mxu0 0
    %2770 = vmatpush1.bf16.msra.mxu0 %v2588
    %2771 = vmatprep.subr.bf16.mxu0 0
    %2772 = vmatpush1.bf16.msra.mxu0 %v2589
    %2773 = vmatprep.subr.bf16.mxu0 0
    %2774 = vmatpush1.bf16.msra.mxu0 %v2590
    %2775 = vmatprep.subr.bf16.mxu0 0
    %2776 = vmatpush1.bf16.msra.mxu0 %v2591
    %2777 = vmatprep.subr.bf16.mxu0 0
    %2778 = vmatpush1.bf16.msra.mxu0 0
    %2779 = vmatprep.subr.bf16.mxu0 0
    %2780 = vmatpush1.bf16.msra.mxu0 0
    %2781 = vmatprep.subr.bf16.mxu0 0
    %2782 = vmatpush1.bf16.msra.mxu0 0
    %2783 = vmatprep.subr.bf16.mxu0 0
    %2784 = vmatpush1.bf16.msra.mxu0 0
    %2785 = vmatprep.subr.bf16.mxu0 0
    %2786 = vmatpush1.bf16.msra.mxu0 0
    %2787 = vmatprep.subr.bf16.mxu0 0
    %2788 = vmatpush1.bf16.msra.mxu0 0
    %2789 = vmatprep.subr.bf16.mxu0 0
    %2790 = vmatpush1.bf16.msra.mxu0 0
    %2791 = vmatprep.subr.bf16.mxu0 0
    %2792 = vmatpush1.bf16.msra.mxu0 0
    %2793 = vmatprep.subr.bf16.mxu0 0
    %2794 = vmatpush1.bf16.msra.mxu0 0
    %2795 = vmatprep.subr.bf16.mxu0 0
    %2796 = vmatpush1.bf16.msra.mxu0 0
    %2797 = vmatprep.subr.bf16.mxu0 0
    %2798 = vmatpush1.bf16.msra.mxu0 0
    %2799 = vmatprep.subr.bf16.mxu0 0
    %2800 = vmatpush1.bf16.msra.mxu0 0
    %2801 = vmatprep.mubr.bf16.mxu0 0
    %2802 = vmatmul.mubr.bf16.gmra.mrb[0].mxu0 %v2758
    %v2803 = vpop.f32.mrb[0].mxu0
    %v2804 = vadd.f32 0.0, %v2803
    %v2805 = vpop.f32.mrb[0].mxu0
    %v2806 = vpop.f32.mrb[0].mxu0
    %v2807 = vadd.f32 0.0, %v2806
    %v2808 = vpop.f32.mrb[0].mxu0
    %2809 = vmatprep.mubr.bf16.mxu0 0
    %2810 = vmatmul.mubr.bf16.gmra.mrb[0].mxu0 %v2761
    %v2811 = vpop.f32.mrb[0].mxu0
    %v2812 = vadd.f32 0.0, %v2811
    %v2813 = vpop.f32.mrb[0].mxu0
    %v2814 = vpop.f32.mrb[0].mxu0
    %v2815 = vadd.f32 0.0, %v2814
    %v2816 = vpop.f32.mrb[0].mxu0
    %2817 = vmatprep.mubr.bf16.mxu0 0
    %2818 = vmatmul.mubr.bf16.gmra.mrb[0].mxu0 %v2764
    %v2819 = vpop.f32.mrb[0].mxu0
    %v2820 = vadd.f32 0.0, %v2819
    %v2821 = vpop.f32.mrb[0].mxu0
    %v2822 = vpop.f32.mrb[0].mxu0
    %v2823 = vadd.f32 0.0, %v2822
    %v2824 = vpop.f32.mrb[0].mxu0
    %2825 = vmatprep.mubr.bf16.mxu0 0
    %2826 = vmatmul.mubr.bf16.gmra.mrb[0].mxu0 %v2767
    %v2827 = vpop.f32.mrb[0].mxu0
    %v2828 = vadd.f32 0.0, %v2827
    %v2829 = vpop.f32.mrb[0].mxu0
    %v2830 = vpop.f32.mrb[0].mxu0
    %v2831 = vadd.f32 0.0, %v2830
    %v2832 = vpop.f32.mrb[0].mxu0
    %2833 = vdwg.mxu0
    %v2834 = vpack.c.bf16 %v2807, %v2804
    %v2835 = vpack.c.bf16 %v2815, %v2812
    %v2836 = vpack.c.bf16 %v2823, %v2820
    %v2837 = vpack.c.bf16 %v2831, %v2828
    %2838 = vmatprep.subr.bf16.mxu0 %v2065
    %2839 = vmatpush1.bf16.msra.mxu0 %v2064
    %2840 = vmatprep.subr.bf16.mxu0 %v2067
    %2841 = vmatpush1.bf16.msra.mxu0 %v2066
    %2842 = vmatprep.subr.bf16.mxu0 %v2069
    %2843 = vmatpush1.bf16.msra.mxu0 %v2068
    %2844 = vmatprep.subr.bf16.mxu0 %v2071
    %2845 = vmatpush1.bf16.msra.mxu0 %v2070
    %2846 = vmatprep.subr.bf16.mxu0 %v2073
    %2847 = vmatpush1.bf16.msra.mxu0 %v2072
    %2848 = vmatprep.subr.bf16.mxu0 %v2075
    %2849 = vmatpush1.bf16.msra.mxu0 %v2074
    %2850 = vmatprep.subr.bf16.mxu0 %v2077
    %2851 = vmatpush1.bf16.msra.mxu0 %v2076
    %2852 = vmatprep.subr.bf16.mxu0 %v2079
    %2853 = vmatpush1.bf16.msra.mxu0 %v2078
    %2854 = vmatprep.subr.bf16.mxu0 0
    %2855 = vmatpush1.bf16.msra.mxu0 0
    %2856 = vmatprep.subr.bf16.mxu0 0
    %2857 = vmatpush1.bf16.msra.mxu0 0
    %2858 = vmatprep.subr.bf16.mxu0 0
    %2859 = vmatpush1.bf16.msra.mxu0 0
    %2860 = vmatprep.subr.bf16.mxu0 0
    %2861 = vmatpush1.bf16.msra.mxu0 0
    %2862 = vmatprep.subr.bf16.mxu0 0
    %2863 = vmatpush1.bf16.msra.mxu0 0
    %2864 = vmatprep.subr.bf16.mxu0 0
    %2865 = vmatpush1.bf16.msra.mxu0 0
    %2866 = vmatprep.subr.bf16.mxu0 0
    %2867 = vmatpush1.bf16.msra.mxu0 0
    %2868 = vmatprep.subr.bf16.mxu0 0
    %2869 = vmatpush1.bf16.msra.mxu0 0
    %2870 = vmatprep.mubr.bf16.mxu0 0
    %2871 = vmatmul.mubr.bf16.gmra.mrb[0].mxu0 %v2834
    %v2872 = vpop.f32.mrb[0].mxu0
    %v2873 = vadd.f32 0.0, %v2872
    %v2874 = vpop.f32.mrb[0].mxu0
    %v2875 = vadd.f32 0.0, %v2874
    %v2876 = vpop.f32.mrb[0].mxu0
    %v2877 = vadd.f32 0.0, %v2876
    %v2878 = vpop.f32.mrb[0].mxu0
    %v2879 = vadd.f32 0.0, %v2878
    %2880 = vmatprep.mubr.bf16.mxu0 0
    %2881 = vmatmul.mubr.bf16.gmra.mrb[0].mxu0 %v2835
    %v2882 = vpop.f32.mrb[0].mxu0
    %v2883 = vadd.f32 0.0, %v2882
    %v2884 = vpop.f32.mrb[0].mxu0
    %v2885 = vadd.f32 0.0, %v2884
    %v2886 = vpop.f32.mrb[0].mxu0
    %v2887 = vadd.f32 0.0, %v2886
    %v2888 = vpop.f32.mrb[0].mxu0
    %v2889 = vadd.f32 0.0, %v2888
    %2890 = vmatprep.mubr.bf16.mxu0 0
    %2891 = vmatmul.mubr.bf16.gmra.mrb[0].mxu0 %v2836
    %v2892 = vpop.f32.mrb[0].mxu0
    %v2893 = vadd.f32 0.0, %v2892
    %v2894 = vpop.f32.mrb[0].mxu0
    %v2895 = vadd.f32 0.0, %v2894
    %v2896 = vpop.f32.mrb[0].mxu0
    %v2897 = vadd.f32 0.0, %v2896
    %v2898 = vpop.f32.mrb[0].mxu0
    %v2899 = vadd.f32 0.0, %v2898
    %2900 = vmatprep.mubr.bf16.mxu0 0
    %2901 = vmatmul.mubr.bf16.gmra.mrb[0].mxu0 %v2837
    %v2902 = vpop.f32.mrb[0].mxu0
    %v2903 = vadd.f32 0.0, %v2902
    %v2904 = vpop.f32.mrb[0].mxu0
    %v2905 = vadd.f32 0.0, %v2904
    %v2906 = vpop.f32.mrb[0].mxu0
    %v2907 = vadd.f32 0.0, %v2906
    %v2908 = vpop.f32.mrb[0].mxu0
    %v2909 = vadd.f32 0.0, %v2908
    %2910 = vdwg.mxu0
    %2911 = vmatprep.subr.bf16.mxu0 %v2218
    %2912 = vmatpush1.bf16.msra.mxu0 %v2217
    %2913 = vmatprep.subr.bf16.mxu0 %v2220
    %2914 = vmatpush1.bf16.msra.mxu0 %v2219
    %2915 = vmatprep.subr.bf16.mxu0 %v2222
    %2916 = vmatpush1.bf16.msra.mxu0 %v2221
    %2917 = vmatprep.subr.bf16.mxu0 %v2224
    %2918 = vmatpush1.bf16.msra.mxu0 %v2223
    %2919 = vmatprep.subr.bf16.mxu0 %v2226
    %2920 = vmatpush1.bf16.msra.mxu0 %v2225
    %2921 = vmatprep.subr.bf16.mxu0 %v2228
    %2922 = vmatpush1.bf16.msra.mxu0 %v2227
    %2923 = vmatprep.subr.bf16.mxu0 %v2230
    %2924 = vmatpush1.bf16.msra.mxu0 %v2229
    %2925 = vmatprep.subr.bf16.mxu0 %v2232
    %2926 = vmatpush1.bf16.msra.mxu0 %v2231
    %2927 = vmatprep.subr.bf16.mxu0 0
    %2928 = vmatpush1.bf16.msra.mxu0 0
    %2929 = vmatprep.subr.bf16.mxu0 0
    %2930 = vmatpush1.bf16.msra.mxu0 0
    %2931 = vmatprep.subr.bf16.mxu0 0
    %2932 = vmatpush1.bf16.msra.mxu0 0
    %2933 = vmatprep.subr.bf16.mxu0 0
    %2934 = vmatpush1.bf16.msra.mxu0 0
    %2935 = vmatprep.subr.bf16.mxu0 0
    %2936 = vmatpush1.bf16.msra.mxu0 0
    %2937 = vmatprep.subr.bf16.mxu0 0
    %2938 = vmatpush1.bf16.msra.mxu0 0
    %2939 = vmatprep.subr.bf16.mxu0 0
    %2940 = vmatpush1.bf16.msra.mxu0 0
    %2941 = vmatprep.subr.bf16.mxu0 0
    %2942 = vmatpush1.bf16.msra.mxu0 0
    %2943 = vmatprep.mubr.bf16.mxu0 0
    %2944 = vmatmul.mubr.bf16.gmra.mrb[0].mxu0 %v2576
    %v2945 = vpop.f32.mrb[0].mxu0
    %v2946 = vadd.f32 %v2873, %v2945
    %v2947 = vpop.f32.mrb[0].mxu0
    %v2948 = vadd.f32 %v2875, %v2947
    %v2949 = vpop.f32.mrb[0].mxu0
    %v2950 = vadd.f32 %v2877, %v2949
    %v2951 = vpop.f32.mrb[0].mxu0
    %v2952 = vadd.f32 %v2879, %v2951
    %2953 = vmatprep.mubr.bf16.mxu0 0
    %2954 = vmatmul.mubr.bf16.gmra.mrb[0].mxu0 %v2577
    %v2955 = vpop.f32.mrb[0].mxu0
    %v2956 = vadd.f32 %v2883, %v2955
    %v2957 = vpop.f32.mrb[0].mxu0
    %v2958 = vadd.f32 %v2885, %v2957
    %v2959 = vpop.f32.mrb[0].mxu0
    %v2960 = vadd.f32 %v2887, %v2959
    %v2961 = vpop.f32.mrb[0].mxu0
    %v2962 = vadd.f32 %v2889, %v2961
    %2963 = vmatprep.mubr.bf16.mxu0 0
    %2964 = vmatmul.mubr.bf16.gmra.mrb[0].mxu0 %v2578
    %v2965 = vpop.f32.mrb[0].mxu0
    %v2966 = vadd.f32 %v2893, %v2965
    %v2967 = vpop.f32.mrb[0].mxu0
    %v2968 = vadd.f32 %v2895, %v2967
    %v2969 = vpop.f32.mrb[0].mxu0
    %v2970 = vadd.f32 %v2897, %v2969
    %v2971 = vpop.f32.mrb[0].mxu0
    %v2972 = vadd.f32 %v2899, %v2971
    %2973 = vmatprep.mubr.bf16.mxu0 0
    %2974 = vmatmul.mubr.bf16.gmra.mrb[0].mxu0 %v2579
    %v2975 = vpop.f32.mrb[0].mxu0
    %v2976 = vadd.f32 %v2903, %v2975
    %v2977 = vpop.f32.mrb[0].mxu0
    %v2978 = vadd.f32 %v2905, %v2977
    %v2979 = vpop.f32.mrb[0].mxu0
    %v2980 = vadd.f32 %v2907, %v2979
    %v2981 = vpop.f32.mrb[0].mxu0
    %v2982 = vadd.f32 %v2909, %v2981
    %2983 = vdwg.mxu0
    %v2984 = vadd.f32 %v111, %v2284
    %v2985 = vadd.f32 %v112, %v2286
    %v2986 = vadd.f32 %v113, %v2288
    %v2987 = vadd.f32 %v114, %v2290
    %v2988 = vadd.f32 %v115, %v2294
    %v2989 = vadd.f32 %v116, %v2296
    %v2990 = vadd.f32 %v117, %v2298
    %v2991 = vadd.f32 %v118, %v2300
    %v2992 = vadd.f32 %v119, %v2304
    %v2993 = vadd.f32 %v120, %v2306
    %v2994 = vadd.f32 %v121, %v2308
    %v2995 = vadd.f32 %v122, %v2310
    %v2996 = vadd.f32 %v123, %v2314
    %v2997 = vadd.f32 %v124, %v2316
    %v2998 = vadd.f32 %v125, %v2318
    %v2999 = vadd.f32 %v126, %v2320
    %v3000 = vadd.f32 %v127, %v2946
    %v3001 = vadd.f32 %v128, %v2948
    %v3002 = vadd.f32 %v129, %v2950
    %v3003 = vadd.f32 %v130, %v2952
    %v3004 = vadd.f32 %v131, %v2956
    %v3005 = vadd.f32 %v132, %v2958
    %v3006 = vadd.f32 %v133, %v2960
    %v3007 = vadd.f32 %v134, %v2962
    %v3008 = vadd.f32 %v135, %v2966
    %v3009 = vadd.f32 %v136, %v2968
    %v3010 = vadd.f32 %v137, %v2970
    %v3011 = vadd.f32 %v138, %v2972
    %v3012 = vadd.f32 %v139, %v2976
    %v3013 = vadd.f32 %v140, %v2978
    %v3014 = vadd.f32 %v141, %v2980
    %v3015 = vadd.f32 %v142, %v2982
    %v3016 = vld [vmem:[%s5] sm:$0x3]
    %v3018 = vlaneseq
    %v3019 = vshrl.u32 %v3018, 7
    %v3020 = vsub.s32 0, %v3019
    %v3021 = vrot.slane %v3016, %v3020
    %v3022 = vlaneseq
    %v3023 = vshrl.u32 %v3022, 7
    %v3024 = vsub.s32 1, %v3023
    %v3025 = vrot.slane %v3016, %v3024
    %v3028 = vadd.f32 %v2984, %v3021
    %v3029 = vadd.f32 %v2985, %v3025
    %v3030 = vadd.f32 %v2986, %v3021
    %v3031 = vadd.f32 %v2987, %v3025
    %v3032 = vadd.f32 %v2988, %v3021
    %v3033 = vadd.f32 %v2989, %v3025
    %v3034 = vadd.f32 %v2990, %v3021
    %v3035 = vadd.f32 %v2991, %v3025
    %v3036 = vadd.f32 %v2992, %v3021
    %v3037 = vadd.f32 %v2993, %v3025
    %v3038 = vadd.f32 %v2994, %v3021
    %v3039 = vadd.f32 %v2995, %v3025
    %v3040 = vadd.f32 %v2996, %v3021
    %v3041 = vadd.f32 %v2997, %v3025
    %v3042 = vadd.f32 %v2998, %v3021
    %v3043 = vadd.f32 %v2999, %v3025
    %v3044 = vadd.f32 %v3000, %v3021
    %v3045 = vadd.f32 %v3001, %v3025
    %v3046 = vadd.f32 %v3002, %v3021
    %v3047 = vadd.f32 %v3003, %v3025
    %v3048 = vadd.f32 %v3004, %v3021
    %v3049 = vadd.f32 %v3005, %v3025
    %v3050 = vadd.f32 %v3006, %v3021
    %v3051 = vadd.f32 %v3007, %v3025
    %v3052 = vadd.f32 %v3008, %v3021
    %v3053 = vadd.f32 %v3009, %v3025
    %v3054 = vadd.f32 %v3010, %v3021
    %v3055 = vadd.f32 %v3011, %v3025
    %v3056 = vadd.f32 %v3012, %v3021
    %v3057 = vadd.f32 %v3013, %v3025
    %v3058 = vadd.f32 %v3014, %v3021
    %v3059 = vadd.f32 %v3015, %v3025
    %v3060 = vld [vmem:[%s6] sm:$0x3]
    %v3061 = vld [vmem:[%s7] sm:$0x3]
    %v3062 = vadd.f32 %v3028, %v3029
    %3063 = vadd.xlane.f32.xlu0 %v3062
    %v3064 = vpop.xlane.xlu0 %3063
    %v3065 = vadd.f32 %v3030, %v3031
    %3066 = vadd.xlane.f32.xlu0 %v3065
    %v3067 = vpop.xlane.xlu0 %3066
    %v3068 = vadd.f32 %v3032, %v3033
    %3069 = vadd.xlane.f32.xlu0 %v3068
    %v3070 = vpop.xlane.xlu0 %3069
    %v3071 = vadd.f32 %v3034, %v3035
    %3072 = vadd.xlane.f32.xlu0 %v3071
    %v3073 = vpop.xlane.xlu0 %3072
    %v3074 = vadd.f32 %v3036, %v3037
    %3075 = vadd.xlane.f32.xlu0 %v3074
    %v3076 = vpop.xlane.xlu0 %3075
    %v3077 = vadd.f32 %v3038, %v3039
    %3078 = vadd.xlane.f32.xlu0 %v3077
    %v3079 = vpop.xlane.xlu0 %3078
    %v3080 = vadd.f32 %v3040, %v3041
    %3081 = vadd.xlane.f32.xlu0 %v3080
    %v3082 = vpop.xlane.xlu0 %3081
    %v3083 = vadd.f32 %v3042, %v3043
    %3084 = vadd.xlane.f32.xlu0 %v3083
    %v3085 = vpop.xlane.xlu0 %3084
    %v3086 = vadd.f32 %v3044, %v3045
    %3087 = vadd.xlane.f32.xlu0 %v3086
    %v3088 = vpop.xlane.xlu0 %3087
    %v3089 = vadd.f32 %v3046, %v3047
    %3090 = vadd.xlane.f32.xlu0 %v3089
    %v3091 = vpop.xlane.xlu0 %3090
    %v3092 = vadd.f32 %v3048, %v3049
    %3093 = vadd.xlane.f32.xlu0 %v3092
    %v3094 = vpop.xlane.xlu0 %3093
    %v3095 = vadd.f32 %v3050, %v3051
    %3096 = vadd.xlane.f32.xlu0 %v3095
    %v3097 = vpop.xlane.xlu0 %3096
    %v3098 = vadd.f32 %v3052, %v3053
    %3099 = vadd.xlane.f32.xlu0 %v3098
    %v3100 = vpop.xlane.xlu0 %3099
    %v3101 = vadd.f32 %v3054, %v3055
    %3102 = vadd.xlane.f32.xlu0 %v3101
    %v3103 = vpop.xlane.xlu0 %3102
    %v3104 = vadd.f32 %v3056, %v3057
    %3105 = vadd.xlane.f32.xlu0 %v3104
    %v3106 = vpop.xlane.xlu0 %3105
    %v3107 = vadd.f32 %v3058, %v3059
    %3108 = vadd.xlane.f32.xlu0 %v3107
    %v3109 = vpop.xlane.xlu0 %3108
    %v3110 = vmul.f32 %v3064, %v193
    %v3111 = vmul.f32 %v3067, %v193
    %v3112 = vmul.f32 %v3070, %v193
    %v3113 = vmul.f32 %v3073, %v193
    %v3114 = vmul.f32 %v3076, %v193
    %v3115 = vmul.f32 %v3079, %v193
    %v3116 = vmul.f32 %v3082, %v193
    %v3117 = vmul.f32 %v3085, %v193
    %v3118 = vmul.f32 %v3088, %v193
    %v3119 = vmul.f32 %v3091, %v193
    %v3120 = vmul.f32 %v3094, %v193
    %v3121 = vmul.f32 %v3097, %v193
    %v3122 = vmul.f32 %v3100, %v193
    %v3123 = vmul.f32 %v3103, %v193
    %v3124 = vmul.f32 %v3106, %v193
    %v3125 = vmul.f32 %v3109, %v193
    %v3126 = vmul.f32 %v3028, %v3028
    %v3127 = vmul.f32 %v3029, %v3029
    %v3128 = vmul.f32 %v3030, %v3030
    %v3129 = vmul.f32 %v3031, %v3031
    %v3130 = vmul.f32 %v3032, %v3032
    %v3131 = vmul.f32 %v3033, %v3033
    %v3132 = vmul.f32 %v3034, %v3034
    %v3133 = vmul.f32 %v3035, %v3035
    %v3134 = vmul.f32 %v3036, %v3036
    %v3135 = vmul.f32 %v3037, %v3037
    %v3136 = vmul.f32 %v3038, %v3038
    %v3137 = vmul.f32 %v3039, %v3039
    %v3138 = vmul.f32 %v3040, %v3040
    %v3139 = vmul.f32 %v3041, %v3041
    %v3140 = vmul.f32 %v3042, %v3042
    %v3141 = vmul.f32 %v3043, %v3043
    %v3142 = vmul.f32 %v3044, %v3044
    %v3143 = vmul.f32 %v3045, %v3045
    %v3144 = vmul.f32 %v3046, %v3046
    %v3145 = vmul.f32 %v3047, %v3047
    %v3146 = vmul.f32 %v3048, %v3048
    %v3147 = vmul.f32 %v3049, %v3049
    %v3148 = vmul.f32 %v3050, %v3050
    %v3149 = vmul.f32 %v3051, %v3051
    %v3150 = vmul.f32 %v3052, %v3052
    %v3151 = vmul.f32 %v3053, %v3053
    %v3152 = vmul.f32 %v3054, %v3054
    %v3153 = vmul.f32 %v3055, %v3055
    %v3154 = vmul.f32 %v3056, %v3056
    %v3155 = vmul.f32 %v3057, %v3057
    %v3156 = vmul.f32 %v3058, %v3058
    %v3157 = vmul.f32 %v3059, %v3059
    %v3158 = vadd.f32 %v3126, %v3127
    %3159 = vadd.xlane.f32.xlu0 %v3158
    %v3160 = vpop.xlane.xlu0 %3159
    %v3161 = vadd.f32 %v3128, %v3129
    %3162 = vadd.xlane.f32.xlu0 %v3161
    %v3163 = vpop.xlane.xlu0 %3162
    %v3164 = vadd.f32 %v3130, %v3131
    %3165 = vadd.xlane.f32.xlu0 %v3164
    %v3166 = vpop.xlane.xlu0 %3165
    %v3167 = vadd.f32 %v3132, %v3133
    %3168 = vadd.xlane.f32.xlu0 %v3167
    %v3169 = vpop.xlane.xlu0 %3168
    %v3170 = vadd.f32 %v3134, %v3135
    %3171 = vadd.xlane.f32.xlu0 %v3170
    %v3172 = vpop.xlane.xlu0 %3171
    %v3173 = vadd.f32 %v3136, %v3137
    %3174 = vadd.xlane.f32.xlu0 %v3173
    %v3175 = vpop.xlane.xlu0 %3174
    %v3176 = vadd.f32 %v3138, %v3139
    %3177 = vadd.xlane.f32.xlu0 %v3176
    %v3178 = vpop.xlane.xlu0 %3177
    %v3179 = vadd.f32 %v3140, %v3141
    %3180 = vadd.xlane.f32.xlu0 %v3179
    %v3181 = vpop.xlane.xlu0 %3180
    %v3182 = vadd.f32 %v3142, %v3143
    %3183 = vadd.xlane.f32.xlu0 %v3182
    %v3184 = vpop.xlane.xlu0 %3183
    %v3185 = vadd.f32 %v3144, %v3145
    %3186 = vadd.xlane.f32.xlu0 %v3185
    %v3187 = vpop.xlane.xlu0 %3186
    %v3188 = vadd.f32 %v3146, %v3147
    %3189 = vadd.xlane.f32.xlu0 %v3188
    %v3190 = vpop.xlane.xlu0 %3189
    %v3191 = vadd.f32 %v3148, %v3149
    %3192 = vadd.xlane.f32.xlu0 %v3191
    %v3193 = vpop.xlane.xlu0 %3192
    %v3194 = vadd.f32 %v3150, %v3151
    %3195 = vadd.xlane.f32.xlu0 %v3194
    %v3196 = vpop.xlane.xlu0 %3195
    %v3197 = vadd.f32 %v3152, %v3153
    %3198 = vadd.xlane.f32.xlu0 %v3197
    %v3199 = vpop.xlane.xlu0 %3198
    %v3200 = vadd.f32 %v3154, %v3155
    %3201 = vadd.xlane.f32.xlu0 %v3200
    %v3202 = vpop.xlane.xlu0 %3201
    %v3203 = vadd.f32 %v3156, %v3157
    %3204 = vadd.xlane.f32.xlu0 %v3203
    %v3205 = vpop.xlane.xlu0 %3204
    %v3206 = vmul.f32 %v3160, %v193
    %v3207 = vmul.f32 %v3163, %v193
    %v3208 = vmul.f32 %v3166, %v193
    %v3209 = vmul.f32 %v3169, %v193
    %v3210 = vmul.f32 %v3172, %v193
    %v3211 = vmul.f32 %v3175, %v193
    %v3212 = vmul.f32 %v3178, %v193
    %v3213 = vmul.f32 %v3181, %v193
    %v3214 = vmul.f32 %v3184, %v193
    %v3215 = vmul.f32 %v3187, %v193
    %v3216 = vmul.f32 %v3190, %v193
    %v3217 = vmul.f32 %v3193, %v193
    %v3218 = vmul.f32 %v3196, %v193
    %v3219 = vmul.f32 %v3199, %v193
    %v3220 = vmul.f32 %v3202, %v193
    %v3221 = vmul.f32 %v3205, %v193
    %v3222 = vmul.f32 %v3110, %v3110
    %v3223 = vmul.f32 %v3111, %v3111
    %v3224 = vmul.f32 %v3112, %v3112
    %v3225 = vmul.f32 %v3113, %v3113
    %v3226 = vmul.f32 %v3114, %v3114
    %v3227 = vmul.f32 %v3115, %v3115
    %v3228 = vmul.f32 %v3116, %v3116
    %v3229 = vmul.f32 %v3117, %v3117
    %v3230 = vmul.f32 %v3118, %v3118
    %v3231 = vmul.f32 %v3119, %v3119
    %v3232 = vmul.f32 %v3120, %v3120
    %v3233 = vmul.f32 %v3121, %v3121
    %v3234 = vmul.f32 %v3122, %v3122
    %v3235 = vmul.f32 %v3123, %v3123
    %v3236 = vmul.f32 %v3124, %v3124
    %v3237 = vmul.f32 %v3125, %v3125
    %v3238 = vsub.f32 %v3206, %v3222
    %v3239 = vsub.f32 %v3207, %v3223
    %v3240 = vsub.f32 %v3208, %v3224
    %v3241 = vsub.f32 %v3209, %v3225
    %v3242 = vsub.f32 %v3210, %v3226
    %v3243 = vsub.f32 %v3211, %v3227
    %v3244 = vsub.f32 %v3212, %v3228
    %v3245 = vsub.f32 %v3213, %v3229
    %v3246 = vsub.f32 %v3214, %v3230
    %v3247 = vsub.f32 %v3215, %v3231
    %v3248 = vsub.f32 %v3216, %v3232
    %v3249 = vsub.f32 %v3217, %v3233
    %v3250 = vsub.f32 %v3218, %v3234
    %v3251 = vsub.f32 %v3219, %v3235
    %v3252 = vsub.f32 %v3220, %v3236
    %v3253 = vsub.f32 %v3221, %v3237
    %v3254 = vmax.f32 %v3238, 0.0
    %v3255 = vmax.f32 %v3239, 0.0
    %v3256 = vmax.f32 %v3240, 0.0
    %v3257 = vmax.f32 %v3241, 0.0
    %v3258 = vmax.f32 %v3242, 0.0
    %v3259 = vmax.f32 %v3243, 0.0
    %v3260 = vmax.f32 %v3244, 0.0
    %v3261 = vmax.f32 %v3245, 0.0
    %v3262 = vmax.f32 %v3246, 0.0
    %v3263 = vmax.f32 %v3247, 0.0
    %v3264 = vmax.f32 %v3248, 0.0
    %v3265 = vmax.f32 %v3249, 0.0
    %v3266 = vmax.f32 %v3250, 0.0
    %v3267 = vmax.f32 %v3251, 0.0
    %v3268 = vmax.f32 %v3252, 0.0
    %v3269 = vmax.f32 %v3253, 0.0
    %v3270 = vsub.f32 %v3028, %v3110
    %v3271 = vsub.f32 %v3029, %v3110
    %v3272 = vsub.f32 %v3030, %v3111
    %v3273 = vsub.f32 %v3031, %v3111
    %v3274 = vsub.f32 %v3032, %v3112
    %v3275 = vsub.f32 %v3033, %v3112
    %v3276 = vsub.f32 %v3034, %v3113
    %v3277 = vsub.f32 %v3035, %v3113
    %v3278 = vsub.f32 %v3036, %v3114
    %v3279 = vsub.f32 %v3037, %v3114
    %v3280 = vsub.f32 %v3038, %v3115
    %v3281 = vsub.f32 %v3039, %v3115
    %v3282 = vsub.f32 %v3040, %v3116
    %v3283 = vsub.f32 %v3041, %v3116
    %v3284 = vsub.f32 %v3042, %v3117
    %v3285 = vsub.f32 %v3043, %v3117
    %v3286 = vsub.f32 %v3044, %v3118
    %v3287 = vsub.f32 %v3045, %v3118
    %v3288 = vsub.f32 %v3046, %v3119
    %v3289 = vsub.f32 %v3047, %v3119
    %v3290 = vsub.f32 %v3048, %v3120
    %v3291 = vsub.f32 %v3049, %v3120
    %v3292 = vsub.f32 %v3050, %v3121
    %v3293 = vsub.f32 %v3051, %v3121
    %v3294 = vsub.f32 %v3052, %v3122
    %v3295 = vsub.f32 %v3053, %v3122
    %v3296 = vsub.f32 %v3054, %v3123
    %v3297 = vsub.f32 %v3055, %v3123
    %v3298 = vsub.f32 %v3056, %v3124
    %v3299 = vsub.f32 %v3057, %v3124
    %v3300 = vsub.f32 %v3058, %v3125
    %v3301 = vsub.f32 %v3059, %v3125
    %v3302 = vadd.f32 %v3254, 1e-05
    %v3303 = vadd.f32 %v3255, 1e-05
    %v3304 = vadd.f32 %v3256, 1e-05
    %v3305 = vadd.f32 %v3257, 1e-05
    %v3306 = vadd.f32 %v3258, 1e-05
    %v3307 = vadd.f32 %v3259, 1e-05
    %v3308 = vadd.f32 %v3260, 1e-05
    %v3309 = vadd.f32 %v3261, 1e-05
    %v3310 = vadd.f32 %v3262, 1e-05
    %v3311 = vadd.f32 %v3263, 1e-05
    %v3312 = vadd.f32 %v3264, 1e-05
    %v3313 = vadd.f32 %v3265, 1e-05
    %v3314 = vadd.f32 %v3266, 1e-05
    %v3315 = vadd.f32 %v3267, 1e-05
    %v3316 = vadd.f32 %v3268, 1e-05
    %v3317 = vadd.f32 %v3269, 1e-05
    %v3318 = vrsqrt.pop %v3302
    %v3319 = vrsqrt.pop %v3303
    %v3320 = vrsqrt.pop %v3304
    %v3321 = vrsqrt.pop %v3305
    %v3322 = vrsqrt.pop %v3306
    %v3323 = vrsqrt.pop %v3307
    %v3324 = vrsqrt.pop %v3308
    %v3325 = vrsqrt.pop %v3309
    %v3326 = vrsqrt.pop %v3310
    %v3327 = vrsqrt.pop %v3311
    %v3328 = vrsqrt.pop %v3312
    %v3329 = vrsqrt.pop %v3313
    %v3330 = vrsqrt.pop %v3314
    %v3331 = vrsqrt.pop %v3315
    %v3332 = vrsqrt.pop %v3316
    %v3333 = vrsqrt.pop %v3317
    %v3334 = vmul.f32 %v3270, %v3318
    %v3335 = vmul.f32 %v3271, %v3318
    %v3336 = vmul.f32 %v3272, %v3319
    %v3337 = vmul.f32 %v3273, %v3319
    %v3338 = vmul.f32 %v3274, %v3320
    %v3339 = vmul.f32 %v3275, %v3320
    %v3340 = vmul.f32 %v3276, %v3321
    %v3341 = vmul.f32 %v3277, %v3321
    %v3342 = vmul.f32 %v3278, %v3322
    %v3343 = vmul.f32 %v3279, %v3322
    %v3344 = vmul.f32 %v3280, %v3323
    %v3345 = vmul.f32 %v3281, %v3323
    %v3346 = vmul.f32 %v3282, %v3324
    %v3347 = vmul.f32 %v3283, %v3324
    %v3348 = vmul.f32 %v3284, %v3325
    %v3349 = vmul.f32 %v3285, %v3325
    %v3350 = vmul.f32 %v3286, %v3326
    %v3351 = vmul.f32 %v3287, %v3326
    %v3352 = vmul.f32 %v3288, %v3327
    %v3353 = vmul.f32 %v3289, %v3327
    %v3354 = vmul.f32 %v3290, %v3328
    %v3355 = vmul.f32 %v3291, %v3328
    %v3356 = vmul.f32 %v3292, %v3329
    %v3357 = vmul.f32 %v3293, %v3329
    %v3358 = vmul.f32 %v3294, %v3330
    %v3359 = vmul.f32 %v3295, %v3330
    %v3360 = vmul.f32 %v3296, %v3331
    %v3361 = vmul.f32 %v3297, %v3331
    %v3362 = vmul.f32 %v3298, %v3332
    %v3363 = vmul.f32 %v3299, %v3332
    %v3364 = vmul.f32 %v3300, %v3333
    %v3365 = vmul.f32 %v3301, %v3333
    %v3367 = vlaneseq
    %v3368 = vshrl.u32 %v3367, 7
    %v3369 = vsub.s32 0, %v3368
    %v3370 = vrot.slane %v3060, %v3369
    %v3371 = vlaneseq
    %v3372 = vshrl.u32 %v3371, 7
    %v3373 = vsub.s32 1, %v3372
    %v3374 = vrot.slane %v3060, %v3373
    %v3377 = vmul.f32 %v3334, %v3370
    %v3378 = vmul.f32 %v3335, %v3374
    %v3379 = vmul.f32 %v3336, %v3370
    %v3380 = vmul.f32 %v3337, %v3374
    %v3381 = vmul.f32 %v3338, %v3370
    %v3382 = vmul.f32 %v3339, %v3374
    %v3383 = vmul.f32 %v3340, %v3370
    %v3384 = vmul.f32 %v3341, %v3374
    %v3385 = vmul.f32 %v3342, %v3370
    %v3386 = vmul.f32 %v3343, %v3374
    %v3387 = vmul.f32 %v3344, %v3370
    %v3388 = vmul.f32 %v3345, %v3374
    %v3389 = vmul.f32 %v3346, %v3370
    %v3390 = vmul.f32 %v3347, %v3374
    %v3391 = vmul.f32 %v3348, %v3370
    %v3392 = vmul.f32 %v3349, %v3374
    %v3393 = vmul.f32 %v3350, %v3370
    %v3394 = vmul.f32 %v3351, %v3374
    %v3395 = vmul.f32 %v3352, %v3370
    %v3396 = vmul.f32 %v3353, %v3374
    %v3397 = vmul.f32 %v3354, %v3370
    %v3398 = vmul.f32 %v3355, %v3374
    %v3399 = vmul.f32 %v3356, %v3370
    %v3400 = vmul.f32 %v3357, %v3374
    %v3401 = vmul.f32 %v3358, %v3370
    %v3402 = vmul.f32 %v3359, %v3374
    %v3403 = vmul.f32 %v3360, %v3370
    %v3404 = vmul.f32 %v3361, %v3374
    %v3405 = vmul.f32 %v3362, %v3370
    %v3406 = vmul.f32 %v3363, %v3374
    %v3407 = vmul.f32 %v3364, %v3370
    %v3408 = vmul.f32 %v3365, %v3374
    %v3410 = vlaneseq
    %v3411 = vshrl.u32 %v3410, 7
    %v3412 = vsub.s32 0, %v3411
    %v3413 = vrot.slane %v3061, %v3412
    %v3414 = vlaneseq
    %v3415 = vshrl.u32 %v3414, 7
    %v3416 = vsub.s32 1, %v3415
    %v3417 = vrot.slane %v3061, %v3416
    %v3420 = vadd.f32 %v3377, %v3413
    %v3421 = vadd.f32 %v3378, %v3417
    %v3422 = vadd.f32 %v3379, %v3413
    %v3423 = vadd.f32 %v3380, %v3417
    %v3424 = vadd.f32 %v3381, %v3413
    %v3425 = vadd.f32 %v3382, %v3417
    %v3426 = vadd.f32 %v3383, %v3413
    %v3427 = vadd.f32 %v3384, %v3417
    %v3428 = vadd.f32 %v3385, %v3413
    %v3429 = vadd.f32 %v3386, %v3417
    %v3430 = vadd.f32 %v3387, %v3413
    %v3431 = vadd.f32 %v3388, %v3417
    %v3432 = vadd.f32 %v3389, %v3413
    %v3433 = vadd.f32 %v3390, %v3417
    %v3434 = vadd.f32 %v3391, %v3413
    %v3435 = vadd.f32 %v3392, %v3417
    %v3436 = vadd.f32 %v3393, %v3413
    %v3437 = vadd.f32 %v3394, %v3417
    %v3438 = vadd.f32 %v3395, %v3413
    %v3439 = vadd.f32 %v3396, %v3417
    %v3440 = vadd.f32 %v3397, %v3413
    %v3441 = vadd.f32 %v3398, %v3417
    %v3442 = vadd.f32 %v3399, %v3413
    %v3443 = vadd.f32 %v3400, %v3417
    %v3444 = vadd.f32 %v3401, %v3413
    %v3445 = vadd.f32 %v3402, %v3417
    %v3446 = vadd.f32 %v3403, %v3413
    %v3447 = vadd.f32 %v3404, %v3417
    %v3448 = vadd.f32 %v3405, %v3413
    %v3449 = vadd.f32 %v3406, %v3417
    %v3450 = vadd.f32 %v3407, %v3413
    %v3451 = vadd.f32 %v3408, %v3417
    %v3452 = vpack.c.bf16 %v3422, %v3420
    %v3453 = vpack.c.bf16 %v3423, %v3421
    %v3454 = vpack.c.bf16 %v3426, %v3424
    %v3455 = vpack.c.bf16 %v3427, %v3425
    %v3456 = vpack.c.bf16 %v3430, %v3428
    %v3457 = vpack.c.bf16 %v3431, %v3429
    %v3458 = vpack.c.bf16 %v3434, %v3432
    %v3459 = vpack.c.bf16 %v3435, %v3433
    %v3460 = vpack.c.bf16 %v3438, %v3436
    %v3461 = vpack.c.bf16 %v3439, %v3437
    %v3462 = vpack.c.bf16 %v3442, %v3440
    %v3463 = vpack.c.bf16 %v3443, %v3441
    %v3464 = vpack.c.bf16 %v3446, %v3444
    %v3465 = vpack.c.bf16 %v3447, %v3445
    %v3466 = vpack.c.bf16 %v3450, %v3448
    %v3467 = vpack.c.bf16 %v3451, %v3449
    %v3468 = vld [vmem:[#allocation8] sm:$0xff]
    %v3469 = vld [vmem:[#allocation8 + $0x8] sm:$0xff]
    %v3470 = vld [vmem:[#allocation8 + $0x10] sm:$0xff]
    %v3471 = vld [vmem:[#allocation8 + $0x18] sm:$0xff]
    %v3472 = vld [vmem:[#allocation8 + $0x20] sm:$0xff]
    %v3473 = vld [vmem:[#allocation8 + $0x28] sm:$0xff]
    %v3474 = vld [vmem:[#allocation8 + $0x30] sm:$0xff]
    %v3475 = vld [vmem:[#allocation8 + $0x38] sm:$0xff]
    %v3476 = vld [vmem:[#allocation8 + $0x40] sm:$0xff]
    %v3477 = vld [vmem:[#allocation8 + $0x48] sm:$0xff]
    %v3478 = vld [vmem:[#allocation8 + $0x50] sm:$0xff]
    %v3479 = vld [vmem:[#allocation8 + $0x58] sm:$0xff]
    %v3480 = vld [vmem:[#allocation8 + $0x60] sm:$0xff]
    %v3481 = vld [vmem:[#allocation8 + $0x68] sm:$0xff]
    %v3482 = vld [vmem:[#allocation8 + $0x70] sm:$0xff]
    %v3483 = vld [vmem:[#allocation8 + $0x78] sm:$0xff]
    %v3484 = vld [vmem:[#allocation8 + $0x80] sm:$0xff]
    %v3485 = vld [vmem:[#allocation8 + $0x88] sm:$0xff]
    %v3486 = vld [vmem:[#allocation8 + $0x90] sm:$0xff]
    %v3487 = vld [vmem:[#allocation8 + $0x98] sm:$0xff]
    %v3488 = vld [vmem:[#allocation8 + $0xa0] sm:$0xff]
    %v3489 = vld [vmem:[#allocation8 + $0xa8] sm:$0xff]
    %v3490 = vld [vmem:[#allocation8 + $0xb0] sm:$0xff]
    %v3491 = vld [vmem:[#allocation8 + $0xb8] sm:$0xff]
    %v3492 = vld [vmem:[#allocation8 + $0xc0] sm:$0xff]
    %v3493 = vld [vmem:[#allocation8 + $0xc8] sm:$0xff]
    %v3494 = vld [vmem:[#allocation8 + $0xd0] sm:$0xff]
    %v3495 = vld [vmem:[#allocation8 + $0xd8] sm:$0xff]
    %v3496 = vld [vmem:[#allocation8 + $0xe0] sm:$0xff]
    %v3497 = vld [vmem:[#allocation8 + $0xe8] sm:$0xff]
    %v3498 = vld [vmem:[#allocation8 + $0xf0] sm:$0xff]
    %v3499 = vld [vmem:[#allocation8 + $0xf8] sm:$0xff]
    %v3500 = vld [vmem:[#allocation8 + $0x100] sm:$0xff]
    %v3501 = vld [vmem:[#allocation8 + $0x108] sm:$0xff]
    %v3502 = vld [vmem:[#allocation8 + $0x110] sm:$0xff]
    %v3503 = vld [vmem:[#allocation8 + $0x118] sm:$0xff]
    %v3504 = vld [vmem:[#allocation8 + $0x120] sm:$0xff]
    %v3505 = vld [vmem:[#allocation8 + $0x128] sm:$0xff]
    %v3506 = vld [vmem:[#allocation8 + $0x130] sm:$0xff]
    %v3507 = vld [vmem:[#allocation8 + $0x138] sm:$0xff]
    %v3508 = vld [vmem:[#allocation8 + $0x140] sm:$0xff]
    %v3509 = vld [vmem:[#allocation8 + $0x148] sm:$0xff]
    %v3510 = vld [vmem:[#allocation8 + $0x150] sm:$0xff]
    %v3511 = vld [vmem:[#allocation8 + $0x158] sm:$0xff]
    %v3512 = vld [vmem:[#allocation8 + $0x160] sm:$0xff]
    %v3513 = vld [vmem:[#allocation8 + $0x168] sm:$0xff]
    %v3514 = vld [vmem:[#allocation8 + $0x170] sm:$0xff]
    %v3515 = vld [vmem:[#allocation8 + $0x178] sm:$0xff]
    %v3516 = vld [vmem:[#allocation8 + $0x180] sm:$0xff]
    %v3517 = vld [vmem:[#allocation8 + $0x188] sm:$0xff]
    %v3518 = vld [vmem:[#allocation8 + $0x190] sm:$0xff]
    %v3519 = vld [vmem:[#allocation8 + $0x198] sm:$0xff]
    %v3520 = vld [vmem:[#allocation8 + $0x1a0] sm:$0xff]
    %v3521 = vld [vmem:[#allocation8 + $0x1a8] sm:$0xff]
    %v3522 = vld [vmem:[#allocation8 + $0x1b0] sm:$0xff]
    %v3523 = vld [vmem:[#allocation8 + $0x1b8] sm:$0xff]
    %v3524 = vld [vmem:[#allocation8 + $0x1c0] sm:$0xff]
    %v3525 = vld [vmem:[#allocation8 + $0x1c8] sm:$0xff]
    %v3526 = vld [vmem:[#allocation8 + $0x1d0] sm:$0xff]
    %v3527 = vld [vmem:[#allocation8 + $0x1d8] sm:$0xff]
    %v3528 = vld [vmem:[#allocation8 + $0x1e0] sm:$0xff]
    %v3529 = vld [vmem:[#allocation8 + $0x1e8] sm:$0xff]
    %v3530 = vld [vmem:[#allocation8 + $0x1f0] sm:$0xff]
    %v3531 = vld [vmem:[#allocation8 + $0x1f8] sm:$0xff]
    %v3532 = vld [vmem:[#allocation8 + $0x200] sm:$0xff]
    %v3533 = vld [vmem:[#allocation8 + $0x208] sm:$0xff]
    %v3534 = vld [vmem:[#allocation8 + $0x210] sm:$0xff]
    %v3535 = vld [vmem:[#allocation8 + $0x218] sm:$0xff]
    %v3536 = vld [vmem:[#allocation8 + $0x220] sm:$0xff]
    %v3537 = vld [vmem:[#allocation8 + $0x228] sm:$0xff]
    %v3538 = vld [vmem:[#allocation8 + $0x230] sm:$0xff]
    %v3539 = vld [vmem:[#allocation8 + $0x238] sm:$0xff]
    %v3540 = vld [vmem:[#allocation8 + $0x240] sm:$0xff]
    %v3541 = vld [vmem:[#allocation8 + $0x248] sm:$0xff]
    %v3542 = vld [vmem:[#allocation8 + $0x250] sm:$0xff]
    %v3543 = vld [vmem:[#allocation8 + $0x258] sm:$0xff]
    %v3544 = vld [vmem:[#allocation8 + $0x260] sm:$0xff]
    %v3545 = vld [vmem:[#allocation8 + $0x268] sm:$0xff]
    %v3546 = vld [vmem:[#allocation8 + $0x270] sm:$0xff]
    %v3547 = vld [vmem:[#allocation8 + $0x278] sm:$0xff]
    %v3548 = vld [vmem:[#allocation8 + $0x280] sm:$0xff]
    %v3549 = vld [vmem:[#allocation8 + $0x288] sm:$0xff]
    %v3550 = vld [vmem:[#allocation8 + $0x290] sm:$0xff]
    %v3551 = vld [vmem:[#allocation8 + $0x298] sm:$0xff]
    %v3552 = vld [vmem:[#allocation8 + $0x2a0] sm:$0xff]
    %v3553 = vld [vmem:[#allocation8 + $0x2a8] sm:$0xff]
    %v3554 = vld [vmem:[#allocation8 + $0x2b0] sm:$0xff]
    %v3555 = vld [vmem:[#allocation8 + $0x2b8] sm:$0xff]
    %v3556 = vld [vmem:[#allocation8 + $0x2c0] sm:$0xff]
    %v3557 = vld [vmem:[#allocation8 + $0x2c8] sm:$0xff]
    %v3558 = vld [vmem:[#allocation8 + $0x2d0] sm:$0xff]
    %v3559 = vld [vmem:[#allocation8 + $0x2d8] sm:$0xff]
    %v3560 = vld [vmem:[#allocation8 + $0x2e0] sm:$0xff]
    %v3561 = vld [vmem:[#allocation8 + $0x2e8] sm:$0xff]
    %v3562 = vld [vmem:[#allocation8 + $0x2f0] sm:$0xff]
    %v3563 = vld [vmem:[#allocation8 + $0x2f8] sm:$0xff]
    %v3564 = vld [vmem:[#allocation8 + $0x300] sm:$0xff]
    %v3565 = vld [vmem:[#allocation8 + $0x308] sm:$0xff]
    %v3566 = vld [vmem:[#allocation8 + $0x310] sm:$0xff]
    %v3567 = vld [vmem:[#allocation8 + $0x318] sm:$0xff]
    %v3568 = vld [vmem:[#allocation8 + $0x320] sm:$0xff]
    %v3569 = vld [vmem:[#allocation8 + $0x328] sm:$0xff]
    %v3570 = vld [vmem:[#allocation8 + $0x330] sm:$0xff]
    %v3571 = vld [vmem:[#allocation8 + $0x338] sm:$0xff]
    %v3572 = vld [vmem:[#allocation8 + $0x340] sm:$0xff]
    %v3573 = vld [vmem:[#allocation8 + $0x348] sm:$0xff]
    %v3574 = vld [vmem:[#allocation8 + $0x350] sm:$0xff]
    %v3575 = vld [vmem:[#allocation8 + $0x358] sm:$0xff]
    %v3576 = vld [vmem:[#allocation8 + $0x360] sm:$0xff]
    %v3577 = vld [vmem:[#allocation8 + $0x368] sm:$0xff]
    %v3578 = vld [vmem:[#allocation8 + $0x370] sm:$0xff]
    %v3579 = vld [vmem:[#allocation8 + $0x378] sm:$0xff]
    %v3580 = vld [vmem:[#allocation8 + $0x380] sm:$0xff]
    %v3581 = vld [vmem:[#allocation8 + $0x388] sm:$0xff]
    %v3582 = vld [vmem:[#allocation8 + $0x390] sm:$0xff]
    %v3583 = vld [vmem:[#allocation8 + $0x398] sm:$0xff]
    %v3584 = vld [vmem:[#allocation8 + $0x3a0] sm:$0xff]
    %v3585 = vld [vmem:[#allocation8 + $0x3a8] sm:$0xff]
    %v3586 = vld [vmem:[#allocation8 + $0x3b0] sm:$0xff]
    %v3587 = vld [vmem:[#allocation8 + $0x3b8] sm:$0xff]
    %v3588 = vld [vmem:[#allocation8 + $0x3c0] sm:$0xff]
    %v3589 = vld [vmem:[#allocation8 + $0x3c8] sm:$0xff]
    %v3590 = vld [vmem:[#allocation8 + $0x3d0] sm:$0xff]
    %v3591 = vld [vmem:[#allocation8 + $0x3d8] sm:$0xff]
    %v3592 = vld [vmem:[#allocation8 + $0x3e0] sm:$0xff]
    %v3593 = vld [vmem:[#allocation8 + $0x3e8] sm:$0xff]
    %v3594 = vld [vmem:[#allocation8 + $0x3f0] sm:$0xff]
    %v3595 = vld [vmem:[#allocation8 + $0x3f8] sm:$0xff]
    %v3596 = vld [vmem:[%s9] sm:$0xff]
    %v3598 = vlaneseq
    %v3599 = vshrl.u32 %v3598, 7
    %v3600 = vsub.s32 0, %v3599
    %v3601 = vrot.slane %v3596, %v3600
    %v3602 = vlaneseq
    %v3603 = vshrl.u32 %v3602, 7
    %v3604 = vsub.s32 1, %v3603
    %v3605 = vrot.slane %v3596, %v3604
    %v3606 = vlaneseq
    %v3607 = vshrl.u32 %v3606, 7
    %v3608 = vsub.s32 2, %v3607
    %v3609 = vrot.slane %v3596, %v3608
    %v3610 = vlaneseq
    %v3611 = vshrl.u32 %v3610, 7
    %v3612 = vsub.s32 3, %v3611
    %v3613 = vrot.slane %v3596, %v3612
    %v3614 = vlaneseq
    %v3615 = vshrl.u32 %v3614, 7
    %v3616 = vsub.s32 4, %v3615
    %v3617 = vrot.slane %v3596, %v3616
    %v3618 = vlaneseq
    %v3619 = vshrl.u32 %v3618, 7
    %v3620 = vsub.s32 5, %v3619
    %v3621 = vrot.slane %v3596, %v3620
    %v3622 = vlaneseq
    %v3623 = vshrl.u32 %v3622, 7
    %v3624 = vsub.s32 6, %v3623
    %v3625 = vrot.slane %v3596, %v3624
    %v3626 = vlaneseq
    %v3627 = vshrl.u32 %v3626, 7
    %v3628 = vsub.s32 7, %v3627
    %v3629 = vrot.slane %v3596, %v3628
    %v3766 = vunpack.c.l.b16 %v3468
    %v3767 = vunpack.c.h.b16 %v3468
    %v3768 = vunpack.c.l.b16 %v3469
    %v3769 = vunpack.c.h.b16 %v3469
    %v3770 = vunpack.c.l.b16 %v3470
    %v3771 = vunpack.c.h.b16 %v3470
    %v3772 = vunpack.c.l.b16 %v3471
    %v3773 = vunpack.c.h.b16 %v3471
    %v3774 = vunpack.c.l.b16 %v3472
    %v3775 = vunpack.c.h.b16 %v3472
    %v3776 = vunpack.c.l.b16 %v3473
    %v3777 = vunpack.c.h.b16 %v3473
    %v3778 = vunpack.c.l.b16 %v3474
    %v3779 = vunpack.c.h.b16 %v3474
    %v3780 = vunpack.c.l.b16 %v3475
    %v3781 = vunpack.c.h.b16 %v3475
    %v3782 = vunpack.c.l.b16 %v3476
    %v3783 = vunpack.c.h.b16 %v3476
    %v3784 = vunpack.c.l.b16 %v3477
    %v3785 = vunpack.c.h.b16 %v3477
    %v3786 = vunpack.c.l.b16 %v3478
    %v3787 = vunpack.c.h.b16 %v3478
    %v3788 = vunpack.c.l.b16 %v3479
    %v3789 = vunpack.c.h.b16 %v3479
    %v3790 = vunpack.c.l.b16 %v3480
    %v3791 = vunpack.c.h.b16 %v3480
    %v3792 = vunpack.c.l.b16 %v3481
    %v3793 = vunpack.c.h.b16 %v3481
    %v3794 = vunpack.c.l.b16 %v3482
    %v3795 = vunpack.c.h.b16 %v3482
    %v3796 = vunpack.c.l.b16 %v3483
    %v3797 = vunpack.c.h.b16 %v3483
    %v3798 = vunpack.c.l.b16 %v3484
    %v3799 = vunpack.c.h.b16 %v3484
    %v3800 = vunpack.c.l.b16 %v3485
    %v3801 = vunpack.c.h.b16 %v3485
    %v3802 = vunpack.c.l.b16 %v3486
    %v3803 = vunpack.c.h.b16 %v3486
    %v3804 = vunpack.c.l.b16 %v3487
    %v3805 = vunpack.c.h.b16 %v3487
    %v3806 = vunpack.c.l.b16 %v3488
    %v3807 = vunpack.c.h.b16 %v3488
    %v3808 = vunpack.c.l.b16 %v3489
    %v3809 = vunpack.c.h.b16 %v3489
    %v3810 = vunpack.c.l.b16 %v3490
    %v3811 = vunpack.c.h.b16 %v3490
    %v3812 = vunpack.c.l.b16 %v3491
    %v3813 = vunpack.c.h.b16 %v3491
    %v3814 = vunpack.c.l.b16 %v3492
    %v3815 = vunpack.c.h.b16 %v3492
    %v3816 = vunpack.c.l.b16 %v3493
    %v3817 = vunpack.c.h.b16 %v3493
    %v3818 = vunpack.c.l.b16 %v3494
    %v3819 = vunpack.c.h.b16 %v3494
    %v3820 = vunpack.c.l.b16 %v3495
    %v3821 = vunpack.c.h.b16 %v3495
    %v3822 = vunpack.c.l.b16 %v3496
    %v3823 = vunpack.c.h.b16 %v3496
    %v3824 = vunpack.c.l.b16 %v3497
    %v3825 = vunpack.c.h.b16 %v3497
    %v3826 = vunpack.c.l.b16 %v3498
    %v3827 = vunpack.c.h.b16 %v3498
    %v3828 = vunpack.c.l.b16 %v3499
    %v3829 = vunpack.c.h.b16 %v3499
    %v3830 = vunpack.c.l.b16 %v3500
    %v3831 = vunpack.c.h.b16 %v3500
    %v3832 = vunpack.c.l.b16 %v3501
    %v3833 = vunpack.c.h.b16 %v3501
    %v3834 = vunpack.c.l.b16 %v3502
    %v3835 = vunpack.c.h.b16 %v3502
    %v3836 = vunpack.c.l.b16 %v3503
    %v3837 = vunpack.c.h.b16 %v3503
    %v3838 = vunpack.c.l.b16 %v3504
    %v3839 = vunpack.c.h.b16 %v3504
    %v3840 = vunpack.c.l.b16 %v3505
    %v3841 = vunpack.c.h.b16 %v3505
    %v3842 = vunpack.c.l.b16 %v3506
    %v3843 = vunpack.c.h.b16 %v3506
    %v3844 = vunpack.c.l.b16 %v3507
    %v3845 = vunpack.c.h.b16 %v3507
    %v3846 = vunpack.c.l.b16 %v3508
    %v3847 = vunpack.c.h.b16 %v3508
    %v3848 = vunpack.c.l.b16 %v3509
    %v3849 = vunpack.c.h.b16 %v3509
    %v3850 = vunpack.c.l.b16 %v3510
    %v3851 = vunpack.c.h.b16 %v3510
    %v3852 = vunpack.c.l.b16 %v3511
    %v3853 = vunpack.c.h.b16 %v3511
    %v3854 = vunpack.c.l.b16 %v3512
    %v3855 = vunpack.c.h.b16 %v3512
    %v3856 = vunpack.c.l.b16 %v3513
    %v3857 = vunpack.c.h.b16 %v3513
    %v3858 = vunpack.c.l.b16 %v3514
    %v3859 = vunpack.c.h.b16 %v3514
    %v3860 = vunpack.c.l.b16 %v3515
    %v3861 = vunpack.c.h.b16 %v3515
    %v3862 = vunpack.c.l.b16 %v3516
    %v3863 = vunpack.c.h.b16 %v3516
    %v3864 = vunpack.c.l.b16 %v3517
    %v3865 = vunpack.c.h.b16 %v3517
    %v3866 = vunpack.c.l.b16 %v3518
    %v3867 = vunpack.c.h.b16 %v3518
    %v3868 = vunpack.c.l.b16 %v3519
    %v3869 = vunpack.c.h.b16 %v3519
    %v3870 = vunpack.c.l.b16 %v3520
    %v3871 = vunpack.c.h.b16 %v3520
    %v3872 = vunpack.c.l.b16 %v3521
    %v3873 = vunpack.c.h.b16 %v3521
    %v3874 = vunpack.c.l.b16 %v3522
    %v3875 = vunpack.c.h.b16 %v3522
    %v3876 = vunpack.c.l.b16 %v3523
    %v3877 = vunpack.c.h.b16 %v3523
    %v3878 = vunpack.c.l.b16 %v3524
    %v3879 = vunpack.c.h.b16 %v3524
    %v3880 = vunpack.c.l.b16 %v3525
    %v3881 = vunpack.c.h.b16 %v3525
    %v3882 = vunpack.c.l.b16 %v3526
    %v3883 = vunpack.c.h.b16 %v3526
    %v3884 = vunpack.c.l.b16 %v3527
    %v3885 = vunpack.c.h.b16 %v3527
    %v3886 = vunpack.c.l.b16 %v3528
    %v3887 = vunpack.c.h.b16 %v3528
    %v3888 = vunpack.c.l.b16 %v3529
    %v3889 = vunpack.c.h.b16 %v3529
    %v3890 = vunpack.c.l.b16 %v3530
    %v3891 = vunpack.c.h.b16 %v3530
    %v3892 = vunpack.c.l.b16 %v3531
    %v3893 = vunpack.c.h.b16 %v3531
    %v3894 = vunpack.c.l.b16 %v3532
    %v3895 = vunpack.c.h.b16 %v3532
    %v3896 = vunpack.c.l.b16 %v3533
    %v3897 = vunpack.c.h.b16 %v3533
    %v3898 = vunpack.c.l.b16 %v3534
    %v3899 = vunpack.c.h.b16 %v3534
    %v3900 = vunpack.c.l.b16 %v3535
    %v3901 = vunpack.c.h.b16 %v3535
    %v3902 = vunpack.c.l.b16 %v3536
    %v3903 = vunpack.c.h.b16 %v3536
    %v3904 = vunpack.c.l.b16 %v3537
    %v3905 = vunpack.c.h.b16 %v3537
    %v3906 = vunpack.c.l.b16 %v3538
    %v3907 = vunpack.c.h.b16 %v3538
    %v3908 = vunpack.c.l.b16 %v3539
    %v3909 = vunpack.c.h.b16 %v3539
    %v3910 = vunpack.c.l.b16 %v3540
    %v3911 = vunpack.c.h.b16 %v3540
    %v3912 = vunpack.c.l.b16 %v3541
    %v3913 = vunpack.c.h.b16 %v3541
    %v3914 = vunpack.c.l.b16 %v3542
    %v3915 = vunpack.c.h.b16 %v3542
    %v3916 = vunpack.c.l.b16 %v3543
    %v3917 = vunpack.c.h.b16 %v3543
    %v3918 = vunpack.c.l.b16 %v3544
    %v3919 = vunpack.c.h.b16 %v3544
    %v3920 = vunpack.c.l.b16 %v3545
    %v3921 = vunpack.c.h.b16 %v3545
    %v3922 = vunpack.c.l.b16 %v3546
    %v3923 = vunpack.c.h.b16 %v3546
    %v3924 = vunpack.c.l.b16 %v3547
    %v3925 = vunpack.c.h.b16 %v3547
    %v3926 = vunpack.c.l.b16 %v3548
    %v3927 = vunpack.c.h.b16 %v3548
    %v3928 = vunpack.c.l.b16 %v3549
    %v3929 = vunpack.c.h.b16 %v3549
    %v3930 = vunpack.c.l.b16 %v3550
    %v3931 = vunpack.c.h.b16 %v3550
    %v3932 = vunpack.c.l.b16 %v3551
    %v3933 = vunpack.c.h.b16 %v3551
    %v3934 = vunpack.c.l.b16 %v3552
    %v3935 = vunpack.c.h.b16 %v3552
    %v3936 = vunpack.c.l.b16 %v3553
    %v3937 = vunpack.c.h.b16 %v3553
    %v3938 = vunpack.c.l.b16 %v3554
    %v3939 = vunpack.c.h.b16 %v3554
    %v3940 = vunpack.c.l.b16 %v3555
    %v3941 = vunpack.c.h.b16 %v3555
    %v3942 = vunpack.c.l.b16 %v3556
    %v3943 = vunpack.c.h.b16 %v3556
    %v3944 = vunpack.c.l.b16 %v3557
    %v3945 = vunpack.c.h.b16 %v3557
    %v3946 = vunpack.c.l.b16 %v3558
    %v3947 = vunpack.c.h.b16 %v3558
    %v3948 = vunpack.c.l.b16 %v3559
    %v3949 = vunpack.c.h.b16 %v3559
    %v3950 = vunpack.c.l.b16 %v3560
    %v3951 = vunpack.c.h.b16 %v3560
    %v3952 = vunpack.c.l.b16 %v3561
    %v3953 = vunpack.c.h.b16 %v3561
    %v3954 = vunpack.c.l.b16 %v3562
    %v3955 = vunpack.c.h.b16 %v3562
    %v3956 = vunpack.c.l.b16 %v3563
    %v3957 = vunpack.c.h.b16 %v3563
    %v3958 = vunpack.c.l.b16 %v3564
    %v3959 = vunpack.c.h.b16 %v3564
    %v3960 = vunpack.c.l.b16 %v3565
    %v3961 = vunpack.c.h.b16 %v3565
    %v3962 = vunpack.c.l.b16 %v3566
    %v3963 = vunpack.c.h.b16 %v3566
    %v3964 = vunpack.c.l.b16 %v3567
    %v3965 = vunpack.c.h.b16 %v3567
    %v3966 = vunpack.c.l.b16 %v3568
    %v3967 = vunpack.c.h.b16 %v3568
    %v3968 = vunpack.c.l.b16 %v3569
    %v3969 = vunpack.c.h.b16 %v3569
    %v3970 = vunpack.c.l.b16 %v3570
    %v3971 = vunpack.c.h.b16 %v3570
    %v3972 = vunpack.c.l.b16 %v3571
    %v3973 = vunpack.c.h.b16 %v3571
    %v3974 = vunpack.c.l.b16 %v3572
    %v3975 = vunpack.c.h.b16 %v3572
    %v3976 = vunpack.c.l.b16 %v3573
    %v3977 = vunpack.c.h.b16 %v3573
    %v3978 = vunpack.c.l.b16 %v3574
    %v3979 = vunpack.c.h.b16 %v3574
    %v3980 = vunpack.c.l.b16 %v3575
    %v3981 = vunpack.c.h.b16 %v3575
    %v3982 = vunpack.c.l.b16 %v3576
    %v3983 = vunpack.c.h.b16 %v3576
    %v3984 = vunpack.c.l.b16 %v3577
    %v3985 = vunpack.c.h.b16 %v3577
    %v3986 = vunpack.c.l.b16 %v3578
    %v3987 = vunpack.c.h.b16 %v3578
    %v3988 = vunpack.c.l.b16 %v3579
    %v3989 = vunpack.c.h.b16 %v3579
    %v3990 = vunpack.c.l.b16 %v3580
    %v3991 = vunpack.c.h.b16 %v3580
    %v3992 = vunpack.c.l.b16 %v3581
    %v3993 = vunpack.c.h.b16 %v3581
    %v3994 = vunpack.c.l.b16 %v3582
    %v3995 = vunpack.c.h.b16 %v3582
    %v3996 = vunpack.c.l.b16 %v3583
    %v3997 = vunpack.c.h.b16 %v3583
    %v3998 = vunpack.c.l.b16 %v3584
    %v3999 = vunpack.c.h.b16 %v3584
    %v4000 = vunpack.c.l.b16 %v3585
    %v4001 = vunpack.c.h.b16 %v3585
    %v4002 = vunpack.c.l.b16 %v3586
    %v4003 = vunpack.c.h.b16 %v3586
    %v4004 = vunpack.c.l.b16 %v3587
    %v4005 = vunpack.c.h.b16 %v3587
    %v4006 = vunpack.c.l.b16 %v3588
    %v4007 = vunpack.c.h.b16 %v3588
    %v4008 = vunpack.c.l.b16 %v3589
    %v4009 = vunpack.c.h.b16 %v3589
    %v4010 = vunpack.c.l.b16 %v3590
    %v4011 = vunpack.c.h.b16 %v3590
    %v4012 = vunpack.c.l.b16 %v3591
    %v4013 = vunpack.c.h.b16 %v3591
    %v4014 = vunpack.c.l.b16 %v3592
    %v4015 = vunpack.c.h.b16 %v3592
    %v4016 = vunpack.c.l.b16 %v3593
    %v4017 = vunpack.c.h.b16 %v3593
    %v4018 = vunpack.c.l.b16 %v3594
    %v4019 = vunpack.c.h.b16 %v3594
    %v4020 = vunpack.c.l.b16 %v3595
    %v4021 = vunpack.c.h.b16 %v3595
    %v4022 = vpack.c.b16 %v3774, %v3766
    %v4023 = vpack.c.b16 %v3775, %v3767
    %v4024 = vpack.c.b16 %v3776, %v3768
    %v4025 = vpack.c.b16 %v3777, %v3769
    %v4026 = vpack.c.b16 %v3778, %v3770
    %v4027 = vpack.c.b16 %v3779, %v3771
    %v4028 = vpack.c.b16 %v3780, %v3772
    %v4029 = vpack.c.b16 %v3781, %v3773
    %v4030 = vpack.c.b16 %v3790, %v3782
    %v4031 = vpack.c.b16 %v3791, %v3783
    %v4032 = vpack.c.b16 %v3792, %v3784
    %v4033 = vpack.c.b16 %v3793, %v3785
    %v4034 = vpack.c.b16 %v3794, %v3786
    %v4035 = vpack.c.b16 %v3795, %v3787
    %v4036 = vpack.c.b16 %v3796, %v3788
    %v4037 = vpack.c.b16 %v3797, %v3789
    %v4038 = vpack.c.b16 %v3806, %v3798
    %v4039 = vpack.c.b16 %v3807, %v3799
    %v4040 = vpack.c.b16 %v3808, %v3800
    %v4041 = vpack.c.b16 %v3809, %v3801
    %v4042 = vpack.c.b16 %v3810, %v3802
    %v4043 = vpack.c.b16 %v3811, %v3803
    %v4044 = vpack.c.b16 %v3812, %v3804
    %v4045 = vpack.c.b16 %v3813, %v3805
    %v4046 = vpack.c.b16 %v3822, %v3814
    %v4047 = vpack.c.b16 %v3823, %v3815
    %v4048 = vpack.c.b16 %v3824, %v3816
    %v4049 = vpack.c.b16 %v3825, %v3817
    %v4050 = vpack.c.b16 %v3826, %v3818
    %v4051 = vpack.c.b16 %v3827, %v3819
    %v4052 = vpack.c.b16 %v3828, %v3820
    %v4053 = vpack.c.b16 %v3829, %v3821
    %v4054 = vpack.c.b16 %v3838, %v3830
    %v4055 = vpack.c.b16 %v3839, %v3831
    %v4056 = vpack.c.b16 %v3840, %v3832
    %v4057 = vpack.c.b16 %v3841, %v3833
    %v4058 = vpack.c.b16 %v3842, %v3834
    %v4059 = vpack.c.b16 %v3843, %v3835
    %v4060 = vpack.c.b16 %v3844, %v3836
    %v4061 = vpack.c.b16 %v3845, %v3837
    %v4062 = vpack.c.b16 %v3854, %v3846
    %v4063 = vpack.c.b16 %v3855, %v3847
    %v4064 = vpack.c.b16 %v3856, %v3848
    %v4065 = vpack.c.b16 %v3857, %v3849
    %v4066 = vpack.c.b16 %v3858, %v3850
    %v4067 = vpack.c.b16 %v3859, %v3851
    %v4068 = vpack.c.b16 %v3860, %v3852
    %v4069 = vpack.c.b16 %v3861, %v3853
    %v4070 = vpack.c.b16 %v3870, %v3862
    %v4071 = vpack.c.b16 %v3871, %v3863
    %v4072 = vpack.c.b16 %v3872, %v3864
    %v4073 = vpack.c.b16 %v3873, %v3865
    %v4074 = vpack.c.b16 %v3874, %v3866
    %v4075 = vpack.c.b16 %v3875, %v3867
    %v4076 = vpack.c.b16 %v3876, %v3868
    %v4077 = vpack.c.b16 %v3877, %v3869
    %v4078 = vpack.c.b16 %v3886, %v3878
    %v4079 = vpack.c.b16 %v3887, %v3879
    %v4080 = vpack.c.b16 %v3888, %v3880
    %v4081 = vpack.c.b16 %v3889, %v3881
    %v4082 = vpack.c.b16 %v3890, %v3882
    %v4083 = vpack.c.b16 %v3891, %v3883
    %v4084 = vpack.c.b16 %v3892, %v3884
    %v4085 = vpack.c.b16 %v3893, %v3885
    %v4086 = vpack.c.b16 %v3902, %v3894
    %v4087 = vpack.c.b16 %v3903, %v3895
    %v4088 = vpack.c.b16 %v3904, %v3896
    %v4089 = vpack.c.b16 %v3905, %v3897
    %v4090 = vpack.c.b16 %v3906, %v3898
    %v4091 = vpack.c.b16 %v3907, %v3899
    %v4092 = vpack.c.b16 %v3908, %v3900
    %v4093 = vpack.c.b16 %v3909, %v3901
    %v4094 = vpack.c.b16 %v3918, %v3910
    %v4095 = vpack.c.b16 %v3919, %v3911
    %v4096 = vpack.c.b16 %v3920, %v3912
    %v4097 = vpack.c.b16 %v3921, %v3913
    %v4098 = vpack.c.b16 %v3922, %v3914
    %v4099 = vpack.c.b16 %v3923, %v3915
    %v4100 = vpack.c.b16 %v3924, %v3916
    %v4101 = vpack.c.b16 %v3925, %v3917
    %v4102 = vpack.c.b16 %v3934, %v3926
    %v4103 = vpack.c.b16 %v3935, %v3927
    %v4104 = vpack.c.b16 %v3936, %v3928
    %v4105 = vpack.c.b16 %v3937, %v3929
    %v4106 = vpack.c.b16 %v3938, %v3930
    %v4107 = vpack.c.b16 %v3939, %v3931
    %v4108 = vpack.c.b16 %v3940, %v3932
    %v4109 = vpack.c.b16 %v3941, %v3933
    %v4110 = vpack.c.b16 %v3950, %v3942
    %v4111 = vpack.c.b16 %v3951, %v3943
    %v4112 = vpack.c.b16 %v3952, %v3944
    %v4113 = vpack.c.b16 %v3953, %v3945
    %v4114 = vpack.c.b16 %v3954, %v3946
    %v4115 = vpack.c.b16 %v3955, %v3947
    %v4116 = vpack.c.b16 %v3956, %v3948
    %v4117 = vpack.c.b16 %v3957, %v3949
    %v4118 = vpack.c.b16 %v3966, %v3958
    %v4119 = vpack.c.b16 %v3967, %v3959
    %v4120 = vpack.c.b16 %v3968, %v3960
    %v4121 = vpack.c.b16 %v3969, %v3961
    %v4122 = vpack.c.b16 %v3970, %v3962
    %v4123 = vpack.c.b16 %v3971, %v3963
    %v4124 = vpack.c.b16 %v3972, %v3964
    %v4125 = vpack.c.b16 %v3973, %v3965
    %v4126 = vpack.c.b16 %v3982, %v3974
    %v4127 = vpack.c.b16 %v3983, %v3975
    %v4128 = vpack.c.b16 %v3984, %v3976
    %v4129 = vpack.c.b16 %v3985, %v3977
    %v4130 = vpack.c.b16 %v3986, %v3978
    %v4131 = vpack.c.b16 %v3987, %v3979
    %v4132 = vpack.c.b16 %v3988, %v3980
    %v4133 = vpack.c.b16 %v3989, %v3981
    %v4134 = vpack.c.b16 %v3998, %v3990
    %v4135 = vpack.c.b16 %v3999, %v3991
    %v4136 = vpack.c.b16 %v4000, %v3992
    %v4137 = vpack.c.b16 %v4001, %v3993
    %v4138 = vpack.c.b16 %v4002, %v3994
    %v4139 = vpack.c.b16 %v4003, %v3995
    %v4140 = vpack.c.b16 %v4004, %v3996
    %v4141 = vpack.c.b16 %v4005, %v3997
    %v4142 = vpack.c.b16 %v4014, %v4006
    %v4143 = vpack.c.b16 %v4015, %v4007
    %v4144 = vpack.c.b16 %v4016, %v4008
    %v4145 = vpack.c.b16 %v4017, %v4009
    %v4146 = vpack.c.b16 %v4018, %v4010
    %v4147 = vpack.c.b16 %v4019, %v4011
    %v4148 = vpack.c.b16 %v4020, %v4012
    %v4149 = vpack.c.b16 %v4021, %v4013
    %4278 = vmatprep.subr.bf16.mxu0 %v4023
    %4279 = vmatpush1.bf16.msra.mxu0 %v4022
    %4280 = vmatprep.subr.bf16.mxu0 %v4031
    %4281 = vmatpush1.bf16.msra.mxu0 %v4030
    %4282 = vmatprep.subr.bf16.mxu0 %v4039
    %4283 = vmatpush1.bf16.msra.mxu0 %v4038
    %4284 = vmatprep.subr.bf16.mxu0 %v4047
    %4285 = vmatpush1.bf16.msra.mxu0 %v4046
    %4286 = vmatprep.subr.bf16.mxu0 %v4055
    %4287 = vmatpush1.bf16.msra.mxu0 %v4054
    %4288 = vmatprep.subr.bf16.mxu0 %v4063
    %4289 = vmatpush1.bf16.msra.mxu0 %v4062
    %4290 = vmatprep.subr.bf16.mxu0 %v4071
    %4291 = vmatpush1.bf16.msra.mxu0 %v4070
    %4292 = vmatprep.subr.bf16.mxu0 %v4079
    %4293 = vmatpush1.bf16.msra.mxu0 %v4078
    %4294 = vmatprep.subr.bf16.mxu0 %v4087
    %4295 = vmatpush1.bf16.msra.mxu0 %v4086
    %4296 = vmatprep.subr.bf16.mxu0 %v4095
    %4297 = vmatpush1.bf16.msra.mxu0 %v4094
    %4298 = vmatprep.subr.bf16.mxu0 %v4103
    %4299 = vmatpush1.bf16.msra.mxu0 %v4102
    %4300 = vmatprep.subr.bf16.mxu0 %v4111
    %4301 = vmatpush1.bf16.msra.mxu0 %v4110
    %4302 = vmatprep.subr.bf16.mxu0 %v4119
    %4303 = vmatpush1.bf16.msra.mxu0 %v4118
    %4304 = vmatprep.subr.bf16.mxu0 %v4127
    %4305 = vmatpush1.bf16.msra.mxu0 %v4126
    %4306 = vmatprep.subr.bf16.mxu0 %v4135
    %4307 = vmatpush1.bf16.msra.mxu0 %v4134
    %4308 = vmatprep.subr.bf16.mxu0 %v4143
    %4309 = vmatpush1.bf16.msra.mxu0 %v4142
    %4310 = vmatprep.mubr.bf16.mxu0 %v3453
    %4311 = vmatmul.mubr.bf16.gmra.mrb[0].mxu0 %v3452
    %v4312 = vpop.f32.mrb[0].mxu0
    %v4313 = vadd.f32 %v3601, %v4312
    %v4314 = vpop.f32.mrb[0].mxu0
    %v4315 = vadd.f32 %v3605, %v4314
    %v4316 = vpop.f32.mrb[0].mxu0
    %v4317 = vadd.f32 %v3601, %v4316
    %v4318 = vpop.f32.mrb[0].mxu0
    %v4319 = vadd.f32 %v3605, %v4318
    %4320 = vmatprep.mubr.bf16.mxu0 %v3455
    %4321 = vmatmul.mubr.bf16.gmra.mrb[0].mxu0 %v3454
    %v4322 = vpop.f32.mrb[0].mxu0
    %v4323 = vadd.f32 %v3601, %v4322
    %v4324 = vpop.f32.mrb[0].mxu0
    %v4325 = vadd.f32 %v3605, %v4324
    %v4326 = vpop.f32.mrb[0].mxu0
    %v4327 = vadd.f32 %v3601, %v4326
    %v4328 = vpop.f32.mrb[0].mxu0
    %v4329 = vadd.f32 %v3605, %v4328
    %4330 = vmatprep.mubr.bf16.mxu0 %v3457
    %4331 = vmatmul.mubr.bf16.gmra.mrb[0].mxu0 %v3456
    %v4332 = vpop.f32.mrb[0].mxu0
    %v4333 = vadd.f32 %v3601, %v4332
    %v4334 = vpop.f32.mrb[0].mxu0
    %v4335 = vadd.f32 %v3605, %v4334
    %v4336 = vpop.f32.mrb[0].mxu0
    %v4337 = vadd.f32 %v3601, %v4336
    %v4338 = vpop.f32.mrb[0].mxu0
    %v4339 = vadd.f32 %v3605, %v4338
    %4340 = vmatprep.mubr.bf16.mxu0 %v3459
    %4341 = vmatmul.mubr.bf16.gmra.mrb[0].mxu0 %v3458
    %v4342 = vpop.f32.mrb[0].mxu0
    %v4343 = vadd.f32 %v3601, %v4342
    %v4344 = vpop.f32.mrb[0].mxu0
    %v4345 = vadd.f32 %v3605, %v4344
    %v4346 = vpop.f32.mrb[0].mxu0
    %v4347 = vadd.f32 %v3601, %v4346
    %v4348 = vpop.f32.mrb[0].mxu0
    %v4349 = vadd.f32 %v3605, %v4348
    %4350 = vmatprep.mubr.bf16.mxu0 %v3461
    %4351 = vmatmul.mubr.bf16.gmra.mrb[0].mxu0 %v3460
    %v4352 = vpop.f32.mrb[0].mxu0
    %v4353 = vadd.f32 %v3601, %v4352
    %v4354 = vpop.f32.mrb[0].mxu0
    %v4355 = vadd.f32 %v3605, %v4354
    %v4356 = vpop.f32.mrb[0].mxu0
    %v4357 = vadd.f32 %v3601, %v4356
    %v4358 = vpop.f32.mrb[0].mxu0
    %v4359 = vadd.f32 %v3605, %v4358
    %4360 = vmatprep.mubr.bf16.mxu0 %v3463
    %4361 = vmatmul.mubr.bf16.gmra.mrb[0].mxu0 %v3462
    %v4362 = vpop.f32.mrb[0].mxu0
    %v4363 = vadd.f32 %v3601, %v4362
    %v4364 = vpop.f32.mrb[0].mxu0
    %v4365 = vadd.f32 %v3605, %v4364
    %v4366 = vpop.f32.mrb[0].mxu0
    %v4367 = vadd.f32 %v3601, %v4366
    %v4368 = vpop.f32.mrb[0].mxu0
    %v4369 = vadd.f32 %v3605, %v4368
    %4370 = vmatprep.mubr.bf16.mxu0 %v3465
    %4371 = vmatmul.mubr.bf16.gmra.mrb[0].mxu0 %v3464
    %v4372 = vpop.f32.mrb[0].mxu0
    %v4373 = vadd.f32 %v3601, %v4372
    %v4374 = vpop.f32.mrb[0].mxu0
    %v4375 = vadd.f32 %v3605, %v4374
    %v4376 = vpop.f32.mrb[0].mxu0
    %v4377 = vadd.f32 %v3601, %v4376
    %v4378 = vpop.f32.mrb[0].mxu0
    %v4379 = vadd.f32 %v3605, %v4378
    %4380 = vmatprep.mubr.bf16.mxu0 %v3467
    %4381 = vmatmul.mubr.bf16.gmra.mrb[0].mxu0 %v3466
    %v4382 = vpop.f32.mrb[0].mxu0
    %v4383 = vadd.f32 %v3601, %v4382
    %v4384 = vpop.f32.mrb[0].mxu0
    %v4385 = vadd.f32 %v3605, %v4384
    %v4386 = vpop.f32.mrb[0].mxu0
    %v4387 = vadd.f32 %v3601, %v4386
    %v4388 = vpop.f32.mrb[0].mxu0
    %v4389 = vadd.f32 %v3605, %v4388
    %4390 = vdwg.mxu0
    %4391 = vmatprep.subr.bf16.mxu0 %v4025
    %4392 = vmatpush1.bf16.msra.mxu0 %v4024
    %4393 = vmatprep.subr.bf16.mxu0 %v4033
    %4394 = vmatpush1.bf16.msra.mxu0 %v4032
    %4395 = vmatprep.subr.bf16.mxu0 %v4041
    %4396 = vmatpush1.bf16.msra.mxu0 %v4040
    %4397 = vmatprep.subr.bf16.mxu0 %v4049
    %4398 = vmatpush1.bf16.msra.mxu0 %v4048
    %4399 = vmatprep.subr.bf16.mxu0 %v4057
    %4400 = vmatpush1.bf16.msra.mxu0 %v4056
    %4401 = vmatprep.subr.bf16.mxu0 %v4065
    %4402 = vmatpush1.bf16.msra.mxu0 %v4064
    %4403 = vmatprep.subr.bf16.mxu0 %v4073
    %4404 = vmatpush1.bf16.msra.mxu0 %v4072
    %4405 = vmatprep.subr.bf16.mxu0 %v4081
    %4406 = vmatpush1.bf16.msra.mxu0 %v4080
    %4407 = vmatprep.subr.bf16.mxu0 %v4089
    %4408 = vmatpush1.bf16.msra.mxu0 %v4088
    %4409 = vmatprep.subr.bf16.mxu0 %v4097
    %4410 = vmatpush1.bf16.msra.mxu0 %v4096
    %4411 = vmatprep.subr.bf16.mxu0 %v4105
    %4412 = vmatpush1.bf16.msra.mxu0 %v4104
    %4413 = vmatprep.subr.bf16.mxu0 %v4113
    %4414 = vmatpush1.bf16.msra.mxu0 %v4112
    %4415 = vmatprep.subr.bf16.mxu0 %v4121
    %4416 = vmatpush1.bf16.msra.mxu0 %v4120
    %4417 = vmatprep.subr.bf16.mxu0 %v4129
    %4418 = vmatpush1.bf16.msra.mxu0 %v4128
    %4419 = vmatprep.subr.bf16.mxu0 %v4137
    %4420 = vmatpush1.bf16.msra.mxu0 %v4136
    %4421 = vmatprep.subr.bf16.mxu0 %v4145
    %4422 = vmatpush1.bf16.msra.mxu0 %v4144
    %4423 = vmatprep.mubr.bf16.mxu0 %v3453
    %4424 = vmatmul.mubr.bf16.gmra.mrb[0].mxu0 %v3452
    %v4425 = vpop.f32.mrb[0].mxu0
    %v4426 = vadd.f32 %v3609, %v4425
    %v4427 = vpop.f32.mrb[0].mxu0
    %v4428 = vadd.f32 %v3613, %v4427
    %v4429 = vpop.f32.mrb[0].mxu0
    %v4430 = vadd.f32 %v3609, %v4429
    %v4431 = vpop.f32.mrb[0].mxu0
    %v4432 = vadd.f32 %v3613, %v4431
    %4433 = vmatprep.mubr.bf16.mxu0 %v3455
    %4434 = vmatmul.mubr.bf16.gmra.mrb[0].mxu0 %v3454
    %v4435 = vpop.f32.mrb[0].mxu0
    %v4436 = vadd.f32 %v3609, %v4435
    %v4437 = vpop.f32.mrb[0].mxu0
    %v4438 = vadd.f32 %v3613, %v4437
    %v4439 = vpop.f32.mrb[0].mxu0
    %v4440 = vadd.f32 %v3609, %v4439
    %v4441 = vpop.f32.mrb[0].mxu0
    %v4442 = vadd.f32 %v3613, %v4441
    %4443 = vmatprep.mubr.bf16.mxu0 %v3457
    %4444 = vmatmul.mubr.bf16.gmra.mrb[0].mxu0 %v3456
    %v4445 = vpop.f32.mrb[0].mxu0
    %v4446 = vadd.f32 %v3609, %v4445
    %v4447 = vpop.f32.mrb[0].mxu0
    %v4448 = vadd.f32 %v3613, %v4447
    %v4449 = vpop.f32.mrb[0].mxu0
    %v4450 = vadd.f32 %v3609, %v4449
    %v4451 = vpop.f32.mrb[0].mxu0
    %v4452 = vadd.f32 %v3613, %v4451
    %4453 = vmatprep.mubr.bf16.mxu0 %v3459
    %4454 = vmatmul.mubr.bf16.gmra.mrb[0].mxu0 %v3458
    %v4455 = vpop.f32.mrb[0].mxu0
    %v4456 = vadd.f32 %v3609, %v4455
    %v4457 = vpop.f32.mrb[0].mxu0
    %v4458 = vadd.f32 %v3613, %v4457
    %v4459 = vpop.f32.mrb[0].mxu0
    %v4460 = vadd.f32 %v3609, %v4459
    %v4461 = vpop.f32.mrb[0].mxu0
    %v4462 = vadd.f32 %v3613, %v4461
    %4463 = vmatprep.mubr.bf16.mxu0 %v3461
    %4464 = vmatmul.mubr.bf16.gmra.mrb[0].mxu0 %v3460
    %v4465 = vpop.f32.mrb[0].mxu0
    %v4466 = vadd.f32 %v3609, %v4465
    %v4467 = vpop.f32.mrb[0].mxu0
    %v4468 = vadd.f32 %v3613, %v4467
    %v4469 = vpop.f32.mrb[0].mxu0
    %v4470 = vadd.f32 %v3609, %v4469
    %v4471 = vpop.f32.mrb[0].mxu0
    %v4472 = vadd.f32 %v3613, %v4471
    %4473 = vmatprep.mubr.bf16.mxu0 %v3463
    %4474 = vmatmul.mubr.bf16.gmra.mrb[0].mxu0 %v3462
    %v4475 = vpop.f32.mrb[0].mxu0
    %v4476 = vadd.f32 %v3609, %v4475
    %v4477 = vpop.f32.mrb[0].mxu0
    %v4478 = vadd.f32 %v3613, %v4477
    %v4479 = vpop.f32.mrb[0].mxu0
    %v4480 = vadd.f32 %v3609, %v4479
    %v4481 = vpop.f32.mrb[0].mxu0
    %v4482 = vadd.f32 %v3613, %v4481
    %4483 = vmatprep.mubr.bf16.mxu0 %v3465
    %4484 = vmatmul.mubr.bf16.gmra.mrb[0].mxu0 %v3464
    %v4485 = vpop.f32.mrb[0].mxu0
    %v4486 = vadd.f32 %v3609, %v4485
    %v4487 = vpop.f32.mrb[0].mxu0
    %v4488 = vadd.f32 %v3613, %v4487
    %v4489 = vpop.f32.mrb[0].mxu0
    %v4490 = vadd.f32 %v3609, %v4489
    %v4491 = vpop.f32.mrb[0].mxu0
    %v4492 = vadd.f32 %v3613, %v4491
    %4493 = vmatprep.mubr.bf16.mxu0 %v3467
    %4494 = vmatmul.mubr.bf16.gmra.mrb[0].mxu0 %v3466
    %v4495 = vpop.f32.mrb[0].mxu0
    %v4496 = vadd.f32 %v3609, %v4495
    %v4497 = vpop.f32.mrb[0].mxu0
    %v4498 = vadd.f32 %v3613, %v4497
    %v4499 = vpop.f32.mrb[0].mxu0
    %v4500 = vadd.f32 %v3609, %v4499
    %v4501 = vpop.f32.mrb[0].mxu0
    %v4502 = vadd.f32 %v3613, %v4501
    %4503 = vdwg.mxu0
    %4504 = vmatprep.subr.bf16.mxu0 %v4027
    %4505 = vmatpush1.bf16.msra.mxu0 %v4026
    %4506 = vmatprep.subr.bf16.mxu0 %v4035
    %4507 = vmatpush1.bf16.msra.mxu0 %v4034
    %4508 = vmatprep.subr.bf16.mxu0 %v4043
    %4509 = vmatpush1.bf16.msra.mxu0 %v4042
    %4510 = vmatprep.subr.bf16.mxu0 %v4051
    %4511 = vmatpush1.bf16.msra.mxu0 %v4050
    %4512 = vmatprep.subr.bf16.mxu0 %v4059
    %4513 = vmatpush1.bf16.msra.mxu0 %v4058
    %4514 = vmatprep.subr.bf16.mxu0 %v4067
    %4515 = vmatpush1.bf16.msra.mxu0 %v4066
    %4516 = vmatprep.subr.bf16.mxu0 %v4075
    %4517 = vmatpush1.bf16.msra.mxu0 %v4074
    %4518 = vmatprep.subr.bf16.mxu0 %v4083
    %4519 = vmatpush1.bf16.msra.mxu0 %v4082
    %4520 = vmatprep.subr.bf16.mxu0 %v4091
    %4521 = vmatpush1.bf16.msra.mxu0 %v4090
    %4522 = vmatprep.subr.bf16.mxu0 %v4099
    %4523 = vmatpush1.bf16.msra.mxu0 %v4098
    %4524 = vmatprep.subr.bf16.mxu0 %v4107
    %4525 = vmatpush1.bf16.msra.mxu0 %v4106
    %4526 = vmatprep.subr.bf16.mxu0 %v4115
    %4527 = vmatpush1.bf16.msra.mxu0 %v4114
    %4528 = vmatprep.subr.bf16.mxu0 %v4123
    %4529 = vmatpush1.bf16.msra.mxu0 %v4122
    %4530 = vmatprep.subr.bf16.mxu0 %v4131
    %4531 = vmatpush1.bf16.msra.mxu0 %v4130
    %4532 = vmatprep.subr.bf16.mxu0 %v4139
    %4533 = vmatpush1.bf16.msra.mxu0 %v4138
    %4534 = vmatprep.subr.bf16.mxu0 %v4147
    %4535 = vmatpush1.bf16.msra.mxu0 %v4146
    %4536 = vmatprep.mubr.bf16.mxu0 %v3453
    %4537 = vmatmul.mubr.bf16.gmra.mrb[0].mxu0 %v3452
    %v4538 = vpop.f32.mrb[0].mxu0
    %v4539 = vadd.f32 %v3617, %v4538
    %v4540 = vpop.f32.mrb[0].mxu0
    %v4541 = vadd.f32 %v3621, %v4540
    %v4542 = vpop.f32.mrb[0].mxu0
    %v4543 = vadd.f32 %v3617, %v4542
    %v4544 = vpop.f32.mrb[0].mxu0
    %v4545 = vadd.f32 %v3621, %v4544
    %4546 = vmatprep.mubr.bf16.mxu0 %v3455
    %4547 = vmatmul.mubr.bf16.gmra.mrb[0].mxu0 %v3454
    %v4548 = vpop.f32.mrb[0].mxu0
    %v4549 = vadd.f32 %v3617, %v4548
    %v4550 = vpop.f32.mrb[0].mxu0
    %v4551 = vadd.f32 %v3621, %v4550
    %v4552 = vpop.f32.mrb[0].mxu0
    %v4553 = vadd.f32 %v3617, %v4552
    %v4554 = vpop.f32.mrb[0].mxu0
    %v4555 = vadd.f32 %v3621, %v4554
    %4556 = vmatprep.mubr.bf16.mxu0 %v3457
    %4557 = vmatmul.mubr.bf16.gmra.mrb[0].mxu0 %v3456
    %v4558 = vpop.f32.mrb[0].mxu0
    %v4559 = vadd.f32 %v3617, %v4558
    %v4560 = vpop.f32.mrb[0].mxu0
    %v4561 = vadd.f32 %v3621, %v4560
    %v4562 = vpop.f32.mrb[0].mxu0
    %v4563 = vadd.f32 %v3617, %v4562
    %v4564 = vpop.f32.mrb[0].mxu0
    %v4565 = vadd.f32 %v3621, %v4564
    %4566 = vmatprep.mubr.bf16.mxu0 %v3459
    %4567 = vmatmul.mubr.bf16.gmra.mrb[0].mxu0 %v3458
    %v4568 = vpop.f32.mrb[0].mxu0
    %v4569 = vadd.f32 %v3617, %v4568
    %v4570 = vpop.f32.mrb[0].mxu0
    %v4571 = vadd.f32 %v3621, %v4570
    %v4572 = vpop.f32.mrb[0].mxu0
    %v4573 = vadd.f32 %v3617, %v4572
    %v4574 = vpop.f32.mrb[0].mxu0
    %v4575 = vadd.f32 %v3621, %v4574
    %4576 = vmatprep.mubr.bf16.mxu0 %v3461
    %4577 = vmatmul.mubr.bf16.gmra.mrb[0].mxu0 %v3460
    %v4578 = vpop.f32.mrb[0].mxu0
    %v4579 = vadd.f32 %v3617, %v4578
    %v4580 = vpop.f32.mrb[0].mxu0
    %v4581 = vadd.f32 %v3621, %v4580
    %v4582 = vpop.f32.mrb[0].mxu0
    %v4583 = vadd.f32 %v3617, %v4582
    %v4584 = vpop.f32.mrb[0].mxu0
    %v4585 = vadd.f32 %v3621, %v4584
    %4586 = vmatprep.mubr.bf16.mxu0 %v3463
    %4587 = vmatmul.mubr.bf16.gmra.mrb[0].mxu0 %v3462
    %v4588 = vpop.f32.mrb[0].mxu0
    %v4589 = vadd.f32 %v3617, %v4588
    %v4590 = vpop.f32.mrb[0].mxu0
    %v4591 = vadd.f32 %v3621, %v4590
    %v4592 = vpop.f32.mrb[0].mxu0
    %v4593 = vadd.f32 %v3617, %v4592
    %v4594 = vpop.f32.mrb[0].mxu0
    %v4595 = vadd.f32 %v3621, %v4594
    %4596 = vmatprep.mubr.bf16.mxu0 %v3465
    %4597 = vmatmul.mubr.bf16.gmra.mrb[0].mxu0 %v3464
    %v4598 = vpop.f32.mrb[0].mxu0
    %v4599 = vadd.f32 %v3617, %v4598
    %v4600 = vpop.f32.mrb[0].mxu0
    %v4601 = vadd.f32 %v3621, %v4600
    %v4602 = vpop.f32.mrb[0].mxu0
    %v4603 = vadd.f32 %v3617, %v4602
    %v4604 = vpop.f32.mrb[0].mxu0
    %v4605 = vadd.f32 %v3621, %v4604
    %4606 = vmatprep.mubr.bf16.mxu0 %v3467
    %4607 = vmatmul.mubr.bf16.gmra.mrb[0].mxu0 %v3466
    %v4608 = vpop.f32.mrb[0].mxu0
    %v4609 = vadd.f32 %v3617, %v4608
    %v4610 = vpop.f32.mrb[0].mxu0
    %v4611 = vadd.f32 %v3621, %v4610
    %v4612 = vpop.f32.mrb[0].mxu0
    %v4613 = vadd.f32 %v3617, %v4612
    %v4614 = vpop.f32.mrb[0].mxu0
    %v4615 = vadd.f32 %v3621, %v4614
    %4616 = vdwg.mxu0
    %4617 = vmatprep.subr.bf16.mxu0 %v4029
    %4618 = vmatpush1.bf16.msra.mxu0 %v4028
    %4619 = vmatprep.subr.bf16.mxu0 %v4037
    %4620 = vmatpush1.bf16.msra.mxu0 %v4036
    %4621 = vmatprep.subr.bf16.mxu0 %v4045
    %4622 = vmatpush1.bf16.msra.mxu0 %v4044
    %4623 = vmatprep.subr.bf16.mxu0 %v4053
    %4624 = vmatpush1.bf16.msra.mxu0 %v4052
    %4625 = vmatprep.subr.bf16.mxu0 %v4061
    %4626 = vmatpush1.bf16.msra.mxu0 %v4060
    %4627 = vmatprep.subr.bf16.mxu0 %v4069
    %4628 = vmatpush1.bf16.msra.mxu0 %v4068
    %4629 = vmatprep.subr.bf16.mxu0 %v4077
    %4630 = vmatpush1.bf16.msra.mxu0 %v4076
    %4631 = vmatprep.subr.bf16.mxu0 %v4085
    %4632 = vmatpush1.bf16.msra.mxu0 %v4084
    %4633 = vmatprep.subr.bf16.mxu0 %v4093
    %4634 = vmatpush1.bf16.msra.mxu0 %v4092
    %4635 = vmatprep.subr.bf16.mxu0 %v4101
    %4636 = vmatpush1.bf16.msra.mxu0 %v4100
    %4637 = vmatprep.subr.bf16.mxu0 %v4109
    %4638 = vmatpush1.bf16.msra.mxu0 %v4108
    %4639 = vmatprep.subr.bf16.mxu0 %v4117
    %4640 = vmatpush1.bf16.msra.mxu0 %v4116
    %4641 = vmatprep.subr.bf16.mxu0 %v4125
    %4642 = vmatpush1.bf16.msra.mxu0 %v4124
    %4643 = vmatprep.subr.bf16.mxu0 %v4133
    %4644 = vmatpush1.bf16.msra.mxu0 %v4132
    %4645 = vmatprep.subr.bf16.mxu0 %v4141
    %4646 = vmatpush1.bf16.msra.mxu0 %v4140
    %4647 = vmatprep.subr.bf16.mxu0 %v4149
    %4648 = vmatpush1.bf16.msra.mxu0 %v4148
    %4649 = vmatprep.mubr.bf16.mxu0 %v3453
    %4650 = vmatmul.mubr.bf16.gmra.mrb[0].mxu0 %v3452
    %v4651 = vpop.f32.mrb[0].mxu0
    %v4652 = vadd.f32 %v3625, %v4651
    %v4653 = vpop.f32.mrb[0].mxu0
    %v4654 = vadd.f32 %v3629, %v4653
    %v4655 = vpop.f32.mrb[0].mxu0
    %v4656 = vadd.f32 %v3625, %v4655
    %v4657 = vpop.f32.mrb[0].mxu0
    %v4658 = vadd.f32 %v3629, %v4657
    %4659 = vmatprep.mubr.bf16.mxu0 %v3455
    %4660 = vmatmul.mubr.bf16.gmra.mrb[0].mxu0 %v3454
    %v4661 = vpop.f32.mrb[0].mxu0
    %v4662 = vadd.f32 %v3625, %v4661
    %v4663 = vpop.f32.mrb[0].mxu0
    %v4664 = vadd.f32 %v3629, %v4663
    %v4665 = vpop.f32.mrb[0].mxu0
    %v4666 = vadd.f32 %v3625, %v4665
    %v4667 = vpop.f32.mrb[0].mxu0
    %v4668 = vadd.f32 %v3629, %v4667
    %4669 = vmatprep.mubr.bf16.mxu0 %v3457
    %4670 = vmatmul.mubr.bf16.gmra.mrb[0].mxu0 %v3456
    %v4671 = vpop.f32.mrb[0].mxu0
    %v4672 = vadd.f32 %v3625, %v4671
    %v4673 = vpop.f32.mrb[0].mxu0
    %v4674 = vadd.f32 %v3629, %v4673
    %v4675 = vpop.f32.mrb[0].mxu0
    %v4676 = vadd.f32 %v3625, %v4675
    %v4677 = vpop.f32.mrb[0].mxu0
    %v4678 = vadd.f32 %v3629, %v4677
    %4679 = vmatprep.mubr.bf16.mxu0 %v3459
    %4680 = vmatmul.mubr.bf16.gmra.mrb[0].mxu0 %v3458
    %v4681 = vpop.f32.mrb[0].mxu0
    %v4682 = vadd.f32 %v3625, %v4681
    %v4683 = vpop.f32.mrb[0].mxu0
    %v4684 = vadd.f32 %v3629, %v4683
    %v4685 = vpop.f32.mrb[0].mxu0
    %v4686 = vadd.f32 %v3625, %v4685
    %v4687 = vpop.f32.mrb[0].mxu0
    %v4688 = vadd.f32 %v3629, %v4687
    %4689 = vmatprep.mubr.bf16.mxu0 %v3461
    %4690 = vmatmul.mubr.bf16.gmra.mrb[0].mxu0 %v3460
    %v4691 = vpop.f32.mrb[0].mxu0
    %v4692 = vadd.f32 %v3625, %v4691
    %v4693 = vpop.f32.mrb[0].mxu0
    %v4694 = vadd.f32 %v3629, %v4693
    %v4695 = vpop.f32.mrb[0].mxu0
    %v4696 = vadd.f32 %v3625, %v4695
    %v4697 = vpop.f32.mrb[0].mxu0
    %v4698 = vadd.f32 %v3629, %v4697
    %4699 = vmatprep.mubr.bf16.mxu0 %v3463
    %4700 = vmatmul.mubr.bf16.gmra.mrb[0].mxu0 %v3462
    %v4701 = vpop.f32.mrb[0].mxu0
    %v4702 = vadd.f32 %v3625, %v4701
    %v4703 = vpop.f32.mrb[0].mxu0
    %v4704 = vadd.f32 %v3629, %v4703
    %v4705 = vpop.f32.mrb[0].mxu0
    %v4706 = vadd.f32 %v3625, %v4705
    %v4707 = vpop.f32.mrb[0].mxu0
    %v4708 = vadd.f32 %v3629, %v4707
    %4709 = vmatprep.mubr.bf16.mxu0 %v3465
    %4710 = vmatmul.mubr.bf16.gmra.mrb[0].mxu0 %v3464
    %v4711 = vpop.f32.mrb[0].mxu0
    %v4712 = vadd.f32 %v3625, %v4711
    %v4713 = vpop.f32.mrb[0].mxu0
    %v4714 = vadd.f32 %v3629, %v4713
    %v4715 = vpop.f32.mrb[0].mxu0
    %v4716 = vadd.f32 %v3625, %v4715
    %v4717 = vpop.f32.mrb[0].mxu0
    %v4718 = vadd.f32 %v3629, %v4717
    %4719 = vmatprep.mubr.bf16.mxu0 %v3467
    %4720 = vmatmul.mubr.bf16.gmra.mrb[0].mxu0 %v3466
    %v4721 = vpop.f32.mrb[0].mxu0
    %v4722 = vadd.f32 %v3625, %v4721
    %v4723 = vpop.f32.mrb[0].mxu0
    %v4724 = vadd.f32 %v3629, %v4723
    %v4725 = vpop.f32.mrb[0].mxu0
    %v4726 = vadd.f32 %v3625, %v4725
    %v4727 = vpop.f32.mrb[0].mxu0
    %v4728 = vadd.f32 %v3629, %v4727
    %4729 = vdwg.mxu0
    %v4730 = vmul.f32 %v4313, 0.5
    %v4731 = vmul.f32 %v4315, 0.5
    %v4732 = vmul.f32 %v4426, 0.5
    %v4733 = vmul.f32 %v4428, 0.5
    %v4734 = vmul.f32 %v4539, 0.5
    %v4735 = vmul.f32 %v4541, 0.5
    %v4736 = vmul.f32 %v4652, 0.5
    %v4737 = vmul.f32 %v4654, 0.5
    %v4738 = vmul.f32 %v4317, 0.5
    %v4739 = vmul.f32 %v4319, 0.5
    %v4740 = vmul.f32 %v4430, 0.5
    %v4741 = vmul.f32 %v4432, 0.5
    %v4742 = vmul.f32 %v4543, 0.5
    %v4743 = vmul.f32 %v4545, 0.5
    %v4744 = vmul.f32 %v4656, 0.5
    %v4745 = vmul.f32 %v4658, 0.5
    %v4746 = vmul.f32 %v4323, 0.5
    %v4747 = vmul.f32 %v4325, 0.5
    %v4748 = vmul.f32 %v4436, 0.5
    %v4749 = vmul.f32 %v4438, 0.5
    %v4750 = vmul.f32 %v4549, 0.5
    %v4751 = vmul.f32 %v4551, 0.5
    %v4752 = vmul.f32 %v4662, 0.5
    %v4753 = vmul.f32 %v4664, 0.5
    %v4754 = vmul.f32 %v4327, 0.5
    %v4755 = vmul.f32 %v4329, 0.5
    %v4756 = vmul.f32 %v4440, 0.5
    %v4757 = vmul.f32 %v4442, 0.5
    %v4758 = vmul.f32 %v4553, 0.5
    %v4759 = vmul.f32 %v4555, 0.5
    %v4760 = vmul.f32 %v4666, 0.5
    %v4761 = vmul.f32 %v4668, 0.5
    %v4762 = vmul.f32 %v4333, 0.5
    %v4763 = vmul.f32 %v4335, 0.5
    %v4764 = vmul.f32 %v4446, 0.5
    %v4765 = vmul.f32 %v4448, 0.5
    %v4766 = vmul.f32 %v4559, 0.5
    %v4767 = vmul.f32 %v4561, 0.5
    %v4768 = vmul.f32 %v4672, 0.5
    %v4769 = vmul.f32 %v4674, 0.5
    %v4770 = vmul.f32 %v4337, 0.5
    %v4771 = vmul.f32 %v4339, 0.5
    %v4772 = vmul.f32 %v4450, 0.5
    %v4773 = vmul.f32 %v4452, 0.5
    %v4774 = vmul.f32 %v4563, 0.5
    %v4775 = vmul.f32 %v4565, 0.5
    %v4776 = vmul.f32 %v4676, 0.5
    %v4777 = vmul.f32 %v4678, 0.5
    %v4778 = vmul.f32 %v4343, 0.5
    %v4779 = vmul.f32 %v4345, 0.5
    %v4780 = vmul.f32 %v4456, 0.5
    %v4781 = vmul.f32 %v4458, 0.5
    %v4782 = vmul.f32 %v4569, 0.5
    %v4783 = vmul.f32 %v4571, 0.5
    %v4784 = vmul.f32 %v4682, 0.5
    %v4785 = vmul.f32 %v4684, 0.5
    %v4786 = vmul.f32 %v4347, 0.5
    %v4787 = vmul.f32 %v4349, 0.5
    %v4788 = vmul.f32 %v4460, 0.5
    %v4789 = vmul.f32 %v4462, 0.5
    %v4790 = vmul.f32 %v4573, 0.5
    %v4791 = vmul.f32 %v4575, 0.5
    %v4792 = vmul.f32 %v4686, 0.5
    %v4793 = vmul.f32 %v4688, 0.5
    %v4794 = vmul.f32 %v4353, 0.5
    %v4795 = vmul.f32 %v4355, 0.5
    %v4796 = vmul.f32 %v4466, 0.5
    %v4797 = vmul.f32 %v4468, 0.5
    %v4798 = vmul.f32 %v4579, 0.5
    %v4799 = vmul.f32 %v4581, 0.5
    %v4800 = vmul.f32 %v4692, 0.5
    %v4801 = vmul.f32 %v4694, 0.5
    %v4802 = vmul.f32 %v4357, 0.5
    %v4803 = vmul.f32 %v4359, 0.5
    %v4804 = vmul.f32 %v4470, 0.5
    %v4805 = vmul.f32 %v4472, 0.5
    %v4806 = vmul.f32 %v4583, 0.5
    %v4807 = vmul.f32 %v4585, 0.5
    %v4808 = vmul.f32 %v4696, 0.5
    %v4809 = vmul.f32 %v4698, 0.5
    %v4810 = vmul.f32 %v4363, 0.5
    %v4811 = vmul.f32 %v4365, 0.5
    %v4812 = vmul.f32 %v4476, 0.5
    %v4813 = vmul.f32 %v4478, 0.5
    %v4814 = vmul.f32 %v4589, 0.5
    %v4815 = vmul.f32 %v4591, 0.5
    %v4816 = vmul.f32 %v4702, 0.5
    %v4817 = vmul.f32 %v4704, 0.5
    %v4818 = vmul.f32 %v4367, 0.5
    %v4819 = vmul.f32 %v4369, 0.5
    %v4820 = vmul.f32 %v4480, 0.5
    %v4821 = vmul.f32 %v4482, 0.5
    %v4822 = vmul.f32 %v4593, 0.5
    %v4823 = vmul.f32 %v4595, 0.5
    %v4824 = vmul.f32 %v4706, 0.5
    %v4825 = vmul.f32 %v4708, 0.5
    %v4826 = vmul.f32 %v4373, 0.5
    %v4827 = vmul.f32 %v4375, 0.5
    %v4828 = vmul.f32 %v4486, 0.5
    %v4829 = vmul.f32 %v4488, 0.5
    %v4830 = vmul.f32 %v4599, 0.5
    %v4831 = vmul.f32 %v4601, 0.5
    %v4832 = vmul.f32 %v4712, 0.5
    %v4833 = vmul.f32 %v4714, 0.5
    %v4834 = vmul.f32 %v4377, 0.5
    %v4835 = vmul.f32 %v4379, 0.5
    %v4836 = vmul.f32 %v4490, 0.5
    %v4837 = vmul.f32 %v4492, 0.5
    %v4838 = vmul.f32 %v4603, 0.5
    %v4839 = vmul.f32 %v4605, 0.5
    %v4840 = vmul.f32 %v4716, 0.5
    %v4841 = vmul.f32 %v4718, 0.5
    %v4842 = vmul.f32 %v4383, 0.5
    %v4843 = vmul.f32 %v4385, 0.5
    %v4844 = vmul.f32 %v4496, 0.5
    %v4845 = vmul.f32 %v4498, 0.5
    %v4846 = vmul.f32 %v4609, 0.5
    %v4847 = vmul.f32 %v4611, 0.5
    %v4848 = vmul.f32 %v4722, 0.5
    %v4849 = vmul.f32 %v4724, 0.5
    %v4850 = vmul.f32 %v4387, 0.5
    %v4851 = vmul.f32 %v4389, 0.5
    %v4852 = vmul.f32 %v4500, 0.5
    %v4853 = vmul.f32 %v4502, 0.5
    %v4854 = vmul.f32 %v4613, 0.5
    %v4855 = vmul.f32 %v4615, 0.5
    %v4856 = vmul.f32 %v4726, 0.5
    %v4857 = vmul.f32 %v4728, 0.5
    %v4858 = vmul.f32 %v4313, 0.044715
    %v4859 = vmul.f32 %v4315, 0.044715
    %v4860 = vmul.f32 %v4426, 0.044715
    %v4861 = vmul.f32 %v4428, 0.044715
    %v4862 = vmul.f32 %v4539, 0.044715
    %v4863 = vmul.f32 %v4541, 0.044715
    %v4864 = vmul.f32 %v4652, 0.044715
    %v4865 = vmul.f32 %v4654, 0.044715
    %v4866 = vmul.f32 %v4317, 0.044715
    %v4867 = vmul.f32 %v4319, 0.044715
    %v4868 = vmul.f32 %v4430, 0.044715
    %v4869 = vmul.f32 %v4432, 0.044715
    %v4870 = vmul.f32 %v4543, 0.044715
    %v4871 = vmul.f32 %v4545, 0.044715
    %v4872 = vmul.f32 %v4656, 0.044715
    %v4873 = vmul.f32 %v4658, 0.044715
    %v4874 = vmul.f32 %v4323, 0.044715
    %v4875 = vmul.f32 %v4325, 0.044715
    %v4876 = vmul.f32 %v4436, 0.044715
    %v4877 = vmul.f32 %v4438, 0.044715
    %v4878 = vmul.f32 %v4549, 0.044715
    %v4879 = vmul.f32 %v4551, 0.044715
    %v4880 = vmul.f32 %v4662, 0.044715
    %v4881 = vmul.f32 %v4664, 0.044715
    %v4882 = vmul.f32 %v4327, 0.044715
    %v4883 = vmul.f32 %v4329, 0.044715
    %v4884 = vmul.f32 %v4440, 0.044715
    %v4885 = vmul.f32 %v4442, 0.044715
    %v4886 = vmul.f32 %v4553, 0.044715
    %v4887 = vmul.f32 %v4555, 0.044715
    %v4888 = vmul.f32 %v4666, 0.044715
    %v4889 = vmul.f32 %v4668, 0.044715
    %v4890 = vmul.f32 %v4333, 0.044715
    %v4891 = vmul.f32 %v4335, 0.044715
    %v4892 = vmul.f32 %v4446, 0.044715
    %v4893 = vmul.f32 %v4448, 0.044715
    %v4894 = vmul.f32 %v4559, 0.044715
    %v4895 = vmul.f32 %v4561, 0.044715
    %v4896 = vmul.f32 %v4672, 0.044715
    %v4897 = vmul.f32 %v4674, 0.044715
    %v4898 = vmul.f32 %v4337, 0.044715
    %v4899 = vmul.f32 %v4339, 0.044715
    %v4900 = vmul.f32 %v4450, 0.044715
    %v4901 = vmul.f32 %v4452, 0.044715
    %v4902 = vmul.f32 %v4563, 0.044715
    %v4903 = vmul.f32 %v4565, 0.044715
    %v4904 = vmul.f32 %v4676, 0.044715
    %v4905 = vmul.f32 %v4678, 0.044715
    %v4906 = vmul.f32 %v4343, 0.044715
    %v4907 = vmul.f32 %v4345, 0.044715
    %v4908 = vmul.f32 %v4456, 0.044715
    %v4909 = vmul.f32 %v4458, 0.044715
    %v4910 = vmul.f32 %v4569, 0.044715
    %v4911 = vmul.f32 %v4571, 0.044715
    %v4912 = vmul.f32 %v4682, 0.044715
    %v4913 = vmul.f32 %v4684, 0.044715
    %v4914 = vmul.f32 %v4347, 0.044715
    %v4915 = vmul.f32 %v4349, 0.044715
    %v4916 = vmul.f32 %v4460, 0.044715
    %v4917 = vmul.f32 %v4462, 0.044715
    %v4918 = vmul.f32 %v4573, 0.044715
    %v4919 = vmul.f32 %v4575, 0.044715
    %v4920 = vmul.f32 %v4686, 0.044715
    %v4921 = vmul.f32 %v4688, 0.044715
    %v4922 = vmul.f32 %v4353, 0.044715
    %v4923 = vmul.f32 %v4355, 0.044715
    %v4924 = vmul.f32 %v4466, 0.044715
    %v4925 = vmul.f32 %v4468, 0.044715
    %v4926 = vmul.f32 %v4579, 0.044715
    %v4927 = vmul.f32 %v4581, 0.044715
    %v4928 = vmul.f32 %v4692, 0.044715
    %v4929 = vmul.f32 %v4694, 0.044715
    %v4930 = vmul.f32 %v4357, 0.044715
    %v4931 = vmul.f32 %v4359, 0.044715
    %v4932 = vmul.f32 %v4470, 0.044715
    %v4933 = vmul.f32 %v4472, 0.044715
    %v4934 = vmul.f32 %v4583, 0.044715
    %v4935 = vmul.f32 %v4585, 0.044715
    %v4936 = vmul.f32 %v4696, 0.044715
    %v4937 = vmul.f32 %v4698, 0.044715
    %v4938 = vmul.f32 %v4363, 0.044715
    %v4939 = vmul.f32 %v4365, 0.044715
    %v4940 = vmul.f32 %v4476, 0.044715
    %v4941 = vmul.f32 %v4478, 0.044715
    %v4942 = vmul.f32 %v4589, 0.044715
    %v4943 = vmul.f32 %v4591, 0.044715
    %v4944 = vmul.f32 %v4702, 0.044715
    %v4945 = vmul.f32 %v4704, 0.044715
    %v4946 = vmul.f32 %v4367, 0.044715
    %v4947 = vmul.f32 %v4369, 0.044715
    %v4948 = vmul.f32 %v4480, 0.044715
    %v4949 = vmul.f32 %v4482, 0.044715
    %v4950 = vmul.f32 %v4593, 0.044715
    %v4951 = vmul.f32 %v4595, 0.044715
    %v4952 = vmul.f32 %v4706, 0.044715
    %v4953 = vmul.f32 %v4708, 0.044715
    %v4954 = vmul.f32 %v4373, 0.044715
    %v4955 = vmul.f32 %v4375, 0.044715
    %v4956 = vmul.f32 %v4486, 0.044715
    %v4957 = vmul.f32 %v4488, 0.044715
    %v4958 = vmul.f32 %v4599, 0.044715
    %v4959 = vmul.f32 %v4601, 0.044715
    %v4960 = vmul.f32 %v4712, 0.044715
    %v4961 = vmul.f32 %v4714, 0.044715
    %v4962 = vmul.f32 %v4377, 0.044715
    %v4963 = vmul.f32 %v4379, 0.044715
    %v4964 = vmul.f32 %v4490, 0.044715
    %v4965 = vmul.f32 %v4492, 0.044715
    %v4966 = vmul.f32 %v4603, 0.044715
    %v4967 = vmul.f32 %v4605, 0.044715
    %v4968 = vmul.f32 %v4716, 0.044715
    %v4969 = vmul.f32 %v4718, 0.044715
    %v4970 = vmul.f32 %v4383, 0.044715
    %v4971 = vmul.f32 %v4385, 0.044715
    %v4972 = vmul.f32 %v4496, 0.044715
    %v4973 = vmul.f32 %v4498, 0.044715
    %v4974 = vmul.f32 %v4609, 0.044715
    %v4975 = vmul.f32 %v4611, 0.044715
    %v4976 = vmul.f32 %v4722, 0.044715
    %v4977 = vmul.f32 %v4724, 0.044715
    %v4978 = vmul.f32 %v4387, 0.044715
    %v4979 = vmul.f32 %v4389, 0.044715
    %v4980 = vmul.f32 %v4500, 0.044715
    %v4981 = vmul.f32 %v4502, 0.044715
    %v4982 = vmul.f32 %v4613, 0.044715
    %v4983 = vmul.f32 %v4615, 0.044715
    %v4984 = vmul.f32 %v4726, 0.044715
    %v4985 = vmul.f32 %v4728, 0.044715
    %v4986 = vmul.f32 %v4858, %v4313
    %v4987 = vmul.f32 %v4859, %v4315
    %v4988 = vmul.f32 %v4860, %v4426
    %v4989 = vmul.f32 %v4861, %v4428
    %v4990 = vmul.f32 %v4862, %v4539
    %v4991 = vmul.f32 %v4863, %v4541
    %v4992 = vmul.f32 %v4864, %v4652
    %v4993 = vmul.f32 %v4865, %v4654
    %v4994 = vmul.f32 %v4866, %v4317
    %v4995 = vmul.f32 %v4867, %v4319
    %v4996 = vmul.f32 %v4868, %v4430
    %v4997 = vmul.f32 %v4869, %v4432
    %v4998 = vmul.f32 %v4870, %v4543
    %v4999 = vmul.f32 %v4871, %v4545
    %v5000 = vmul.f32 %v4872, %v4656
    %v5001 = vmul.f32 %v4873, %v4658
    %v5002 = vmul.f32 %v4874, %v4323
    %v5003 = vmul.f32 %v4875, %v4325
    %v5004 = vmul.f32 %v4876, %v4436
    %v5005 = vmul.f32 %v4877, %v4438
    %v5006 = vmul.f32 %v4878, %v4549
    %v5007 = vmul.f32 %v4879, %v4551
    %v5008 = vmul.f32 %v4880, %v4662
    %v5009 = vmul.f32 %v4881, %v4664
    %v5010 = vmul.f32 %v4882, %v4327
    %v5011 = vmul.f32 %v4883, %v4329
    %v5012 = vmul.f32 %v4884, %v4440
    %v5013 = vmul.f32 %v4885, %v4442
    %v5014 = vmul.f32 %v4886, %v4553
    %v5015 = vmul.f32 %v4887, %v4555
    %v5016 = vmul.f32 %v4888, %v4666
    %v5017 = vmul.f32 %v4889, %v4668
    %v5018 = vmul.f32 %v4890, %v4333
    %v5019 = vmul.f32 %v4891, %v4335
    %v5020 = vmul.f32 %v4892, %v4446
    %v5021 = vmul.f32 %v4893, %v4448
    %v5022 = vmul.f32 %v4894, %v4559
    %v5023 = vmul.f32 %v4895, %v4561
    %v5024 = vmul.f32 %v4896, %v4672
    %v5025 = vmul.f32 %v4897, %v4674
    %v5026 = vmul.f32 %v4898, %v4337
    %v5027 = vmul.f32 %v4899, %v4339
    %v5028 = vmul.f32 %v4900, %v4450
    %v5029 = vmul.f32 %v4901, %v4452
    %v5030 = vmul.f32 %v4902, %v4563
    %v5031 = vmul.f32 %v4903, %v4565
    %v5032 = vmul.f32 %v4904, %v4676
    %v5033 = vmul.f32 %v4905, %v4678
    %v5034 = vmul.f32 %v4906, %v4343
    %v5035 = vmul.f32 %v4907, %v4345
    %v5036 = vmul.f32 %v4908, %v4456
    %v5037 = vmul.f32 %v4909, %v4458
    %v5038 = vmul.f32 %v4910, %v4569
    %v5039 = vmul.f32 %v4911, %v4571
    %v5040 = vmul.f32 %v4912, %v4682
    %v5041 = vmul.f32 %v4913, %v4684
    %v5042 = vmul.f32 %v4914, %v4347
    %v5043 = vmul.f32 %v4915, %v4349
    %v5044 = vmul.f32 %v4916, %v4460
    %v5045 = vmul.f32 %v4917, %v4462
    %v5046 = vmul.f32 %v4918, %v4573
    %v5047 = vmul.f32 %v4919, %v4575
    %v5048 = vmul.f32 %v4920, %v4686
    %v5049 = vmul.f32 %v4921, %v4688
    %v5050 = vmul.f32 %v4922, %v4353
    %v5051 = vmul.f32 %v4923, %v4355
    %v5052 = vmul.f32 %v4924, %v4466
    %v5053 = vmul.f32 %v4925, %v4468
    %v5054 = vmul.f32 %v4926, %v4579
    %v5055 = vmul.f32 %v4927, %v4581
    %v5056 = vmul.f32 %v4928, %v4692
    %v5057 = vmul.f32 %v4929, %v4694
    %v5058 = vmul.f32 %v4930, %v4357
    %v5059 = vmul.f32 %v4931, %v4359
    %v5060 = vmul.f32 %v4932, %v4470
    %v5061 = vmul.f32 %v4933, %v4472
    %v5062 = vmul.f32 %v4934, %v4583
    %v5063 = vmul.f32 %v4935, %v4585
    %v5064 = vmul.f32 %v4936, %v4696
    %v5065 = vmul.f32 %v4937, %v4698
    %v5066 = vmul.f32 %v4938, %v4363
    %v5067 = vmul.f32 %v4939, %v4365
    %v5068 = vmul.f32 %v4940, %v4476
    %v5069 = vmul.f32 %v4941, %v4478
    %v5070 = vmul.f32 %v4942, %v4589
    %v5071 = vmul.f32 %v4943, %v4591
    %v5072 = vmul.f32 %v4944, %v4702
    %v5073 = vmul.f32 %v4945, %v4704
    %v5074 = vmul.f32 %v4946, %v4367
    %v5075 = vmul.f32 %v4947, %v4369
    %v5076 = vmul.f32 %v4948, %v4480
    %v5077 = vmul.f32 %v4949, %v4482
    %v5078 = vmul.f32 %v4950, %v4593
    %v5079 = vmul.f32 %v4951, %v4595
    %v5080 = vmul.f32 %v4952, %v4706
    %v5081 = vmul.f32 %v4953, %v4708
    %v5082 = vmul.f32 %v4954, %v4373
    %v5083 = vmul.f32 %v4955, %v4375
    %v5084 = vmul.f32 %v4956, %v4486
    %v5085 = vmul.f32 %v4957, %v4488
    %v5086 = vmul.f32 %v4958, %v4599
    %v5087 = vmul.f32 %v4959, %v4601
    %v5088 = vmul.f32 %v4960, %v4712
    %v5089 = vmul.f32 %v4961, %v4714
    %v5090 = vmul.f32 %v4962, %v4377
    %v5091 = vmul.f32 %v4963, %v4379
    %v5092 = vmul.f32 %v4964, %v4490
    %v5093 = vmul.f32 %v4965, %v4492
    %v5094 = vmul.f32 %v4966, %v4603
    %v5095 = vmul.f32 %v4967, %v4605
    %v5096 = vmul.f32 %v4968, %v4716
    %v5097 = vmul.f32 %v4969, %v4718
    %v5098 = vmul.f32 %v4970, %v4383
    %v5099 = vmul.f32 %v4971, %v4385
    %v5100 = vmul.f32 %v4972, %v4496
    %v5101 = vmul.f32 %v4973, %v4498
    %v5102 = vmul.f32 %v4974, %v4609
    %v5103 = vmul.f32 %v4975, %v4611
    %v5104 = vmul.f32 %v4976, %v4722
    %v5105 = vmul.f32 %v4977, %v4724
    %v5106 = vmul.f32 %v4978, %v4387
    %v5107 = vmul.f32 %v4979, %v4389
    %v5108 = vmul.f32 %v4980, %v4500
    %v5109 = vmul.f32 %v4981, %v4502
    %v5110 = vmul.f32 %v4982, %v4613
    %v5111 = vmul.f32 %v4983, %v4615
    %v5112 = vmul.f32 %v4984, %v4726
    %v5113 = vmul.f32 %v4985, %v4728
    %v5114 = vmul.f32 %v4986, %v4313
    %v5115 = vmul.f32 %v4987, %v4315
    %v5116 = vmul.f32 %v4988, %v4426
    %v5117 = vmul.f32 %v4989, %v4428
    %v5118 = vmul.f32 %v4990, %v4539
    %v5119 = vmul.f32 %v4991, %v4541
    %v5120 = vmul.f32 %v4992, %v4652
    %v5121 = vmul.f32 %v4993, %v4654
    %v5122 = vmul.f32 %v4994, %v4317
    %v5123 = vmul.f32 %v4995, %v4319
    %v5124 = vmul.f32 %v4996, %v4430
    %v5125 = vmul.f32 %v4997, %v4432
    %v5126 = vmul.f32 %v4998, %v4543
    %v5127 = vmul.f32 %v4999, %v4545
    %v5128 = vmul.f32 %v5000, %v4656
    %v5129 = vmul.f32 %v5001, %v4658
    %v5130 = vmul.f32 %v5002, %v4323
    %v5131 = vmul.f32 %v5003, %v4325
    %v5132 = vmul.f32 %v5004, %v4436
    %v5133 = vmul.f32 %v5005, %v4438
    %v5134 = vmul.f32 %v5006, %v4549
    %v5135 = vmul.f32 %v5007, %v4551
    %v5136 = vmul.f32 %v5008, %v4662
    %v5137 = vmul.f32 %v5009, %v4664
    %v5138 = vmul.f32 %v5010, %v4327
    %v5139 = vmul.f32 %v5011, %v4329
    %v5140 = vmul.f32 %v5012, %v4440
    %v5141 = vmul.f32 %v5013, %v4442
    %v5142 = vmul.f32 %v5014, %v4553
    %v5143 = vmul.f32 %v5015, %v4555
    %v5144 = vmul.f32 %v5016, %v4666
    %v5145 = vmul.f32 %v5017, %v4668
    %v5146 = vmul.f32 %v5018, %v4333
    %v5147 = vmul.f32 %v5019, %v4335
    %v5148 = vmul.f32 %v5020, %v4446
    %v5149 = vmul.f32 %v5021, %v4448
    %v5150 = vmul.f32 %v5022, %v4559
    %v5151 = vmul.f32 %v5023, %v4561
    %v5152 = vmul.f32 %v5024, %v4672
    %v5153 = vmul.f32 %v5025, %v4674
    %v5154 = vmul.f32 %v5026, %v4337
    %v5155 = vmul.f32 %v5027, %v4339
    %v5156 = vmul.f32 %v5028, %v4450
    %v5157 = vmul.f32 %v5029, %v4452
    %v5158 = vmul.f32 %v5030, %v4563
    %v5159 = vmul.f32 %v5031, %v4565
    %v5160 = vmul.f32 %v5032, %v4676
    %v5161 = vmul.f32 %v5033, %v4678
    %v5162 = vmul.f32 %v5034, %v4343
    %v5163 = vmul.f32 %v5035, %v4345
    %v5164 = vmul.f32 %v5036, %v4456
    %v5165 = vmul.f32 %v5037, %v4458
    %v5166 = vmul.f32 %v5038, %v4569
    %v5167 = vmul.f32 %v5039, %v4571
    %v5168 = vmul.f32 %v5040, %v4682
    %v5169 = vmul.f32 %v5041, %v4684
    %v5170 = vmul.f32 %v5042, %v4347
    %v5171 = vmul.f32 %v5043, %v4349
    %v5172 = vmul.f32 %v5044, %v4460
    %v5173 = vmul.f32 %v5045, %v4462
    %v5174 = vmul.f32 %v5046, %v4573
    %v5175 = vmul.f32 %v5047, %v4575
    %v5176 = vmul.f32 %v5048, %v4686
    %v5177 = vmul.f32 %v5049, %v4688
    %v5178 = vmul.f32 %v5050, %v4353
    %v5179 = vmul.f32 %v5051, %v4355
    %v5180 = vmul.f32 %v5052, %v4466
    %v5181 = vmul.f32 %v5053, %v4468
    %v5182 = vmul.f32 %v5054, %v4579
    %v5183 = vmul.f32 %v5055, %v4581
    %v5184 = vmul.f32 %v5056, %v4692
    %v5185 = vmul.f32 %v5057, %v4694
    %v5186 = vmul.f32 %v5058, %v4357
    %v5187 = vmul.f32 %v5059, %v4359
    %v5188 = vmul.f32 %v5060, %v4470
    %v5189 = vmul.f32 %v5061, %v4472
    %v5190 = vmul.f32 %v5062, %v4583
    %v5191 = vmul.f32 %v5063, %v4585
    %v5192 = vmul.f32 %v5064, %v4696
    %v5193 = vmul.f32 %v5065, %v4698
    %v5194 = vmul.f32 %v5066, %v4363
    %v5195 = vmul.f32 %v5067, %v4365
    %v5196 = vmul.f32 %v5068, %v4476
    %v5197 = vmul.f32 %v5069, %v4478
    %v5198 = vmul.f32 %v5070, %v4589
    %v5199 = vmul.f32 %v5071, %v4591
    %v5200 = vmul.f32 %v5072, %v4702
    %v5201 = vmul.f32 %v5073, %v4704
    %v5202 = vmul.f32 %v5074, %v4367
    %v5203 = vmul.f32 %v5075, %v4369
    %v5204 = vmul.f32 %v5076, %v4480
    %v5205 = vmul.f32 %v5077, %v4482
    %v5206 = vmul.f32 %v5078, %v4593
    %v5207 = vmul.f32 %v5079, %v4595
    %v5208 = vmul.f32 %v5080, %v4706
    %v5209 = vmul.f32 %v5081, %v4708
    %v5210 = vmul.f32 %v5082, %v4373
    %v5211 = vmul.f32 %v5083, %v4375
    %v5212 = vmul.f32 %v5084, %v4486
    %v5213 = vmul.f32 %v5085, %v4488
    %v5214 = vmul.f32 %v5086, %v4599
    %v5215 = vmul.f32 %v5087, %v4601
    %v5216 = vmul.f32 %v5088, %v4712
    %v5217 = vmul.f32 %v5089, %v4714
    %v5218 = vmul.f32 %v5090, %v4377
    %v5219 = vmul.f32 %v5091, %v4379
    %v5220 = vmul.f32 %v5092, %v4490
    %v5221 = vmul.f32 %v5093, %v4492
    %v5222 = vmul.f32 %v5094, %v4603
    %v5223 = vmul.f32 %v5095, %v4605
    %v5224 = vmul.f32 %v5096, %v4716
    %v5225 = vmul.f32 %v5097, %v4718
    %v5226 = vmul.f32 %v5098, %v4383
    %v5227 = vmul.f32 %v5099, %v4385
    %v5228 = vmul.f32 %v5100, %v4496
    %v5229 = vmul.f32 %v5101, %v4498
    %v5230 = vmul.f32 %v5102, %v4609
    %v5231 = vmul.f32 %v5103, %v4611
    %v5232 = vmul.f32 %v5104, %v4722
    %v5233 = vmul.f32 %v5105, %v4724
    %v5234 = vmul.f32 %v5106, %v4387
    %v5235 = vmul.f32 %v5107, %v4389
    %v5236 = vmul.f32 %v5108, %v4500
    %v5237 = vmul.f32 %v5109, %v4502
    %v5238 = vmul.f32 %v5110, %v4613
    %v5239 = vmul.f32 %v5111, %v4615
    %v5240 = vmul.f32 %v5112, %v4726
    %v5241 = vmul.f32 %v5113, %v4728
    %v5242 = vadd.f32 %v4313, %v5114
    %v5243 = vadd.f32 %v4315, %v5115
    %v5244 = vadd.f32 %v4426, %v5116
    %v5245 = vadd.f32 %v4428, %v5117
    %v5246 = vadd.f32 %v4539, %v5118
    %v5247 = vadd.f32 %v4541, %v5119
    %v5248 = vadd.f32 %v4652, %v5120
    %v5249 = vadd.f32 %v4654, %v5121
    %v5250 = vadd.f32 %v4317, %v5122
    %v5251 = vadd.f32 %v4319, %v5123
    %v5252 = vadd.f32 %v4430, %v5124
    %v5253 = vadd.f32 %v4432, %v5125
    %v5254 = vadd.f32 %v4543, %v5126
    %v5255 = vadd.f32 %v4545, %v5127
    %v5256 = vadd.f32 %v4656, %v5128
    %v5257 = vadd.f32 %v4658, %v5129
    %v5258 = vadd.f32 %v4323, %v5130
    %v5259 = vadd.f32 %v4325, %v5131
    %v5260 = vadd.f32 %v4436, %v5132
    %v5261 = vadd.f32 %v4438, %v5133
    %v5262 = vadd.f32 %v4549, %v5134
    %v5263 = vadd.f32 %v4551, %v5135
    %v5264 = vadd.f32 %v4662, %v5136
    %v5265 = vadd.f32 %v4664, %v5137
    %v5266 = vadd.f32 %v4327, %v5138
    %v5267 = vadd.f32 %v4329, %v5139
    %v5268 = vadd.f32 %v4440, %v5140
    %v5269 = vadd.f32 %v4442, %v5141
    %v5270 = vadd.f32 %v4553, %v5142
    %v5271 = vadd.f32 %v4555, %v5143
    %v5272 = vadd.f32 %v4666, %v5144
    %v5273 = vadd.f32 %v4668, %v5145
    %v5274 = vadd.f32 %v4333, %v5146
    %v5275 = vadd.f32 %v4335, %v5147
    %v5276 = vadd.f32 %v4446, %v5148
    %v5277 = vadd.f32 %v4448, %v5149
    %v5278 = vadd.f32 %v4559, %v5150
    %v5279 = vadd.f32 %v4561, %v5151
    %v5280 = vadd.f32 %v4672, %v5152
    %v5281 = vadd.f32 %v4674, %v5153
    %v5282 = vadd.f32 %v4337, %v5154
    %v5283 = vadd.f32 %v4339, %v5155
    %v5284 = vadd.f32 %v4450, %v5156
    %v5285 = vadd.f32 %v4452, %v5157
    %v5286 = vadd.f32 %v4563, %v5158
    %v5287 = vadd.f32 %v4565, %v5159
    %v5288 = vadd.f32 %v4676, %v5160
    %v5289 = vadd.f32 %v4678, %v5161
    %v5290 = vadd.f32 %v4343, %v5162
    %v5291 = vadd.f32 %v4345, %v5163
    %v5292 = vadd.f32 %v4456, %v5164
    %v5293 = vadd.f32 %v4458, %v5165
    %v5294 = vadd.f32 %v4569, %v5166
    %v5295 = vadd.f32 %v4571, %v5167
    %v5296 = vadd.f32 %v4682, %v5168
    %v5297 = vadd.f32 %v4684, %v5169
    %v5298 = vadd.f32 %v4347, %v5170
    %v5299 = vadd.f32 %v4349, %v5171
    %v5300 = vadd.f32 %v4460, %v5172
    %v5301 = vadd.f32 %v4462, %v5173
    %v5302 = vadd.f32 %v4573, %v5174
    %v5303 = vadd.f32 %v4575, %v5175
    %v5304 = vadd.f32 %v4686, %v5176
    %v5305 = vadd.f32 %v4688, %v5177
    %v5306 = vadd.f32 %v4353, %v5178
    %v5307 = vadd.f32 %v4355, %v5179
    %v5308 = vadd.f32 %v4466, %v5180
    %v5309 = vadd.f32 %v4468, %v5181
    %v5310 = vadd.f32 %v4579, %v5182
    %v5311 = vadd.f32 %v4581, %v5183
    %v5312 = vadd.f32 %v4692, %v5184
    %v5313 = vadd.f32 %v4694, %v5185
    %v5314 = vadd.f32 %v4357, %v5186
    %v5315 = vadd.f32 %v4359, %v5187
    %v5316 = vadd.f32 %v4470, %v5188
    %v5317 = vadd.f32 %v4472, %v5189
    %v5318 = vadd.f32 %v4583, %v5190
    %v5319 = vadd.f32 %v4585, %v5191
    %v5320 = vadd.f32 %v4696, %v5192
    %v5321 = vadd.f32 %v4698, %v5193
    %v5322 = vadd.f32 %v4363, %v5194
    %v5323 = vadd.f32 %v4365, %v5195
    %v5324 = vadd.f32 %v4476, %v5196
    %v5325 = vadd.f32 %v4478, %v5197
    %v5326 = vadd.f32 %v4589, %v5198
    %v5327 = vadd.f32 %v4591, %v5199
    %v5328 = vadd.f32 %v4702, %v5200
    %v5329 = vadd.f32 %v4704, %v5201
    %v5330 = vadd.f32 %v4367, %v5202
    %v5331 = vadd.f32 %v4369, %v5203
    %v5332 = vadd.f32 %v4480, %v5204
    %v5333 = vadd.f32 %v4482, %v5205
    %v5334 = vadd.f32 %v4593, %v5206
    %v5335 = vadd.f32 %v4595, %v5207
    %v5336 = vadd.f32 %v4706, %v5208
    %v5337 = vadd.f32 %v4708, %v5209
    %v5338 = vadd.f32 %v4373, %v5210
    %v5339 = vadd.f32 %v4375, %v5211
    %v5340 = vadd.f32 %v4486, %v5212
    %v5341 = vadd.f32 %v4488, %v5213
    %v5342 = vadd.f32 %v4599, %v5214
    %v5343 = vadd.f32 %v4601, %v5215
    %v5344 = vadd.f32 %v4712, %v5216
    %v5345 = vadd.f32 %v4714, %v5217
    %v5346 = vadd.f32 %v4377, %v5218
    %v5347 = vadd.f32 %v4379, %v5219
    %v5348 = vadd.f32 %v4490, %v5220
    %v5349 = vadd.f32 %v4492, %v5221
    %v5350 = vadd.f32 %v4603, %v5222
    %v5351 = vadd.f32 %v4605, %v5223
    %v5352 = vadd.f32 %v4716, %v5224
    %v5353 = vadd.f32 %v4718, %v5225
    %v5354 = vadd.f32 %v4383, %v5226
    %v5355 = vadd.f32 %v4385, %v5227
    %v5356 = vadd.f32 %v4496, %v5228
    %v5357 = vadd.f32 %v4498, %v5229
    %v5358 = vadd.f32 %v4609, %v5230
    %v5359 = vadd.f32 %v4611, %v5231
    %v5360 = vadd.f32 %v4722, %v5232
    %v5361 = vadd.f32 %v4724, %v5233
    %v5362 = vadd.f32 %v4387, %v5234
    %v5363 = vadd.f32 %v4389, %v5235
    %v5364 = vadd.f32 %v4500, %v5236
    %v5365 = vadd.f32 %v4502, %v5237
    %v5366 = vadd.f32 %v4613, %v5238
    %v5367 = vadd.f32 %v4615, %v5239
    %v5368 = vadd.f32 %v4726, %v5240
    %v5369 = vadd.f32 %v4728, %v5241
    %v5370 = vmul.f32 %v5242, 0.7978846
    %v5371 = vmul.f32 %v5243, 0.7978846
    %v5372 = vmul.f32 %v5244, 0.7978846
    %v5373 = vmul.f32 %v5245, 0.7978846
    %v5374 = vmul.f32 %v5246, 0.7978846
    %v5375 = vmul.f32 %v5247, 0.7978846
    %v5376 = vmul.f32 %v5248, 0.7978846
    %v5377 = vmul.f32 %v5249, 0.7978846
    %v5378 = vmul.f32 %v5250, 0.7978846
    %v5379 = vmul.f32 %v5251, 0.7978846
    %v5380 = vmul.f32 %v5252, 0.7978846
    %v5381 = vmul.f32 %v5253, 0.7978846
    %v5382 = vmul.f32 %v5254, 0.7978846
    %v5383 = vmul.f32 %v5255, 0.7978846
    %v5384 = vmul.f32 %v5256, 0.7978846
    %v5385 = vmul.f32 %v5257, 0.7978846
    %v5386 = vmul.f32 %v5258, 0.7978846
    %v5387 = vmul.f32 %v5259, 0.7978846
    %v5388 = vmul.f32 %v5260, 0.7978846
    %v5389 = vmul.f32 %v5261, 0.7978846
    %v5390 = vmul.f32 %v5262, 0.7978846
    %v5391 = vmul.f32 %v5263, 0.7978846
    %v5392 = vmul.f32 %v5264, 0.7978846
    %v5393 = vmul.f32 %v5265, 0.7978846
    %v5394 = vmul.f32 %v5266, 0.7978846
    %v5395 = vmul.f32 %v5267, 0.7978846
    %v5396 = vmul.f32 %v5268, 0.7978846
    %v5397 = vmul.f32 %v5269, 0.7978846
    %v5398 = vmul.f32 %v5270, 0.7978846
    %v5399 = vmul.f32 %v5271, 0.7978846
    %v5400 = vmul.f32 %v5272, 0.7978846
    %v5401 = vmul.f32 %v5273, 0.7978846
    %v5402 = vmul.f32 %v5274, 0.7978846
    %v5403 = vmul.f32 %v5275, 0.7978846
    %v5404 = vmul.f32 %v5276, 0.7978846
    %v5405 = vmul.f32 %v5277, 0.7978846
    %v5406 = vmul.f32 %v5278, 0.7978846
    %v5407 = vmul.f32 %v5279, 0.7978846
    %v5408 = vmul.f32 %v5280, 0.7978846
    %v5409 = vmul.f32 %v5281, 0.7978846
    %v5410 = vmul.f32 %v5282, 0.7978846
    %v5411 = vmul.f32 %v5283, 0.7978846
    %v5412 = vmul.f32 %v5284, 0.7978846
    %v5413 = vmul.f32 %v5285, 0.7978846
    %v5414 = vmul.f32 %v5286, 0.7978846
    %v5415 = vmul.f32 %v5287, 0.7978846
    %v5416 = vmul.f32 %v5288, 0.7978846
    %v5417 = vmul.f32 %v5289, 0.7978846
    %v5418 = vmul.f32 %v5290, 0.7978846
    %v5419 = vmul.f32 %v5291, 0.7978846
    %v5420 = vmul.f32 %v5292, 0.7978846
    %v5421 = vmul.f32 %v5293, 0.7978846
    %v5422 = vmul.f32 %v5294, 0.7978846
    %v5423 = vmul.f32 %v5295, 0.7978846
    %v5424 = vmul.f32 %v5296, 0.7978846
    %v5425 = vmul.f32 %v5297, 0.7978846
    %v5426 = vmul.f32 %v5298, 0.7978846
    %v5427 = vmul.f32 %v5299, 0.7978846
    %v5428 = vmul.f32 %v5300, 0.7978846
    %v5429 = vmul.f32 %v5301, 0.7978846
    %v5430 = vmul.f32 %v5302, 0.7978846
    %v5431 = vmul.f32 %v5303, 0.7978846
    %v5432 = vmul.f32 %v5304, 0.7978846
    %v5433 = vmul.f32 %v5305, 0.7978846
    %v5434 = vmul.f32 %v5306, 0.7978846
    %v5435 = vmul.f32 %v5307, 0.7978846
    %v5436 = vmul.f32 %v5308, 0.7978846
    %v5437 = vmul.f32 %v5309, 0.7978846
    %v5438 = vmul.f32 %v5310, 0.7978846
    %v5439 = vmul.f32 %v5311, 0.7978846
    %v5440 = vmul.f32 %v5312, 0.7978846
    %v5441 = vmul.f32 %v5313, 0.7978846
    %v5442 = vmul.f32 %v5314, 0.7978846
    %v5443 = vmul.f32 %v5315, 0.7978846
    %v5444 = vmul.f32 %v5316, 0.7978846
    %v5445 = vmul.f32 %v5317, 0.7978846
    %v5446 = vmul.f32 %v5318, 0.7978846
    %v5447 = vmul.f32 %v5319, 0.7978846
    %v5448 = vmul.f32 %v5320, 0.7978846
    %v5449 = vmul.f32 %v5321, 0.7978846
    %v5450 = vmul.f32 %v5322, 0.7978846
    %v5451 = vmul.f32 %v5323, 0.7978846
    %v5452 = vmul.f32 %v5324, 0.7978846
    %v5453 = vmul.f32 %v5325, 0.7978846
    %v5454 = vmul.f32 %v5326, 0.7978846
    %v5455 = vmul.f32 %v5327, 0.7978846
    %v5456 = vmul.f32 %v5328, 0.7978846
    %v5457 = vmul.f32 %v5329, 0.7978846
    %v5458 = vmul.f32 %v5330, 0.7978846
    %v5459 = vmul.f32 %v5331, 0.7978846
    %v5460 = vmul.f32 %v5332, 0.7978846
    %v5461 = vmul.f32 %v5333, 0.7978846
    %v5462 = vmul.f32 %v5334, 0.7978846
    %v5463 = vmul.f32 %v5335, 0.7978846
    %v5464 = vmul.f32 %v5336, 0.7978846
    %v5465 = vmul.f32 %v5337, 0.7978846
    %v5466 = vmul.f32 %v5338, 0.7978846
    %v5467 = vmul.f32 %v5339, 0.7978846
    %v5468 = vmul.f32 %v5340, 0.7978846
    %v5469 = vmul.f32 %v5341, 0.7978846
    %v5470 = vmul.f32 %v5342, 0.7978846
    %v5471 = vmul.f32 %v5343, 0.7978846
    %v5472 = vmul.f32 %v5344, 0.7978846
    %v5473 = vmul.f32 %v5345, 0.7978846
    %v5474 = vmul.f32 %v5346, 0.7978846
    %v5475 = vmul.f32 %v5347, 0.7978846
    %v5476 = vmul.f32 %v5348, 0.7978846
    %v5477 = vmul.f32 %v5349, 0.7978846
    %v5478 = vmul.f32 %v5350, 0.7978846
    %v5479 = vmul.f32 %v5351, 0.7978846
    %v5480 = vmul.f32 %v5352, 0.7978846
    %v5481 = vmul.f32 %v5353, 0.7978846
    %v5482 = vmul.f32 %v5354, 0.7978846
    %v5483 = vmul.f32 %v5355, 0.7978846
    %v5484 = vmul.f32 %v5356, 0.7978846
    %v5485 = vmul.f32 %v5357, 0.7978846
    %v5486 = vmul.f32 %v5358, 0.7978846
    %v5487 = vmul.f32 %v5359, 0.7978846
    %v5488 = vmul.f32 %v5360, 0.7978846
    %v5489 = vmul.f32 %v5361, 0.7978846
    %v5490 = vmul.f32 %v5362, 0.7978846
    %v5491 = vmul.f32 %v5363, 0.7978846
    %v5492 = vmul.f32 %v5364, 0.7978846
    %v5493 = vmul.f32 %v5365, 0.7978846
    %v5494 = vmul.f32 %v5366, 0.7978846
    %v5495 = vmul.f32 %v5367, 0.7978846
    %v5496 = vmul.f32 %v5368, 0.7978846
    %v5497 = vmul.f32 %v5369, 0.7978846
    %v5498 = vtanh.pop %v5370
    %v5499 = vtanh.pop %v5371
    %v5500 = vtanh.pop %v5372
    %v5501 = vtanh.pop %v5373
    %v5502 = vtanh.pop %v5374
    %v5503 = vtanh.pop %v5375
    %v5504 = vtanh.pop %v5376
    %v5505 = vtanh.pop %v5377
    %v5506 = vtanh.pop %v5378
    %v5507 = vtanh.pop %v5379
    %v5508 = vtanh.pop %v5380
    %v5509 = vtanh.pop %v5381
    %v5510 = vtanh.pop %v5382
    %v5511 = vtanh.pop %v5383
    %v5512 = vtanh.pop %v5384
    %v5513 = vtanh.pop %v5385
    %v5514 = vtanh.pop %v5386
    %v5515 = vtanh.pop %v5387
    %v5516 = vtanh.pop %v5388
    %v5517 = vtanh.pop %v5389
    %v5518 = vtanh.pop %v5390
    %v5519 = vtanh.pop %v5391
    %v5520 = vtanh.pop %v5392
    %v5521 = vtanh.pop %v5393
    %v5522 = vtanh.pop %v5394
    %v5523 = vtanh.pop %v5395
    %v5524 = vtanh.pop %v5396
    %v5525 = vtanh.pop %v5397
    %v5526 = vtanh.pop %v5398
    %v5527 = vtanh.pop %v5399
    %v5528 = vtanh.pop %v5400
    %v5529 = vtanh.pop %v5401
    %v5530 = vtanh.pop %v5402
    %v5531 = vtanh.pop %v5403
    %v5532 = vtanh.pop %v5404
    %v5533 = vtanh.pop %v5405
    %v5534 = vtanh.pop %v5406
    %v5535 = vtanh.pop %v5407
    %v5536 = vtanh.pop %v5408
    %v5537 = vtanh.pop %v5409
    %v5538 = vtanh.pop %v5410
    %v5539 = vtanh.pop %v5411
    %v5540 = vtanh.pop %v5412
    %v5541 = vtanh.pop %v5413
    %v5542 = vtanh.pop %v5414
    %v5543 = vtanh.pop %v5415
    %v5544 = vtanh.pop %v5416
    %v5545 = vtanh.pop %v5417
    %v5546 = vtanh.pop %v5418
    %v5547 = vtanh.pop %v5419
    %v5548 = vtanh.pop %v5420
    %v5549 = vtanh.pop %v5421
    %v5550 = vtanh.pop %v5422
    %v5551 = vtanh.pop %v5423
    %v5552 = vtanh.pop %v5424
    %v5553 = vtanh.pop %v5425
    %v5554 = vtanh.pop %v5426
    %v5555 = vtanh.pop %v5427
    %v5556 = vtanh.pop %v5428
    %v5557 = vtanh.pop %v5429
    %v5558 = vtanh.pop %v5430
    %v5559 = vtanh.pop %v5431
    %v5560 = vtanh.pop %v5432
    %v5561 = vtanh.pop %v5433
    %v5562 = vtanh.pop %v5434
    %v5563 = vtanh.pop %v5435
    %v5564 = vtanh.pop %v5436
    %v5565 = vtanh.pop %v5437
    %v5566 = vtanh.pop %v5438
    %v5567 = vtanh.pop %v5439
    %v5568 = vtanh.pop %v5440
    %v5569 = vtanh.pop %v5441
    %v5570 = vtanh.pop %v5442
    %v5571 = vtanh.pop %v5443
    %v5572 = vtanh.pop %v5444
    %v5573 = vtanh.pop %v5445
    %v5574 = vtanh.pop %v5446
    %v5575 = vtanh.pop %v5447
    %v5576 = vtanh.pop %v5448
    %v5577 = vtanh.pop %v5449
    %v5578 = vtanh.pop %v5450
    %v5579 = vtanh.pop %v5451
    %v5580 = vtanh.pop %v5452
    %v5581 = vtanh.pop %v5453
    %v5582 = vtanh.pop %v5454
    %v5583 = vtanh.pop %v5455
    %v5584 = vtanh.pop %v5456
    %v5585 = vtanh.pop %v5457
    %v5586 = vtanh.pop %v5458
    %v5587 = vtanh.pop %v5459
    %v5588 = vtanh.pop %v5460
    %v5589 = vtanh.pop %v5461
    %v5590 = vtanh.pop %v5462
    %v5591 = vtanh.pop %v5463
    %v5592 = vtanh.pop %v5464
    %v5593 = vtanh.pop %v5465
    %v5594 = vtanh.pop %v5466
    %v5595 = vtanh.pop %v5467
    %v5596 = vtanh.pop %v5468
    %v5597 = vtanh.pop %v5469
    %v5598 = vtanh.pop %v5470
    %v5599 = vtanh.pop %v5471
    %v5600 = vtanh.pop %v5472
    %v5601 = vtanh.pop %v5473
    %v5602 = vtanh.pop %v5474
    %v5603 = vtanh.pop %v5475
    %v5604 = vtanh.pop %v5476
    %v5605 = vtanh.pop %v5477
    %v5606 = vtanh.pop %v5478
    %v5607 = vtanh.pop %v5479
    %v5608 = vtanh.pop %v5480
    %v5609 = vtanh.pop %v5481
    %v5610 = vtanh.pop %v5482
    %v5611 = vtanh.pop %v5483
    %v5612 = vtanh.pop %v5484
    %v5613 = vtanh.pop %v5485
    %v5614 = vtanh.pop %v5486
    %v5615 = vtanh.pop %v5487
    %v5616 = vtanh.pop %v5488
    %v5617 = vtanh.pop %v5489
    %v5618 = vtanh.pop %v5490
    %v5619 = vtanh.pop %v5491
    %v5620 = vtanh.pop %v5492
    %v5621 = vtanh.pop %v5493
    %v5622 = vtanh.pop %v5494
    %v5623 = vtanh.pop %v5495
    %v5624 = vtanh.pop %v5496
    %v5625 = vtanh.pop %v5497
    %v5626 = vadd.f32 %v5498, 1.0
    %v5627 = vadd.f32 %v5499, 1.0
    %v5628 = vadd.f32 %v5500, 1.0
    %v5629 = vadd.f32 %v5501, 1.0
    %v5630 = vadd.f32 %v5502, 1.0
    %v5631 = vadd.f32 %v5503, 1.0
    %v5632 = vadd.f32 %v5504, 1.0
    %v5633 = vadd.f32 %v5505, 1.0
    %v5634 = vadd.f32 %v5506, 1.0
    %v5635 = vadd.f32 %v5507, 1.0
    %v5636 = vadd.f32 %v5508, 1.0
    %v5637 = vadd.f32 %v5509, 1.0
    %v5638 = vadd.f32 %v5510, 1.0
    %v5639 = vadd.f32 %v5511, 1.0
    %v5640 = vadd.f32 %v5512, 1.0
    %v5641 = vadd.f32 %v5513, 1.0
    %v5642 = vadd.f32 %v5514, 1.0
    %v5643 = vadd.f32 %v5515, 1.0
    %v5644 = vadd.f32 %v5516, 1.0
    %v5645 = vadd.f32 %v5517, 1.0
    %v5646 = vadd.f32 %v5518, 1.0
    %v5647 = vadd.f32 %v5519, 1.0
    %v5648 = vadd.f32 %v5520, 1.0
    %v5649 = vadd.f32 %v5521, 1.0
    %v5650 = vadd.f32 %v5522, 1.0
    %v5651 = vadd.f32 %v5523, 1.0
    %v5652 = vadd.f32 %v5524, 1.0
    %v5653 = vadd.f32 %v5525, 1.0
    %v5654 = vadd.f32 %v5526, 1.0
    %v5655 = vadd.f32 %v5527, 1.0
    %v5656 = vadd.f32 %v5528, 1.0
    %v5657 = vadd.f32 %v5529, 1.0
    %v5658 = vadd.f32 %v5530, 1.0
    %v5659 = vadd.f32 %v5531, 1.0
    %v5660 = vadd.f32 %v5532, 1.0
    %v5661 = vadd.f32 %v5533, 1.0
    %v5662 = vadd.f32 %v5534, 1.0
    %v5663 = vadd.f32 %v5535, 1.0
    %v5664 = vadd.f32 %v5536, 1.0
    %v5665 = vadd.f32 %v5537, 1.0
    %v5666 = vadd.f32 %v5538, 1.0
    %v5667 = vadd.f32 %v5539, 1.0
    %v5668 = vadd.f32 %v5540, 1.0
    %v5669 = vadd.f32 %v5541, 1.0
    %v5670 = vadd.f32 %v5542, 1.0
    %v5671 = vadd.f32 %v5543, 1.0
    %v5672 = vadd.f32 %v5544, 1.0
    %v5673 = vadd.f32 %v5545, 1.0
    %v5674 = vadd.f32 %v5546, 1.0
    %v5675 = vadd.f32 %v5547, 1.0
    %v5676 = vadd.f32 %v5548, 1.0
    %v5677 = vadd.f32 %v5549, 1.0
    %v5678 = vadd.f32 %v5550, 1.0
    %v5679 = vadd.f32 %v5551, 1.0
    %v5680 = vadd.f32 %v5552, 1.0
    %v5681 = vadd.f32 %v5553, 1.0
    %v5682 = vadd.f32 %v5554, 1.0
    %v5683 = vadd.f32 %v5555, 1.0
    %v5684 = vadd.f32 %v5556, 1.0
    %v5685 = vadd.f32 %v5557, 1.0
    %v5686 = vadd.f32 %v5558, 1.0
    %v5687 = vadd.f32 %v5559, 1.0
    %v5688 = vadd.f32 %v5560, 1.0
    %v5689 = vadd.f32 %v5561, 1.0
    %v5690 = vadd.f32 %v5562, 1.0
    %v5691 = vadd.f32 %v5563, 1.0
    %v5692 = vadd.f32 %v5564, 1.0
    %v5693 = vadd.f32 %v5565, 1.0
    %v5694 = vadd.f32 %v5566, 1.0
    %v5695 = vadd.f32 %v5567, 1.0
    %v5696 = vadd.f32 %v5568, 1.0
    %v5697 = vadd.f32 %v5569, 1.0
    %v5698 = vadd.f32 %v5570, 1.0
    %v5699 = vadd.f32 %v5571, 1.0
    %v5700 = vadd.f32 %v5572, 1.0
    %v5701 = vadd.f32 %v5573, 1.0
    %v5702 = vadd.f32 %v5574, 1.0
    %v5703 = vadd.f32 %v5575, 1.0
    %v5704 = vadd.f32 %v5576, 1.0
    %v5705 = vadd.f32 %v5577, 1.0
    %v5706 = vadd.f32 %v5578, 1.0
    %v5707 = vadd.f32 %v5579, 1.0
    %v5708 = vadd.f32 %v5580, 1.0
    %v5709 = vadd.f32 %v5581, 1.0
    %v5710 = vadd.f32 %v5582, 1.0
    %v5711 = vadd.f32 %v5583, 1.0
    %v5712 = vadd.f32 %v5584, 1.0
    %v5713 = vadd.f32 %v5585, 1.0
    %v5714 = vadd.f32 %v5586, 1.0
    %v5715 = vadd.f32 %v5587, 1.0
    %v5716 = vadd.f32 %v5588, 1.0
    %v5717 = vadd.f32 %v5589, 1.0
    %v5718 = vadd.f32 %v5590, 1.0
    %v5719 = vadd.f32 %v5591, 1.0
    %v5720 = vadd.f32 %v5592, 1.0
    %v5721 = vadd.f32 %v5593, 1.0
    %v5722 = vadd.f32 %v5594, 1.0
    %v5723 = vadd.f32 %v5595, 1.0
    %v5724 = vadd.f32 %v5596, 1.0
    %v5725 = vadd.f32 %v5597, 1.0
    %v5726 = vadd.f32 %v5598, 1.0
    %v5727 = vadd.f32 %v5599, 1.0
    %v5728 = vadd.f32 %v5600, 1.0
    %v5729 = vadd.f32 %v5601, 1.0
    %v5730 = vadd.f32 %v5602, 1.0
    %v5731 = vadd.f32 %v5603, 1.0
    %v5732 = vadd.f32 %v5604, 1.0
    %v5733 = vadd.f32 %v5605, 1.0
    %v5734 = vadd.f32 %v5606, 1.0
    %v5735 = vadd.f32 %v5607, 1.0
    %v5736 = vadd.f32 %v5608, 1.0
    %v5737 = vadd.f32 %v5609, 1.0
    %v5738 = vadd.f32 %v5610, 1.0
    %v5739 = vadd.f32 %v5611, 1.0
    %v5740 = vadd.f32 %v5612, 1.0
    %v5741 = vadd.f32 %v5613, 1.0
    %v5742 = vadd.f32 %v5614, 1.0
    %v5743 = vadd.f32 %v5615, 1.0
    %v5744 = vadd.f32 %v5616, 1.0
    %v5745 = vadd.f32 %v5617, 1.0
    %v5746 = vadd.f32 %v5618, 1.0
    %v5747 = vadd.f32 %v5619, 1.0
    %v5748 = vadd.f32 %v5620, 1.0
    %v5749 = vadd.f32 %v5621, 1.0
    %v5750 = vadd.f32 %v5622, 1.0
    %v5751 = vadd.f32 %v5623, 1.0
    %v5752 = vadd.f32 %v5624, 1.0
    %v5753 = vadd.f32 %v5625, 1.0
    %v5754 = vmul.f32 %v4730, %v5626
    %v5755 = vmul.f32 %v4731, %v5627
    %v5756 = vmul.f32 %v4732, %v5628
    %v5757 = vmul.f32 %v4733, %v5629
    %v5758 = vmul.f32 %v4734, %v5630
    %v5759 = vmul.f32 %v4735, %v5631
    %v5760 = vmul.f32 %v4736, %v5632
    %v5761 = vmul.f32 %v4737, %v5633
    %v5762 = vmul.f32 %v4738, %v5634
    %v5763 = vmul.f32 %v4739, %v5635
    %v5764 = vmul.f32 %v4740, %v5636
    %v5765 = vmul.f32 %v4741, %v5637
    %v5766 = vmul.f32 %v4742, %v5638
    %v5767 = vmul.f32 %v4743, %v5639
    %v5768 = vmul.f32 %v4744, %v5640
    %v5769 = vmul.f32 %v4745, %v5641
    %v5770 = vmul.f32 %v4746, %v5642
    %v5771 = vmul.f32 %v4747, %v5643
    %v5772 = vmul.f32 %v4748, %v5644
    %v5773 = vmul.f32 %v4749, %v5645
    %v5774 = vmul.f32 %v4750, %v5646
    %v5775 = vmul.f32 %v4751, %v5647
    %v5776 = vmul.f32 %v4752, %v5648
    %v5777 = vmul.f32 %v4753, %v5649
    %v5778 = vmul.f32 %v4754, %v5650
    %v5779 = vmul.f32 %v4755, %v5651
    %v5780 = vmul.f32 %v4756, %v5652
    %v5781 = vmul.f32 %v4757, %v5653
    %v5782 = vmul.f32 %v4758, %v5654
    %v5783 = vmul.f32 %v4759, %v5655
    %v5784 = vmul.f32 %v4760, %v5656
    %v5785 = vmul.f32 %v4761, %v5657
    %v5786 = vmul.f32 %v4762, %v5658
    %v5787 = vmul.f32 %v4763, %v5659
    %v5788 = vmul.f32 %v4764, %v5660
    %v5789 = vmul.f32 %v4765, %v5661
    %v5790 = vmul.f32 %v4766, %v5662
    %v5791 = vmul.f32 %v4767, %v5663
    %v5792 = vmul.f32 %v4768, %v5664
    %v5793 = vmul.f32 %v4769, %v5665
    %v5794 = vmul.f32 %v4770, %v5666
    %v5795 = vmul.f32 %v4771, %v5667
    %v5796 = vmul.f32 %v4772, %v5668
    %v5797 = vmul.f32 %v4773, %v5669
    %v5798 = vmul.f32 %v4774, %v5670
    %v5799 = vmul.f32 %v4775, %v5671
    %v5800 = vmul.f32 %v4776, %v5672
    %v5801 = vmul.f32 %v4777, %v5673
    %v5802 = vmul.f32 %v4778, %v5674
    %v5803 = vmul.f32 %v4779, %v5675
    %v5804 = vmul.f32 %v4780, %v5676
    %v5805 = vmul.f32 %v4781, %v5677
    %v5806 = vmul.f32 %v4782, %v5678
    %v5807 = vmul.f32 %v4783, %v5679
    %v5808 = vmul.f32 %v4784, %v5680
    %v5809 = vmul.f32 %v4785, %v5681
    %v5810 = vmul.f32 %v4786, %v5682
    %v5811 = vmul.f32 %v4787, %v5683
    %v5812 = vmul.f32 %v4788, %v5684
    %v5813 = vmul.f32 %v4789, %v5685
    %v5814 = vmul.f32 %v4790, %v5686
    %v5815 = vmul.f32 %v4791, %v5687
    %v5816 = vmul.f32 %v4792, %v5688
    %v5817 = vmul.f32 %v4793, %v5689
    %v5818 = vmul.f32 %v4794, %v5690
    %v5819 = vmul.f32 %v4795, %v5691
    %v5820 = vmul.f32 %v4796, %v5692
    %v5821 = vmul.f32 %v4797, %v5693
    %v5822 = vmul.f32 %v4798, %v5694
    %v5823 = vmul.f32 %v4799, %v5695
    %v5824 = vmul.f32 %v4800, %v5696
    %v5825 = vmul.f32 %v4801, %v5697
    %v5826 = vmul.f32 %v4802, %v5698
    %v5827 = vmul.f32 %v4803, %v5699
    %v5828 = vmul.f32 %v4804, %v5700
    %v5829 = vmul.f32 %v4805, %v5701
    %v5830 = vmul.f32 %v4806, %v5702
    %v5831 = vmul.f32 %v4807, %v5703
    %v5832 = vmul.f32 %v4808, %v5704
    %v5833 = vmul.f32 %v4809, %v5705
    %v5834 = vmul.f32 %v4810, %v5706
    %v5835 = vmul.f32 %v4811, %v5707
    %v5836 = vmul.f32 %v4812, %v5708
    %v5837 = vmul.f32 %v4813, %v5709
    %v5838 = vmul.f32 %v4814, %v5710
    %v5839 = vmul.f32 %v4815, %v5711
    %v5840 = vmul.f32 %v4816, %v5712
    %v5841 = vmul.f32 %v4817, %v5713
    %v5842 = vmul.f32 %v4818, %v5714
    %v5843 = vmul.f32 %v4819, %v5715
    %v5844 = vmul.f32 %v4820, %v5716
    %v5845 = vmul.f32 %v4821, %v5717
    %v5846 = vmul.f32 %v4822, %v5718
    %v5847 = vmul.f32 %v4823, %v5719
    %v5848 = vmul.f32 %v4824, %v5720
    %v5849 = vmul.f32 %v4825, %v5721
    %v5850 = vmul.f32 %v4826, %v5722
    %v5851 = vmul.f32 %v4827, %v5723
    %v5852 = vmul.f32 %v4828, %v5724
    %v5853 = vmul.f32 %v4829, %v5725
    %v5854 = vmul.f32 %v4830, %v5726
    %v5855 = vmul.f32 %v4831, %v5727
    %v5856 = vmul.f32 %v4832, %v5728
    %v5857 = vmul.f32 %v4833, %v5729
    %v5858 = vmul.f32 %v4834, %v5730
    %v5859 = vmul.f32 %v4835, %v5731
    %v5860 = vmul.f32 %v4836, %v5732
    %v5861 = vmul.f32 %v4837, %v5733
    %v5862 = vmul.f32 %v4838, %v5734
    %v5863 = vmul.f32 %v4839, %v5735
    %v5864 = vmul.f32 %v4840, %v5736
    %v5865 = vmul.f32 %v4841, %v5737
    %v5866 = vmul.f32 %v4842, %v5738
    %v5867 = vmul.f32 %v4843, %v5739
    %v5868 = vmul.f32 %v4844, %v5740
    %v5869 = vmul.f32 %v4845, %v5741
    %v5870 = vmul.f32 %v4846, %v5742
    %v5871 = vmul.f32 %v4847, %v5743
    %v5872 = vmul.f32 %v4848, %v5744
    %v5873 = vmul.f32 %v4849, %v5745
    %v5874 = vmul.f32 %v4850, %v5746
    %v5875 = vmul.f32 %v4851, %v5747
    %v5876 = vmul.f32 %v4852, %v5748
    %v5877 = vmul.f32 %v4853, %v5749
    %v5878 = vmul.f32 %v4854, %v5750
    %v5879 = vmul.f32 %v4855, %v5751
    %v5880 = vmul.f32 %v4856, %v5752
    %v5881 = vmul.f32 %v4857, %v5753
    %v5882 = vpack.c.bf16 %v5762, %v5754
    %v5883 = vpack.c.bf16 %v5763, %v5755
    %v5884 = vpack.c.bf16 %v5764, %v5756
    %v5885 = vpack.c.bf16 %v5765, %v5757
    %v5886 = vpack.c.bf16 %v5766, %v5758
    %v5887 = vpack.c.bf16 %v5767, %v5759
    %v5888 = vpack.c.bf16 %v5768, %v5760
    %v5889 = vpack.c.bf16 %v5769, %v5761
    %v5890 = vpack.c.bf16 %v5778, %v5770
    %v5891 = vpack.c.bf16 %v5779, %v5771
    %v5892 = vpack.c.bf16 %v5780, %v5772
    %v5893 = vpack.c.bf16 %v5781, %v5773
    %v5894 = vpack.c.bf16 %v5782, %v5774
    %v5895 = vpack.c.bf16 %v5783, %v5775
    %v5896 = vpack.c.bf16 %v5784, %v5776
    %v5897 = vpack.c.bf16 %v5785, %v5777
    %v5898 = vpack.c.bf16 %v5794, %v5786
    %v5899 = vpack.c.bf16 %v5795, %v5787
    %v5900 = vpack.c.bf16 %v5796, %v5788
    %v5901 = vpack.c.bf16 %v5797, %v5789
    %v5902 = vpack.c.bf16 %v5798, %v5790
    %v5903 = vpack.c.bf16 %v5799, %v5791
    %v5904 = vpack.c.bf16 %v5800, %v5792
    %v5905 = vpack.c.bf16 %v5801, %v5793
    %v5906 = vpack.c.bf16 %v5810, %v5802
    %v5907 = vpack.c.bf16 %v5811, %v5803
    %v5908 = vpack.c.bf16 %v5812, %v5804
    %v5909 = vpack.c.bf16 %v5813, %v5805
    %v5910 = vpack.c.bf16 %v5814, %v5806
    %v5911 = vpack.c.bf16 %v5815, %v5807
    %v5912 = vpack.c.bf16 %v5816, %v5808
    %v5913 = vpack.c.bf16 %v5817, %v5809
    %v5914 = vpack.c.bf16 %v5826, %v5818
    %v5915 = vpack.c.bf16 %v5827, %v5819
    %v5916 = vpack.c.bf16 %v5828, %v5820
    %v5917 = vpack.c.bf16 %v5829, %v5821
    %v5918 = vpack.c.bf16 %v5830, %v5822
    %v5919 = vpack.c.bf16 %v5831, %v5823
    %v5920 = vpack.c.bf16 %v5832, %v5824
    %v5921 = vpack.c.bf16 %v5833, %v5825
    %v5922 = vpack.c.bf16 %v5842, %v5834
    %v5923 = vpack.c.bf16 %v5843, %v5835
    %v5924 = vpack.c.bf16 %v5844, %v5836
    %v5925 = vpack.c.bf16 %v5845, %v5837
    %v5926 = vpack.c.bf16 %v5846, %v5838
    %v5927 = vpack.c.bf16 %v5847, %v5839
    %v5928 = vpack.c.bf16 %v5848, %v5840
    %v5929 = vpack.c.bf16 %v5849, %v5841
    %v5930 = vpack.c.bf16 %v5858, %v5850
    %v5931 = vpack.c.bf16 %v5859, %v5851
    %v5932 = vpack.c.bf16 %v5860, %v5852
    %v5933 = vpack.c.bf16 %v5861, %v5853
    %v5934 = vpack.c.bf16 %v5862, %v5854
    %v5935 = vpack.c.bf16 %v5863, %v5855
    %v5936 = vpack.c.bf16 %v5864, %v5856
    %v5937 = vpack.c.bf16 %v5865, %v5857
    %v5938 = vpack.c.bf16 %v5874, %v5866
    %v5939 = vpack.c.bf16 %v5875, %v5867
    %v5940 = vpack.c.bf16 %v5876, %v5868
    %v5941 = vpack.c.bf16 %v5877, %v5869
    %v5942 = vpack.c.bf16 %v5878, %v5870
    %v5943 = vpack.c.bf16 %v5879, %v5871
    %v5944 = vpack.c.bf16 %v5880, %v5872
    %v5945 = vpack.c.bf16 %v5881, %v5873
    %v5946 = vld [vmem:[#allocation10] sm:$0xff]
    %v5947 = vld [vmem:[#allocation10 + $0x8] sm:$0xff]
    %v5948 = vld [vmem:[#allocation10 + $0x10] sm:$0xff]
    %v5949 = vld [vmem:[#allocation10 + $0x18] sm:$0xff]
    %v5950 = vld [vmem:[#allocation10 + $0x20] sm:$0xff]
    %v5951 = vld [vmem:[#allocation10 + $0x28] sm:$0xff]
    %v5952 = vld [vmem:[#allocation10 + $0x30] sm:$0xff]
    %v5953 = vld [vmem:[#allocation10 + $0x38] sm:$0xff]
    %v5954 = vld [vmem:[#allocation10 + $0x40] sm:$0xff]
    %v5955 = vld [vmem:[#allocation10 + $0x48] sm:$0xff]
    %v5956 = vld [vmem:[#allocation10 + $0x50] sm:$0xff]
    %v5957 = vld [vmem:[#allocation10 + $0x58] sm:$0xff]
    %v5958 = vld [vmem:[#allocation10 + $0x60] sm:$0xff]
    %v5959 = vld [vmem:[#allocation10 + $0x68] sm:$0xff]
    %v5960 = vld [vmem:[#allocation10 + $0x70] sm:$0xff]
    %v5961 = vld [vmem:[#allocation10 + $0x78] sm:$0xff]
    %v5962 = vld [vmem:[#allocation10 + $0x80] sm:$0xff]
    %v5963 = vld [vmem:[#allocation10 + $0x88] sm:$0xff]
    %v5964 = vld [vmem:[#allocation10 + $0x90] sm:$0xff]
    %v5965 = vld [vmem:[#allocation10 + $0x98] sm:$0xff]
    %v5966 = vld [vmem:[#allocation10 + $0xa0] sm:$0xff]
    %v5967 = vld [vmem:[#allocation10 + $0xa8] sm:$0xff]
    %v5968 = vld [vmem:[#allocation10 + $0xb0] sm:$0xff]
    %v5969 = vld [vmem:[#allocation10 + $0xb8] sm:$0xff]
    %v5970 = vld [vmem:[#allocation10 + $0xc0] sm:$0xff]
    %v5971 = vld [vmem:[#allocation10 + $0xc8] sm:$0xff]
    %v5972 = vld [vmem:[#allocation10 + $0xd0] sm:$0xff]
    %v5973 = vld [vmem:[#allocation10 + $0xd8] sm:$0xff]
    %v5974 = vld [vmem:[#allocation10 + $0xe0] sm:$0xff]
    %v5975 = vld [vmem:[#allocation10 + $0xe8] sm:$0xff]
    %v5976 = vld [vmem:[#allocation10 + $0xf0] sm:$0xff]
    %v5977 = vld [vmem:[#allocation10 + $0xf8] sm:$0xff]
    %v5978 = vld [vmem:[#allocation10 + $0x100] sm:$0xff]
    %v5979 = vld [vmem:[#allocation10 + $0x108] sm:$0xff]
    %v5980 = vld [vmem:[#allocation10 + $0x110] sm:$0xff]
    %v5981 = vld [vmem:[#allocation10 + $0x118] sm:$0xff]
    %v5982 = vld [vmem:[#allocation10 + $0x120] sm:$0xff]
    %v5983 = vld [vmem:[#allocation10 + $0x128] sm:$0xff]
    %v5984 = vld [vmem:[#allocation10 + $0x130] sm:$0xff]
    %v5985 = vld [vmem:[#allocation10 + $0x138] sm:$0xff]
    %v5986 = vld [vmem:[#allocation10 + $0x140] sm:$0xff]
    %v5987 = vld [vmem:[#allocation10 + $0x148] sm:$0xff]
    %v5988 = vld [vmem:[#allocation10 + $0x150] sm:$0xff]
    %v5989 = vld [vmem:[#allocation10 + $0x158] sm:$0xff]
    %v5990 = vld [vmem:[#allocation10 + $0x160] sm:$0xff]
    %v5991 = vld [vmem:[#allocation10 + $0x168] sm:$0xff]
    %v5992 = vld [vmem:[#allocation10 + $0x170] sm:$0xff]
    %v5993 = vld [vmem:[#allocation10 + $0x178] sm:$0xff]
    %v5994 = vld [vmem:[#allocation10 + $0x180] sm:$0xff]
    %v5995 = vld [vmem:[#allocation10 + $0x188] sm:$0xff]
    %v5996 = vld [vmem:[#allocation10 + $0x190] sm:$0xff]
    %v5997 = vld [vmem:[#allocation10 + $0x198] sm:$0xff]
    %v5998 = vld [vmem:[#allocation10 + $0x1a0] sm:$0xff]
    %v5999 = vld [vmem:[#allocation10 + $0x1a8] sm:$0xff]
    %v6000 = vld [vmem:[#allocation10 + $0x1b0] sm:$0xff]
    %v6001 = vld [vmem:[#allocation10 + $0x1b8] sm:$0xff]
    %v6002 = vld [vmem:[#allocation10 + $0x1c0] sm:$0xff]
    %v6003 = vld [vmem:[#allocation10 + $0x1c8] sm:$0xff]
    %v6004 = vld [vmem:[#allocation10 + $0x1d0] sm:$0xff]
    %v6005 = vld [vmem:[#allocation10 + $0x1d8] sm:$0xff]
    %v6006 = vld [vmem:[#allocation10 + $0x1e0] sm:$0xff]
    %v6007 = vld [vmem:[#allocation10 + $0x1e8] sm:$0xff]
    %v6008 = vld [vmem:[#allocation10 + $0x1f0] sm:$0xff]
    %v6009 = vld [vmem:[#allocation10 + $0x1f8] sm:$0xff]
    %v6010 = vld [vmem:[#allocation10 + $0x200] sm:$0xff]
    %v6011 = vld [vmem:[#allocation10 + $0x208] sm:$0xff]
    %v6012 = vld [vmem:[#allocation10 + $0x210] sm:$0xff]
    %v6013 = vld [vmem:[#allocation10 + $0x218] sm:$0xff]
    %v6014 = vld [vmem:[#allocation10 + $0x220] sm:$0xff]
    %v6015 = vld [vmem:[#allocation10 + $0x228] sm:$0xff]
    %v6016 = vld [vmem:[#allocation10 + $0x230] sm:$0xff]
    %v6017 = vld [vmem:[#allocation10 + $0x238] sm:$0xff]
    %v6018 = vld [vmem:[#allocation10 + $0x240] sm:$0xff]
    %v6019 = vld [vmem:[#allocation10 + $0x248] sm:$0xff]
    %v6020 = vld [vmem:[#allocation10 + $0x250] sm:$0xff]
    %v6021 = vld [vmem:[#allocation10 + $0x258] sm:$0xff]
    %v6022 = vld [vmem:[#allocation10 + $0x260] sm:$0xff]
    %v6023 = vld [vmem:[#allocation10 + $0x268] sm:$0xff]
    %v6024 = vld [vmem:[#allocation10 + $0x270] sm:$0xff]
    %v6025 = vld [vmem:[#allocation10 + $0x278] sm:$0xff]
    %v6026 = vld [vmem:[#allocation10 + $0x280] sm:$0xff]
    %v6027 = vld [vmem:[#allocation10 + $0x288] sm:$0xff]
    %v6028 = vld [vmem:[#allocation10 + $0x290] sm:$0xff]
    %v6029 = vld [vmem:[#allocation10 + $0x298] sm:$0xff]
    %v6030 = vld [vmem:[#allocation10 + $0x2a0] sm:$0xff]
    %v6031 = vld [vmem:[#allocation10 + $0x2a8] sm:$0xff]
    %v6032 = vld [vmem:[#allocation10 + $0x2b0] sm:$0xff]
    %v6033 = vld [vmem:[#allocation10 + $0x2b8] sm:$0xff]
    %v6034 = vld [vmem:[#allocation10 + $0x2c0] sm:$0xff]
    %v6035 = vld [vmem:[#allocation10 + $0x2c8] sm:$0xff]
    %v6036 = vld [vmem:[#allocation10 + $0x2d0] sm:$0xff]
    %v6037 = vld [vmem:[#allocation10 + $0x2d8] sm:$0xff]
    %v6038 = vld [vmem:[#allocation10 + $0x2e0] sm:$0xff]
    %v6039 = vld [vmem:[#allocation10 + $0x2e8] sm:$0xff]
    %v6040 = vld [vmem:[#allocation10 + $0x2f0] sm:$0xff]
    %v6041 = vld [vmem:[#allocation10 + $0x2f8] sm:$0xff]
    %v6042 = vld [vmem:[#allocation10 + $0x300] sm:$0xff]
    %v6043 = vld [vmem:[#allocation10 + $0x308] sm:$0xff]
    %v6044 = vld [vmem:[#allocation10 + $0x310] sm:$0xff]
    %v6045 = vld [vmem:[#allocation10 + $0x318] sm:$0xff]
    %v6046 = vld [vmem:[#allocation10 + $0x320] sm:$0xff]
    %v6047 = vld [vmem:[#allocation10 + $0x328] sm:$0xff]
    %v6048 = vld [vmem:[#allocation10 + $0x330] sm:$0xff]
    %v6049 = vld [vmem:[#allocation10 + $0x338] sm:$0xff]
    %v6050 = vld [vmem:[#allocation10 + $0x340] sm:$0xff]
    %v6051 = vld [vmem:[#allocation10 + $0x348] sm:$0xff]
    %v6052 = vld [vmem:[#allocation10 + $0x350] sm:$0xff]
    %v6053 = vld [vmem:[#allocation10 + $0x358] sm:$0xff]
    %v6054 = vld [vmem:[#allocation10 + $0x360] sm:$0xff]
    %v6055 = vld [vmem:[#allocation10 + $0x368] sm:$0xff]
    %v6056 = vld [vmem:[#allocation10 + $0x370] sm:$0xff]
    %v6057 = vld [vmem:[#allocation10 + $0x378] sm:$0xff]
    %v6058 = vld [vmem:[#allocation10 + $0x380] sm:$0xff]
    %v6059 = vld [vmem:[#allocation10 + $0x388] sm:$0xff]
    %v6060 = vld [vmem:[#allocation10 + $0x390] sm:$0xff]
    %v6061 = vld [vmem:[#allocation10 + $0x398] sm:$0xff]
    %v6062 = vld [vmem:[#allocation10 + $0x3a0] sm:$0xff]
    %v6063 = vld [vmem:[#allocation10 + $0x3a8] sm:$0xff]
    %v6064 = vld [vmem:[#allocation10 + $0x3b0] sm:$0xff]
    %v6065 = vld [vmem:[#allocation10 + $0x3b8] sm:$0xff]
    %v6066 = vld [vmem:[#allocation10 + $0x3c0] sm:$0xff]
    %v6067 = vld [vmem:[#allocation10 + $0x3c8] sm:$0xff]
    %v6068 = vld [vmem:[#allocation10 + $0x3d0] sm:$0xff]
    %v6069 = vld [vmem:[#allocation10 + $0x3d8] sm:$0xff]
    %v6070 = vld [vmem:[#allocation10 + $0x3e0] sm:$0xff]
    %v6071 = vld [vmem:[#allocation10 + $0x3e8] sm:$0xff]
    %v6072 = vld [vmem:[#allocation10 + $0x3f0] sm:$0xff]
    %v6073 = vld [vmem:[#allocation10 + $0x3f8] sm:$0xff]
    %v6074 = vld [vmem:[%s11] sm:$0x3]
    %v6076 = vlaneseq
    %v6077 = vshrl.u32 %v6076, 7
    %v6078 = vsub.s32 0, %v6077
    %v6079 = vrot.slane %v6074, %v6078
    %v6080 = vlaneseq
    %v6081 = vshrl.u32 %v6080, 7
    %v6082 = vsub.s32 1, %v6081
    %v6083 = vrot.slane %v6074, %v6082
    %v6214 = vunpack.c.l.b16 %v5946
    %v6215 = vunpack.c.h.b16 %v5946
    %v6216 = vunpack.c.l.b16 %v5947
    %v6217 = vunpack.c.h.b16 %v5947
    %v6218 = vunpack.c.l.b16 %v5948
    %v6219 = vunpack.c.h.b16 %v5948
    %v6220 = vunpack.c.l.b16 %v5949
    %v6221 = vunpack.c.h.b16 %v5949
    %v6222 = vunpack.c.l.b16 %v5950
    %v6223 = vunpack.c.h.b16 %v5950
    %v6224 = vunpack.c.l.b16 %v5951
    %v6225 = vunpack.c.h.b16 %v5951
    %v6226 = vunpack.c.l.b16 %v5952
    %v6227 = vunpack.c.h.b16 %v5952
    %v6228 = vunpack.c.l.b16 %v5953
    %v6229 = vunpack.c.h.b16 %v5953
    %v6230 = vunpack.c.l.b16 %v5954
    %v6231 = vunpack.c.h.b16 %v5954
    %v6232 = vunpack.c.l.b16 %v5955
    %v6233 = vunpack.c.h.b16 %v5955
    %v6234 = vunpack.c.l.b16 %v5956
    %v6235 = vunpack.c.h.b16 %v5956
    %v6236 = vunpack.c.l.b16 %v5957
    %v6237 = vunpack.c.h.b16 %v5957
    %v6238 = vunpack.c.l.b16 %v5958
    %v6239 = vunpack.c.h.b16 %v5958
    %v6240 = vunpack.c.l.b16 %v5959
    %v6241 = vunpack.c.h.b16 %v5959
    %v6242 = vunpack.c.l.b16 %v5960
    %v6243 = vunpack.c.h.b16 %v5960
    %v6244 = vunpack.c.l.b16 %v5961
    %v6245 = vunpack.c.h.b16 %v5961
    %v6246 = vunpack.c.l.b16 %v5962
    %v6247 = vunpack.c.h.b16 %v5962
    %v6248 = vunpack.c.l.b16 %v5963
    %v6249 = vunpack.c.h.b16 %v5963
    %v6250 = vunpack.c.l.b16 %v5964
    %v6251 = vunpack.c.h.b16 %v5964
    %v6252 = vunpack.c.l.b16 %v5965
    %v6253 = vunpack.c.h.b16 %v5965
    %v6254 = vunpack.c.l.b16 %v5966
    %v6255 = vunpack.c.h.b16 %v5966
    %v6256 = vunpack.c.l.b16 %v5967
    %v6257 = vunpack.c.h.b16 %v5967
    %v6258 = vunpack.c.l.b16 %v5968
    %v6259 = vunpack.c.h.b16 %v5968
    %v6260 = vunpack.c.l.b16 %v5969
    %v6261 = vunpack.c.h.b16 %v5969
    %v6262 = vunpack.c.l.b16 %v5970
    %v6263 = vunpack.c.h.b16 %v5970
    %v6264 = vunpack.c.l.b16 %v5971
    %v6265 = vunpack.c.h.b16 %v5971
    %v6266 = vunpack.c.l.b16 %v5972
    %v6267 = vunpack.c.h.b16 %v5972
    %v6268 = vunpack.c.l.b16 %v5973
    %v6269 = vunpack.c.h.b16 %v5973
    %v6270 = vunpack.c.l.b16 %v5974
    %v6271 = vunpack.c.h.b16 %v5974
    %v6272 = vunpack.c.l.b16 %v5975
    %v6273 = vunpack.c.h.b16 %v5975
    %v6274 = vunpack.c.l.b16 %v5976
    %v6275 = vunpack.c.h.b16 %v5976
    %v6276 = vunpack.c.l.b16 %v5977
    %v6277 = vunpack.c.h.b16 %v5977
    %v6278 = vunpack.c.l.b16 %v5978
    %v6279 = vunpack.c.h.b16 %v5978
    %v6280 = vunpack.c.l.b16 %v5979
    %v6281 = vunpack.c.h.b16 %v5979
    %v6282 = vunpack.c.l.b16 %v5980
    %v6283 = vunpack.c.h.b16 %v5980
    %v6284 = vunpack.c.l.b16 %v5981
    %v6285 = vunpack.c.h.b16 %v5981
    %v6286 = vunpack.c.l.b16 %v5982
    %v6287 = vunpack.c.h.b16 %v5982
    %v6288 = vunpack.c.l.b16 %v5983
    %v6289 = vunpack.c.h.b16 %v5983
    %v6290 = vunpack.c.l.b16 %v5984
    %v6291 = vunpack.c.h.b16 %v5984
    %v6292 = vunpack.c.l.b16 %v5985
    %v6293 = vunpack.c.h.b16 %v5985
    %v6294 = vunpack.c.l.b16 %v5986
    %v6295 = vunpack.c.h.b16 %v5986
    %v6296 = vunpack.c.l.b16 %v5987
    %v6297 = vunpack.c.h.b16 %v5987
    %v6298 = vunpack.c.l.b16 %v5988
    %v6299 = vunpack.c.h.b16 %v5988
    %v6300 = vunpack.c.l.b16 %v5989
    %v6301 = vunpack.c.h.b16 %v5989
    %v6302 = vunpack.c.l.b16 %v5990
    %v6303 = vunpack.c.h.b16 %v5990
    %v6304 = vunpack.c.l.b16 %v5991
    %v6305 = vunpack.c.h.b16 %v5991
    %v6306 = vunpack.c.l.b16 %v5992
    %v6307 = vunpack.c.h.b16 %v5992
    %v6308 = vunpack.c.l.b16 %v5993
    %v6309 = vunpack.c.h.b16 %v5993
    %v6310 = vunpack.c.l.b16 %v5994
    %v6311 = vunpack.c.h.b16 %v5994
    %v6312 = vunpack.c.l.b16 %v5995
    %v6313 = vunpack.c.h.b16 %v5995
    %v6314 = vunpack.c.l.b16 %v5996
    %v6315 = vunpack.c.h.b16 %v5996
    %v6316 = vunpack.c.l.b16 %v5997
    %v6317 = vunpack.c.h.b16 %v5997
    %v6318 = vunpack.c.l.b16 %v5998
    %v6319 = vunpack.c.h.b16 %v5998
    %v6320 = vunpack.c.l.b16 %v5999
    %v6321 = vunpack.c.h.b16 %v5999
    %v6322 = vunpack.c.l.b16 %v6000
    %v6323 = vunpack.c.h.b16 %v6000
    %v6324 = vunpack.c.l.b16 %v6001
    %v6325 = vunpack.c.h.b16 %v6001
    %v6326 = vunpack.c.l.b16 %v6002
    %v6327 = vunpack.c.h.b16 %v6002
    %v6328 = vunpack.c.l.b16 %v6003
    %v6329 = vunpack.c.h.b16 %v6003
    %v6330 = vunpack.c.l.b16 %v6004
    %v6331 = vunpack.c.h.b16 %v6004
    %v6332 = vunpack.c.l.b16 %v6005
    %v6333 = vunpack.c.h.b16 %v6005
    %v6334 = vunpack.c.l.b16 %v6006
    %v6335 = vunpack.c.h.b16 %v6006
    %v6336 = vunpack.c.l.b16 %v6007
    %v6337 = vunpack.c.h.b16 %v6007
    %v6338 = vunpack.c.l.b16 %v6008
    %v6339 = vunpack.c.h.b16 %v6008
    %v6340 = vunpack.c.l.b16 %v6009
    %v6341 = vunpack.c.h.b16 %v6009
    %v6342 = vunpack.c.l.b16 %v6010
    %v6343 = vunpack.c.h.b16 %v6010
    %v6344 = vunpack.c.l.b16 %v6011
    %v6345 = vunpack.c.h.b16 %v6011
    %v6346 = vunpack.c.l.b16 %v6012
    %v6347 = vunpack.c.h.b16 %v6012
    %v6348 = vunpack.c.l.b16 %v6013
    %v6349 = vunpack.c.h.b16 %v6013
    %v6350 = vunpack.c.l.b16 %v6014
    %v6351 = vunpack.c.h.b16 %v6014
    %v6352 = vunpack.c.l.b16 %v6015
    %v6353 = vunpack.c.h.b16 %v6015
    %v6354 = vunpack.c.l.b16 %v6016
    %v6355 = vunpack.c.h.b16 %v6016
    %v6356 = vunpack.c.l.b16 %v6017
    %v6357 = vunpack.c.h.b16 %v6017
    %v6358 = vunpack.c.l.b16 %v6018
    %v6359 = vunpack.c.h.b16 %v6018
    %v6360 = vunpack.c.l.b16 %v6019
    %v6361 = vunpack.c.h.b16 %v6019
    %v6362 = vunpack.c.l.b16 %v6020
    %v6363 = vunpack.c.h.b16 %v6020
    %v6364 = vunpack.c.l.b16 %v6021
    %v6365 = vunpack.c.h.b16 %v6021
    %v6366 = vunpack.c.l.b16 %v6022
    %v6367 = vunpack.c.h.b16 %v6022
    %v6368 = vunpack.c.l.b16 %v6023
    %v6369 = vunpack.c.h.b16 %v6023
    %v6370 = vunpack.c.l.b16 %v6024
    %v6371 = vunpack.c.h.b16 %v6024
    %v6372 = vunpack.c.l.b16 %v6025
    %v6373 = vunpack.c.h.b16 %v6025
    %v6374 = vunpack.c.l.b16 %v6026
    %v6375 = vunpack.c.h.b16 %v6026
    %v6376 = vunpack.c.l.b16 %v6027
    %v6377 = vunpack.c.h.b16 %v6027
    %v6378 = vunpack.c.l.b16 %v6028
    %v6379 = vunpack.c.h.b16 %v6028
    %v6380 = vunpack.c.l.b16 %v6029
    %v6381 = vunpack.c.h.b16 %v6029
    %v6382 = vunpack.c.l.b16 %v6030
    %v6383 = vunpack.c.h.b16 %v6030
    %v6384 = vunpack.c.l.b16 %v6031
    %v6385 = vunpack.c.h.b16 %v6031
    %v6386 = vunpack.c.l.b16 %v6032
    %v6387 = vunpack.c.h.b16 %v6032
    %v6388 = vunpack.c.l.b16 %v6033
    %v6389 = vunpack.c.h.b16 %v6033
    %v6390 = vunpack.c.l.b16 %v6034
    %v6391 = vunpack.c.h.b16 %v6034
    %v6392 = vunpack.c.l.b16 %v6035
    %v6393 = vunpack.c.h.b16 %v6035
    %v6394 = vunpack.c.l.b16 %v6036
    %v6395 = vunpack.c.h.b16 %v6036
    %v6396 = vunpack.c.l.b16 %v6037
    %v6397 = vunpack.c.h.b16 %v6037
    %v6398 = vunpack.c.l.b16 %v6038
    %v6399 = vunpack.c.h.b16 %v6038
    %v6400 = vunpack.c.l.b16 %v6039
    %v6401 = vunpack.c.h.b16 %v6039
    %v6402 = vunpack.c.l.b16 %v6040
    %v6403 = vunpack.c.h.b16 %v6040
    %v6404 = vunpack.c.l.b16 %v6041
    %v6405 = vunpack.c.h.b16 %v6041
    %v6406 = vunpack.c.l.b16 %v6042
    %v6407 = vunpack.c.h.b16 %v6042
    %v6408 = vunpack.c.l.b16 %v6043
    %v6409 = vunpack.c.h.b16 %v6043
    %v6410 = vunpack.c.l.b16 %v6044
    %v6411 = vunpack.c.h.b16 %v6044
    %v6412 = vunpack.c.l.b16 %v6045
    %v6413 = vunpack.c.h.b16 %v6045
    %v6414 = vunpack.c.l.b16 %v6046
    %v6415 = vunpack.c.h.b16 %v6046
    %v6416 = vunpack.c.l.b16 %v6047
    %v6417 = vunpack.c.h.b16 %v6047
    %v6418 = vunpack.c.l.b16 %v6048
    %v6419 = vunpack.c.h.b16 %v6048
    %v6420 = vunpack.c.l.b16 %v6049
    %v6421 = vunpack.c.h.b16 %v6049
    %v6422 = vunpack.c.l.b16 %v6050
    %v6423 = vunpack.c.h.b16 %v6050
    %v6424 = vunpack.c.l.b16 %v6051
    %v6425 = vunpack.c.h.b16 %v6051
    %v6426 = vunpack.c.l.b16 %v6052
    %v6427 = vunpack.c.h.b16 %v6052
    %v6428 = vunpack.c.l.b16 %v6053
    %v6429 = vunpack.c.h.b16 %v6053
    %v6430 = vunpack.c.l.b16 %v6054
    %v6431 = vunpack.c.h.b16 %v6054
    %v6432 = vunpack.c.l.b16 %v6055
    %v6433 = vunpack.c.h.b16 %v6055
    %v6434 = vunpack.c.l.b16 %v6056
    %v6435 = vunpack.c.h.b16 %v6056
    %v6436 = vunpack.c.l.b16 %v6057
    %v6437 = vunpack.c.h.b16 %v6057
    %v6438 = vunpack.c.l.b16 %v6058
    %v6439 = vunpack.c.h.b16 %v6058
    %v6440 = vunpack.c.l.b16 %v6059
    %v6441 = vunpack.c.h.b16 %v6059
    %v6442 = vunpack.c.l.b16 %v6060
    %v6443 = vunpack.c.h.b16 %v6060
    %v6444 = vunpack.c.l.b16 %v6061
    %v6445 = vunpack.c.h.b16 %v6061
    %v6446 = vunpack.c.l.b16 %v6062
    %v6447 = vunpack.c.h.b16 %v6062
    %v6448 = vunpack.c.l.b16 %v6063
    %v6449 = vunpack.c.h.b16 %v6063
    %v6450 = vunpack.c.l.b16 %v6064
    %v6451 = vunpack.c.h.b16 %v6064
    %v6452 = vunpack.c.l.b16 %v6065
    %v6453 = vunpack.c.h.b16 %v6065
    %v6454 = vunpack.c.l.b16 %v6066
    %v6455 = vunpack.c.h.b16 %v6066
    %v6456 = vunpack.c.l.b16 %v6067
    %v6457 = vunpack.c.h.b16 %v6067
    %v6458 = vunpack.c.l.b16 %v6068
    %v6459 = vunpack.c.h.b16 %v6068
    %v6460 = vunpack.c.l.b16 %v6069
    %v6461 = vunpack.c.h.b16 %v6069
    %v6462 = vunpack.c.l.b16 %v6070
    %v6463 = vunpack.c.h.b16 %v6070
    %v6464 = vunpack.c.l.b16 %v6071
    %v6465 = vunpack.c.h.b16 %v6071
    %v6466 = vunpack.c.l.b16 %v6072
    %v6467 = vunpack.c.h.b16 %v6072
    %v6468 = vunpack.c.l.b16 %v6073
    %v6469 = vunpack.c.h.b16 %v6073
    %v6470 = vpack.c.b16 %v6216, %v6214
    %v6471 = vpack.c.b16 %v6217, %v6215
    %v6472 = vpack.c.b16 %v6220, %v6218
    %v6473 = vpack.c.b16 %v6221, %v6219
    %v6474 = vpack.c.b16 %v6224, %v6222
    %v6475 = vpack.c.b16 %v6225, %v6223
    %v6476 = vpack.c.b16 %v6228, %v6226
    %v6477 = vpack.c.b16 %v6229, %v6227
    %v6478 = vpack.c.b16 %v6232, %v6230
    %v6479 = vpack.c.b16 %v6233, %v6231
    %v6480 = vpack.c.b16 %v6236, %v6234
    %v6481 = vpack.c.b16 %v6237, %v6235
    %v6482 = vpack.c.b16 %v6240, %v6238
    %v6483 = vpack.c.b16 %v6241, %v6239
    %v6484 = vpack.c.b16 %v6244, %v6242
    %v6485 = vpack.c.b16 %v6245, %v6243
    %v6486 = vpack.c.b16 %v6248, %v6246
    %v6487 = vpack.c.b16 %v6249, %v6247
    %v6488 = vpack.c.b16 %v6252, %v6250
    %v6489 = vpack.c.b16 %v6253, %v6251
    %v6490 = vpack.c.b16 %v6256, %v6254
    %v6491 = vpack.c.b16 %v6257, %v6255
    %v6492 = vpack.c.b16 %v6260, %v6258
    %v6493 = vpack.c.b16 %v6261, %v6259
    %v6494 = vpack.c.b16 %v6264, %v6262
    %v6495 = vpack.c.b16 %v6265, %v6263
    %v6496 = vpack.c.b16 %v6268, %v6266
    %v6497 = vpack.c.b16 %v6269, %v6267
    %v6498 = vpack.c.b16 %v6272, %v6270
    %v6499 = vpack.c.b16 %v6273, %v6271
    %v6500 = vpack.c.b16 %v6276, %v6274
    %v6501 = vpack.c.b16 %v6277, %v6275
    %v6502 = vpack.c.b16 %v6280, %v6278
    %v6503 = vpack.c.b16 %v6281, %v6279
    %v6504 = vpack.c.b16 %v6284, %v6282
    %v6505 = vpack.c.b16 %v6285, %v6283
    %v6506 = vpack.c.b16 %v6288, %v6286
    %v6507 = vpack.c.b16 %v6289, %v6287
    %v6508 = vpack.c.b16 %v6292, %v6290
    %v6509 = vpack.c.b16 %v6293, %v6291
    %v6510 = vpack.c.b16 %v6296, %v6294
    %v6511 = vpack.c.b16 %v6297, %v6295
    %v6512 = vpack.c.b16 %v6300, %v6298
    %v6513 = vpack.c.b16 %v6301, %v6299
    %v6514 = vpack.c.b16 %v6304, %v6302
    %v6515 = vpack.c.b16 %v6305, %v6303
    %v6516 = vpack.c.b16 %v6308, %v6306
    %v6517 = vpack.c.b16 %v6309, %v6307
    %v6518 = vpack.c.b16 %v6312, %v6310
    %v6519 = vpack.c.b16 %v6313, %v6311
    %v6520 = vpack.c.b16 %v6316, %v6314
    %v6521 = vpack.c.b16 %v6317, %v6315
    %v6522 = vpack.c.b16 %v6320, %v6318
    %v6523 = vpack.c.b16 %v6321, %v6319
    %v6524 = vpack.c.b16 %v6324, %v6322
    %v6525 = vpack.c.b16 %v6325, %v6323
    %v6526 = vpack.c.b16 %v6328, %v6326
    %v6527 = vpack.c.b16 %v6329, %v6327
    %v6528 = vpack.c.b16 %v6332, %v6330
    %v6529 = vpack.c.b16 %v6333, %v6331
    %v6530 = vpack.c.b16 %v6336, %v6334
    %v6531 = vpack.c.b16 %v6337, %v6335
    %v6532 = vpack.c.b16 %v6340, %v6338
    %v6533 = vpack.c.b16 %v6341, %v6339
    %v6534 = vpack.c.b16 %v6344, %v6342
    %v6535 = vpack.c.b16 %v6345, %v6343
    %v6536 = vpack.c.b16 %v6348, %v6346
    %v6537 = vpack.c.b16 %v6349, %v6347
    %v6538 = vpack.c.b16 %v6352, %v6350
    %v6539 = vpack.c.b16 %v6353, %v6351
    %v6540 = vpack.c.b16 %v6356, %v6354
    %v6541 = vpack.c.b16 %v6357, %v6355
    %v6542 = vpack.c.b16 %v6360, %v6358
    %v6543 = vpack.c.b16 %v6361, %v6359
    %v6544 = vpack.c.b16 %v6364, %v6362
    %v6545 = vpack.c.b16 %v6365, %v6363
    %v6546 = vpack.c.b16 %v6368, %v6366
    %v6547 = vpack.c.b16 %v6369, %v6367
    %v6548 = vpack.c.b16 %v6372, %v6370
    %v6549 = vpack.c.b16 %v6373, %v6371
    %v6550 = vpack.c.b16 %v6376, %v6374
    %v6551 = vpack.c.b16 %v6377, %v6375
    %v6552 = vpack.c.b16 %v6380, %v6378
    %v6553 = vpack.c.b16 %v6381, %v6379
    %v6554 = vpack.c.b16 %v6384, %v6382
    %v6555 = vpack.c.b16 %v6385, %v6383
    %v6556 = vpack.c.b16 %v6388, %v6386
    %v6557 = vpack.c.b16 %v6389, %v6387
    %v6558 = vpack.c.b16 %v6392, %v6390
    %v6559 = vpack.c.b16 %v6393, %v6391
    %v6560 = vpack.c.b16 %v6396, %v6394
    %v6561 = vpack.c.b16 %v6397, %v6395
    %v6562 = vpack.c.b16 %v6400, %v6398
    %v6563 = vpack.c.b16 %v6401, %v6399
    %v6564 = vpack.c.b16 %v6404, %v6402
    %v6565 = vpack.c.b16 %v6405, %v6403
    %v6566 = vpack.c.b16 %v6408, %v6406
    %v6567 = vpack.c.b16 %v6409, %v6407
    %v6568 = vpack.c.b16 %v6412, %v6410
    %v6569 = vpack.c.b16 %v6413, %v6411
    %v6570 = vpack.c.b16 %v6416, %v6414
    %v6571 = vpack.c.b16 %v6417, %v6415
    %v6572 = vpack.c.b16 %v6420, %v6418
    %v6573 = vpack.c.b16 %v6421, %v6419
    %v6574 = vpack.c.b16 %v6424, %v6422
    %v6575 = vpack.c.b16 %v6425, %v6423
    %v6576 = vpack.c.b16 %v6428, %v6426
    %v6577 = vpack.c.b16 %v6429, %v6427
    %v6578 = vpack.c.b16 %v6432, %v6430
    %v6579 = vpack.c.b16 %v6433, %v6431
    %v6580 = vpack.c.b16 %v6436, %v6434
    %v6581 = vpack.c.b16 %v6437, %v6435
    %v6582 = vpack.c.b16 %v6440, %v6438
    %v6583 = vpack.c.b16 %v6441, %v6439
    %v6584 = vpack.c.b16 %v6444, %v6442
    %v6585 = vpack.c.b16 %v6445, %v6443
    %v6586 = vpack.c.b16 %v6448, %v6446
    %v6587 = vpack.c.b16 %v6449, %v6447
    %v6588 = vpack.c.b16 %v6452, %v6450
    %v6589 = vpack.c.b16 %v6453, %v6451
    %v6590 = vpack.c.b16 %v6456, %v6454
    %v6591 = vpack.c.b16 %v6457, %v6455
    %v6592 = vpack.c.b16 %v6460, %v6458
    %v6593 = vpack.c.b16 %v6461, %v6459
    %v6594 = vpack.c.b16 %v6464, %v6462
    %v6595 = vpack.c.b16 %v6465, %v6463
    %v6596 = vpack.c.b16 %v6468, %v6466
    %v6597 = vpack.c.b16 %v6469, %v6467
    %6726 = vmatprep.subr.bf16.mxu0 %v6471
    %6727 = vmatpush1.bf16.msra.mxu0 %v6470
    %6728 = vmatprep.subr.bf16.mxu0 %v6473
    %6729 = vmatpush1.bf16.msra.mxu0 %v6472
    %6730 = vmatprep.subr.bf16.mxu0 %v6475
    %6731 = vmatpush1.bf16.msra.mxu0 %v6474
    %6732 = vmatprep.subr.bf16.mxu0 %v6477
    %6733 = vmatpush1.bf16.msra.mxu0 %v6476
    %6734 = vmatprep.subr.bf16.mxu0 %v6479
    %6735 = vmatpush1.bf16.msra.mxu0 %v6478
    %6736 = vmatprep.subr.bf16.mxu0 %v6481
    %6737 = vmatpush1.bf16.msra.mxu0 %v6480
    %6738 = vmatprep.subr.bf16.mxu0 %v6483
    %6739 = vmatpush1.bf16.msra.mxu0 %v6482
    %6740 = vmatprep.subr.bf16.mxu0 %v6485
    %6741 = vmatpush1.bf16.msra.mxu0 %v6484
    %6742 = vmatprep.subr.bf16.mxu0 %v6487
    %6743 = vmatpush1.bf16.msra.mxu0 %v6486
    %6744 = vmatprep.subr.bf16.mxu0 %v6489
    %6745 = vmatpush1.bf16.msra.mxu0 %v6488
    %6746 = vmatprep.subr.bf16.mxu0 %v6491
    %6747 = vmatpush1.bf16.msra.mxu0 %v6490
    %6748 = vmatprep.subr.bf16.mxu0 %v6493
    %6749 = vmatpush1.bf16.msra.mxu0 %v6492
    %6750 = vmatprep.subr.bf16.mxu0 %v6495
    %6751 = vmatpush1.bf16.msra.mxu0 %v6494
    %6752 = vmatprep.subr.bf16.mxu0 %v6497
    %6753 = vmatpush1.bf16.msra.mxu0 %v6496
    %6754 = vmatprep.subr.bf16.mxu0 %v6499
    %6755 = vmatpush1.bf16.msra.mxu0 %v6498
    %6756 = vmatprep.subr.bf16.mxu0 %v6501
    %6757 = vmatpush1.bf16.msra.mxu0 %v6500
    %6758 = vmatprep.mubr.bf16.mxu0 %v5883
    %6759 = vmatmul.mubr.bf16.gmra.mrb[0].mxu0 %v5882
    %v6760 = vpop.f32.mrb[0].mxu0
    %v6761 = vadd.f32 %v6079, %v6760
    %v6762 = vpop.f32.mrb[0].mxu0
    %v6763 = vadd.f32 %v6083, %v6762
    %v6764 = vpop.f32.mrb[0].mxu0
    %v6765 = vadd.f32 %v6079, %v6764
    %v6766 = vpop.f32.mrb[0].mxu0
    %v6767 = vadd.f32 %v6083, %v6766
    %6768 = vmatprep.mubr.bf16.mxu0 %v5891
    %6769 = vmatmul.mubr.bf16.gmra.mrb[0].mxu0 %v5890
    %v6770 = vpop.f32.mrb[0].mxu0
    %v6771 = vadd.f32 %v6079, %v6770
    %v6772 = vpop.f32.mrb[0].mxu0
    %v6773 = vadd.f32 %v6083, %v6772
    %v6774 = vpop.f32.mrb[0].mxu0
    %v6775 = vadd.f32 %v6079, %v6774
    %v6776 = vpop.f32.mrb[0].mxu0
    %v6777 = vadd.f32 %v6083, %v6776
    %6778 = vmatprep.mubr.bf16.mxu0 %v5899
    %6779 = vmatmul.mubr.bf16.gmra.mrb[0].mxu0 %v5898
    %v6780 = vpop.f32.mrb[0].mxu0
    %v6781 = vadd.f32 %v6079, %v6780
    %v6782 = vpop.f32.mrb[0].mxu0
    %v6783 = vadd.f32 %v6083, %v6782
    %v6784 = vpop.f32.mrb[0].mxu0
    %v6785 = vadd.f32 %v6079, %v6784
    %v6786 = vpop.f32.mrb[0].mxu0
    %v6787 = vadd.f32 %v6083, %v6786
    %6788 = vmatprep.mubr.bf16.mxu0 %v5907
    %6789 = vmatmul.mubr.bf16.gmra.mrb[0].mxu0 %v5906
    %v6790 = vpop.f32.mrb[0].mxu0
    %v6791 = vadd.f32 %v6079, %v6790
    %v6792 = vpop.f32.mrb[0].mxu0
    %v6793 = vadd.f32 %v6083, %v6792
    %v6794 = vpop.f32.mrb[0].mxu0
    %v6795 = vadd.f32 %v6079, %v6794
    %v6796 = vpop.f32.mrb[0].mxu0
    %v6797 = vadd.f32 %v6083, %v6796
    %6798 = vmatprep.mubr.bf16.mxu0 %v5915
    %6799 = vmatmul.mubr.bf16.gmra.mrb[0].mxu0 %v5914
    %v6800 = vpop.f32.mrb[0].mxu0
    %v6801 = vadd.f32 %v6079, %v6800
    %v6802 = vpop.f32.mrb[0].mxu0
    %v6803 = vadd.f32 %v6083, %v6802
    %v6804 = vpop.f32.mrb[0].mxu0
    %v6805 = vadd.f32 %v6079, %v6804
    %v6806 = vpop.f32.mrb[0].mxu0
    %v6807 = vadd.f32 %v6083, %v6806
    %6808 = vmatprep.mubr.bf16.mxu0 %v5923
    %6809 = vmatmul.mubr.bf16.gmra.mrb[0].mxu0 %v5922
    %v6810 = vpop.f32.mrb[0].mxu0
    %v6811 = vadd.f32 %v6079, %v6810
    %v6812 = vpop.f32.mrb[0].mxu0
    %v6813 = vadd.f32 %v6083, %v6812
    %v6814 = vpop.f32.mrb[0].mxu0
    %v6815 = vadd.f32 %v6079, %v6814
    %v6816 = vpop.f32.mrb[0].mxu0
    %v6817 = vadd.f32 %v6083, %v6816
    %6818 = vmatprep.mubr.bf16.mxu0 %v5931
    %6819 = vmatmul.mubr.bf16.gmra.mrb[0].mxu0 %v5930
    %v6820 = vpop.f32.mrb[0].mxu0
    %v6821 = vadd.f32 %v6079, %v6820
    %v6822 = vpop.f32.mrb[0].mxu0
    %v6823 = vadd.f32 %v6083, %v6822
    %v6824 = vpop.f32.mrb[0].mxu0
    %v6825 = vadd.f32 %v6079, %v6824
    %v6826 = vpop.f32.mrb[0].mxu0
    %v6827 = vadd.f32 %v6083, %v6826
    %6828 = vmatprep.mubr.bf16.mxu0 %v5939
    %6829 = vmatmul.mubr.bf16.gmra.mrb[0].mxu0 %v5938
    %v6830 = vpop.f32.mrb[0].mxu0
    %v6831 = vadd.f32 %v6079, %v6830
    %v6832 = vpop.f32.mrb[0].mxu0
    %v6833 = vadd.f32 %v6083, %v6832
    %v6834 = vpop.f32.mrb[0].mxu0
    %v6835 = vadd.f32 %v6079, %v6834
    %v6836 = vpop.f32.mrb[0].mxu0
    %v6837 = vadd.f32 %v6083, %v6836
    %6838 = vdwg.mxu0
    %6839 = vmatprep.subr.bf16.mxu0 %v6503
    %6840 = vmatpush1.bf16.msra.mxu0 %v6502
    %6841 = vmatprep.subr.bf16.mxu0 %v6505
    %6842 = vmatpush1.bf16.msra.mxu0 %v6504
    %6843 = vmatprep.subr.bf16.mxu0 %v6507
    %6844 = vmatpush1.bf16.msra.mxu0 %v6506
    %6845 = vmatprep.subr.bf16.mxu0 %v6509
    %6846 = vmatpush1.bf16.msra.mxu0 %v6508
    %6847 = vmatprep.subr.bf16.mxu0 %v6511
    %6848 = vmatpush1.bf16.msra.mxu0 %v6510
    %6849 = vmatprep.subr.bf16.mxu0 %v6513
    %6850 = vmatpush1.bf16.msra.mxu0 %v6512
    %6851 = vmatprep.subr.bf16.mxu0 %v6515
    %6852 = vmatpush1.bf16.msra.mxu0 %v6514
    %6853 = vmatprep.subr.bf16.mxu0 %v6517
    %6854 = vmatpush1.bf16.msra.mxu0 %v6516
    %6855 = vmatprep.subr.bf16.mxu0 %v6519
    %6856 = vmatpush1.bf16.msra.mxu0 %v6518
    %6857 = vmatprep.subr.bf16.mxu0 %v6521
    %6858 = vmatpush1.bf16.msra.mxu0 %v6520
    %6859 = vmatprep.subr.bf16.mxu0 %v6523
    %6860 = vmatpush1.bf16.msra.mxu0 %v6522
    %6861 = vmatprep.subr.bf16.mxu0 %v6525
    %6862 = vmatpush1.bf16.msra.mxu0 %v6524
    %6863 = vmatprep.subr.bf16.mxu0 %v6527
    %6864 = vmatpush1.bf16.msra.mxu0 %v6526
    %6865 = vmatprep.subr.bf16.mxu0 %v6529
    %6866 = vmatpush1.bf16.msra.mxu0 %v6528
    %6867 = vmatprep.subr.bf16.mxu0 %v6531
    %6868 = vmatpush1.bf16.msra.mxu0 %v6530
    %6869 = vmatprep.subr.bf16.mxu0 %v6533
    %6870 = vmatpush1.bf16.msra.mxu0 %v6532
    %6871 = vmatprep.mubr.bf16.mxu0 %v5885
    %6872 = vmatmul.mubr.bf16.gmra.mrb[0].mxu0 %v5884
    %v6873 = vpop.f32.mrb[0].mxu0
    %v6874 = vadd.f32 %v6761, %v6873
    %v6875 = vpop.f32.mrb[0].mxu0
    %v6876 = vadd.f32 %v6763, %v6875
    %v6877 = vpop.f32.mrb[0].mxu0
    %v6878 = vadd.f32 %v6765, %v6877
    %v6879 = vpop.f32.mrb[0].mxu0
    %v6880 = vadd.f32 %v6767, %v6879
    %6881 = vmatprep.mubr.bf16.mxu0 %v5893
    %6882 = vmatmul.mubr.bf16.gmra.mrb[0].mxu0 %v5892
    %v6883 = vpop.f32.mrb[0].mxu0
    %v6884 = vadd.f32 %v6771, %v6883
    %v6885 = vpop.f32.mrb[0].mxu0
    %v6886 = vadd.f32 %v6773, %v6885
    %v6887 = vpop.f32.mrb[0].mxu0
    %v6888 = vadd.f32 %v6775, %v6887
    %v6889 = vpop.f32.mrb[0].mxu0
    %v6890 = vadd.f32 %v6777, %v6889
    %6891 = vmatprep.mubr.bf16.mxu0 %v5901
    %6892 = vmatmul.mubr.bf16.gmra.mrb[0].mxu0 %v5900
    %v6893 = vpop.f32.mrb[0].mxu0
    %v6894 = vadd.f32 %v6781, %v6893
    %v6895 = vpop.f32.mrb[0].mxu0
    %v6896 = vadd.f32 %v6783, %v6895
    %v6897 = vpop.f32.mrb[0].mxu0
    %v6898 = vadd.f32 %v6785, %v6897
    %v6899 = vpop.f32.mrb[0].mxu0
    %v6900 = vadd.f32 %v6787, %v6899
    %6901 = vmatprep.mubr.bf16.mxu0 %v5909
    %6902 = vmatmul.mubr.bf16.gmra.mrb[0].mxu0 %v5908
    %v6903 = vpop.f32.mrb[0].mxu0
    %v6904 = vadd.f32 %v6791, %v6903
    %v6905 = vpop.f32.mrb[0].mxu0
    %v6906 = vadd.f32 %v6793, %v6905
    %v6907 = vpop.f32.mrb[0].mxu0
    %v6908 = vadd.f32 %v6795, %v6907
    %v6909 = vpop.f32.mrb[0].mxu0
    %v6910 = vadd.f32 %v6797, %v6909
    %6911 = vmatprep.mubr.bf16.mxu0 %v5917
    %6912 = vmatmul.mubr.bf16.gmra.mrb[0].mxu0 %v5916
    %v6913 = vpop.f32.mrb[0].mxu0
    %v6914 = vadd.f32 %v6801, %v6913
    %v6915 = vpop.f32.mrb[0].mxu0
    %v6916 = vadd.f32 %v6803, %v6915
    %v6917 = vpop.f32.mrb[0].mxu0
    %v6918 = vadd.f32 %v6805, %v6917
    %v6919 = vpop.f32.mrb[0].mxu0
    %v6920 = vadd.f32 %v6807, %v6919
    %6921 = vmatprep.mubr.bf16.mxu0 %v5925
    %6922 = vmatmul.mubr.bf16.gmra.mrb[0].mxu0 %v5924
    %v6923 = vpop.f32.mrb[0].mxu0
    %v6924 = vadd.f32 %v6811, %v6923
    %v6925 = vpop.f32.mrb[0].mxu0
    %v6926 = vadd.f32 %v6813, %v6925
    %v6927 = vpop.f32.mrb[0].mxu0
    %v6928 = vadd.f32 %v6815, %v6927
    %v6929 = vpop.f32.mrb[0].mxu0
    %v6930 = vadd.f32 %v6817, %v6929
    %6931 = vmatprep.mubr.bf16.mxu0 %v5933
    %6932 = vmatmul.mubr.bf16.gmra.mrb[0].mxu0 %v5932
    %v6933 = vpop.f32.mrb[0].mxu0
    %v6934 = vadd.f32 %v6821, %v6933
    %v6935 = vpop.f32.mrb[0].mxu0
    %v6936 = vadd.f32 %v6823, %v6935
    %v6937 = vpop.f32.mrb[0].mxu0
    %v6938 = vadd.f32 %v6825, %v6937
    %v6939 = vpop.f32.mrb[0].mxu0
    %v6940 = vadd.f32 %v6827, %v6939
    %6941 = vmatprep.mubr.bf16.mxu0 %v5941
    %6942 = vmatmul.mubr.bf16.gmra.mrb[0].mxu0 %v5940
    %v6943 = vpop.f32.mrb[0].mxu0
    %v6944 = vadd.f32 %v6831, %v6943
    %v6945 = vpop.f32.mrb[0].mxu0
    %v6946 = vadd.f32 %v6833, %v6945
    %v6947 = vpop.f32.mrb[0].mxu0
    %v6948 = vadd.f32 %v6835, %v6947
    %v6949 = vpop.f32.mrb[0].mxu0
    %v6950 = vadd.f32 %v6837, %v6949
    %6951 = vdwg.mxu0
    %6952 = vmatprep.subr.bf16.mxu0 %v6535
    %6953 = vmatpush1.bf16.msra.mxu0 %v6534
    %6954 = vmatprep.subr.bf16.mxu0 %v6537
    %6955 = vmatpush1.bf16.msra.mxu0 %v6536
    %6956 = vmatprep.subr.bf16.mxu0 %v6539
    %6957 = vmatpush1.bf16.msra.mxu0 %v6538
    %6958 = vmatprep.subr.bf16.mxu0 %v6541
    %6959 = vmatpush1.bf16.msra.mxu0 %v6540
    %6960 = vmatprep.subr.bf16.mxu0 %v6543
    %6961 = vmatpush1.bf16.msra.mxu0 %v6542
    %6962 = vmatprep.subr.bf16.mxu0 %v6545
    %6963 = vmatpush1.bf16.msra.mxu0 %v6544
    %6964 = vmatprep.subr.bf16.mxu0 %v6547
    %6965 = vmatpush1.bf16.msra.mxu0 %v6546
    %6966 = vmatprep.subr.bf16.mxu0 %v6549
    %6967 = vmatpush1.bf16.msra.mxu0 %v6548
    %6968 = vmatprep.subr.bf16.mxu0 %v6551
    %6969 = vmatpush1.bf16.msra.mxu0 %v6550
    %6970 = vmatprep.subr.bf16.mxu0 %v6553
    %6971 = vmatpush1.bf16.msra.mxu0 %v6552
    %6972 = vmatprep.subr.bf16.mxu0 %v6555
    %6973 = vmatpush1.bf16.msra.mxu0 %v6554
    %6974 = vmatprep.subr.bf16.mxu0 %v6557
    %6975 = vmatpush1.bf16.msra.mxu0 %v6556
    %6976 = vmatprep.subr.bf16.mxu0 %v6559
    %6977 = vmatpush1.bf16.msra.mxu0 %v6558
    %6978 = vmatprep.subr.bf16.mxu0 %v6561
    %6979 = vmatpush1.bf16.msra.mxu0 %v6560
    %6980 = vmatprep.subr.bf16.mxu0 %v6563
    %6981 = vmatpush1.bf16.msra.mxu0 %v6562
    %6982 = vmatprep.subr.bf16.mxu0 %v6565
    %6983 = vmatpush1.bf16.msra.mxu0 %v6564
    %6984 = vmatprep.mubr.bf16.mxu0 %v5887
    %6985 = vmatmul.mubr.bf16.gmra.mrb[0].mxu0 %v5886
    %v6986 = vpop.f32.mrb[0].mxu0
    %v6987 = vadd.f32 %v6874, %v6986
    %v6988 = vpop.f32.mrb[0].mxu0
    %v6989 = vadd.f32 %v6876, %v6988
    %v6990 = vpop.f32.mrb[0].mxu0
    %v6991 = vadd.f32 %v6878, %v6990
    %v6992 = vpop.f32.mrb[0].mxu0
    %v6993 = vadd.f32 %v6880, %v6992
    %6994 = vmatprep.mubr.bf16.mxu0 %v5895
    %6995 = vmatmul.mubr.bf16.gmra.mrb[0].mxu0 %v5894
    %v6996 = vpop.f32.mrb[0].mxu0
    %v6997 = vadd.f32 %v6884, %v6996
    %v6998 = vpop.f32.mrb[0].mxu0
    %v6999 = vadd.f32 %v6886, %v6998
    %v7000 = vpop.f32.mrb[0].mxu0
    %v7001 = vadd.f32 %v6888, %v7000
    %v7002 = vpop.f32.mrb[0].mxu0
    %v7003 = vadd.f32 %v6890, %v7002
    %7004 = vmatprep.mubr.bf16.mxu0 %v5903
    %7005 = vmatmul.mubr.bf16.gmra.mrb[0].mxu0 %v5902
    %v7006 = vpop.f32.mrb[0].mxu0
    %v7007 = vadd.f32 %v6894, %v7006
    %v7008 = vpop.f32.mrb[0].mxu0
    %v7009 = vadd.f32 %v6896, %v7008
    %v7010 = vpop.f32.mrb[0].mxu0
    %v7011 = vadd.f32 %v6898, %v7010
    %v7012 = vpop.f32.mrb[0].mxu0
    %v7013 = vadd.f32 %v6900, %v7012
    %7014 = vmatprep.mubr.bf16.mxu0 %v5911
    %7015 = vmatmul.mubr.bf16.gmra.mrb[0].mxu0 %v5910
    %v7016 = vpop.f32.mrb[0].mxu0
    %v7017 = vadd.f32 %v6904, %v7016
    %v7018 = vpop.f32.mrb[0].mxu0
    %v7019 = vadd.f32 %v6906, %v7018
    %v7020 = vpop.f32.mrb[0].mxu0
    %v7021 = vadd.f32 %v6908, %v7020
    %v7022 = vpop.f32.mrb[0].mxu0
    %v7023 = vadd.f32 %v6910, %v7022
    %7024 = vmatprep.mubr.bf16.mxu0 %v5919
    %7025 = vmatmul.mubr.bf16.gmra.mrb[0].mxu0 %v5918
    %v7026 = vpop.f32.mrb[0].mxu0
    %v7027 = vadd.f32 %v6914, %v7026
    %v7028 = vpop.f32.mrb[0].mxu0
    %v7029 = vadd.f32 %v6916, %v7028
    %v7030 = vpop.f32.mrb[0].mxu0
    %v7031 = vadd.f32 %v6918, %v7030
    %v7032 = vpop.f32.mrb[0].mxu0
    %v7033 = vadd.f32 %v6920, %v7032
    %7034 = vmatprep.mubr.bf16.mxu0 %v5927
    %7035 = vmatmul.mubr.bf16.gmra.mrb[0].mxu0 %v5926
    %v7036 = vpop.f32.mrb[0].mxu0
    %v7037 = vadd.f32 %v6924, %v7036
    %v7038 = vpop.f32.mrb[0].mxu0
    %v7039 = vadd.f32 %v6926, %v7038
    %v7040 = vpop.f32.mrb[0].mxu0
    %v7041 = vadd.f32 %v6928, %v7040
    %v7042 = vpop.f32.mrb[0].mxu0
    %v7043 = vadd.f32 %v6930, %v7042
    %7044 = vmatprep.mubr.bf16.mxu0 %v5935
    %7045 = vmatmul.mubr.bf16.gmra.mrb[0].mxu0 %v5934
    %v7046 = vpop.f32.mrb[0].mxu0
    %v7047 = vadd.f32 %v6934, %v7046
    %v7048 = vpop.f32.mrb[0].mxu0
    %v7049 = vadd.f32 %v6936, %v7048
    %v7050 = vpop.f32.mrb[0].mxu0
    %v7051 = vadd.f32 %v6938, %v7050
    %v7052 = vpop.f32.mrb[0].mxu0
    %v7053 = vadd.f32 %v6940, %v7052
    %7054 = vmatprep.mubr.bf16.mxu0 %v5943
    %7055 = vmatmul.mubr.bf16.gmra.mrb[0].mxu0 %v5942
    %v7056 = vpop.f32.mrb[0].mxu0
    %v7057 = vadd.f32 %v6944, %v7056
    %v7058 = vpop.f32.mrb[0].mxu0
    %v7059 = vadd.f32 %v6946, %v7058
    %v7060 = vpop.f32.mrb[0].mxu0
    %v7061 = vadd.f32 %v6948, %v7060
    %v7062 = vpop.f32.mrb[0].mxu0
    %v7063 = vadd.f32 %v6950, %v7062
    %7064 = vdwg.mxu0
    %7065 = vmatprep.subr.bf16.mxu0 %v6567
    %7066 = vmatpush1.bf16.msra.mxu0 %v6566
    %7067 = vmatprep.subr.bf16.mxu0 %v6569
    %7068 = vmatpush1.bf16.msra.mxu0 %v6568
    %7069 = vmatprep.subr.bf16.mxu0 %v6571
    %7070 = vmatpush1.bf16.msra.mxu0 %v6570
    %7071 = vmatprep.subr.bf16.mxu0 %v6573
    %7072 = vmatpush1.bf16.msra.mxu0 %v6572
    %7073 = vmatprep.subr.bf16.mxu0 %v6575
    %7074 = vmatpush1.bf16.msra.mxu0 %v6574
    %7075 = vmatprep.subr.bf16.mxu0 %v6577
    %7076 = vmatpush1.bf16.msra.mxu0 %v6576
    %7077 = vmatprep.subr.bf16.mxu0 %v6579
    %7078 = vmatpush1.bf16.msra.mxu0 %v6578
    %7079 = vmatprep.subr.bf16.mxu0 %v6581
    %7080 = vmatpush1.bf16.msra.mxu0 %v6580
    %7081 = vmatprep.subr.bf16.mxu0 %v6583
    %7082 = vmatpush1.bf16.msra.mxu0 %v6582
    %7083 = vmatprep.subr.bf16.mxu0 %v6585
    %7084 = vmatpush1.bf16.msra.mxu0 %v6584
    %7085 = vmatprep.subr.bf16.mxu0 %v6587
    %7086 = vmatpush1.bf16.msra.mxu0 %v6586
    %7087 = vmatprep.subr.bf16.mxu0 %v6589
    %7088 = vmatpush1.bf16.msra.mxu0 %v6588
    %7089 = vmatprep.subr.bf16.mxu0 %v6591
    %7090 = vmatpush1.bf16.msra.mxu0 %v6590
    %7091 = vmatprep.subr.bf16.mxu0 %v6593
    %7092 = vmatpush1.bf16.msra.mxu0 %v6592
    %7093 = vmatprep.subr.bf16.mxu0 %v6595
    %7094 = vmatpush1.bf16.msra.mxu0 %v6594
    %7095 = vmatprep.subr.bf16.mxu0 %v6597
    %7096 = vmatpush1.bf16.msra.mxu0 %v6596
    %7097 = vmatprep.mubr.bf16.mxu0 %v5889
    %7098 = vmatmul.mubr.bf16.gmra.mrb[0].mxu0 %v5888
    %v7099 = vpop.f32.mrb[0].mxu0
    %v7100 = vadd.f32 %v6987, %v7099
    %v7101 = vpop.f32.mrb[0].mxu0
    %v7102 = vadd.f32 %v6989, %v7101
    %v7103 = vpop.f32.mrb[0].mxu0
    %v7104 = vadd.f32 %v6991, %v7103
    %v7105 = vpop.f32.mrb[0].mxu0
    %v7106 = vadd.f32 %v6993, %v7105
    %7107 = vmatprep.mubr.bf16.mxu0 %v5897
    %7108 = vmatmul.mubr.bf16.gmra.mrb[0].mxu0 %v5896
    %v7109 = vpop.f32.mrb[0].mxu0
    %v7110 = vadd.f32 %v6997, %v7109
    %v7111 = vpop.f32.mrb[0].mxu0
    %v7112 = vadd.f32 %v6999, %v7111
    %v7113 = vpop.f32.mrb[0].mxu0
    %v7114 = vadd.f32 %v7001, %v7113
    %v7115 = vpop.f32.mrb[0].mxu0
    %v7116 = vadd.f32 %v7003, %v7115
    %7117 = vmatprep.mubr.bf16.mxu0 %v5905
    %7118 = vmatmul.mubr.bf16.gmra.mrb[0].mxu0 %v5904
    %v7119 = vpop.f32.mrb[0].mxu0
    %v7120 = vadd.f32 %v7007, %v7119
    %v7121 = vpop.f32.mrb[0].mxu0
    %v7122 = vadd.f32 %v7009, %v7121
    %v7123 = vpop.f32.mrb[0].mxu0
    %v7124 = vadd.f32 %v7011, %v7123
    %v7125 = vpop.f32.mrb[0].mxu0
    %v7126 = vadd.f32 %v7013, %v7125
    %7127 = vmatprep.mubr.bf16.mxu0 %v5913
    %7128 = vmatmul.mubr.bf16.gmra.mrb[0].mxu0 %v5912
    %v7129 = vpop.f32.mrb[0].mxu0
    %v7130 = vadd.f32 %v7017, %v7129
    %v7131 = vpop.f32.mrb[0].mxu0
    %v7132 = vadd.f32 %v7019, %v7131
    %v7133 = vpop.f32.mrb[0].mxu0
    %v7134 = vadd.f32 %v7021, %v7133
    %v7135 = vpop.f32.mrb[0].mxu0
    %v7136 = vadd.f32 %v7023, %v7135
    %7137 = vmatprep.mubr.bf16.mxu0 %v5921
    %7138 = vmatmul.mubr.bf16.gmra.mrb[0].mxu0 %v5920
    %v7139 = vpop.f32.mrb[0].mxu0
    %v7140 = vadd.f32 %v7027, %v7139
    %v7141 = vpop.f32.mrb[0].mxu0
    %v7142 = vadd.f32 %v7029, %v7141
    %v7143 = vpop.f32.mrb[0].mxu0
    %v7144 = vadd.f32 %v7031, %v7143
    %v7145 = vpop.f32.mrb[0].mxu0
    %v7146 = vadd.f32 %v7033, %v7145
    %7147 = vmatprep.mubr.bf16.mxu0 %v5929
    %7148 = vmatmul.mubr.bf16.gmra.mrb[0].mxu0 %v5928
    %v7149 = vpop.f32.mrb[0].mxu0
    %v7150 = vadd.f32 %v7037, %v7149
    %v7151 = vpop.f32.mrb[0].mxu0
    %v7152 = vadd.f32 %v7039, %v7151
    %v7153 = vpop.f32.mrb[0].mxu0
    %v7154 = vadd.f32 %v7041, %v7153
    %v7155 = vpop.f32.mrb[0].mxu0
    %v7156 = vadd.f32 %v7043, %v7155
    %7157 = vmatprep.mubr.bf16.mxu0 %v5937
    %7158 = vmatmul.mubr.bf16.gmra.mrb[0].mxu0 %v5936
    %v7159 = vpop.f32.mrb[0].mxu0
    %v7160 = vadd.f32 %v7047, %v7159
    %v7161 = vpop.f32.mrb[0].mxu0
    %v7162 = vadd.f32 %v7049, %v7161
    %v7163 = vpop.f32.mrb[0].mxu0
    %v7164 = vadd.f32 %v7051, %v7163
    %v7165 = vpop.f32.mrb[0].mxu0
    %v7166 = vadd.f32 %v7053, %v7165
    %7167 = vmatprep.mubr.bf16.mxu0 %v5945
    %7168 = vmatmul.mubr.bf16.gmra.mrb[0].mxu0 %v5944
    %v7169 = vpop.f32.mrb[0].mxu0
    %v7170 = vadd.f32 %v7057, %v7169
    %v7171 = vpop.f32.mrb[0].mxu0
    %v7172 = vadd.f32 %v7059, %v7171
    %v7173 = vpop.f32.mrb[0].mxu0
    %v7174 = vadd.f32 %v7061, %v7173
    %v7175 = vpop.f32.mrb[0].mxu0
    %v7176 = vadd.f32 %v7063, %v7175
    %7177 = vdwg.mxu0
    %v7178 = vadd.f32 %v3028, %v7100
    %v7179 = vadd.f32 %v3029, %v7102
    %v7180 = vadd.f32 %v3030, %v7104
    %v7181 = vadd.f32 %v3031, %v7106
    %v7182 = vadd.f32 %v3032, %v7110
    %v7183 = vadd.f32 %v3033, %v7112
    %v7184 = vadd.f32 %v3034, %v7114
    %v7185 = vadd.f32 %v3035, %v7116
    %v7186 = vadd.f32 %v3036, %v7120
    %v7187 = vadd.f32 %v3037, %v7122
    %v7188 = vadd.f32 %v3038, %v7124
    %v7189 = vadd.f32 %v3039, %v7126
    %v7190 = vadd.f32 %v3040, %v7130
    %v7191 = vadd.f32 %v3041, %v7132
    %v7192 = vadd.f32 %v3042, %v7134
    %v7193 = vadd.f32 %v3043, %v7136
    %v7194 = vadd.f32 %v3044, %v7140
    %v7195 = vadd.f32 %v3045, %v7142
    %v7196 = vadd.f32 %v3046, %v7144
    %v7197 = vadd.f32 %v3047, %v7146
    %v7198 = vadd.f32 %v3048, %v7150
    %v7199 = vadd.f32 %v3049, %v7152
    %v7200 = vadd.f32 %v3050, %v7154
    %v7201 = vadd.f32 %v3051, %v7156
    %v7202 = vadd.f32 %v3052, %v7160
    %v7203 = vadd.f32 %v3053, %v7162
    %v7204 = vadd.f32 %v3054, %v7164
    %v7205 = vadd.f32 %v3055, %v7166
    %v7206 = vadd.f32 %v3056, %v7170
    %v7207 = vadd.f32 %v3057, %v7172
    %v7208 = vadd.f32 %v3058, %v7174
    %v7209 = vadd.f32 %v3059, %v7176
    %7210 = vst [vmem:[#allocation11] sm:$0xff] %v7178
    %7211 = vst [vmem:[#allocation11 + $0x8] sm:$0xff] %v7179
    %7212 = vst [vmem:[#allocation11 + $0x10] sm:$0xff] %v7180
    %7213 = vst [vmem:[#allocation11 + $0x18] sm:$0xff] %v7181
    %7214 = vst [vmem:[#allocation11 + $0x20] sm:$0xff] %v7182
    %7215 = vst [vmem:[#allocation11 + $0x28] sm:$0xff] %v7183
    %7216 = vst [vmem:[#allocation11 + $0x30] sm:$0xff] %v7184
    %7217 = vst [vmem:[#allocation11 + $0x38] sm:$0xff] %v7185
    %7218 = vst [vmem:[#allocation11 + $0x40] sm:$0xff] %v7186
    %7219 = vst [vmem:[#allocation11 + $0x48] sm:$0xff] %v7187
    %7220 = vst [vmem:[#allocation11 + $0x50] sm:$0xff] %v7188
    %7221 = vst [vmem:[#allocation11 + $0x58] sm:$0xff] %v7189
    %7222 = vst [vmem:[#allocation11 + $0x60] sm:$0xff] %v7190
    %7223 = vst [vmem:[#allocation11 + $0x68] sm:$0xff] %v7191
    %7224 = vst [vmem:[#allocation11 + $0x70] sm:$0xff] %v7192
    %7225 = vst [vmem:[#allocation11 + $0x78] sm:$0xff] %v7193
    %7226 = vst [vmem:[#allocation11 + $0x80] sm:$0xff] %v7194
    %7227 = vst [vmem:[#allocation11 + $0x88] sm:$0xff] %v7195
    %7228 = vst [vmem:[#allocation11 + $0x90] sm:$0xff] %v7196
    %7229 = vst [vmem:[#allocation11 + $0x98] sm:$0xff] %v7197
    %7230 = vst [vmem:[#allocation11 + $0xa0] sm:$0xff] %v7198
    %7231 = vst [vmem:[#allocation11 + $0xa8] sm:$0xff] %v7199
    %7232 = vst [vmem:[#allocation11 + $0xb0] sm:$0xff] %v7200
    %7233 = vst [vmem:[#allocation11 + $0xb8] sm:$0xff] %v7201
    %7234 = vst [vmem:[#allocation11 + $0xc0] sm:$0xff] %v7202
    %7235 = vst [vmem:[#allocation11 + $0xc8] sm:$0xff] %v7203
    %7236 = vst [vmem:[#allocation11 + $0xd0] sm:$0xff] %v7204
    %7237 = vst [vmem:[#allocation11 + $0xd8] sm:$0xff] %v7205
    %7238 = vst [vmem:[#allocation11 + $0xe0] sm:$0xff] %v7206
    %7239 = vst [vmem:[#allocation11 + $0xe8] sm:$0xff] %v7207
    %7240 = vst [vmem:[#allocation11 + $0xf0] sm:$0xff] %v7208
    %7241 = vst [vmem:[#allocation11 + $0xf8] sm:$0xff] %v7209
    // Predicated region
    $region70: #{tpu_custom_call.1} parent=1 // pred_check
      _
    $region71: #{tpu_custom_call.1} parent=1 // pred_check_branch
      %7243 = sbr.rel (0) target = $region73
    $region72: #{tpu_custom_call.1} parent=1 // pred_region
      %s7245 = ssub.s32 4096, 4096
      %7246 = vsyncadd [#allocation4], %s7245
      %s7247 = sshll.u32 [#allocation11], 4
      %s7248 = int_to_ptr.vmem [resolvable:$true] %s7247
      %7253 = dma.vmem_to_hbm [thread:$0]  %s7248, 4096, %s12, [#allocation4], 256, 256, 16
    $region73: #{tpu_custom_call.1} parent=1 // pred_fallthru
      _
    // Predicated region
    $region74: #{tpu_custom_call.1} parent=1 // pred_check
      _
    $region75: #{tpu_custom_call.1} parent=1 // pred_check_branch
      %7255 = sbr.rel (0) target = $region77
    $region76: #{tpu_custom_call.1} parent=1 // pred_region
      %7256 = dma.done [#allocation4], 4096
    $region77: #{tpu_custom_call.1} parent=1 // pred_fallthru
      _
    %7257 = vsyncpa [#allocation3], 1
    %7258 = vsyncpa [#allocation6], 1
    %7259 = vsyncpa [#allocation9], 1
    %7260 = vsyncpa [#allocation4], 1

</llo_original>
